<compile_context>
chip_gen: v6e
topology: v6e:2x2x1
jax: 0.10.0
libtpu: 0.0.40
codegen_flags: <defaults>
</compile_context>

<pallas_src>
import functools

import jax
import jax.numpy as jnp
from jax.experimental import pallas as pl
from jax.experimental.pallas import tpu as pltpu

NPAD = 128  # lane-dense padded output width for the fused head kernels


# ----------------------------------------------------------------------------
# Pallas kernels
# ----------------------------------------------------------------------------

def _backbone_pool_kernel(p_ref, w_ref, b_ref, pm_ref, o_ref):
    """im2col 3x3 conv + bias + ReLU, then fused /16 avg-pool via matmul."""
    conv = jnp.dot(p_ref[...], w_ref[...],
                   preferred_element_type=jnp.float32)          # (L, Cout)
    conv = jnp.maximum(conv + b_ref[...], 0.0)
    # Average pool expressed as a constant (P, L) matmul: one MXU op, no
    # reshapes / cross-sublane reductions, output is tiny (Hf*Wf, Cout).
    pooled = jnp.dot(pm_ref[...], conv.astype(jnp.bfloat16),
                     preferred_element_type=jnp.float32)         # (P, Cout)
    o_ref[...] = pooled


def backbone_pool_pallas(patches_bf16, w_bf16, bias_row, pool_mat_bf16):
    """patches: (B, L, 9*Cin) bf16, w: (9*Cin, Cout) bf16, pool: (P, L) bf16."""
    B, L, K9 = patches_bf16.shape
    Cout = w_bf16.shape[-1]
    P = pool_mat_bf16.shape[0]
    return pl.pallas_call(
        _backbone_pool_kernel,
        out_shape=jax.ShapeDtypeStruct((B, P, Cout), jnp.float32),
        grid=(B,),
        in_specs=[
            pl.BlockSpec((None, L, K9), lambda b: (b, 0, 0)),
            pl.BlockSpec((K9, Cout), lambda b: (0, 0)),
            pl.BlockSpec((1, Cout), lambda b: (0, 0)),
            pl.BlockSpec((P, L), lambda b: (0, 0)),
        ],
        out_specs=pl.BlockSpec((None, P, Cout), lambda b: (b, 0, 0)),
        compiler_params=pltpu.CompilerParams(
            dimension_semantics=("parallel",)),
        cost_estimate=pl.CostEstimate(
            flops=2 * B * L * Cout * (K9 + P),
            transcendentals=0,
            bytes_accessed=(2 * B * L * K9 + 2 * P * L + 2 * K9 * Cout
                            + 4 * B * P * Cout)),
    )(patches_bf16, w_bf16, bias_row, pool_mat_bf16)


def _rpn_kernel(x_ref, wc_ref, bc_ref, wh_ref, bh_ref, o_ref):
    """Fused RPN: im2col 3x3 conv + ReLU + packed cls/bbox 1x1 heads."""
    h = jnp.dot(x_ref[...], wc_ref[...],
                preferred_element_type=jnp.float32)              # (M, Cmid)
    h = jnp.maximum(h + bc_ref[...], 0.0)
    y = jnp.dot(h.astype(jnp.bfloat16), wh_ref[...],
                preferred_element_type=jnp.float32) + bh_ref[...]  # (M, 128)
    o_ref[...] = y.astype(o_ref.dtype)


def rpn_pallas(patches_bf16, wc_bf16, bc_row, wh_bf16, bh_row):
    """Single invocation for the whole batch (per-step overhead dominated)."""
    M, K9 = patches_bf16.shape
    Cmid = wc_bf16.shape[-1]
    Np = wh_bf16.shape[-1]
    return pl.pallas_call(
        _rpn_kernel,
        out_shape=jax.ShapeDtypeStruct((M, Np), jnp.bfloat16),
        grid=(1,),
        in_specs=[
            pl.BlockSpec((M, K9), lambda i: (0, 0)),
            pl.BlockSpec((K9, Cmid), lambda i: (0, 0)),
            pl.BlockSpec((1, Cmid), lambda i: (0, 0)),
            pl.BlockSpec((Cmid, Np), lambda i: (0, 0)),
            pl.BlockSpec((1, Np), lambda i: (0, 0)),
        ],
        out_specs=pl.BlockSpec((M, Np), lambda i: (0, 0)),
        compiler_params=pltpu.CompilerParams(
            dimension_semantics=("arbitrary",)),
    )(patches_bf16, wc_bf16, bc_row, wh_bf16, bh_row)


def _head_kernel(x_ref, w6_ref, b6_ref, w7_ref, b7_ref, wh_ref, bh_ref, o_ref,
                 *, cls_start, cls_end):
    """fc6 -> fc7 -> packed {coral, bbox, cls(+masked softmax)}."""
    h6 = jnp.dot(x_ref[...], w6_ref[...],
                 preferred_element_type=jnp.float32) + b6_ref[...]
    h6 = jnp.maximum(h6, 0.0)
    h7 = jnp.dot(h6.astype(jnp.bfloat16), w7_ref[...],
                 preferred_element_type=jnp.float32) + b7_ref[...]
    h7 = jnp.maximum(h7, 0.0)
    y = jnp.dot(h7.astype(jnp.bfloat16), wh_ref[...],
                preferred_element_type=jnp.float32) + bh_ref[...]   # (tm, 128)

    col = jax.lax.broadcasted_iota(jnp.int32, y.shape, 1)
    is_cls = jnp.logical_and(col >= cls_start, col < cls_end)
    masked = jnp.where(is_cls, y, -1e30)
    m = jnp.max(masked, axis=-1, keepdims=True)
    e = jnp.exp(jnp.where(is_cls, y - m, -1e30))
    denom = jnp.sum(e, axis=-1, keepdims=True)
    # approx reciprocal on the EUP -> ~1e-3 relative deviation, OK for eval.
    probs = e * pl.reciprocal(denom, approx=True)
    o_ref[...] = jnp.where(is_cls, probs, y).astype(o_ref.dtype)


def head_pallas(x_bf16, w6, b6, w7, b7, wh, bh, *, cls_start, cls_end, tm=None):
    M, K = x_bf16.shape
    F = w6.shape[1]
    Np = wh.shape[1]
    if tm is None:
        tm = min(M, 256)          # weight blocks are constant-index: not re-DMAed
    Mp = pl.cdiv(M, tm) * tm
    if Mp != M:
        x_bf16 = jnp.pad(x_bf16, ((0, Mp - M), (0, 0)))
    kern = functools.partial(_head_kernel, cls_start=cls_start, cls_end=cls_end)
    out = pl.pallas_call(
        kern,
        out_shape=jax.ShapeDtypeStruct((Mp, Np), jnp.float32),
        grid=(Mp // tm,),
        in_specs=[
            pl.BlockSpec((tm, K), lambda i: (i, 0)),
            pl.BlockSpec((K, F), lambda i: (0, 0)),
            pl.BlockSpec((1, F), lambda i: (0, 0)),
            pl.BlockSpec((F, F), lambda i: (0, 0)),
            pl.BlockSpec((1, F), lambda i: (0, 0)),
            pl.BlockSpec((F, Np), lambda i: (0, 0)),
            pl.BlockSpec((1, Np), lambda i: (0, 0)),
        ],
        out_specs=pl.BlockSpec((tm, Np), lambda i: (i, 0)),
        compiler_params=pltpu.CompilerParams(
            dimension_semantics=("parallel",)),
        cost_estimate=pl.CostEstimate(
            flops=2 * Mp * (K * F + F * F + F * Np),
            transcendentals=Mp * (cls_end - cls_start),
            bytes_accessed=2 * Mp * K + 4 * Mp * Np
                           + 2 * (K * F + F * F + F * Np)),
    )(x_bf16, w6, b6, w7, b7, wh, bh)
    return out[:M]


# ----------------------------------------------------------------------------
# Plain-JAX glue (data movement / box math only; all FLOP-heavy work is in the
# Pallas kernels above).
# ----------------------------------------------------------------------------

def im2col_3x3(x_nhwc):
    """(B, H, W, C) -> (B, H*W, 9*C) patch matrix for a SAME-padded 3x3 conv."""
    B, H, W, C = x_nhwc.shape
    xp = jnp.pad(x_nhwc, ((0, 0), (1, 1), (1, 1), (0, 0)))
    cols = [xp[:, dy:dy + H, dx:dx + W, :]
            for dy in range(3) for dx in range(3)]
    return jnp.concatenate(cols, axis=-1).reshape(B, H * W, 9 * C)


def build_pool_matrix(H, W, stride, dtype=jnp.bfloat16):
    """(Hf*Wf, H*W) matrix so that pool_mat @ x_flat == /stride avg pooling."""
    Hf, Wf = H // stride, W // stride
    k = jnp.arange(H * W)
    h, w = k // W, k % W
    p = (h // stride) * Wf + (w // stride)                    # (H*W,)
    rows = jnp.arange(Hf * Wf)[:, None]                       # (P, 1)
    mat = (rows == p[None, :]).astype(jnp.float32) / float(stride * stride)
    return mat.astype(dtype)


def generate_anchors(Hf, Wf, feat_stride, sizes):
    ys = jnp.arange(Hf, dtype=jnp.float32) * feat_stride + feat_stride / 2.0
    xs = jnp.arange(Wf, dtype=jnp.float32) * feat_stride + feat_stride / 2.0
    cy, cx = jnp.meshgrid(ys, xs, indexing="ij")               # (Hf, Wf)
    cy = cy[..., None]
    cx = cx[..., None]
    s = jnp.asarray(sizes, dtype=jnp.float32)[None, None, :]   # (1, 1, A)
    anchors = jnp.stack([cx - s / 2.0, cy - s / 2.0,
                         cx + s / 2.0, cy + s / 2.0], axis=-1)  # (Hf, Wf, A, 4)
    return anchors.reshape(-1, 4)


def decode_boxes(anchors, deltas):
    w = anchors[:, 2] - anchors[:, 0] + 1.0
    h = anchors[:, 3] - anchors[:, 1] + 1.0
    cx = anchors[:, 0] + 0.5 * w
    cy = anchors[:, 1] + 0.5 * h
    dx, dy, dw, dh = deltas[..., 0], deltas[..., 1], deltas[..., 2], deltas[..., 3]
    pcx = dx * w + cx
    pcy = dy * h + cy
    pw = jnp.exp(dw) * w
    ph = jnp.exp(dh) * h
    return jnp.stack(
        [pcx - 0.5 * pw, pcy - 0.5 * ph, pcx + 0.5 * pw, pcy + 0.5 * ph], axis=-1)


def proposal_layer(rpn_cls, rpn_bbox, im_info, anchors, A, num_rois):
    # rpn_cls channels are [bg_0..bg_{A-1}, fg_0..fg_{A-1}] (matches the
    # PyTorch view(B, 2, A*H, W) grouping); rpn_bbox is per-anchor (dx,dy,dw,dh).
    B, Hf, Wf, _ = rpn_cls.shape
    logits = rpn_cls.reshape(B, Hf, Wf, 2, A)
    fg = jax.nn.softmax(logits, axis=3)[:, :, :, 1, :]          # (B, Hf, Wf, A)
    scores = fg.reshape(B, Hf * Wf * A)
    deltas = rpn_bbox.reshape(B, Hf * Wf * A, 4)
    props = decode_boxes(anchors, deltas)                        # (B, K, 4)
    im_h = im_info[:, 0][:, None]
    im_w = im_info[:, 1][:, None]
    x1 = jnp.clip(props[..., 0], 0.0, im_w - 1.0)
    y1 = jnp.clip(props[..., 1], 0.0, im_h - 1.0)
    x2 = jnp.clip(props[..., 2], 0.0, im_w - 1.0)
    y2 = jnp.clip(props[..., 3], 0.0, im_h - 1.0)
    props = jnp.stack([x1, y1, x2, y2], axis=-1)
    # TODO(synk): true NMS has no clean Pallas equivalent here; replaced with
    # per-image top-k by foreground score.
    _, top_idx = jax.lax.top_k(scores, num_rois)                 # (B, R)
    props = jnp.take_along_axis(props, top_idx[..., None], axis=1)
    batch_idx = jnp.broadcast_to(
        jnp.arange(B, dtype=jnp.float32)[:, None, None], (B, num_rois, 1))
    return jnp.concatenate([batch_idx, props], axis=-1)          # (B, R, 5)


def roi_align(feat_nhwc, rois_flat, out_size, spatial_scale):
    # TODO(synk): data-dependent bilinear gather (single centre sample per bin)
    # kept in plain JAX; a Pallas version needs a scalar-prefetch manual-DMA
    # gather which is not worth it at these tiny shapes.
    B, Hf, Wf, C = feat_nhwc.shape
    N = rois_flat.shape[0]
    P = out_size
    b_idx = rois_flat[:, 0].astype(jnp.int32)
    x1 = rois_flat[:, 1] * spatial_scale
    y1 = rois_flat[:, 2] * spatial_scale
    x2 = rois_flat[:, 3] * spatial_scale
    y2 = rois_flat[:, 4] * spatial_scale
    roi_w = jnp.maximum(x2 - x1, 1.0)
    roi_h = jnp.maximum(y2 - y1, 1.0)
    centers = jnp.arange(P, dtype=jnp.float32) + 0.5
    ys = y1[:, None] + centers[None, :] * (roi_h / P)[:, None]   # (N, P)
    xs = x1[:, None] + centers[None, :] * (roi_w / P)[:, None]   # (N, P)
    y = jnp.broadcast_to(ys[:, :, None], (N, P, P))
    x = jnp.broadcast_to(xs[:, None, :], (N, P, P))
    y0f = jnp.floor(y)
    x0f = jnp.floor(x)
    y0 = jnp.clip(y0f.astype(jnp.int32), 0, Hf - 1)
    x0 = jnp.clip(x0f.astype(jnp.int32), 0, Wf - 1)
    y1i = jnp.clip(y0 + 1, 0, Hf - 1)
    x1i = jnp.clip(x0 + 1, 0, Wf - 1)
    wy = (y - y0f)[..., None]
    wx = (x - x0f)[..., None]
    bb = b_idx[:, None, None]
    f00 = feat_nhwc[bb, y0, x0]
    f01 = feat_nhwc[bb, y0, x1i]
    f10 = feat_nhwc[bb, y1i, x0]
    f11 = feat_nhwc[bb, y1i, x1i]
    return ((1 - wy) * (1 - wx) * f00 + (1 - wy) * wx * f01
            + wy * (1 - wx) * f10 + wy * wx * f11)               # (N, P, P, C)


# ----------------------------------------------------------------------------
# Parameters (deterministic, mirrors _init_weights std-devs).
# ----------------------------------------------------------------------------

def init_params(key, *, c_in, c_base, num_anchors, pool, fc_dim, coral_dim,
                n_classes, class_agnostic):
    keys = jax.random.split(key, 10)

    def normal(k, shape, std):
        return std * jax.random.normal(k, shape, jnp.float32)

    p = {}
    # synthetic RCNN_base: one 3x3 conv, weight stored (9, Cin, Cout)
    p["base_w"] = normal(keys[0], (9, c_in, c_base), 0.01)
    p["base_b"] = jnp.zeros((c_base,), jnp.float32)
    # RPN (normal_init std=0.01)
    p["rpn_conv_w"] = normal(keys[1], (9, c_base, c_base), 0.01)
    p["rpn_conv_b"] = jnp.zeros((c_base,), jnp.float32)
    p["rpn_cls_w"] = normal(keys[2], (c_base, 2 * num_anchors), 0.01)
    p["rpn_cls_b"] = jnp.zeros((2 * num_anchors,), jnp.float32)
    p["rpn_bbox_w"] = normal(keys[3], (c_base, 4 * num_anchors), 0.01)
    p["rpn_bbox_b"] = jnp.zeros((4 * num_anchors,), jnp.float32)
    # _head_to_tail (fc6 / fc7)
    p["fc6_w"] = normal(keys[4], (pool * pool * c_base, fc_dim), 0.01)
    p["fc6_b"] = jnp.zeros((fc_dim,), jnp.float32)
    p["fc7_w"] = normal(keys[5], (fc_dim, fc_dim), 0.01)
    p["fc7_b"] = jnp.zeros((fc_dim,), jnp.float32)
    # CoralFCLayer (std=0.005)
    p["coral_fc_w"] = normal(keys[6], (fc_dim, coral_dim), 0.005)
    p["coral_fc_b"] = jnp.zeros((coral_dim,), jnp.float32)
    # RCNN_cls_score (std=0.01), RCNN_bbox_pred (std=0.001)
    p["cls_w"] = normal(keys[7], (fc_dim, n_classes), 0.01)
    p["cls_b"] = jnp.zeros((n_classes,), jnp.float32)
    bbox_out = 4 if class_agnostic else 4 * n_classes
    p["bbox_w"] = normal(keys[8], (fc_dim, bbox_out), 0.001)
    p["bbox_b"] = jnp.zeros((bbox_out,), jnp.float32)
    return p


# ----------------------------------------------------------------------------
# Forward pass (eval mode, fc=True, cv=False, target=False).
# ----------------------------------------------------------------------------

def faster_rcnn_forward(params, im_data_nchw, im_info, gt_boxes, num_boxes,
                        *, num_anchors=3, anchor_sizes=(16.0, 32.0, 48.0),
                        feat_stride=16, pool=4, num_rois=8, n_classes=4,
                        coral_dim=32):
    del gt_boxes, num_boxes  # eval mode: only consumed by RPN/RCNN losses
    A = num_anchors
    x = jnp.transpose(im_data_nchw, (0, 2, 3, 1))                # NCHW -> NHWC
    B, H, W, Cin = x.shape
    Hf, Wf = H // feat_stride, W // feat_stride

    # ---- RCNN_base (synthetic backbone): im2col 3x3 conv + ReLU with the /16
    #      average pool fused into the kernel (output is base_feat directly).
    patches = im2col_3x3(x.astype(jnp.bfloat16))                 # (B, H*W, 27)
    pool_mat = build_pool_matrix(H, W, feat_stride)              # (Hf*Wf, H*W)
    w_base = params["base_w"].reshape(9 * Cin, -1).astype(jnp.bfloat16)
    base = backbone_pool_pallas(patches, w_base,
                                params["base_b"].reshape(1, -1), pool_mat)
    Cb = base.shape[-1]
    base_feat = base.reshape(B, Hf, Wf, Cb)                      # (B,Hf,Wf,Cb) f32

    # ---- RPN: whole batch in one fused kernel (conv3x3 + ReLU + cls/bbox
    #      heads), lane-dense 128-wide bf16 output.
    rpn_patches = im2col_3x3(base_feat.astype(jnp.bfloat16)
                             ).reshape(B * Hf * Wf, 9 * Cb)       # (B*Hf*Wf, 288)
    wc_rpn = params["rpn_conv_w"].reshape(9 * Cb, Cb).astype(jnp.bfloat16)
    wh_rpn = jnp.concatenate(
        [params["rpn_cls_w"], params["rpn_bbox_w"],
         jnp.zeros((Cb, NPAD - 6 * A), jnp.float32)], axis=1)
    bh_rpn = jnp.concatenate(
        [params["rpn_cls_b"], params["rpn_bbox_b"],
         jnp.zeros((NPAD - 6 * A,), jnp.float32)]).reshape(1, NPAD)
    rpn_out = rpn_pallas(rpn_patches, wc_rpn,
                         params["rpn_conv_b"].reshape(1, -1),
                         wh_rpn.astype(jnp.bfloat16), bh_rpn)     # (B*Hf*Wf, 128)
    rpn_map = rpn_out.reshape(B, Hf, Wf, NPAD)
    rpn_cls = rpn_map[..., :2 * A].astype(jnp.float32)
    rpn_bbox = rpn_map[..., 2 * A:6 * A].astype(jnp.float32)

    anchors = generate_anchors(Hf, Wf, feat_stride, anchor_sizes)
    rois = proposal_layer(rpn_cls, rpn_bbox, im_info, anchors, A, num_rois)
    rpn_loss_cls = jnp.zeros((), jnp.float32)
    rpn_loss_bbox = jnp.zeros((), jnp.float32)
    rois_label = None

    # ---- ROI Align (cfg.POOLING_MODE == 'align')
    rois_flat = rois.reshape(-1, 5)
    pooled = roi_align(base_feat, rois_flat, pool, 1.0 / feat_stride)
    # NOTE: flattened NHWC (PyTorch flattens NCHW); harmless with synthetic
    # weights, would need a permutation if real fc6 weights were loaded.
    pooled_flat = pooled.reshape(pooled.shape[0], -1).astype(jnp.bfloat16)

    # ---- fused head: fc6 -> fc7 -> {CoralFC, bbox_pred, cls_score+softmax}
    bbox_dim = params["bbox_w"].shape[1]
    coral_end = coral_dim
    bbox_end = coral_end + bbox_dim
    cls_end = bbox_end + n_classes
    wh = jnp.concatenate(
        [params["coral_fc_w"], params["bbox_w"], params["cls_w"],
         jnp.zeros((params["fc7_w"].shape[1], NPAD - cls_end), jnp.float32)],
        axis=1)
    bh = jnp.concatenate(
        [params["coral_fc_b"], params["bbox_b"], params["cls_b"],
         jnp.zeros((NPAD - cls_end,), jnp.float32)]).reshape(1, NPAD)
    head_out = head_pallas(pooled_flat,
                           params["fc6_w"].astype(jnp.bfloat16),
                           params["fc6_b"].reshape(1, -1),
                           params["fc7_w"].astype(jnp.bfloat16),
                           params["fc7_b"].reshape(1, -1),
                           wh.astype(jnp.bfloat16), bh,
                           cls_start=bbox_end, cls_end=cls_end)
    coral_fc_feat = head_out[:, :coral_end]
    bbox_pred = head_out[:, coral_end:bbox_end]
    cls_prob = head_out[:, bbox_end:cls_end]

    RCNN_loss_cls = jnp.zeros((), jnp.float32)
    RCNN_loss_bbox = jnp.zeros((), jnp.float32)
    cls_prob = cls_prob.reshape(B, num_rois, -1)
    bbox_pred = bbox_pred.reshape(B, num_rois, -1)

    # fc=True, cv=False branch of the return
    return (rois, cls_prob, bbox_pred, rpn_loss_cls, rpn_loss_bbox,
            RCNN_loss_cls, RCNN_loss_bbox, rois_label, coral_fc_feat)


# ----------------------------------------------------------------------------

if __name__ == "__main__":
    key = jax.random.PRNGKey(0)
    k_im, k_par = jax.random.split(key)

    B, C_in, H, W = 2, 3, 64, 64
    n_classes = 4            # len(('__background__', 'a', 'b', 'c'))
    class_agnostic = True
    num_anchors = 3
    pool = 4                 # cfg.POOLING_SIZE (small synthetic value)
    fc_dim = 64
    coral_dim = 32
    c_base = 32              # dout_base_model
    num_rois = 8

    im_data = jax.random.normal(k_im, (B, C_in, H, W), jnp.float32)
    im_info = jnp.array([[H, W, 1.0]] * B, jnp.float32)
    gt_boxes = jnp.zeros((B, 5, 5), jnp.float32)
    num_boxes = jnp.zeros((B,), jnp.int32)

    params = init_params(k_par, c_in=C_in, c_base=c_base,
                         num_anchors=num_anchors, pool=pool, fc_dim=fc_dim,
                         coral_dim=coral_dim, n_classes=n_classes,
                         class_agnostic=class_agnostic)

    fwd = jax.jit(functools.partial(
        faster_rcnn_forward, num_anchors=num_anchors, pool=pool,
        num_rois=num_rois, n_classes=n_classes, coral_dim=coral_dim))

    outs = fwd(params, im_data, im_info, gt_boxes, num_boxes)
    (rois, cls_prob, bbox_pred, rpn_lc, rpn_lb, rc_lc, rc_lb,
     rois_label, coral_fc) = outs
    jax.block_until_ready((rois, cls_prob, bbox_pred, coral_fc))

    assert rois.shape == (B, num_rois, 5)
    assert cls_prob.shape == (B, num_rois, n_classes)
    assert bbox_pred.shape == (B, num_rois, 4)
    assert coral_fc.shape == (B * num_rois, coral_dim)
    assert bool(jnp.all(jnp.isfinite(cls_prob)))
    assert bool(jnp.all(jnp.isfinite(coral_fc)))
    print("KERNEL_OK")
</pallas_src>

<mosaic_0001>
module attributes {stable_mosaic.version = 11 : i64} {
  func.func @_backbone_pool_kernel(%arg0: i32, %arg1: memref<1x4096x27xbf16, #tpu.memory_space<vmem>>, %arg2: memref<27x32xbf16, #tpu.memory_space<vmem>>, %arg3: memref<1x32xf32, #tpu.memory_space<vmem>>, %arg4: memref<16x4096xbf16, #tpu.memory_space<vmem>>, %arg5: memref<1x16x32xf32, #tpu.memory_space<vmem>>) attributes {dimension_semantics = [#tpu.dimension_semantics<parallel>], iteration_bounds = array<i64: 2>, scalar_prefetch = 0 : i64, scratch_operands = 0 : i64, tpu.core_type = #tpu.core_type<tc>, window_params = [{transform_indices = @transform_0, window_bounds = array<i64: 1, 4096, 27>}, {pipeline_mode = #tpu.pipeline_mode<synchronous>, transform_indices = @transform_1, window_bounds = array<i64: 27, 32>}, {pipeline_mode = #tpu.pipeline_mode<synchronous>, transform_indices = @transform_2, window_bounds = array<i64: 1, 32>}, {pipeline_mode = #tpu.pipeline_mode<synchronous>, transform_indices = @transform_3, window_bounds = array<i64: 16, 4096>}, {transform_indices = @transform_4, window_bounds = array<i64: 1, 16, 32>}]} {
    %c0 = arith.constant 0 : index
    %c0_0 = arith.constant 0 : index
    %c0_1 = arith.constant 0 : index
    %0 = vector.load %arg1[%c0, %c0_0, %c0_1] : memref<1x4096x27xbf16, #tpu.memory_space<vmem>>, vector<1x4096x27xbf16>
    %1 = vector.shape_cast %0 : vector<1x4096x27xbf16> to vector<4096x27xbf16>
    %c0_2 = arith.constant 0 : index
    %c0_3 = arith.constant 0 : index
    %2 = vector.load %arg2[%c0_2, %c0_3] : memref<27x32xbf16, #tpu.memory_space<vmem>>, vector<27x32xbf16>
    %cst = arith.constant dense<0.000000e+00> : vector<4096x32xf32>
    %3 = tpu.matmul %1, %2, %cst {dimension_numbers = #tpu.dot_dimension_numbers<[1], [0], [0], [1], [0, 0, 1, 1], [], []>} : vector<4096x27xbf16>, vector<27x32xbf16>, vector<4096x32xf32> -> vector<4096x32xf32>
    %c0_4 = arith.constant 0 : index
    %c0_5 = arith.constant 0 : index
    %4 = vector.load %arg3[%c0_4, %c0_5] : memref<1x32xf32, #tpu.memory_space<vmem>>, vector<1x32xf32>
    %5 = vector.broadcast %4 : vector<1x32xf32> to vector<4096x32xf32>
    %6 = arith.addf %3, %5 : vector<4096x32xf32>
    %cst_6 = arith.constant 0.000000e+00 : f32
    %7 = vector.broadcast %cst_6 : f32 to vector<4096x32xf32>
    %8 = arith.maximumf %6, %7 : vector<4096x32xf32>
    %c0_7 = arith.constant 0 : index
    %c0_8 = arith.constant 0 : index
    %9 = vector.load %arg4[%c0_7, %c0_8] : memref<16x4096xbf16, #tpu.memory_space<vmem>>, vector<16x4096xbf16>
    %10 = arith.truncf %8 : vector<4096x32xf32> to vector<4096x32xbf16>
    %cst_9 = arith.constant dense<0.000000e+00> : vector<16x32xf32>
    %11 = tpu.matmul %9, %10, %cst_9 {dimension_numbers = #tpu.dot_dimension_numbers<[1], [0], [0], [1], [0, 0, 1, 1], [], []>} : vector<16x4096xbf16>, vector<4096x32xbf16>, vector<16x32xf32> -> vector<16x32xf32>
    %c0_10 = arith.constant 0 : index
    %c0_11 = arith.constant 0 : index
    %c0_12 = arith.constant 0 : index
    %12 = vector.load %arg5[%c0_10, %c0_11, %c0_12] : memref<1x16x32xf32, #tpu.memory_space<vmem>>, vector<1x16x32xf32>
    %13 = vector.shape_cast %12 : vector<1x16x32xf32> to vector<16x32xf32>
    %14 = vector.shape_cast %11 : vector<16x32xf32> to vector<1x16x32xf32>
    tpu.vector_store %arg5[%c0_10, %c0_11, %c0_12], %14 {strides = array<i32>} : memref<1x16x32xf32, #tpu.memory_space<vmem>>, vector<1x16x32xf32>,
    return
  }
  func.func @transform_0(%arg0: i32) -> (i32, i32, i32) {
    %c0_i32 = arith.constant 0 : i32
    %c0_i32_0 = arith.constant 0 : i32
    %c0_i32_1 = arith.constant 0 : i32
    return %arg0, %c0_i32, %c0_i32_0 : i32, i32, i32
  }
  func.func @transform_1(%arg0: i32) -> (i32, i32) {
    %c0_i32 = arith.constant 0 : i32
    %c0_i32_0 = arith.constant 0 : i32
    %c0_i32_1 = arith.constant 0 : i32
    return %c0_i32, %c0_i32_0 : i32, i32
  }
  func.func @transform_2(%arg0: i32) -> (i32, i32) {
    %c0_i32 = arith.constant 0 : i32
    %c0_i32_0 = arith.constant 0 : i32
    %c0_i32_1 = arith.constant 0 : i32
    return %c0_i32, %c0_i32_0 : i32, i32
  }
  func.func @transform_3(%arg0: i32) -> (i32, i32) {
    %c0_i32 = arith.constant 0 : i32
    %c0_i32_0 = arith.constant 0 : i32
    %c0_i32_1 = arith.constant 0 : i32
    return %c0_i32, %c0_i32_0 : i32, i32
  }
  func.func @transform_4(%arg0: i32) -> (i32, i32, i32) {
    %c0_i32 = arith.constant 0 : i32
    %c0_i32_0 = arith.constant 0 : i32
    %c0_i32_1 = arith.constant 0 : i32
    return %arg0, %c0_i32, %c0_i32_0 : i32, i32, i32
  }
}

module attributes {stable_mosaic.version = 11 : i64} {
  func.func @_rpn_kernel(%arg0: i32, %arg1: memref<32x288xbf16, #tpu.memory_space<vmem>>, %arg2: memref<288x32xbf16, #tpu.memory_space<vmem>>, %arg3: memref<1x32xf32, #tpu.memory_space<vmem>>, %arg4: memref<32x128xbf16, #tpu.memory_space<vmem>>, %arg5: memref<1x128xf32, #tpu.memory_space<vmem>>, %arg6: memref<32x128xbf16, #tpu.memory_space<vmem>>) attributes {dimension_semantics = [#tpu.dimension_semantics<arbitrary>], iteration_bounds = array<i64: 1>, scalar_prefetch = 0 : i64, scratch_operands = 0 : i64, tpu.core_type = #tpu.core_type<tc>, window_params = [{pipeline_mode = #tpu.pipeline_mode<synchronous>, transform_indices = @transform_0, window_bounds = array<i64: 32, 288>}, {pipeline_mode = #tpu.pipeline_mode<synchronous>, transform_indices = @transform_1, window_bounds = array<i64: 288, 32>}, {pipeline_mode = #tpu.pipeline_mode<synchronous>, transform_indices = @transform_2, window_bounds = array<i64: 1, 32>}, {pipeline_mode = #tpu.pipeline_mode<synchronous>, transform_indices = @transform_3, window_bounds = array<i64: 32, 128>}, {pipeline_mode = #tpu.pipeline_mode<synchronous>, transform_indices = @transform_4, window_bounds = array<i64: 1, 128>}, {pipeline_mode = #tpu.pipeline_mode<synchronous>, transform_indices = @transform_5, window_bounds = array<i64: 32, 128>}]} {
    %c0 = arith.constant 0 : index
    %c0_0 = arith.constant 0 : index
    %0 = vector.load %arg1[%c0, %c0_0] : memref<32x288xbf16, #tpu.memory_space<vmem>>, vector<32x288xbf16>
    %c0_1 = arith.constant 0 : index
    %c0_2 = arith.constant 0 : index
    %1 = vector.load %arg2[%c0_1, %c0_2] : memref<288x32xbf16, #tpu.memory_space<vmem>>, vector<288x32xbf16>
    %cst = arith.constant dense<0.000000e+00> : vector<32x32xf32>
    %2 = tpu.matmul %0, %1, %cst {dimension_numbers = #tpu.dot_dimension_numbers<[1], [0], [0], [1], [0, 0, 1, 1], [], []>} : vector<32x288xbf16>, vector<288x32xbf16>, vector<32x32xf32> -> vector<32x32xf32>
    %c0_3 = arith.constant 0 : index
    %c0_4 = arith.constant 0 : index
    %3 = vector.load %arg3[%c0_3, %c0_4] : memref<1x32xf32, #tpu.memory_space<vmem>>, vector<1x32xf32>
    %4 = vector.broadcast %3 : vector<1x32xf32> to vector<32x32xf32>
    %5 = arith.addf %2, %4 : vector<32x32xf32>
    %cst_5 = arith.constant 0.000000e+00 : f32
    %6 = vector.broadcast %cst_5 : f32 to vector<32x32xf32>
    %7 = arith.maximumf %5, %6 : vector<32x32xf32>
    %8 = arith.truncf %7 : vector<32x32xf32> to vector<32x32xbf16>
    %c0_6 = arith.constant 0 : index
    %c0_7 = arith.constant 0 : index
    %9 = vector.load %arg4[%c0_6, %c0_7] : memref<32x128xbf16, #tpu.memory_space<vmem>>, vector<32x128xbf16>
    %cst_8 = arith.constant dense<0.000000e+00> : vector<32x128xf32>
    %10 = tpu.matmul %8, %9, %cst_8 {dimension_numbers = #tpu.dot_dimension_numbers<[1], [0], [0], [1], [0, 0, 1, 1], [], []>} : vector<32x32xbf16>, vector<32x128xbf16>, vector<32x128xf32> -> vector<32x128xf32>
    %c0_9 = arith.constant 0 : index
    %c0_10 = arith.constant 0 : index
    %11 = vector.load %arg5[%c0_9, %c0_10] : memref<1x128xf32, #tpu.memory_space<vmem>>, vector<1x128xf32>
    %12 = vector.broadcast %11 : vector<1x128xf32> to vector<32x128xf32>
    %13 = arith.addf %10, %12 : vector<32x128xf32>
    %14 = arith.truncf %13 : vector<32x128xf32> to vector<32x128xbf16>
    %c0_11 = arith.constant 0 : index
    %c0_12 = arith.constant 0 : index
    %15 = vector.load %arg6[%c0_11, %c0_12] : memref<32x128xbf16, #tpu.memory_space<vmem>>, vector<32x128xbf16>
    tpu.vector_store %arg6[%c0_11, %c0_12], %14 {strides = array<i32>} : memref<32x128xbf16, #tpu.memory_space<vmem>>, vector<32x128xbf16>,
    return
  }
  func.func @transform_0(%arg0: i32) -> (i32, i32) {
    %c0_i32 = arith.constant 0 : i32
    %c0_i32_0 = arith.constant 0 : i32
    %c0_i32_1 = arith.constant 0 : i32
    return %c0_i32, %c0_i32_0 : i32, i32
  }
  func.func @transform_1(%arg0: i32) -> (i32, i32) {
    %c0_i32 = arith.constant 0 : i32
    %c0_i32_0 = arith.constant 0 : i32
    %c0_i32_1 = arith.constant 0 : i32
    return %c0_i32, %c0_i32_0 : i32, i32
  }
  func.func @transform_2(%arg0: i32) -> (i32, i32) {
    %c0_i32 = arith.constant 0 : i32
    %c0_i32_0 = arith.constant 0 : i32
    %c0_i32_1 = arith.constant 0 : i32
    return %c0_i32, %c0_i32_0 : i32, i32
  }
  func.func @transform_3(%arg0: i32) -> (i32, i32) {
    %c0_i32 = arith.constant 0 : i32
    %c0_i32_0 = arith.constant 0 : i32
    %c0_i32_1 = arith.constant 0 : i32
    return %c0_i32, %c0_i32_0 : i32, i32
  }
  func.func @transform_4(%arg0: i32) -> (i32, i32) {
    %c0_i32 = arith.constant 0 : i32
    %c0_i32_0 = arith.constant 0 : i32
    %c0_i32_1 = arith.constant 0 : i32
    return %c0_i32, %c0_i32_0 : i32, i32
  }
  func.func @transform_5(%arg0: i32) -> (i32, i32) {
    %c0_i32 = arith.constant 0 : i32
    %c0_i32_0 = arith.constant 0 : i32
    %c0_i32_1 = arith.constant 0 : i32
    return %c0_i32, %c0_i32_0 : i32, i32
  }
}

module attributes {stable_mosaic.version = 11 : i64} {
  func.func @_head_kernel(%arg0: i32, %arg1: memref<16x512xbf16, #tpu.memory_space<vmem>>, %arg2: memref<512x64xbf16, #tpu.memory_space<vmem>>, %arg3: memref<1x64xf32, #tpu.memory_space<vmem>>, %arg4: memref<64x64xbf16, #tpu.memory_space<vmem>>, %arg5: memref<1x64xf32, #tpu.memory_space<vmem>>, %arg6: memref<64x128xbf16, #tpu.memory_space<vmem>>, %arg7: memref<1x128xf32, #tpu.memory_space<vmem>>, %arg8: memref<16x128xf32, #tpu.memory_space<vmem>>) attributes {dimension_semantics = [#tpu.dimension_semantics<parallel>], iteration_bounds = array<i64: 1>, scalar_prefetch = 0 : i64, scratch_operands = 0 : i64, tpu.core_type = #tpu.core_type<tc>, window_params = [{transform_indices = @transform_0, window_bounds = array<i64: 16, 512>}, {pipeline_mode = #tpu.pipeline_mode<synchronous>, transform_indices = @transform_1, window_bounds = array<i64: 512, 64>}, {pipeline_mode = #tpu.pipeline_mode<synchronous>, transform_indices = @transform_2, window_bounds = array<i64: 1, 64>}, {pipeline_mode = #tpu.pipeline_mode<synchronous>, transform_indices = @transform_3, window_bounds = array<i64: 64, 64>}, {pipeline_mode = #tpu.pipeline_mode<synchronous>, transform_indices = @transform_4, window_bounds = array<i64: 1, 64>}, {pipeline_mode = #tpu.pipeline_mode<synchronous>, transform_indices = @transform_5, window_bounds = array<i64: 64, 128>}, {pipeline_mode = #tpu.pipeline_mode<synchronous>, transform_indices = @transform_6, window_bounds = array<i64: 1, 128>}, {transform_indices = @transform_7, window_bounds = array<i64: 16, 128>}]} {
    %c0 = arith.constant 0 : index
    %c0_0 = arith.constant 0 : index
    %0 = vector.load %arg1[%c0, %c0_0] : memref<16x512xbf16, #tpu.memory_space<vmem>>, vector<16x512xbf16>
    %c0_1 = arith.constant 0 : index
    %c0_2 = arith.constant 0 : index
    %1 = vector.load %arg2[%c0_1, %c0_2] : memref<512x64xbf16, #tpu.memory_space<vmem>>, vector<512x64xbf16>
    %cst = arith.constant dense<0.000000e+00> : vector<16x64xf32>
    %2 = tpu.matmul %0, %1, %cst {dimension_numbers = #tpu.dot_dimension_numbers<[1], [0], [0], [1], [0, 0, 1, 1], [], []>} : vector<16x512xbf16>, vector<512x64xbf16>, vector<16x64xf32> -> vector<16x64xf32>
    %c0_3 = arith.constant 0 : index
    %c0_4 = arith.constant 0 : index
    %3 = vector.load %arg3[%c0_3, %c0_4] : memref<1x64xf32, #tpu.memory_space<vmem>>, vector<1x64xf32>
    %4 = vector.broadcast %3 : vector<1x64xf32> to vector<16x64xf32>
    %5 = arith.addf %2, %4 : vector<16x64xf32>
    %cst_5 = arith.constant 0.000000e+00 : f32
    %6 = vector.broadcast %cst_5 : f32 to vector<16x64xf32>
    %7 = arith.maximumf %5, %6 : vector<16x64xf32>
    %8 = arith.truncf %7 : vector<16x64xf32> to vector<16x64xbf16>
    %c0_6 = arith.constant 0 : index
    %c0_7 = arith.constant 0 : index
    %9 = vector.load %arg4[%c0_6, %c0_7] : memref<64x64xbf16, #tpu.memory_space<vmem>>, vector<64x64xbf16>
    %cst_8 = arith.constant dense<0.000000e+00> : vector<16x64xf32>
    %10 = tpu.matmul %8, %9, %cst_8 {dimension_numbers = #tpu.dot_dimension_numbers<[1], [0], [0], [1], [0, 0, 1, 1], [], []>} : vector<16x64xbf16>, vector<64x64xbf16>, vector<16x64xf32> -> vector<16x64xf32>
    %c0_9 = arith.constant 0 : index
    %c0_10 = arith.constant 0 : index
    %11 = vector.load %arg5[%c0_9, %c0_10] : memref<1x64xf32, #tpu.memory_space<vmem>>, vector<1x64xf32>
    %12 = vector.broadcast %11 : vector<1x64xf32> to vector<16x64xf32>
    %13 = arith.addf %10, %12 : vector<16x64xf32>
    %cst_11 = arith.constant 0.000000e+00 : f32
    %14 = vector.broadcast %cst_11 : f32 to vector<16x64xf32>
    %15 = arith.maximumf %13, %14 : vector<16x64xf32>
    %16 = arith.truncf %15 : vector<16x64xf32> to vector<16x64xbf16>
    %c0_12 = arith.constant 0 : index
    %c0_13 = arith.constant 0 : index
    %17 = vector.load %arg6[%c0_12, %c0_13] : memref<64x128xbf16, #tpu.memory_space<vmem>>, vector<64x128xbf16>
    %cst_14 = arith.constant dense<0.000000e+00> : vector<16x128xf32>
    %18 = tpu.matmul %16, %17, %cst_14 {dimension_numbers = #tpu.dot_dimension_numbers<[1], [0], [0], [1], [0, 0, 1, 1], [], []>} : vector<16x64xbf16>, vector<64x128xbf16>, vector<16x128xf32> -> vector<16x128xf32>
    %c0_15 = arith.constant 0 : index
    %c0_16 = arith.constant 0 : index
    %19 = vector.load %arg7[%c0_15, %c0_16] : memref<1x128xf32, #tpu.memory_space<vmem>>, vector<1x128xf32>
    %20 = vector.broadcast %19 : vector<1x128xf32> to vector<16x128xf32>
    %21 = arith.addf %18, %20 : vector<16x128xf32>
    %22 = tpu.iota {dimensions = array<i32: 1>} : vector<16x128xi32>
    %c36_i32 = arith.constant 36 : i32
    %23 = vector.broadcast %c36_i32 : i32 to vector<16x128xi32>
    %24 = arith.cmpi sge, %22, %23 : vector<16x128xi32>
    %c40_i32 = arith.constant 40 : i32
    %25 = vector.broadcast %c40_i32 : i32 to vector<16x128xi32>
    %26 = arith.cmpi slt, %22, %25 : vector<16x128xi32>
    %27 = arith.andi %24, %26 : vector<16x128xi1>
    %cst_17 = arith.constant -1.000000e+30 : f32
    %28 = vector.broadcast %cst_17 : f32 to vector<16x128xf32>
    %29 = arith.select %27, %21, %28 : vector<16x128xi1>, vector<16x128xf32>
    %cst_18 = arith.constant dense<0xFF800000> : vector<16xf32>
    %30 = vector.multi_reduction <maximumf>, %29, %cst_18 [1] : vector<16x128xf32> to vector<16xf32>
    %31 = vector.shape_cast %30 : vector<16xf32> to vector<16x1xf32>
    %32 = vector.broadcast %31 : vector<16x1xf32> to vector<16x128xf32>
    %33 = arith.subf %21, %32 : vector<16x128xf32>
    %cst_19 = arith.constant -1.000000e+30 : f32
    %34 = vector.broadcast %cst_19 : f32 to vector<16x128xf32>
    %35 = arith.select %27, %33, %34 : vector<16x128xi1>, vector<16x128xf32>
    %36 = math.exp %35 : vector<16x128xf32>
    %cst_20 = arith.constant dense<0.000000e+00> : vector<16xf32>
    %37 = vector.multi_reduction <add>, %36, %cst_20 [1] : vector<16x128xf32> to vector<16xf32>
    %38 = vector.shape_cast %37 : vector<16xf32> to vector<16x1xf32>
    %39 = tpu.reciprocal %38 {approx = true} : vector<16x1xf32> -> vector<16x1xf32>
    %40 = vector.broadcast %39 : vector<16x1xf32> to vector<16x128xf32>
    %41 = arith.mulf %36, %40 : vector<16x128xf32>
    %42 = arith.select %27, %41, %21 : vector<16x128xi1>, vector<16x128xf32>
    %c0_21 = arith.constant 0 : index
    %c0_22 = arith.constant 0 : index
    %43 = vector.load %arg8[%c0_21, %c0_22] : memref<16x128xf32, #tpu.memory_space<vmem>>, vector<16x128xf32>
    tpu.vector_store %arg8[%c0_21, %c0_22], %42 {strides = array<i32>} : memref<16x128xf32, #tpu.memory_space<vmem>>, vector<16x128xf32>,
    return
  }
  func.func @transform_0(%arg0: i32) -> (i32, i32) {
    %c0_i32 = arith.constant 0 : i32
    %c0_i32_0 = arith.constant 0 : i32
    return %arg0, %c0_i32 : i32, i32
  }
  func.func @transform_1(%arg0: i32) -> (i32, i32) {
    %c0_i32 = arith.constant 0 : i32
    %c0_i32_0 = arith.constant 0 : i32
    %c0_i32_1 = arith.constant 0 : i32
    return %c0_i32, %c0_i32_0 : i32, i32
  }
  func.func @transform_2(%arg0: i32) -> (i32, i32) {
    %c0_i32 = arith.constant 0 : i32
    %c0_i32_0 = arith.constant 0 : i32
    %c0_i32_1 = arith.constant 0 : i32
    return %c0_i32, %c0_i32_0 : i32, i32
  }
  func.func @transform_3(%arg0: i32) -> (i32, i32) {
    %c0_i32 = arith.constant 0 : i32
    %c0_i32_0 = arith.constant 0 : i32
    %c0_i32_1 = arith.constant 0 : i32
    return %c0_i32, %c0_i32_0 : i32, i32
  }
  func.func @transform_4(%arg0: i32) -> (i32, i32) {
    %c0_i32 = arith.constant 0 : i32
    %c0_i32_0 = arith.constant 0 : i32
    %c0_i32_1 = arith.constant 0 : i32
    return %c0_i32, %c0_i32_0 : i32, i32
  }
  func.func @transform_5(%arg0: i32) -> (i32, i32) {
    %c0_i32 = arith.constant 0 : i32
    %c0_i32_0 = arith.constant 0 : i32
    %c0_i32_1 = arith.constant 0 : i32
    return %c0_i32, %c0_i32_0 : i32, i32
  }
  func.func @transform_6(%arg0: i32) -> (i32, i32) {
    %c0_i32 = arith.constant 0 : i32
    %c0_i32_0 = arith.constant 0 : i32
    %c0_i32_1 = arith.constant 0 : i32
    return %c0_i32, %c0_i32_0 : i32, i32
  }
  func.func @transform_7(%arg0: i32) -> (i32, i32) {
    %c0_i32 = arith.constant 0 : i32
    %c0_i32_0 = arith.constant 0 : i32
    return %arg0, %c0_i32 : i32, i32
  }
}

</mosaic_0001>

<llo_original>
// kernel: squeeze.16
$region0: #{squeeze.16}
  %s0 = inlined_call_operand.vmem [shape: f32[2,4,4,1,3], index: 0, kind: input, shape index: {}]
  %s1 = inlined_call_operand.vmem [shape: f32[2,48], index: 1, kind: output, shape index: {}]
  $region1: #{squeeze.16} parent=0
    #allocation0 [shape = 'u8[4096]{0}', space=vmem, size = 0x1000, scoped, tag = 'scoped mem for output reshape']
    #allocation1 [shape = 'u8[32768]{0}', space=vmem, size = 0x8000, scoped, tag = 'scoped mem for input reshape']
    %s3 = sshll.u32 1, 4
    %s4 = ssub.s32 %s3, 1
    %s5 = smul.addr 4, 7
    %s6 = scalar_lea.vmem %s0, %s5
    %v7 = vld [vmem:[%s6] sm:%s4]
    %s8 = scalar_lea.vmem [#allocation1], 56
    %9 = vst [vmem:[%s8] sm:%s4] %v7
    %s10 = smul.addr 4, 6
    %s11 = scalar_lea.vmem %s0, %s10
    %v12 = vld [vmem:[%s11] sm:%s4]
    %s13 = scalar_lea.vmem [#allocation1], 48
    %14 = vst [vmem:[%s13] sm:%s4] %v12
    %s15 = smul.addr 4, 5
    %s16 = scalar_lea.vmem %s0, %s15
    %v17 = vld [vmem:[%s16] sm:%s4]
    %s18 = scalar_lea.vmem [#allocation1], 40
    %19 = vst [vmem:[%s18] sm:%s4] %v17
    %s20 = smul.addr 4, 4
    %s21 = scalar_lea.vmem %s0, %s20
    %v22 = vld [vmem:[%s21] sm:%s4]
    %s23 = scalar_lea.vmem [#allocation1], 32
    %24 = vst [vmem:[%s23] sm:%s4] %v22
    %s25 = smul.addr 4, 3
    %s26 = scalar_lea.vmem %s0, %s25
    %v27 = vld [vmem:[%s26] sm:%s4]
    %s28 = scalar_lea.vmem [#allocation1], 24
    %29 = vst [vmem:[%s28] sm:%s4] %v27
    %s30 = smul.addr 4, 2
    %s31 = scalar_lea.vmem %s0, %s30
    %v32 = vld [vmem:[%s31] sm:%s4]
    %s33 = scalar_lea.vmem [#allocation1], 16
    %34 = vst [vmem:[%s33] sm:%s4] %v32
    %s35 = scalar_lea.vmem %s0, 4
    %v36 = vld [vmem:[%s35] sm:%s4]
    %s37 = scalar_lea.vmem [#allocation1], 8
    %38 = vst [vmem:[%s37] sm:%s4] %v36
    %v39 = vld [vmem:[%s0] sm:%s4]
    %40 = vst [vmem:[#allocation1] sm:%s4] %v39
    %v41 = vld [vmem:[#allocation1] sm:$0x1]
    %s42 = scalar_lea.vmem [#allocation1], 31
    %v43 = vld [vmem:[%s42] sm:$0x2]
    %vm44 = vcmask 1041409
    %v45 = vsel %vm44, %v43, %v41
    %vm46 = vcmask 23552
    %47 = vst.msk [vmem:[#allocation0] sm:$0x3] %vm46, %v45
    %s48 = scalar_lea.vmem [#allocation1], 27
    %v49 = vld [vmem:[%s48] sm:$0x1]
    %s50 = scalar_lea.vmem [#allocation1], 58
    %v51 = vld [vmem:[%s50] sm:$0x2]
    %vm52 = vcmask 1041409
    %v53 = vsel %vm52, %v51, %v49
    %54 = vrot.lane.b32.xlu0 %v53, 45
    %v55 = vpop.permute.xlu0 %54
    %vm56 = vcmask 392552
    %57 = vst.msk [vmem:[#allocation0] sm:$0x3] %vm56, %v55
    %s58 = scalar_lea.vmem [#allocation1], 26
    %v59 = vld [vmem:[%s58] sm:$0x1]
    %s60 = scalar_lea.vmem [#allocation1], 57
    %v61 = vld [vmem:[%s60] sm:$0x2]
    %vm62 = vcmask 1041409
    %v63 = vsel %vm62, %v61, %v59
    %64 = vrot.lane.b32.xlu0 %v63, 42
    %v65 = vpop.permute.xlu0 %64
    %vm66 = vcmask 367952
    %67 = vst.msk [vmem:[#allocation0] sm:$0x3] %vm66, %v65
    %s68 = scalar_lea.vmem [#allocation1], 25
    %v69 = vld [vmem:[%s68] sm:$0x1]
    %s70 = scalar_lea.vmem [#allocation1], 56
    %v71 = vld [vmem:[%s70] sm:$0x2]
    %vm72 = vcmask 1041409
    %v73 = vsel %vm72, %v71, %v69
    %74 = vrot.lane.b32.xlu0 %v73, 39
    %v75 = vpop.permute.xlu0 %74
    %vm76 = vcmask 343352
    %77 = vst.msk [vmem:[#allocation0] sm:$0x3] %vm76, %v75
    %s78 = scalar_lea.vmem [#allocation1], 24
    %v79 = vld [vmem:[%s78] sm:$0x1]
    %s80 = scalar_lea.vmem [#allocation1], 55
    %v81 = vld [vmem:[%s80] sm:$0x2]
    %vm82 = vcmask 1041409
    %v83 = vsel %vm82, %v81, %v79
    %84 = vrot.lane.b32.xlu0 %v83, 36
    %v85 = vpop.permute.xlu0 %84
    %vm86 = vcmask 318752
    %87 = vst.msk [vmem:[#allocation0] sm:$0x3] %vm86, %v85
    %s88 = scalar_lea.vmem [#allocation1], 19
    %v89 = vld [vmem:[%s88] sm:$0x1]
    %s90 = scalar_lea.vmem [#allocation1], 50
    %v91 = vld [vmem:[%s90] sm:$0x2]
    %vm92 = vcmask 1041409
    %v93 = vsel %vm92, %v91, %v89
    %94 = vrot.lane.b32.xlu0 %v93, 33
    %v95 = vpop.permute.xlu0 %94
    %vm96 = vcmask 294152
    %97 = vst.msk [vmem:[#allocation0] sm:$0x3] %vm96, %v95
    %s98 = scalar_lea.vmem [#allocation1], 18
    %v99 = vld [vmem:[%s98] sm:$0x1]
    %s100 = scalar_lea.vmem [#allocation1], 49
    %v101 = vld [vmem:[%s100] sm:$0x2]
    %vm102 = vcmask 1041409
    %v103 = vsel %vm102, %v101, %v99
    %104 = vrot.lane.b32.xlu0 %v103, 30
    %v105 = vpop.permute.xlu0 %104
    %vm106 = vcmask 269552
    %107 = vst.msk [vmem:[#allocation0] sm:$0x3] %vm106, %v105
    %s108 = scalar_lea.vmem [#allocation1], 17
    %v109 = vld [vmem:[%s108] sm:$0x1]
    %s110 = scalar_lea.vmem [#allocation1], 48
    %v111 = vld [vmem:[%s110] sm:$0x2]
    %vm112 = vcmask 1041409
    %v113 = vsel %vm112, %v111, %v109
    %114 = vrot.lane.b32.xlu0 %v113, 27
    %v115 = vpop.permute.xlu0 %114
    %vm116 = vcmask 244952
    %117 = vst.msk [vmem:[#allocation0] sm:$0x3] %vm116, %v115
    %s118 = scalar_lea.vmem [#allocation1], 16
    %v119 = vld [vmem:[%s118] sm:$0x1]
    %s120 = scalar_lea.vmem [#allocation1], 47
    %v121 = vld [vmem:[%s120] sm:$0x2]
    %vm122 = vcmask 1041409
    %v123 = vsel %vm122, %v121, %v119
    %124 = vrot.lane.b32.xlu0 %v123, 24
    %v125 = vpop.permute.xlu0 %124
    %vm126 = vcmask 220352
    %127 = vst.msk [vmem:[#allocation0] sm:$0x3] %vm126, %v125
    %s128 = scalar_lea.vmem [#allocation1], 11
    %v129 = vld [vmem:[%s128] sm:$0x1]
    %s130 = scalar_lea.vmem [#allocation1], 42
    %v131 = vld [vmem:[%s130] sm:$0x2]
    %vm132 = vcmask 1041409
    %v133 = vsel %vm132, %v131, %v129
    %134 = vrot.lane.b32.xlu0 %v133, 21
    %v135 = vpop.permute.xlu0 %134
    %vm136 = vcmask 195752
    %137 = vst.msk [vmem:[#allocation0] sm:$0x3] %vm136, %v135
    %s138 = scalar_lea.vmem [#allocation1], 10
    %v139 = vld [vmem:[%s138] sm:$0x1]
    %s140 = scalar_lea.vmem [#allocation1], 41
    %v141 = vld [vmem:[%s140] sm:$0x2]
    %vm142 = vcmask 1041409
    %v143 = vsel %vm142, %v141, %v139
    %144 = vrot.lane.b32.xlu0 %v143, 18
    %v145 = vpop.permute.xlu0 %144
    %vm146 = vcmask 171152
    %147 = vst.msk [vmem:[#allocation0] sm:$0x3] %vm146, %v145
    %s148 = scalar_lea.vmem [#allocation1], 9
    %v149 = vld [vmem:[%s148] sm:$0x1]
    %s150 = scalar_lea.vmem [#allocation1], 40
    %v151 = vld [vmem:[%s150] sm:$0x2]
    %vm152 = vcmask 1041409
    %v153 = vsel %vm152, %v151, %v149
    %154 = vrot.lane.b32.xlu0 %v153, 15
    %v155 = vpop.permute.xlu0 %154
    %vm156 = vcmask 146552
    %157 = vst.msk [vmem:[#allocation0] sm:$0x3] %vm156, %v155
    %s158 = scalar_lea.vmem [#allocation1], 8
    %v159 = vld [vmem:[%s158] sm:$0x1]
    %s160 = scalar_lea.vmem [#allocation1], 39
    %v161 = vld [vmem:[%s160] sm:$0x2]
    %vm162 = vcmask 1041409
    %v163 = vsel %vm162, %v161, %v159
    %164 = vrot.lane.b32.xlu0 %v163, 12
    %v165 = vpop.permute.xlu0 %164
    %vm166 = vcmask 121952
    %167 = vst.msk [vmem:[#allocation0] sm:$0x3] %vm166, %v165
    %s168 = scalar_lea.vmem [#allocation1], 3
    %v169 = vld [vmem:[%s168] sm:$0x1]
    %s170 = scalar_lea.vmem [#allocation1], 34
    %v171 = vld [vmem:[%s170] sm:$0x2]
    %vm172 = vcmask 1041409
    %v173 = vsel %vm172, %v171, %v169
    %174 = vrot.lane.b32.xlu0 %v173, 9
    %v175 = vpop.permute.xlu0 %174
    %vm176 = vcmask 97352
    %177 = vst.msk [vmem:[#allocation0] sm:$0x3] %vm176, %v175
    %s178 = scalar_lea.vmem [#allocation1], 2
    %v179 = vld [vmem:[%s178] sm:$0x1]
    %s180 = scalar_lea.vmem [#allocation1], 33
    %v181 = vld [vmem:[%s180] sm:$0x2]
    %vm182 = vcmask 1041409
    %v183 = vsel %vm182, %v181, %v179
    %184 = vrot.lane.b32.xlu0 %v183, 6
    %v185 = vpop.permute.xlu0 %184
    %vm186 = vcmask 72752
    %187 = vst.msk [vmem:[#allocation0] sm:$0x3] %vm186, %v185
    %s188 = scalar_lea.vmem [#allocation1], 1
    %v189 = vld [vmem:[%s188] sm:$0x1]
    %s190 = scalar_lea.vmem [#allocation1], 32
    %v191 = vld [vmem:[%s190] sm:$0x2]
    %vm192 = vcmask 1041409
    %v193 = vsel %vm192, %v191, %v189
    %194 = vrot.lane.b32.xlu0 %v193, 3
    %v195 = vpop.permute.xlu0 %194
    %vm196 = vcmask 48152
    %197 = vst.msk [vmem:[#allocation0] sm:$0x3] %vm196, %v195
    %s199 = sshll.u32 1, 2
    %s200 = ssub.s32 %s199, 1
    %v202 = vld [vmem:[#allocation0] sm:%s200]
    %s203 = sshll.u32 1, 2
    %s204 = ssub.s32 %s203, 1
    %205 = vst [vmem:[%s1] sm:%s204] %v202

// kernel: faster_rcnn_forward.4
$region0: #{faster_rcnn_forward.4}
  #allocation0 [shape = 'u32[]', space=smem, size = 0x4, offset = 0x4, fixed_abs, tag = 'smem constant byte address 0x4 - core index']
  #allocation1 [shape = 'u32[144,128]{1,0:T(1,128)}', space=vmem, size = 0x12000, scoped, tag = 'internal scratch']
  %s0 = inlined_call_operand.vmem [shape: bf16[32,288], index: 0, kind: input, shape index: {}]
  %s1 = inlined_call_operand.vmem [shape: bf16[288,32], index: 1, kind: input, shape index: {}]
  %s2 = inlined_call_operand.vmem [shape: f32[1,32], index: 2, kind: input, shape index: {}]
  %s3 = inlined_call_operand.vmem [shape: bf16[32,128], index: 3, kind: input, shape index: {}]
  %s4 = inlined_call_operand.vmem [shape: f32[1,128], index: 4, kind: input, shape index: {}]
  %s5 = inlined_call_operand.vmem [shape: bf16[32,128], index: 5, kind: output, shape index: {}]
  %s6 = sld [smem:[#allocation0]]
  $region30: #{faster_rcnn_forward.4} parent=0
    _
  %s8 = ssub.s32 1, %s6
  %s9 = scalar_select 0, %s8, %s6
  // Predicated region
  $region2: #{faster_rcnn_forward.4} parent=0 // pred_check
    _
  $region3: #{faster_rcnn_forward.4} parent=0 // pred_check_branch
    %11 = sbr.rel (0) target = $region5
  $region4: #{faster_rcnn_forward.4} parent=0 // pred_region
    _
  $region5: #{faster_rcnn_forward.4} parent=0 // pred_fallthru
    _
  // Predicated region
  $region6: #{faster_rcnn_forward.4} parent=0 // pred_check
    _
  $region7: #{faster_rcnn_forward.4} parent=0 // pred_check_branch
    %13 = sbr.rel (0) target = $region9
  $region8: #{faster_rcnn_forward.4} parent=0 // pred_region
    _
  $region9: #{faster_rcnn_forward.4} parent=0 // pred_fallthru
    _
  // Predicated region
  $region10: #{faster_rcnn_forward.4} parent=0 // pred_check
    _
  $region11: #{faster_rcnn_forward.4} parent=0 // pred_check_branch
    %15 = sbr.rel (0) target = $region13
  $region12: #{faster_rcnn_forward.4} parent=0 // pred_region
    _
  $region13: #{faster_rcnn_forward.4} parent=0 // pred_fallthru
    _
  // Predicated region
  $region14: #{faster_rcnn_forward.4} parent=0 // pred_check
    _
  $region15: #{faster_rcnn_forward.4} parent=0 // pred_check_branch
    %17 = sbr.rel (0) target = $region17
  $region16: #{faster_rcnn_forward.4} parent=0 // pred_region
    _
  $region17: #{faster_rcnn_forward.4} parent=0 // pred_fallthru
    _
  // Predicated region
  $region18: #{faster_rcnn_forward.4} parent=0 // pred_check
    _
  $region19: #{faster_rcnn_forward.4} parent=0 // pred_check_branch
    %19 = sbr.rel (0) target = $region21
  $region20: #{faster_rcnn_forward.4} parent=0 // pred_region
    _
  $region21: #{faster_rcnn_forward.4} parent=0 // pred_fallthru
    _
  %v21 = vld [vmem:[%s0] sm:$0xff]
  %v22 = vld [vmem:[%s0 + $0x8] sm:$0xf]
  %v23 = vld [vmem:[%s0 + $0xc] sm:$0xff]
  %v24 = vld [vmem:[%s0 + $0x14] sm:$0xf]
  %v25 = vld [vmem:[%s0 + $0x18] sm:$0xff]
  %v26 = vld [vmem:[%s0 + $0x20] sm:$0xf]
  %v27 = vld [vmem:[%s0 + $0x24] sm:$0xff]
  %v28 = vld [vmem:[%s0 + $0x2c] sm:$0xf]
  %v29 = vld [vmem:[%s1] sm:$0xf]
  %v30 = vld [vmem:[%s1 + $0x4] sm:$0xf]
  %v31 = vld [vmem:[%s1 + $0x8] sm:$0xf]
  %v32 = vld [vmem:[%s1 + $0xc] sm:$0xf]
  %v33 = vld [vmem:[%s1 + $0x10] sm:$0xf]
  %v34 = vld [vmem:[%s1 + $0x14] sm:$0xf]
  %v35 = vld [vmem:[%s1 + $0x18] sm:$0xf]
  %v36 = vld [vmem:[%s1 + $0x1c] sm:$0xf]
  %v37 = vld [vmem:[%s1 + $0x20] sm:$0xf]
  %v38 = vld [vmem:[%s1 + $0x24] sm:$0xf]
  %v39 = vld [vmem:[%s1 + $0x28] sm:$0xf]
  %v40 = vld [vmem:[%s1 + $0x2c] sm:$0xf]
  %v41 = vld [vmem:[%s1 + $0x30] sm:$0xf]
  %v42 = vld [vmem:[%s1 + $0x34] sm:$0xf]
  %v43 = vld [vmem:[%s1 + $0x38] sm:$0xf]
  %v44 = vld [vmem:[%s1 + $0x3c] sm:$0xf]
  %v45 = vld [vmem:[%s1 + $0x40] sm:$0xf]
  %v46 = vld [vmem:[%s1 + $0x44] sm:$0xf]
  %v47 = vld [vmem:[%s1 + $0x48] sm:$0xf]
  %v48 = vld [vmem:[%s1 + $0x4c] sm:$0xf]
  %v49 = vld [vmem:[%s1 + $0x50] sm:$0xf]
  %v50 = vld [vmem:[%s1 + $0x54] sm:$0xf]
  %v51 = vld [vmem:[%s1 + $0x58] sm:$0xf]
  %v52 = vld [vmem:[%s1 + $0x5c] sm:$0xf]
  %v53 = vld [vmem:[%s1 + $0x60] sm:$0xf]
  %v54 = vld [vmem:[%s1 + $0x64] sm:$0xf]
  %v55 = vld [vmem:[%s1 + $0x68] sm:$0xf]
  %v56 = vld [vmem:[%s1 + $0x6c] sm:$0xf]
  %v57 = vld [vmem:[%s1 + $0x70] sm:$0xf]
  %v58 = vld [vmem:[%s1 + $0x74] sm:$0xf]
  %v59 = vld [vmem:[%s1 + $0x78] sm:$0xf]
  %v60 = vld [vmem:[%s1 + $0x7c] sm:$0xf]
  %v61 = vld [vmem:[%s1 + $0x80] sm:$0xf]
  %v62 = vld [vmem:[%s1 + $0x84] sm:$0xf]
  %v63 = vld [vmem:[%s1 + $0x88] sm:$0xf]
  %v64 = vld [vmem:[%s1 + $0x8c] sm:$0xf]
  %v65 = vld [vmem:[%s2] sm:$0x1]
  %v67 = vlaneseq
  %v68 = vshrl.u32 %v67, 7
  %v69 = vsub.s32 0, %v68
  %v70 = vrot.slane %v65, %v69
  %v80 = vunpack.c.l.b16 %v21
  %v81 = vunpack.c.h.b16 %v21
  %v82 = vunpack.c.l.b16 %v22
  %v83 = vunpack.c.l.b16 %v23
  %v84 = vunpack.c.h.b16 %v23
  %v85 = vunpack.c.l.b16 %v24
  %v86 = vunpack.c.l.b16 %v25
  %v87 = vunpack.c.h.b16 %v25
  %v88 = vunpack.c.l.b16 %v26
  %v89 = vunpack.c.l.b16 %v27
  %v90 = vunpack.c.h.b16 %v27
  %v91 = vunpack.c.l.b16 %v28
  %v92 = vpack.c.b16 %v83, %v80
  %v93 = vpack.c.b16 %v84, %v81
  %v94 = vpack.c.b16 %v85, %v82
  %v95 = vpack.c.b16 %v89, %v86
  %v96 = vpack.c.b16 %v90, %v87
  %v97 = vpack.c.b16 %v91, %v88
  %v138 = vunpack.c.l.b16 %v29
  %v139 = vunpack.c.l.b16 %v30
  %v140 = vunpack.c.l.b16 %v31
  %v141 = vunpack.c.l.b16 %v32
  %v142 = vunpack.c.l.b16 %v33
  %v143 = vunpack.c.l.b16 %v34
  %v144 = vunpack.c.l.b16 %v35
  %v145 = vunpack.c.l.b16 %v36
  %v146 = vunpack.c.l.b16 %v37
  %v147 = vunpack.c.l.b16 %v38
  %v148 = vunpack.c.l.b16 %v39
  %v149 = vunpack.c.l.b16 %v40
  %v150 = vunpack.c.l.b16 %v41
  %v151 = vunpack.c.l.b16 %v42
  %v152 = vunpack.c.l.b16 %v43
  %v153 = vunpack.c.l.b16 %v44
  %v154 = vunpack.c.l.b16 %v45
  %v155 = vunpack.c.l.b16 %v46
  %v156 = vunpack.c.l.b16 %v47
  %v157 = vunpack.c.l.b16 %v48
  %v158 = vunpack.c.l.b16 %v49
  %v159 = vunpack.c.l.b16 %v50
  %v160 = vunpack.c.l.b16 %v51
  %v161 = vunpack.c.l.b16 %v52
  %v162 = vunpack.c.l.b16 %v53
  %v163 = vunpack.c.l.b16 %v54
  %v164 = vunpack.c.l.b16 %v55
  %v165 = vunpack.c.l.b16 %v56
  %v166 = vunpack.c.l.b16 %v57
  %v167 = vunpack.c.l.b16 %v58
  %v168 = vunpack.c.l.b16 %v59
  %v169 = vunpack.c.l.b16 %v60
  %v170 = vunpack.c.l.b16 %v61
  %v171 = vunpack.c.l.b16 %v62
  %v172 = vunpack.c.l.b16 %v63
  %v173 = vunpack.c.l.b16 %v64
  %v174 = vpack.c.b16 %v139, %v138
  %v175 = vpack.c.b16 %v141, %v140
  %v176 = vpack.c.b16 %v143, %v142
  %v177 = vpack.c.b16 %v145, %v144
  %v178 = vpack.c.b16 %v147, %v146
  %v179 = vpack.c.b16 %v149, %v148
  %v180 = vpack.c.b16 %v151, %v150
  %v181 = vpack.c.b16 %v153, %v152
  %v182 = vpack.c.b16 %v155, %v154
  %v183 = vpack.c.b16 %v157, %v156
  %v184 = vpack.c.b16 %v159, %v158
  %v185 = vpack.c.b16 %v161, %v160
  %v186 = vpack.c.b16 %v163, %v162
  %v187 = vpack.c.b16 %v165, %v164
  %v188 = vpack.c.b16 %v167, %v166
  %v189 = vpack.c.b16 %v169, %v168
  %v190 = vpack.c.b16 %v171, %v170
  %v191 = vpack.c.b16 %v173, %v172
  %vm210 = vcmask 261120
  %v212 = vsel %vm210, %v94, 0
  %v215 = vsel %vm210, %v97, 0
  %217 = vmatprep.subr.bf16.mxu0 0
  %218 = vmatpush1.bf16.msra.mxu0 %v181
  %219 = vmatprep.subr.bf16.mxu0 0
  %220 = vmatpush1.bf16.msra.mxu0 %v180
  %221 = vmatprep.subr.bf16.mxu0 0
  %222 = vmatpush1.bf16.msra.mxu0 %v179
  %223 = vmatprep.subr.bf16.mxu0 0
  %224 = vmatpush1.bf16.msra.mxu0 %v178
  %225 = vmatprep.subr.bf16.mxu0 0
  %226 = vmatpush1.bf16.msra.mxu0 %v177
  %227 = vmatprep.subr.bf16.mxu0 0
  %228 = vmatpush1.bf16.msra.mxu0 %v176
  %229 = vmatprep.subr.bf16.mxu0 0
  %230 = vmatpush1.bf16.msra.mxu0 %v175
  %231 = vmatprep.subr.bf16.mxu0 0
  %232 = vmatpush1.bf16.msra.mxu0 %v174
  %233 = vmatprep.subr.bf16.mxu0 0
  %234 = vmatpush2.bf16.msra.mxu0 %v189
  %235 = vmatprep.subr.bf16.mxu0 0
  %236 = vmatpush2.bf16.msra.mxu0 %v188
  %237 = vmatprep.subr.bf16.mxu0 0
  %238 = vmatpush2.bf16.msra.mxu0 %v187
  %239 = vmatprep.subr.bf16.mxu0 0
  %240 = vmatpush2.bf16.msra.mxu0 %v186
  %241 = vmatprep.subr.bf16.mxu0 0
  %242 = vmatpush2.bf16.msra.mxu0 %v185
  %243 = vmatprep.subr.bf16.mxu0 0
  %244 = vmatpush2.bf16.msra.mxu0 %v184
  %245 = vmatprep.subr.bf16.mxu0 0
  %246 = vmatpush2.bf16.msra.mxu0 %v183
  %247 = vmatprep.subr.bf16.mxu0 0
  %248 = vmatpush2.bf16.msra.mxu0 %v182
  %249 = vmatprep.mubr.bf16.mxu0 %v93
  %250 = vmatmul.mubr.bf16.gmra.mxu0 %v92
  %v251 = vpop.f32.mrf.mxu0
  %v252 = vadd.f32 %v70, %v251
  %v253 = vpop.f32.mrf.mxu0
  %v254 = vpop.f32.mrf.mxu0
  %v255 = vadd.f32 %v70, %v254
  %v256 = vpop.f32.mrf.mxu0
  %257 = vmatprep.mubr.bf16.mxu0 %v96
  %258 = vmatmul.mubr.bf16.gmra.mxu0 %v95
  %v259 = vpop.f32.mrf.mxu0
  %v260 = vadd.f32 %v70, %v259
  %v261 = vpop.f32.mrf.mxu0
  %v262 = vpop.f32.mrf.mxu0
  %v263 = vadd.f32 %v70, %v262
  %v264 = vpop.f32.mrf.mxu0
  %265 = vdwg.mxu0
  %266 = vmatprep.subr.bf16.mxu0 0
  %267 = vmatpush1.bf16.msra.mxu0 0
  %268 = vmatprep.subr.bf16.mxu0 0
  %269 = vmatpush1.bf16.msra.mxu0 0
  %270 = vmatprep.subr.bf16.mxu0 0
  %271 = vmatpush1.bf16.msra.mxu0 0
  %272 = vmatprep.subr.bf16.mxu0 0
  %273 = vmatpush1.bf16.msra.mxu0 0
  %274 = vmatprep.subr.bf16.mxu0 0
  %275 = vmatpush1.bf16.msra.mxu0 0
  %276 = vmatprep.subr.bf16.mxu0 0
  %277 = vmatpush1.bf16.msra.mxu0 0
  %278 = vmatprep.subr.bf16.mxu0 0
  %279 = vmatpush1.bf16.msra.mxu0 %v191
  %280 = vmatprep.subr.bf16.mxu0 0
  %281 = vmatpush1.bf16.msra.mxu0 %v190
  %282 = vmatprep.subr.bf16.mxu0 0
  %283 = vmatpush2.bf16.msra.mxu0 0
  %284 = vmatprep.subr.bf16.mxu0 0
  %285 = vmatpush2.bf16.msra.mxu0 0
  %286 = vmatprep.subr.bf16.mxu0 0
  %287 = vmatpush2.bf16.msra.mxu0 0
  %288 = vmatprep.subr.bf16.mxu0 0
  %289 = vmatpush2.bf16.msra.mxu0 0
  %290 = vmatprep.subr.bf16.mxu0 0
  %291 = vmatpush2.bf16.msra.mxu0 0
  %292 = vmatprep.subr.bf16.mxu0 0
  %293 = vmatpush2.bf16.msra.mxu0 0
  %294 = vmatprep.subr.bf16.mxu0 0
  %295 = vmatpush2.bf16.msra.mxu0 0
  %296 = vmatprep.subr.bf16.mxu0 0
  %297 = vmatpush2.bf16.msra.mxu0 0
  %298 = vmatprep.mubr.bf16.mxu0 0
  %299 = vmatmul.mubr.bf16.gmra.mxu0 %v212
  %v300 = vpop.f32.mrf.mxu0
  %v301 = vadd.f32 %v252, %v300
  %v302 = vpop.f32.mrf.mxu0
  %v303 = vpop.f32.mrf.mxu0
  %v304 = vadd.f32 %v255, %v303
  %v305 = vpop.f32.mrf.mxu0
  %306 = vmatprep.mubr.bf16.mxu0 0
  %307 = vmatmul.mubr.bf16.gmra.mxu0 %v215
  %v308 = vpop.f32.mrf.mxu0
  %v309 = vadd.f32 %v260, %v308
  %v310 = vpop.f32.mrf.mxu0
  %v311 = vpop.f32.mrf.mxu0
  %v312 = vadd.f32 %v263, %v311
  %v313 = vpop.f32.mrf.mxu0
  %314 = vdwg.mxu0
  %v315 = vmax.f32 %v301, 0.0
  %v316 = vmax.f32 %v304, 0.0
  %v317 = vmax.f32 %v309, 0.0
  %v318 = vmax.f32 %v312, 0.0
  %v319 = vpack.c.bf16 %v316, %v315
  %v320 = vpack.c.bf16 %v318, %v317
  %v321 = vld [vmem:[%s3] sm:$0xf]
  %v322 = vld [vmem:[%s3 + $0x4] sm:$0xf]
  %v323 = vld [vmem:[%s3 + $0x8] sm:$0xf]
  %v324 = vld [vmem:[%s3 + $0xc] sm:$0xf]
  %v325 = vld [vmem:[%s4] sm:$0x1]
  %v327 = vlaneseq
  %v328 = vshrl.u32 %v327, 7
  %v329 = vsub.s32 0, %v328
  %v330 = vrot.slane %v325, %v329
  %v336 = vunpack.c.l.b16 %v321
  %v337 = vunpack.c.l.b16 %v322
  %v338 = vunpack.c.l.b16 %v323
  %v339 = vunpack.c.l.b16 %v324
  %v340 = vpack.c.b16 %v337, %v336
  %v341 = vpack.c.b16 %v339, %v338
  %v345 = vsel %vm210, %v319, 0
  %v348 = vsel %vm210, %v320, 0
  %350 = vmatprep.subr.bf16.mxu0 0
  %351 = vmatpush1.bf16.msra.mxu0 0
  %352 = vmatprep.subr.bf16.mxu0 0
  %353 = vmatpush1.bf16.msra.mxu0 0
  %354 = vmatprep.subr.bf16.mxu0 0
  %355 = vmatpush1.bf16.msra.mxu0 0
  %356 = vmatprep.subr.bf16.mxu0 0
  %357 = vmatpush1.bf16.msra.mxu0 0
  %358 = vmatprep.subr.bf16.mxu0 0
  %359 = vmatpush1.bf16.msra.mxu0 0
  %360 = vmatprep.subr.bf16.mxu0 0
  %361 = vmatpush1.bf16.msra.mxu0 0
  %362 = vmatprep.subr.bf16.mxu0 0
  %363 = vmatpush1.bf16.msra.mxu0 %v341
  %364 = vmatprep.subr.bf16.mxu0 0
  %365 = vmatpush1.bf16.msra.mxu0 %v340
  %366 = vmatprep.subr.bf16.mxu0 0
  %367 = vmatpush2.bf16.msra.mxu0 0
  %368 = vmatprep.subr.bf16.mxu0 0
  %369 = vmatpush2.bf16.msra.mxu0 0
  %370 = vmatprep.subr.bf16.mxu0 0
  %371 = vmatpush2.bf16.msra.mxu0 0
  %372 = vmatprep.subr.bf16.mxu0 0
  %373 = vmatpush2.bf16.msra.mxu0 0
  %374 = vmatprep.subr.bf16.mxu0 0
  %375 = vmatpush2.bf16.msra.mxu0 0
  %376 = vmatprep.subr.bf16.mxu0 0
  %377 = vmatpush2.bf16.msra.mxu0 0
  %378 = vmatprep.subr.bf16.mxu0 0
  %379 = vmatpush2.bf16.msra.mxu0 0
  %380 = vmatprep.subr.bf16.mxu0 0
  %381 = vmatpush2.bf16.msra.mxu0 0
  %382 = vmatprep.mubr.bf16.mxu0 0
  %383 = vmatmul.mubr.bf16.gmra.mxu0 %v345
  %v384 = vpop.f32.mrf.mxu0
  %v385 = vadd.f32 %v330, %v384
  %v386 = vpop.f32.mrf.mxu0
  %v387 = vpop.f32.mrf.mxu0
  %v388 = vadd.f32 %v330, %v387
  %v389 = vpop.f32.mrf.mxu0
  %390 = vmatprep.mubr.bf16.mxu0 0
  %391 = vmatmul.mubr.bf16.gmra.mxu0 %v348
  %v392 = vpop.f32.mrf.mxu0
  %v393 = vadd.f32 %v330, %v392
  %v394 = vpop.f32.mrf.mxu0
  %v395 = vpop.f32.mrf.mxu0
  %v396 = vadd.f32 %v330, %v395
  %v397 = vpop.f32.mrf.mxu0
  %398 = vdwg.mxu0
  %v399 = vpack.c.bf16 %v388, %v385
  %v400 = vpack.c.bf16 %v396, %v393
  %v403 = vunpack.c.l.b16 %v399
  %v404 = vunpack.c.h.b16 %v399
  %v405 = vunpack.c.l.b16 %v400
  %v406 = vunpack.c.h.b16 %v400
  %v407 = vpack.c.b16 %v403, %v403
  %v408 = vpack.c.b16 %v404, %v404
  %v409 = vpack.c.b16 %v405, %v405
  %v410 = vpack.c.b16 %v406, %v406
  %415 = vst [vmem:[%s5] sm:$0xf] %v407
  %416 = vst [vmem:[%s5 + $0x4] sm:$0xf] %v408
  %417 = vst [vmem:[%s5 + $0x8] sm:$0xf] %v409
  %418 = vst [vmem:[%s5 + $0xc] sm:$0xf] %v410
  // Predicated region
  $region22: #{faster_rcnn_forward.4} parent=0 // pred_check
    _
  $region23: #{faster_rcnn_forward.4} parent=0 // pred_check_branch
    %420 = sbr.rel (0) target = $region25
  $region24: #{faster_rcnn_forward.4} parent=0 // pred_region
    _
  $region25: #{faster_rcnn_forward.4} parent=0 // pred_fallthru
    _
  // Predicated region
  $region26: #{faster_rcnn_forward.4} parent=0 // pred_check
    _
  $region27: #{faster_rcnn_forward.4} parent=0 // pred_check_branch
    %422 = sbr.rel (0) target = $region29
  $region28: #{faster_rcnn_forward.4} parent=0 // pred_region
    _
  $region29: #{faster_rcnn_forward.4} parent=0 // pred_fallthru
    _

// kernel: faster_rcnn_forward.3
$region0: #{faster_rcnn_forward.3}
  #allocation0 [shape = 'u32[]', space=smem, size = 0x4, offset = 0x4, fixed_abs, tag = 'smem constant byte address 0x4 - core index']
  #allocation1 [shape = 'u32[144,128]{1,0:T(1,128)}', space=vmem, size = 0x12000, scoped, tag = 'internal scratch']
  %s0 = inlined_call_operand.vmem [shape: bf16[2,4096,27], index: 0, kind: input, shape index: {}]
  %s1 = inlined_call_operand.vmem [shape: bf16[27,32], index: 1, kind: input, shape index: {}]
  %s2 = inlined_call_operand.vmem [shape: f32[1,32], index: 2, kind: input, shape index: {}]
  %s3 = inlined_call_operand.vmem [shape: bf16[16,4096], index: 3, kind: input, shape index: {}]
  %s4 = inlined_call_operand.vmem [shape: f32[2,16,32], index: 4, kind: output, shape index: {}]
  %s5 = sld [smem:[#allocation0]]
  $region49: #{faster_rcnn_forward.3} parent=0
    _
  %s7 = ssub.s32 1, %s5
  %s8 = scalar_select 0, %s7, %s5
  loop: start=0, step=1, limit=4
  $region2: #{faster_rcnn_forward.3} parent=0 // loop_pre_header
    _
  $region3: #{faster_rcnn_forward.3} parent=0 // loop_header
    %s10 = sphi 0, %s14
    %p11 = scmp.ge.s32.totalorder %s10, 4
    %s20 = sphi 0, %s22
    %s23 = sphi 0, %s20
    %s24 = sphi 0, %s23
    %s40 = sphi 0, %s24
    %s44 = sphi 0, %s44
    %s46 = sphi 0, %s44
    %s47 = sphi 0, %s46
    %s61 = sphi 0, %s47
    %s65 = sphi 0, %s65
    %s67 = sphi 0, %s65
    %s68 = sphi 0, %s67
    %s82 = sphi 0, %s68
    %s86 = sphi 0, %s86
    %s88 = sphi 0, %s86
    %s89 = sphi 0, %s88
    %s103 = sphi 0, %s89
    %s109 = sphi 0, %s111
    %s112 = sphi 0, %s109
    %s113 = sphi 0, %s112
    %s129 = sphi 0, %s113
  $region4: #{faster_rcnn_forward.3} parent=0 // loop_header_branch
    %13 = sbr.rel (%p11) target = $region8
  $region5: #{faster_rcnn_forward.3} parent=0 // loop_body
    %s15 = ssub.s32 %s10, 1
    %s16 = ssub.s32 %s10, 2
    %s17 = sadd.s32 %s10, 1
    %s18 = ssub.s32 %s10, %s17
    %p19 = scmp.eq.s32.totalorder %s18, 0
    %s21 = sadd.s32 %s20, 1
    %s22 = scalar_select %p19, %s20, %s21
    %p25 = pneg %p19
    %p26 = scmp.eq.s32.totalorder %s10, 1
    %p27 = por %p25, %p26
    %p28 = scmp.ne.s32.totalorder %s20, %s23
    %p29 = scmp.eq.s32.totalorder %s10, 0
    %p30 = por %p28, %p29
    %p31 = scmp.ne.s32.totalorder %s20, %s23
    %p32 = scmp.eq.s32.totalorder %s15, 1
    %p33 = por %p31, %p32
    %p34 = scmp.ne.s32.totalorder %s23, %s24
    %p35 = scmp.eq.s32.totalorder %s15, 0
    %p36 = por %p34, %p35
    %p37 = scmp.ne.s32.totalorder %s23, %s24
    %p38 = scmp.eq.s32.totalorder %s16, 1
    %p39 = por %p37, %p38
    %p41 = scmp.ne.s32.totalorder %s24, %s40
    %p42 = scmp.eq.s32.totalorder %s16, 0
    %p43 = por %p41, %p42
    %s45 = sadd.s32 %s44, 1
    %p48 = scmp.eq.s32.totalorder %s10, 1
    %p49 = scmp.ne.s32.totalorder %s44, %s46
    %p50 = scmp.eq.s32.totalorder %s10, 0
    %p51 = por %p49, %p50
    %p52 = scmp.ne.s32.totalorder %s44, %s46
    %p53 = scmp.eq.s32.totalorder %s15, 1
    %p54 = por %p52, %p53
    %p55 = scmp.ne.s32.totalorder %s46, %s47
    %p56 = scmp.eq.s32.totalorder %s15, 0
    %p57 = por %p55, %p56
    %p58 = scmp.ne.s32.totalorder %s46, %s47
    %p59 = scmp.eq.s32.totalorder %s16, 1
    %p60 = por %p58, %p59
    %p62 = scmp.ne.s32.totalorder %s47, %s61
    %p63 = scmp.eq.s32.totalorder %s16, 0
    %p64 = por %p62, %p63
    %s66 = sadd.s32 %s65, 1
    %p69 = scmp.eq.s32.totalorder %s10, 1
    %p70 = scmp.ne.s32.totalorder %s65, %s67
    %p71 = scmp.eq.s32.totalorder %s10, 0
    %p72 = por %p70, %p71
    %p73 = scmp.ne.s32.totalorder %s65, %s67
    %p74 = scmp.eq.s32.totalorder %s15, 1
    %p75 = por %p73, %p74
    %p76 = scmp.ne.s32.totalorder %s67, %s68
    %p77 = scmp.eq.s32.totalorder %s15, 0
    %p78 = por %p76, %p77
    %p79 = scmp.ne.s32.totalorder %s67, %s68
    %p80 = scmp.eq.s32.totalorder %s16, 1
    %p81 = por %p79, %p80
    %p83 = scmp.ne.s32.totalorder %s68, %s82
    %p84 = scmp.eq.s32.totalorder %s16, 0
    %p85 = por %p83, %p84
    %s87 = sadd.s32 %s86, 1
    %p90 = scmp.eq.s32.totalorder %s10, 1
    %p91 = scmp.ne.s32.totalorder %s86, %s88
    %p92 = scmp.eq.s32.totalorder %s10, 0
    %p93 = por %p91, %p92
    %p94 = scmp.ne.s32.totalorder %s86, %s88
    %p95 = scmp.eq.s32.totalorder %s15, 1
    %p96 = por %p94, %p95
    %p97 = scmp.ne.s32.totalorder %s88, %s89
    %p98 = scmp.eq.s32.totalorder %s15, 0
    %p99 = por %p97, %p98
    %p100 = scmp.ne.s32.totalorder %s88, %s89
    %p101 = scmp.eq.s32.totalorder %s16, 1
    %p102 = por %p100, %p101
    %p104 = scmp.ne.s32.totalorder %s89, %s103
    %p105 = scmp.eq.s32.totalorder %s16, 0
    %p106 = por %p104, %p105
    %s107 = ssub.s32 %s10, %s17
    %p108 = scmp.eq.s32.totalorder %s107, 0
    %s110 = sadd.s32 %s109, 1
    %s111 = scalar_select %p108, %s109, %s110
    %p114 = pneg %p108
    %p115 = scmp.eq.s32.totalorder %s10, 1
    %p116 = por %p114, %p115
    %p117 = scmp.ne.s32.totalorder %s109, %s112
    %p118 = scmp.eq.s32.totalorder %s10, 0
    %p119 = por %p117, %p118
    %p120 = scmp.ne.s32.totalorder %s109, %s112
    %p121 = scmp.eq.s32.totalorder %s15, 1
    %p122 = por %p120, %p121
    %p123 = scmp.ne.s32.totalorder %s112, %s113
    %p124 = scmp.eq.s32.totalorder %s15, 0
    %p125 = por %p123, %p124
    %p126 = scmp.ne.s32.totalorder %s112, %s113
    %p127 = scmp.eq.s32.totalorder %s16, 1
    %p128 = por %p126, %p127
    %p130 = scmp.ne.s32.totalorder %s113, %s129
    %p131 = scmp.eq.s32.totalorder %s16, 0
    %p132 = por %p130, %p131
    %p133 = scmp.le.s32.totalorder 1, %s10
    %p134 = scmp.lt.s32.totalorder %s10, 3
    %p135 = pnand %p133, %p134
    %p136 = pneg %p135
    // Predicated region
    $region9: #{faster_rcnn_forward.3} parent=5 // pred_check
      _
    $region10: #{faster_rcnn_forward.3} parent=5 // pred_check_branch
      %138 = sbr.rel (%p135) target = $region12
    $region11: #{faster_rcnn_forward.3} parent=5 // pred_region
      %s139 = ssub.s32 %s10, 1
      // Predicated region
      $region13: #{faster_rcnn_forward.3} parent=11 // pred_check
        %p140 = pneg %p57
      $region14: #{faster_rcnn_forward.3} parent=11 // pred_check_branch
        %142 = sbr.rel (%p140) target = $region16
      $region15: #{faster_rcnn_forward.3} parent=11 // pred_region
        _
      $region16: #{faster_rcnn_forward.3} parent=11 // pred_fallthru
        _
      // Predicated region
      $region17: #{faster_rcnn_forward.3} parent=11 // pred_check
        %p143 = pneg %p78
      $region18: #{faster_rcnn_forward.3} parent=11 // pred_check_branch
        %145 = sbr.rel (%p143) target = $region20
      $region19: #{faster_rcnn_forward.3} parent=11 // pred_region
        _
      $region20: #{faster_rcnn_forward.3} parent=11 // pred_fallthru
        _
      // Predicated region
      $region21: #{faster_rcnn_forward.3} parent=11 // pred_check
        %p146 = pneg %p99
      $region22: #{faster_rcnn_forward.3} parent=11 // pred_check_branch
        %148 = sbr.rel (%p146) target = $region24
      $region23: #{faster_rcnn_forward.3} parent=11 // pred_region
        _
      $region24: #{faster_rcnn_forward.3} parent=11 // pred_fallthru
        _
    $region12: #{faster_rcnn_forward.3} parent=5 // pred_fallthru
      _
    %p149 = scmp.lt.s32.totalorder %s10, 2
    // Predicated region
    $region25: #{faster_rcnn_forward.3} parent=5 // pred_check
      %p150 = pneg %p149
    $region26: #{faster_rcnn_forward.3} parent=5 // pred_check_branch
      %152 = sbr.rel (%p150) target = $region28
    $region27: #{faster_rcnn_forward.3} parent=5 // pred_region
      // Predicated region
      $region29: #{faster_rcnn_forward.3} parent=27 // pred_check
        %p153 = pneg %p30
      $region30: #{faster_rcnn_forward.3} parent=27 // pred_check_branch
        %155 = sbr.rel (%p153) target = $region32
      $region31: #{faster_rcnn_forward.3} parent=27 // pred_region
        %p156 = scmp.lt.s32.totalorder %s10, 1
        %s157 = scalar_select %p156, %s10, 1
        %s158 = smul.addr %s157, 512
        %s159 = smul.addr %s158, 4
        %s160 = scalar_lea.vmem %s0, %s159
      $region32: #{faster_rcnn_forward.3} parent=27 // pred_fallthru
        _
    $region28: #{faster_rcnn_forward.3} parent=5 // pred_fallthru
      _
    %p161 = scmp.le.s32.totalorder 1, %s10
    %p162 = scmp.lt.s32.totalorder %s10, 3
    %p163 = pnand %p161, %p162
    %p164 = pneg %p163
    // Predicated region
    $region33: #{faster_rcnn_forward.3} parent=5 // pred_check
      _
    $region34: #{faster_rcnn_forward.3} parent=5 // pred_check_branch
      %166 = sbr.rel (%p163) target = $region36
    $region35: #{faster_rcnn_forward.3} parent=5 // pred_region
      %s167 = ssub.s32 %s10, 1
      %p168 = scmp.lt.s32.totalorder %s15, 1
      %s169 = scalar_select %p168, %s15, 1
      %s170 = smul.addr %s169, 512
      %s171 = smul.addr %s170, 4
      %s172 = scalar_lea.vmem %s0, %s171
      %p173 = pneg %p36
      %p174 = pneg %p33
      %p175 = pneg %p57
      %p176 = pneg %p54
      %p177 = pneg %p78
      %p178 = pneg %p75
      %p179 = pneg %p99
      %p180 = pneg %p96
      %p181 = pneg %p125
      %p182 = pneg %p122
      %p183 = scmp.lt.s32.totalorder %s15, 1
      %s184 = scalar_select %p183, %s15, 1
      %s185 = smul.addr %s184, 2
      %s186 = smul.addr %s185, 8
      %s187 = scalar_lea.vmem %s4, %s186
      %p188 = scmp.lt.s32.totalorder %s15, 1
      %s189 = scalar_select %p188, %s15, 1
      %s190 = smul.addr %s189, 512
      %s191 = smul.addr %s190, 4
      %s192 = scalar_lea.vmem %s0, %s191
      %p193 = scmp.lt.s32.totalorder %s15, 1
      %s194 = scalar_select %p193, %s15, 1
      %s195 = smul.addr %s194, 2
      %s196 = smul.addr %s195, 8
      %s197 = scalar_lea.vmem %s4, %s196
      %v199 = vld [vmem:[%s192] sm:$0xf]
      %v200 = vld [vmem:[%s192 + $0x4] sm:$0xf]
      %v201 = vld [vmem:[%s192 + $0x8] sm:$0xf]
      %v202 = vld [vmem:[%s192 + $0xc] sm:$0xf]
      %v203 = vld [vmem:[%s192 + $0x10] sm:$0xf]
      %v204 = vld [vmem:[%s192 + $0x14] sm:$0xf]
      %v205 = vld [vmem:[%s192 + $0x18] sm:$0xf]
      %v206 = vld [vmem:[%s192 + $0x1c] sm:$0xf]
      %v207 = vld [vmem:[%s192 + $0x20] sm:$0xf]
      %v208 = vld [vmem:[%s192 + $0x24] sm:$0xf]
      %v209 = vld [vmem:[%s192 + $0x28] sm:$0xf]
      %v210 = vld [vmem:[%s192 + $0x2c] sm:$0xf]
      %v211 = vld [vmem:[%s192 + $0x30] sm:$0xf]
      %v212 = vld [vmem:[%s192 + $0x34] sm:$0xf]
      %v213 = vld [vmem:[%s192 + $0x38] sm:$0xf]
      %v214 = vld [vmem:[%s192 + $0x3c] sm:$0xf]
      %v215 = vld [vmem:[%s192 + $0x40] sm:$0xf]
      %v216 = vld [vmem:[%s192 + $0x44] sm:$0xf]
      %v217 = vld [vmem:[%s192 + $0x48] sm:$0xf]
      %v218 = vld [vmem:[%s192 + $0x4c] sm:$0xf]
      %v219 = vld [vmem:[%s192 + $0x50] sm:$0xf]
      %v220 = vld [vmem:[%s192 + $0x54] sm:$0xf]
      %v221 = vld [vmem:[%s192 + $0x58] sm:$0xf]
      %v222 = vld [vmem:[%s192 + $0x5c] sm:$0xf]
      %v223 = vld [vmem:[%s192 + $0x60] sm:$0xf]
      %v224 = vld [vmem:[%s192 + $0x64] sm:$0xf]
      %v225 = vld [vmem:[%s192 + $0x68] sm:$0xf]
      %v226 = vld [vmem:[%s192 + $0x6c] sm:$0xf]
      %v227 = vld [vmem:[%s192 + $0x70] sm:$0xf]
      %v228 = vld [vmem:[%s192 + $0x74] sm:$0xf]
      %v229 = vld [vmem:[%s192 + $0x78] sm:$0xf]
      %v230 = vld [vmem:[%s192 + $0x7c] sm:$0xf]
      %v231 = vld [vmem:[%s192 + $0x80] sm:$0xf]
      %v232 = vld [vmem:[%s192 + $0x84] sm:$0xf]
      %v233 = vld [vmem:[%s192 + $0x88] sm:$0xf]
      %v234 = vld [vmem:[%s192 + $0x8c] sm:$0xf]
      %v235 = vld [vmem:[%s192 + $0x90] sm:$0xf]
      %v236 = vld [vmem:[%s192 + $0x94] sm:$0xf]
      %v237 = vld [vmem:[%s192 + $0x98] sm:$0xf]
      %v238 = vld [vmem:[%s192 + $0x9c] sm:$0xf]
      %v239 = vld [vmem:[%s192 + $0xa0] sm:$0xf]
      %v240 = vld [vmem:[%s192 + $0xa4] sm:$0xf]
      %v241 = vld [vmem:[%s192 + $0xa8] sm:$0xf]
      %v242 = vld [vmem:[%s192 + $0xac] sm:$0xf]
      %v243 = vld [vmem:[%s192 + $0xb0] sm:$0xf]
      %v244 = vld [vmem:[%s192 + $0xb4] sm:$0xf]
      %v245 = vld [vmem:[%s192 + $0xb8] sm:$0xf]
      %v246 = vld [vmem:[%s192 + $0xbc] sm:$0xf]
      %v247 = vld [vmem:[%s192 + $0xc0] sm:$0xf]
      %v248 = vld [vmem:[%s192 + $0xc4] sm:$0xf]
      %v249 = vld [vmem:[%s192 + $0xc8] sm:$0xf]
      %v250 = vld [vmem:[%s192 + $0xcc] sm:$0xf]
      %v251 = vld [vmem:[%s192 + $0xd0] sm:$0xf]
      %v252 = vld [vmem:[%s192 + $0xd4] sm:$0xf]
      %v253 = vld [vmem:[%s192 + $0xd8] sm:$0xf]
      %v254 = vld [vmem:[%s192 + $0xdc] sm:$0xf]
      %v255 = vld [vmem:[%s192 + $0xe0] sm:$0xf]
      %v256 = vld [vmem:[%s192 + $0xe4] sm:$0xf]
      %v257 = vld [vmem:[%s192 + $0xe8] sm:$0xf]
      %v258 = vld [vmem:[%s192 + $0xec] sm:$0xf]
      %v259 = vld [vmem:[%s192 + $0xf0] sm:$0xf]
      %v260 = vld [vmem:[%s192 + $0xf4] sm:$0xf]
      %v261 = vld [vmem:[%s192 + $0xf8] sm:$0xf]
      %v262 = vld [vmem:[%s192 + $0xfc] sm:$0xf]
      %v263 = vld [vmem:[%s192 + $0x100] sm:$0xf]
      %v264 = vld [vmem:[%s192 + $0x104] sm:$0xf]
      %v265 = vld [vmem:[%s192 + $0x108] sm:$0xf]
      %v266 = vld [vmem:[%s192 + $0x10c] sm:$0xf]
      %v267 = vld [vmem:[%s192 + $0x110] sm:$0xf]
      %v268 = vld [vmem:[%s192 + $0x114] sm:$0xf]
      %v269 = vld [vmem:[%s192 + $0x118] sm:$0xf]
      %v270 = vld [vmem:[%s192 + $0x11c] sm:$0xf]
      %v271 = vld [vmem:[%s192 + $0x120] sm:$0xf]
      %v272 = vld [vmem:[%s192 + $0x124] sm:$0xf]
      %v273 = vld [vmem:[%s192 + $0x128] sm:$0xf]
      %v274 = vld [vmem:[%s192 + $0x12c] sm:$0xf]
      %v275 = vld [vmem:[%s192 + $0x130] sm:$0xf]
      %v276 = vld [vmem:[%s192 + $0x134] sm:$0xf]
      %v277 = vld [vmem:[%s192 + $0x138] sm:$0xf]
      %v278 = vld [vmem:[%s192 + $0x13c] sm:$0xf]
      %v279 = vld [vmem:[%s192 + $0x140] sm:$0xf]
      %v280 = vld [vmem:[%s192 + $0x144] sm:$0xf]
      %v281 = vld [vmem:[%s192 + $0x148] sm:$0xf]
      %v282 = vld [vmem:[%s192 + $0x14c] sm:$0xf]
      %v283 = vld [vmem:[%s192 + $0x150] sm:$0xf]
      %v284 = vld [vmem:[%s192 + $0x154] sm:$0xf]
      %v285 = vld [vmem:[%s192 + $0x158] sm:$0xf]
      %v286 = vld [vmem:[%s192 + $0x15c] sm:$0xf]
      %v287 = vld [vmem:[%s192 + $0x160] sm:$0xf]
      %v288 = vld [vmem:[%s192 + $0x164] sm:$0xf]
      %v289 = vld [vmem:[%s192 + $0x168] sm:$0xf]
      %v290 = vld [vmem:[%s192 + $0x16c] sm:$0xf]
      %v291 = vld [vmem:[%s192 + $0x170] sm:$0xf]
      %v292 = vld [vmem:[%s192 + $0x174] sm:$0xf]
      %v293 = vld [vmem:[%s192 + $0x178] sm:$0xf]
      %v294 = vld [vmem:[%s192 + $0x17c] sm:$0xf]
      %v295 = vld [vmem:[%s192 + $0x180] sm:$0xf]
      %v296 = vld [vmem:[%s192 + $0x184] sm:$0xf]
      %v297 = vld [vmem:[%s192 + $0x188] sm:$0xf]
      %v298 = vld [vmem:[%s192 + $0x18c] sm:$0xf]
      %v299 = vld [vmem:[%s192 + $0x190] sm:$0xf]
      %v300 = vld [vmem:[%s192 + $0x194] sm:$0xf]
      %v301 = vld [vmem:[%s192 + $0x198] sm:$0xf]
      %v302 = vld [vmem:[%s192 + $0x19c] sm:$0xf]
      %v303 = vld [vmem:[%s192 + $0x1a0] sm:$0xf]
      %v304 = vld [vmem:[%s192 + $0x1a4] sm:$0xf]
      %v305 = vld [vmem:[%s192 + $0x1a8] sm:$0xf]
      %v306 = vld [vmem:[%s192 + $0x1ac] sm:$0xf]
      %v307 = vld [vmem:[%s192 + $0x1b0] sm:$0xf]
      %v308 = vld [vmem:[%s192 + $0x1b4] sm:$0xf]
      %v309 = vld [vmem:[%s192 + $0x1b8] sm:$0xf]
      %v310 = vld [vmem:[%s192 + $0x1bc] sm:$0xf]
      %v311 = vld [vmem:[%s192 + $0x1c0] sm:$0xf]
      %v312 = vld [vmem:[%s192 + $0x1c4] sm:$0xf]
      %v313 = vld [vmem:[%s192 + $0x1c8] sm:$0xf]
      %v314 = vld [vmem:[%s192 + $0x1cc] sm:$0xf]
      %v315 = vld [vmem:[%s192 + $0x1d0] sm:$0xf]
      %v316 = vld [vmem:[%s192 + $0x1d4] sm:$0xf]
      %v317 = vld [vmem:[%s192 + $0x1d8] sm:$0xf]
      %v318 = vld [vmem:[%s192 + $0x1dc] sm:$0xf]
      %v319 = vld [vmem:[%s192 + $0x1e0] sm:$0xf]
      %v320 = vld [vmem:[%s192 + $0x1e4] sm:$0xf]
      %v321 = vld [vmem:[%s192 + $0x1e8] sm:$0xf]
      %v322 = vld [vmem:[%s192 + $0x1ec] sm:$0xf]
      %v323 = vld [vmem:[%s192 + $0x1f0] sm:$0xf]
      %v324 = vld [vmem:[%s192 + $0x1f4] sm:$0xf]
      %v325 = vld [vmem:[%s192 + $0x1f8] sm:$0xf]
      %v326 = vld [vmem:[%s192 + $0x1fc] sm:$0xf]
      %v327 = vld [vmem:[%s192 + $0x200] sm:$0xf]
      %v328 = vld [vmem:[%s192 + $0x204] sm:$0xf]
      %v329 = vld [vmem:[%s192 + $0x208] sm:$0xf]
      %v330 = vld [vmem:[%s192 + $0x20c] sm:$0xf]
      %v331 = vld [vmem:[%s192 + $0x210] sm:$0xf]
      %v332 = vld [vmem:[%s192 + $0x214] sm:$0xf]
      %v333 = vld [vmem:[%s192 + $0x218] sm:$0xf]
      %v334 = vld [vmem:[%s192 + $0x21c] sm:$0xf]
      %v335 = vld [vmem:[%s192 + $0x220] sm:$0xf]
      %v336 = vld [vmem:[%s192 + $0x224] sm:$0xf]
      %v337 = vld [vmem:[%s192 + $0x228] sm:$0xf]
      %v338 = vld [vmem:[%s192 + $0x22c] sm:$0xf]
      %v339 = vld [vmem:[%s192 + $0x230] sm:$0xf]
      %v340 = vld [vmem:[%s192 + $0x234] sm:$0xf]
      %v341 = vld [vmem:[%s192 + $0x238] sm:$0xf]
      %v342 = vld [vmem:[%s192 + $0x23c] sm:$0xf]
      %v343 = vld [vmem:[%s192 + $0x240] sm:$0xf]
      %v344 = vld [vmem:[%s192 + $0x244] sm:$0xf]
      %v345 = vld [vmem:[%s192 + $0x248] sm:$0xf]
      %v346 = vld [vmem:[%s192 + $0x24c] sm:$0xf]
      %v347 = vld [vmem:[%s192 + $0x250] sm:$0xf]
      %v348 = vld [vmem:[%s192 + $0x254] sm:$0xf]
      %v349 = vld [vmem:[%s192 + $0x258] sm:$0xf]
      %v350 = vld [vmem:[%s192 + $0x25c] sm:$0xf]
      %v351 = vld [vmem:[%s192 + $0x260] sm:$0xf]
      %v352 = vld [vmem:[%s192 + $0x264] sm:$0xf]
      %v353 = vld [vmem:[%s192 + $0x268] sm:$0xf]
      %v354 = vld [vmem:[%s192 + $0x26c] sm:$0xf]
      %v355 = vld [vmem:[%s192 + $0x270] sm:$0xf]
      %v356 = vld [vmem:[%s192 + $0x274] sm:$0xf]
      %v357 = vld [vmem:[%s192 + $0x278] sm:$0xf]
      %v358 = vld [vmem:[%s192 + $0x27c] sm:$0xf]
      %v359 = vld [vmem:[%s192 + $0x280] sm:$0xf]
      %v360 = vld [vmem:[%s192 + $0x284] sm:$0xf]
      %v361 = vld [vmem:[%s192 + $0x288] sm:$0xf]
      %v362 = vld [vmem:[%s192 + $0x28c] sm:$0xf]
      %v363 = vld [vmem:[%s192 + $0x290] sm:$0xf]
      %v364 = vld [vmem:[%s192 + $0x294] sm:$0xf]
      %v365 = vld [vmem:[%s192 + $0x298] sm:$0xf]
      %v366 = vld [vmem:[%s192 + $0x29c] sm:$0xf]
      %v367 = vld [vmem:[%s192 + $0x2a0] sm:$0xf]
      %v368 = vld [vmem:[%s192 + $0x2a4] sm:$0xf]
      %v369 = vld [vmem:[%s192 + $0x2a8] sm:$0xf]
      %v370 = vld [vmem:[%s192 + $0x2ac] sm:$0xf]
      %v371 = vld [vmem:[%s192 + $0x2b0] sm:$0xf]
      %v372 = vld [vmem:[%s192 + $0x2b4] sm:$0xf]
      %v373 = vld [vmem:[%s192 + $0x2b8] sm:$0xf]
      %v374 = vld [vmem:[%s192 + $0x2bc] sm:$0xf]
      %v375 = vld [vmem:[%s192 + $0x2c0] sm:$0xf]
      %v376 = vld [vmem:[%s192 + $0x2c4] sm:$0xf]
      %v377 = vld [vmem:[%s192 + $0x2c8] sm:$0xf]
      %v378 = vld [vmem:[%s192 + $0x2cc] sm:$0xf]
      %v379 = vld [vmem:[%s192 + $0x2d0] sm:$0xf]
      %v380 = vld [vmem:[%s192 + $0x2d4] sm:$0xf]
      %v381 = vld [vmem:[%s192 + $0x2d8] sm:$0xf]
      %v382 = vld [vmem:[%s192 + $0x2dc] sm:$0xf]
      %v383 = vld [vmem:[%s192 + $0x2e0] sm:$0xf]
      %v384 = vld [vmem:[%s192 + $0x2e4] sm:$0xf]
      %v385 = vld [vmem:[%s192 + $0x2e8] sm:$0xf]
      %v386 = vld [vmem:[%s192 + $0x2ec] sm:$0xf]
      %v387 = vld [vmem:[%s192 + $0x2f0] sm:$0xf]
      %v388 = vld [vmem:[%s192 + $0x2f4] sm:$0xf]
      %v389 = vld [vmem:[%s192 + $0x2f8] sm:$0xf]
      %v390 = vld [vmem:[%s192 + $0x2fc] sm:$0xf]
      %v391 = vld [vmem:[%s192 + $0x300] sm:$0xf]
      %v392 = vld [vmem:[%s192 + $0x304] sm:$0xf]
      %v393 = vld [vmem:[%s192 + $0x308] sm:$0xf]
      %v394 = vld [vmem:[%s192 + $0x30c] sm:$0xf]
      %v395 = vld [vmem:[%s192 + $0x310] sm:$0xf]
      %v396 = vld [vmem:[%s192 + $0x314] sm:$0xf]
      %v397 = vld [vmem:[%s192 + $0x318] sm:$0xf]
      %v398 = vld [vmem:[%s192 + $0x31c] sm:$0xf]
      %v399 = vld [vmem:[%s192 + $0x320] sm:$0xf]
      %v400 = vld [vmem:[%s192 + $0x324] sm:$0xf]
      %v401 = vld [vmem:[%s192 + $0x328] sm:$0xf]
      %v402 = vld [vmem:[%s192 + $0x32c] sm:$0xf]
      %v403 = vld [vmem:[%s192 + $0x330] sm:$0xf]
      %v404 = vld [vmem:[%s192 + $0x334] sm:$0xf]
      %v405 = vld [vmem:[%s192 + $0x338] sm:$0xf]
      %v406 = vld [vmem:[%s192 + $0x33c] sm:$0xf]
      %v407 = vld [vmem:[%s192 + $0x340] sm:$0xf]
      %v408 = vld [vmem:[%s192 + $0x344] sm:$0xf]
      %v409 = vld [vmem:[%s192 + $0x348] sm:$0xf]
      %v410 = vld [vmem:[%s192 + $0x34c] sm:$0xf]
      %v411 = vld [vmem:[%s192 + $0x350] sm:$0xf]
      %v412 = vld [vmem:[%s192 + $0x354] sm:$0xf]
      %v413 = vld [vmem:[%s192 + $0x358] sm:$0xf]
      %v414 = vld [vmem:[%s192 + $0x35c] sm:$0xf]
      %v415 = vld [vmem:[%s192 + $0x360] sm:$0xf]
      %v416 = vld [vmem:[%s192 + $0x364] sm:$0xf]
      %v417 = vld [vmem:[%s192 + $0x368] sm:$0xf]
      %v418 = vld [vmem:[%s192 + $0x36c] sm:$0xf]
      %v419 = vld [vmem:[%s192 + $0x370] sm:$0xf]
      %v420 = vld [vmem:[%s192 + $0x374] sm:$0xf]
      %v421 = vld [vmem:[%s192 + $0x378] sm:$0xf]
      %v422 = vld [vmem:[%s192 + $0x37c] sm:$0xf]
      %v423 = vld [vmem:[%s192 + $0x380] sm:$0xf]
      %v424 = vld [vmem:[%s192 + $0x384] sm:$0xf]
      %v425 = vld [vmem:[%s192 + $0x388] sm:$0xf]
      %v426 = vld [vmem:[%s192 + $0x38c] sm:$0xf]
      %v427 = vld [vmem:[%s192 + $0x390] sm:$0xf]
      %v428 = vld [vmem:[%s192 + $0x394] sm:$0xf]
      %v429 = vld [vmem:[%s192 + $0x398] sm:$0xf]
      %v430 = vld [vmem:[%s192 + $0x39c] sm:$0xf]
      %v431 = vld [vmem:[%s192 + $0x3a0] sm:$0xf]
      %v432 = vld [vmem:[%s192 + $0x3a4] sm:$0xf]
      %v433 = vld [vmem:[%s192 + $0x3a8] sm:$0xf]
      %v434 = vld [vmem:[%s192 + $0x3ac] sm:$0xf]
      %v435 = vld [vmem:[%s192 + $0x3b0] sm:$0xf]
      %v436 = vld [vmem:[%s192 + $0x3b4] sm:$0xf]
      %v437 = vld [vmem:[%s192 + $0x3b8] sm:$0xf]
      %v438 = vld [vmem:[%s192 + $0x3bc] sm:$0xf]
      %v439 = vld [vmem:[%s192 + $0x3c0] sm:$0xf]
      %v440 = vld [vmem:[%s192 + $0x3c4] sm:$0xf]
      %v441 = vld [vmem:[%s192 + $0x3c8] sm:$0xf]
      %v442 = vld [vmem:[%s192 + $0x3cc] sm:$0xf]
      %v443 = vld [vmem:[%s192 + $0x3d0] sm:$0xf]
      %v444 = vld [vmem:[%s192 + $0x3d4] sm:$0xf]
      %v445 = vld [vmem:[%s192 + $0x3d8] sm:$0xf]
      %v446 = vld [vmem:[%s192 + $0x3dc] sm:$0xf]
      %v447 = vld [vmem:[%s192 + $0x3e0] sm:$0xf]
      %v448 = vld [vmem:[%s192 + $0x3e4] sm:$0xf]
      %v449 = vld [vmem:[%s192 + $0x3e8] sm:$0xf]
      %v450 = vld [vmem:[%s192 + $0x3ec] sm:$0xf]
      %v451 = vld [vmem:[%s192 + $0x3f0] sm:$0xf]
      %v452 = vld [vmem:[%s192 + $0x3f4] sm:$0xf]
      %v453 = vld [vmem:[%s192 + $0x3f8] sm:$0xf]
      %v454 = vld [vmem:[%s192 + $0x3fc] sm:$0xf]
      %v455 = vld [vmem:[%s192 + $0x400] sm:$0xf]
      %v456 = vld [vmem:[%s192 + $0x404] sm:$0xf]
      %v457 = vld [vmem:[%s192 + $0x408] sm:$0xf]
      %v458 = vld [vmem:[%s192 + $0x40c] sm:$0xf]
      %v459 = vld [vmem:[%s192 + $0x410] sm:$0xf]
      %v460 = vld [vmem:[%s192 + $0x414] sm:$0xf]
      %v461 = vld [vmem:[%s192 + $0x418] sm:$0xf]
      %v462 = vld [vmem:[%s192 + $0x41c] sm:$0xf]
      %v463 = vld [vmem:[%s192 + $0x420] sm:$0xf]
      %v464 = vld [vmem:[%s192 + $0x424] sm:$0xf]
      %v465 = vld [vmem:[%s192 + $0x428] sm:$0xf]
      %v466 = vld [vmem:[%s192 + $0x42c] sm:$0xf]
      %v467 = vld [vmem:[%s192 + $0x430] sm:$0xf]
      %v468 = vld [vmem:[%s192 + $0x434] sm:$0xf]
      %v469 = vld [vmem:[%s192 + $0x438] sm:$0xf]
      %v470 = vld [vmem:[%s192 + $0x43c] sm:$0xf]
      %v471 = vld [vmem:[%s192 + $0x440] sm:$0xf]
      %v472 = vld [vmem:[%s192 + $0x444] sm:$0xf]
      %v473 = vld [vmem:[%s192 + $0x448] sm:$0xf]
      %v474 = vld [vmem:[%s192 + $0x44c] sm:$0xf]
      %v475 = vld [vmem:[%s192 + $0x450] sm:$0xf]
      %v476 = vld [vmem:[%s192 + $0x454] sm:$0xf]
      %v477 = vld [vmem:[%s192 + $0x458] sm:$0xf]
      %v478 = vld [vmem:[%s192 + $0x45c] sm:$0xf]
      %v479 = vld [vmem:[%s192 + $0x460] sm:$0xf]
      %v480 = vld [vmem:[%s192 + $0x464] sm:$0xf]
      %v481 = vld [vmem:[%s192 + $0x468] sm:$0xf]
      %v482 = vld [vmem:[%s192 + $0x46c] sm:$0xf]
      %v483 = vld [vmem:[%s192 + $0x470] sm:$0xf]
      %v484 = vld [vmem:[%s192 + $0x474] sm:$0xf]
      %v485 = vld [vmem:[%s192 + $0x478] sm:$0xf]
      %v486 = vld [vmem:[%s192 + $0x47c] sm:$0xf]
      %v487 = vld [vmem:[%s192 + $0x480] sm:$0xf]
      %v488 = vld [vmem:[%s192 + $0x484] sm:$0xf]
      %v489 = vld [vmem:[%s192 + $0x488] sm:$0xf]
      %v490 = vld [vmem:[%s192 + $0x48c] sm:$0xf]
      %v491 = vld [vmem:[%s192 + $0x490] sm:$0xf]
      %v492 = vld [vmem:[%s192 + $0x494] sm:$0xf]
      %v493 = vld [vmem:[%s192 + $0x498] sm:$0xf]
      %v494 = vld [vmem:[%s192 + $0x49c] sm:$0xf]
      %v495 = vld [vmem:[%s192 + $0x4a0] sm:$0xf]
      %v496 = vld [vmem:[%s192 + $0x4a4] sm:$0xf]
      %v497 = vld [vmem:[%s192 + $0x4a8] sm:$0xf]
      %v498 = vld [vmem:[%s192 + $0x4ac] sm:$0xf]
      %v499 = vld [vmem:[%s192 + $0x4b0] sm:$0xf]
      %v500 = vld [vmem:[%s192 + $0x4b4] sm:$0xf]
      %v501 = vld [vmem:[%s192 + $0x4b8] sm:$0xf]
      %v502 = vld [vmem:[%s192 + $0x4bc] sm:$0xf]
      %v503 = vld [vmem:[%s192 + $0x4c0] sm:$0xf]
      %v504 = vld [vmem:[%s192 + $0x4c4] sm:$0xf]
      %v505 = vld [vmem:[%s192 + $0x4c8] sm:$0xf]
      %v506 = vld [vmem:[%s192 + $0x4cc] sm:$0xf]
      %v507 = vld [vmem:[%s192 + $0x4d0] sm:$0xf]
      %v508 = vld [vmem:[%s192 + $0x4d4] sm:$0xf]
      %v509 = vld [vmem:[%s192 + $0x4d8] sm:$0xf]
      %v510 = vld [vmem:[%s192 + $0x4dc] sm:$0xf]
      %v511 = vld [vmem:[%s192 + $0x4e0] sm:$0xf]
      %v512 = vld [vmem:[%s192 + $0x4e4] sm:$0xf]
      %v513 = vld [vmem:[%s192 + $0x4e8] sm:$0xf]
      %v514 = vld [vmem:[%s192 + $0x4ec] sm:$0xf]
      %v515 = vld [vmem:[%s192 + $0x4f0] sm:$0xf]
      %v516 = vld [vmem:[%s192 + $0x4f4] sm:$0xf]
      %v517 = vld [vmem:[%s192 + $0x4f8] sm:$0xf]
      %v518 = vld [vmem:[%s192 + $0x4fc] sm:$0xf]
      %v519 = vld [vmem:[%s192 + $0x500] sm:$0xf]
      %v520 = vld [vmem:[%s192 + $0x504] sm:$0xf]
      %v521 = vld [vmem:[%s192 + $0x508] sm:$0xf]
      %v522 = vld [vmem:[%s192 + $0x50c] sm:$0xf]
      %v523 = vld [vmem:[%s192 + $0x510] sm:$0xf]
      %v524 = vld [vmem:[%s192 + $0x514] sm:$0xf]
      %v525 = vld [vmem:[%s192 + $0x518] sm:$0xf]
      %v526 = vld [vmem:[%s192 + $0x51c] sm:$0xf]
      %v527 = vld [vmem:[%s192 + $0x520] sm:$0xf]
      %v528 = vld [vmem:[%s192 + $0x524] sm:$0xf]
      %v529 = vld [vmem:[%s192 + $0x528] sm:$0xf]
      %v530 = vld [vmem:[%s192 + $0x52c] sm:$0xf]
      %v531 = vld [vmem:[%s192 + $0x530] sm:$0xf]
      %v532 = vld [vmem:[%s192 + $0x534] sm:$0xf]
      %v533 = vld [vmem:[%s192 + $0x538] sm:$0xf]
      %v534 = vld [vmem:[%s192 + $0x53c] sm:$0xf]
      %v535 = vld [vmem:[%s192 + $0x540] sm:$0xf]
      %v536 = vld [vmem:[%s192 + $0x544] sm:$0xf]
      %v537 = vld [vmem:[%s192 + $0x548] sm:$0xf]
      %v538 = vld [vmem:[%s192 + $0x54c] sm:$0xf]
      %v539 = vld [vmem:[%s192 + $0x550] sm:$0xf]
      %v540 = vld [vmem:[%s192 + $0x554] sm:$0xf]
      %v541 = vld [vmem:[%s192 + $0x558] sm:$0xf]
      %v542 = vld [vmem:[%s192 + $0x55c] sm:$0xf]
      %v543 = vld [vmem:[%s192 + $0x560] sm:$0xf]
      %v544 = vld [vmem:[%s192 + $0x564] sm:$0xf]
      %v545 = vld [vmem:[%s192 + $0x568] sm:$0xf]
      %v546 = vld [vmem:[%s192 + $0x56c] sm:$0xf]
      %v547 = vld [vmem:[%s192 + $0x570] sm:$0xf]
      %v548 = vld [vmem:[%s192 + $0x574] sm:$0xf]
      %v549 = vld [vmem:[%s192 + $0x578] sm:$0xf]
      %v550 = vld [vmem:[%s192 + $0x57c] sm:$0xf]
      %v551 = vld [vmem:[%s192 + $0x580] sm:$0xf]
      %v552 = vld [vmem:[%s192 + $0x584] sm:$0xf]
      %v553 = vld [vmem:[%s192 + $0x588] sm:$0xf]
      %v554 = vld [vmem:[%s192 + $0x58c] sm:$0xf]
      %v555 = vld [vmem:[%s192 + $0x590] sm:$0xf]
      %v556 = vld [vmem:[%s192 + $0x594] sm:$0xf]
      %v557 = vld [vmem:[%s192 + $0x598] sm:$0xf]
      %v558 = vld [vmem:[%s192 + $0x59c] sm:$0xf]
      %v559 = vld [vmem:[%s192 + $0x5a0] sm:$0xf]
      %v560 = vld [vmem:[%s192 + $0x5a4] sm:$0xf]
      %v561 = vld [vmem:[%s192 + $0x5a8] sm:$0xf]
      %v562 = vld [vmem:[%s192 + $0x5ac] sm:$0xf]
      %v563 = vld [vmem:[%s192 + $0x5b0] sm:$0xf]
      %v564 = vld [vmem:[%s192 + $0x5b4] sm:$0xf]
      %v565 = vld [vmem:[%s192 + $0x5b8] sm:$0xf]
      %v566 = vld [vmem:[%s192 + $0x5bc] sm:$0xf]
      %v567 = vld [vmem:[%s192 + $0x5c0] sm:$0xf]
      %v568 = vld [vmem:[%s192 + $0x5c4] sm:$0xf]
      %v569 = vld [vmem:[%s192 + $0x5c8] sm:$0xf]
      %v570 = vld [vmem:[%s192 + $0x5cc] sm:$0xf]
      %v571 = vld [vmem:[%s192 + $0x5d0] sm:$0xf]
      %v572 = vld [vmem:[%s192 + $0x5d4] sm:$0xf]
      %v573 = vld [vmem:[%s192 + $0x5d8] sm:$0xf]
      %v574 = vld [vmem:[%s192 + $0x5dc] sm:$0xf]
      %v575 = vld [vmem:[%s192 + $0x5e0] sm:$0xf]
      %v576 = vld [vmem:[%s192 + $0x5e4] sm:$0xf]
      %v577 = vld [vmem:[%s192 + $0x5e8] sm:$0xf]
      %v578 = vld [vmem:[%s192 + $0x5ec] sm:$0xf]
      %v579 = vld [vmem:[%s192 + $0x5f0] sm:$0xf]
      %v580 = vld [vmem:[%s192 + $0x5f4] sm:$0xf]
      %v581 = vld [vmem:[%s192 + $0x5f8] sm:$0xf]
      %v582 = vld [vmem:[%s192 + $0x5fc] sm:$0xf]
      %v583 = vld [vmem:[%s192 + $0x600] sm:$0xf]
      %v584 = vld [vmem:[%s192 + $0x604] sm:$0xf]
      %v585 = vld [vmem:[%s192 + $0x608] sm:$0xf]
      %v586 = vld [vmem:[%s192 + $0x60c] sm:$0xf]
      %v587 = vld [vmem:[%s192 + $0x610] sm:$0xf]
      %v588 = vld [vmem:[%s192 + $0x614] sm:$0xf]
      %v589 = vld [vmem:[%s192 + $0x618] sm:$0xf]
      %v590 = vld [vmem:[%s192 + $0x61c] sm:$0xf]
      %v591 = vld [vmem:[%s192 + $0x620] sm:$0xf]
      %v592 = vld [vmem:[%s192 + $0x624] sm:$0xf]
      %v593 = vld [vmem:[%s192 + $0x628] sm:$0xf]
      %v594 = vld [vmem:[%s192 + $0x62c] sm:$0xf]
      %v595 = vld [vmem:[%s192 + $0x630] sm:$0xf]
      %v596 = vld [vmem:[%s192 + $0x634] sm:$0xf]
      %v597 = vld [vmem:[%s192 + $0x638] sm:$0xf]
      %v598 = vld [vmem:[%s192 + $0x63c] sm:$0xf]
      %v599 = vld [vmem:[%s192 + $0x640] sm:$0xf]
      %v600 = vld [vmem:[%s192 + $0x644] sm:$0xf]
      %v601 = vld [vmem:[%s192 + $0x648] sm:$0xf]
      %v602 = vld [vmem:[%s192 + $0x64c] sm:$0xf]
      %v603 = vld [vmem:[%s192 + $0x650] sm:$0xf]
      %v604 = vld [vmem:[%s192 + $0x654] sm:$0xf]
      %v605 = vld [vmem:[%s192 + $0x658] sm:$0xf]
      %v606 = vld [vmem:[%s192 + $0x65c] sm:$0xf]
      %v607 = vld [vmem:[%s192 + $0x660] sm:$0xf]
      %v608 = vld [vmem:[%s192 + $0x664] sm:$0xf]
      %v609 = vld [vmem:[%s192 + $0x668] sm:$0xf]
      %v610 = vld [vmem:[%s192 + $0x66c] sm:$0xf]
      %v611 = vld [vmem:[%s192 + $0x670] sm:$0xf]
      %v612 = vld [vmem:[%s192 + $0x674] sm:$0xf]
      %v613 = vld [vmem:[%s192 + $0x678] sm:$0xf]
      %v614 = vld [vmem:[%s192 + $0x67c] sm:$0xf]
      %v615 = vld [vmem:[%s192 + $0x680] sm:$0xf]
      %v616 = vld [vmem:[%s192 + $0x684] sm:$0xf]
      %v617 = vld [vmem:[%s192 + $0x688] sm:$0xf]
      %v618 = vld [vmem:[%s192 + $0x68c] sm:$0xf]
      %v619 = vld [vmem:[%s192 + $0x690] sm:$0xf]
      %v620 = vld [vmem:[%s192 + $0x694] sm:$0xf]
      %v621 = vld [vmem:[%s192 + $0x698] sm:$0xf]
      %v622 = vld [vmem:[%s192 + $0x69c] sm:$0xf]
      %v623 = vld [vmem:[%s192 + $0x6a0] sm:$0xf]
      %v624 = vld [vmem:[%s192 + $0x6a4] sm:$0xf]
      %v625 = vld [vmem:[%s192 + $0x6a8] sm:$0xf]
      %v626 = vld [vmem:[%s192 + $0x6ac] sm:$0xf]
      %v627 = vld [vmem:[%s192 + $0x6b0] sm:$0xf]
      %v628 = vld [vmem:[%s192 + $0x6b4] sm:$0xf]
      %v629 = vld [vmem:[%s192 + $0x6b8] sm:$0xf]
      %v630 = vld [vmem:[%s192 + $0x6bc] sm:$0xf]
      %v631 = vld [vmem:[%s192 + $0x6c0] sm:$0xf]
      %v632 = vld [vmem:[%s192 + $0x6c4] sm:$0xf]
      %v633 = vld [vmem:[%s192 + $0x6c8] sm:$0xf]
      %v634 = vld [vmem:[%s192 + $0x6cc] sm:$0xf]
      %v635 = vld [vmem:[%s192 + $0x6d0] sm:$0xf]
      %v636 = vld [vmem:[%s192 + $0x6d4] sm:$0xf]
      %v637 = vld [vmem:[%s192 + $0x6d8] sm:$0xf]
      %v638 = vld [vmem:[%s192 + $0x6dc] sm:$0xf]
      %v639 = vld [vmem:[%s192 + $0x6e0] sm:$0xf]
      %v640 = vld [vmem:[%s192 + $0x6e4] sm:$0xf]
      %v641 = vld [vmem:[%s192 + $0x6e8] sm:$0xf]
      %v642 = vld [vmem:[%s192 + $0x6ec] sm:$0xf]
      %v643 = vld [vmem:[%s192 + $0x6f0] sm:$0xf]
      %v644 = vld [vmem:[%s192 + $0x6f4] sm:$0xf]
      %v645 = vld [vmem:[%s192 + $0x6f8] sm:$0xf]
      %v646 = vld [vmem:[%s192 + $0x6fc] sm:$0xf]
      %v647 = vld [vmem:[%s192 + $0x700] sm:$0xf]
      %v648 = vld [vmem:[%s192 + $0x704] sm:$0xf]
      %v649 = vld [vmem:[%s192 + $0x708] sm:$0xf]
      %v650 = vld [vmem:[%s192 + $0x70c] sm:$0xf]
      %v651 = vld [vmem:[%s192 + $0x710] sm:$0xf]
      %v652 = vld [vmem:[%s192 + $0x714] sm:$0xf]
      %v653 = vld [vmem:[%s192 + $0x718] sm:$0xf]
      %v654 = vld [vmem:[%s192 + $0x71c] sm:$0xf]
      %v655 = vld [vmem:[%s192 + $0x720] sm:$0xf]
      %v656 = vld [vmem:[%s192 + $0x724] sm:$0xf]
      %v657 = vld [vmem:[%s192 + $0x728] sm:$0xf]
      %v658 = vld [vmem:[%s192 + $0x72c] sm:$0xf]
      %v659 = vld [vmem:[%s192 + $0x730] sm:$0xf]
      %v660 = vld [vmem:[%s192 + $0x734] sm:$0xf]
      %v661 = vld [vmem:[%s192 + $0x738] sm:$0xf]
      %v662 = vld [vmem:[%s192 + $0x73c] sm:$0xf]
      %v663 = vld [vmem:[%s192 + $0x740] sm:$0xf]
      %v664 = vld [vmem:[%s192 + $0x744] sm:$0xf]
      %v665 = vld [vmem:[%s192 + $0x748] sm:$0xf]
      %v666 = vld [vmem:[%s192 + $0x74c] sm:$0xf]
      %v667 = vld [vmem:[%s192 + $0x750] sm:$0xf]
      %v668 = vld [vmem:[%s192 + $0x754] sm:$0xf]
      %v669 = vld [vmem:[%s192 + $0x758] sm:$0xf]
      %v670 = vld [vmem:[%s192 + $0x75c] sm:$0xf]
      %v671 = vld [vmem:[%s192 + $0x760] sm:$0xf]
      %v672 = vld [vmem:[%s192 + $0x764] sm:$0xf]
      %v673 = vld [vmem:[%s192 + $0x768] sm:$0xf]
      %v674 = vld [vmem:[%s192 + $0x76c] sm:$0xf]
      %v675 = vld [vmem:[%s192 + $0x770] sm:$0xf]
      %v676 = vld [vmem:[%s192 + $0x774] sm:$0xf]
      %v677 = vld [vmem:[%s192 + $0x778] sm:$0xf]
      %v678 = vld [vmem:[%s192 + $0x77c] sm:$0xf]
      %v679 = vld [vmem:[%s192 + $0x780] sm:$0xf]
      %v680 = vld [vmem:[%s192 + $0x784] sm:$0xf]
      %v681 = vld [vmem:[%s192 + $0x788] sm:$0xf]
      %v682 = vld [vmem:[%s192 + $0x78c] sm:$0xf]
      %v683 = vld [vmem:[%s192 + $0x790] sm:$0xf]
      %v684 = vld [vmem:[%s192 + $0x794] sm:$0xf]
      %v685 = vld [vmem:[%s192 + $0x798] sm:$0xf]
      %v686 = vld [vmem:[%s192 + $0x79c] sm:$0xf]
      %v687 = vld [vmem:[%s192 + $0x7a0] sm:$0xf]
      %v688 = vld [vmem:[%s192 + $0x7a4] sm:$0xf]
      %v689 = vld [vmem:[%s192 + $0x7a8] sm:$0xf]
      %v690 = vld [vmem:[%s192 + $0x7ac] sm:$0xf]
      %v691 = vld [vmem:[%s192 + $0x7b0] sm:$0xf]
      %v692 = vld [vmem:[%s192 + $0x7b4] sm:$0xf]
      %v693 = vld [vmem:[%s192 + $0x7b8] sm:$0xf]
      %v694 = vld [vmem:[%s192 + $0x7bc] sm:$0xf]
      %v695 = vld [vmem:[%s192 + $0x7c0] sm:$0xf]
      %v696 = vld [vmem:[%s192 + $0x7c4] sm:$0xf]
      %v697 = vld [vmem:[%s192 + $0x7c8] sm:$0xf]
      %v698 = vld [vmem:[%s192 + $0x7cc] sm:$0xf]
      %v699 = vld [vmem:[%s192 + $0x7d0] sm:$0xf]
      %v700 = vld [vmem:[%s192 + $0x7d4] sm:$0xf]
      %v701 = vld [vmem:[%s192 + $0x7d8] sm:$0xf]
      %v702 = vld [vmem:[%s192 + $0x7dc] sm:$0xf]
      %v703 = vld [vmem:[%s192 + $0x7e0] sm:$0xf]
      %v704 = vld [vmem:[%s192 + $0x7e4] sm:$0xf]
      %v705 = vld [vmem:[%s192 + $0x7e8] sm:$0xf]
      %v706 = vld [vmem:[%s192 + $0x7ec] sm:$0xf]
      %v707 = vld [vmem:[%s192 + $0x7f0] sm:$0xf]
      %v708 = vld [vmem:[%s192 + $0x7f4] sm:$0xf]
      %v709 = vld [vmem:[%s192 + $0x7f8] sm:$0xf]
      %v710 = vld [vmem:[%s192 + $0x7fc] sm:$0xf]
      %v711 = vld [vmem:[%s1] sm:$0xf]
      %v712 = vld [vmem:[%s1 + $0x4] sm:$0xf]
      %v713 = vld [vmem:[%s1 + $0x8] sm:$0xf]
      %v714 = vld [vmem:[%s1 + $0xc] sm:$0x3]
      %v715 = vld [vmem:[%s2] sm:$0x1]
      %v717 = vlaneseq
      %v718 = vshrl.u32 %v717, 7
      %v719 = vsub.s32 0, %v718
      %v720 = vrot.slane %v715, %v719
      %v1234 = vunpack.c.l.b16 %v199
      %v1235 = vunpack.c.l.b16 %v200
      %v1236 = vunpack.c.l.b16 %v201
      %v1237 = vunpack.c.l.b16 %v202
      %v1238 = vunpack.c.l.b16 %v203
      %v1239 = vunpack.c.l.b16 %v204
      %v1240 = vunpack.c.l.b16 %v205
      %v1241 = vunpack.c.l.b16 %v206
      %v1242 = vunpack.c.l.b16 %v207
      %v1243 = vunpack.c.l.b16 %v208
      %v1244 = vunpack.c.l.b16 %v209
      %v1245 = vunpack.c.l.b16 %v210
      %v1246 = vunpack.c.l.b16 %v211
      %v1247 = vunpack.c.l.b16 %v212
      %v1248 = vunpack.c.l.b16 %v213
      %v1249 = vunpack.c.l.b16 %v214
      %v1250 = vunpack.c.l.b16 %v215
      %v1251 = vunpack.c.l.b16 %v216
      %v1252 = vunpack.c.l.b16 %v217
      %v1253 = vunpack.c.l.b16 %v218
      %v1254 = vunpack.c.l.b16 %v219
      %v1255 = vunpack.c.l.b16 %v220
      %v1256 = vunpack.c.l.b16 %v221
      %v1257 = vunpack.c.l.b16 %v222
      %v1258 = vunpack.c.l.b16 %v223
      %v1259 = vunpack.c.l.b16 %v224
      %v1260 = vunpack.c.l.b16 %v225
      %v1261 = vunpack.c.l.b16 %v226
      %v1262 = vunpack.c.l.b16 %v227
      %v1263 = vunpack.c.l.b16 %v228
      %v1264 = vunpack.c.l.b16 %v229
      %v1265 = vunpack.c.l.b16 %v230
      %v1266 = vunpack.c.l.b16 %v231
      %v1267 = vunpack.c.l.b16 %v232
      %v1268 = vunpack.c.l.b16 %v233
      %v1269 = vunpack.c.l.b16 %v234
      %v1270 = vunpack.c.l.b16 %v235
      %v1271 = vunpack.c.l.b16 %v236
      %v1272 = vunpack.c.l.b16 %v237
      %v1273 = vunpack.c.l.b16 %v238
      %v1274 = vunpack.c.l.b16 %v239
      %v1275 = vunpack.c.l.b16 %v240
      %v1276 = vunpack.c.l.b16 %v241
      %v1277 = vunpack.c.l.b16 %v242
      %v1278 = vunpack.c.l.b16 %v243
      %v1279 = vunpack.c.l.b16 %v244
      %v1280 = vunpack.c.l.b16 %v245
      %v1281 = vunpack.c.l.b16 %v246
      %v1282 = vunpack.c.l.b16 %v247
      %v1283 = vunpack.c.l.b16 %v248
      %v1284 = vunpack.c.l.b16 %v249
      %v1285 = vunpack.c.l.b16 %v250
      %v1286 = vunpack.c.l.b16 %v251
      %v1287 = vunpack.c.l.b16 %v252
      %v1288 = vunpack.c.l.b16 %v253
      %v1289 = vunpack.c.l.b16 %v254
      %v1290 = vunpack.c.l.b16 %v255
      %v1291 = vunpack.c.l.b16 %v256
      %v1292 = vunpack.c.l.b16 %v257
      %v1293 = vunpack.c.l.b16 %v258
      %v1294 = vunpack.c.l.b16 %v259
      %v1295 = vunpack.c.l.b16 %v260
      %v1296 = vunpack.c.l.b16 %v261
      %v1297 = vunpack.c.l.b16 %v262
      %v1298 = vunpack.c.l.b16 %v263
      %v1299 = vunpack.c.l.b16 %v264
      %v1300 = vunpack.c.l.b16 %v265
      %v1301 = vunpack.c.l.b16 %v266
      %v1302 = vunpack.c.l.b16 %v267
      %v1303 = vunpack.c.l.b16 %v268
      %v1304 = vunpack.c.l.b16 %v269
      %v1305 = vunpack.c.l.b16 %v270
      %v1306 = vunpack.c.l.b16 %v271
      %v1307 = vunpack.c.l.b16 %v272
      %v1308 = vunpack.c.l.b16 %v273
      %v1309 = vunpack.c.l.b16 %v274
      %v1310 = vunpack.c.l.b16 %v275
      %v1311 = vunpack.c.l.b16 %v276
      %v1312 = vunpack.c.l.b16 %v277
      %v1313 = vunpack.c.l.b16 %v278
      %v1314 = vunpack.c.l.b16 %v279
      %v1315 = vunpack.c.l.b16 %v280
      %v1316 = vunpack.c.l.b16 %v281
      %v1317 = vunpack.c.l.b16 %v282
      %v1318 = vunpack.c.l.b16 %v283
      %v1319 = vunpack.c.l.b16 %v284
      %v1320 = vunpack.c.l.b16 %v285
      %v1321 = vunpack.c.l.b16 %v286
      %v1322 = vunpack.c.l.b16 %v287
      %v1323 = vunpack.c.l.b16 %v288
      %v1324 = vunpack.c.l.b16 %v289
      %v1325 = vunpack.c.l.b16 %v290
      %v1326 = vunpack.c.l.b16 %v291
      %v1327 = vunpack.c.l.b16 %v292
      %v1328 = vunpack.c.l.b16 %v293
      %v1329 = vunpack.c.l.b16 %v294
      %v1330 = vunpack.c.l.b16 %v295
      %v1331 = vunpack.c.l.b16 %v296
      %v1332 = vunpack.c.l.b16 %v297
      %v1333 = vunpack.c.l.b16 %v298
      %v1334 = vunpack.c.l.b16 %v299
      %v1335 = vunpack.c.l.b16 %v300
      %v1336 = vunpack.c.l.b16 %v301
      %v1337 = vunpack.c.l.b16 %v302
      %v1338 = vunpack.c.l.b16 %v303
      %v1339 = vunpack.c.l.b16 %v304
      %v1340 = vunpack.c.l.b16 %v305
      %v1341 = vunpack.c.l.b16 %v306
      %v1342 = vunpack.c.l.b16 %v307
      %v1343 = vunpack.c.l.b16 %v308
      %v1344 = vunpack.c.l.b16 %v309
      %v1345 = vunpack.c.l.b16 %v310
      %v1346 = vunpack.c.l.b16 %v311
      %v1347 = vunpack.c.l.b16 %v312
      %v1348 = vunpack.c.l.b16 %v313
      %v1349 = vunpack.c.l.b16 %v314
      %v1350 = vunpack.c.l.b16 %v315
      %v1351 = vunpack.c.l.b16 %v316
      %v1352 = vunpack.c.l.b16 %v317
      %v1353 = vunpack.c.l.b16 %v318
      %v1354 = vunpack.c.l.b16 %v319
      %v1355 = vunpack.c.l.b16 %v320
      %v1356 = vunpack.c.l.b16 %v321
      %v1357 = vunpack.c.l.b16 %v322
      %v1358 = vunpack.c.l.b16 %v323
      %v1359 = vunpack.c.l.b16 %v324
      %v1360 = vunpack.c.l.b16 %v325
      %v1361 = vunpack.c.l.b16 %v326
      %v1362 = vunpack.c.l.b16 %v327
      %v1363 = vunpack.c.l.b16 %v328
      %v1364 = vunpack.c.l.b16 %v329
      %v1365 = vunpack.c.l.b16 %v330
      %v1366 = vunpack.c.l.b16 %v331
      %v1367 = vunpack.c.l.b16 %v332
      %v1368 = vunpack.c.l.b16 %v333
      %v1369 = vunpack.c.l.b16 %v334
      %v1370 = vunpack.c.l.b16 %v335
      %v1371 = vunpack.c.l.b16 %v336
      %v1372 = vunpack.c.l.b16 %v337
      %v1373 = vunpack.c.l.b16 %v338
      %v1374 = vunpack.c.l.b16 %v339
      %v1375 = vunpack.c.l.b16 %v340
      %v1376 = vunpack.c.l.b16 %v341
      %v1377 = vunpack.c.l.b16 %v342
      %v1378 = vunpack.c.l.b16 %v343
      %v1379 = vunpack.c.l.b16 %v344
      %v1380 = vunpack.c.l.b16 %v345
      %v1381 = vunpack.c.l.b16 %v346
      %v1382 = vunpack.c.l.b16 %v347
      %v1383 = vunpack.c.l.b16 %v348
      %v1384 = vunpack.c.l.b16 %v349
      %v1385 = vunpack.c.l.b16 %v350
      %v1386 = vunpack.c.l.b16 %v351
      %v1387 = vunpack.c.l.b16 %v352
      %v1388 = vunpack.c.l.b16 %v353
      %v1389 = vunpack.c.l.b16 %v354
      %v1390 = vunpack.c.l.b16 %v355
      %v1391 = vunpack.c.l.b16 %v356
      %v1392 = vunpack.c.l.b16 %v357
      %v1393 = vunpack.c.l.b16 %v358
      %v1394 = vunpack.c.l.b16 %v359
      %v1395 = vunpack.c.l.b16 %v360
      %v1396 = vunpack.c.l.b16 %v361
      %v1397 = vunpack.c.l.b16 %v362
      %v1398 = vunpack.c.l.b16 %v363
      %v1399 = vunpack.c.l.b16 %v364
      %v1400 = vunpack.c.l.b16 %v365
      %v1401 = vunpack.c.l.b16 %v366
      %v1402 = vunpack.c.l.b16 %v367
      %v1403 = vunpack.c.l.b16 %v368
      %v1404 = vunpack.c.l.b16 %v369
      %v1405 = vunpack.c.l.b16 %v370
      %v1406 = vunpack.c.l.b16 %v371
      %v1407 = vunpack.c.l.b16 %v372
      %v1408 = vunpack.c.l.b16 %v373
      %v1409 = vunpack.c.l.b16 %v374
      %v1410 = vunpack.c.l.b16 %v375
      %v1411 = vunpack.c.l.b16 %v376
      %v1412 = vunpack.c.l.b16 %v377
      %v1413 = vunpack.c.l.b16 %v378
      %v1414 = vunpack.c.l.b16 %v379
      %v1415 = vunpack.c.l.b16 %v380
      %v1416 = vunpack.c.l.b16 %v381
      %v1417 = vunpack.c.l.b16 %v382
      %v1418 = vunpack.c.l.b16 %v383
      %v1419 = vunpack.c.l.b16 %v384
      %v1420 = vunpack.c.l.b16 %v385
      %v1421 = vunpack.c.l.b16 %v386
      %v1422 = vunpack.c.l.b16 %v387
      %v1423 = vunpack.c.l.b16 %v388
      %v1424 = vunpack.c.l.b16 %v389
      %v1425 = vunpack.c.l.b16 %v390
      %v1426 = vunpack.c.l.b16 %v391
      %v1427 = vunpack.c.l.b16 %v392
      %v1428 = vunpack.c.l.b16 %v393
      %v1429 = vunpack.c.l.b16 %v394
      %v1430 = vunpack.c.l.b16 %v395
      %v1431 = vunpack.c.l.b16 %v396
      %v1432 = vunpack.c.l.b16 %v397
      %v1433 = vunpack.c.l.b16 %v398
      %v1434 = vunpack.c.l.b16 %v399
      %v1435 = vunpack.c.l.b16 %v400
      %v1436 = vunpack.c.l.b16 %v401
      %v1437 = vunpack.c.l.b16 %v402
      %v1438 = vunpack.c.l.b16 %v403
      %v1439 = vunpack.c.l.b16 %v404
      %v1440 = vunpack.c.l.b16 %v405
      %v1441 = vunpack.c.l.b16 %v406
      %v1442 = vunpack.c.l.b16 %v407
      %v1443 = vunpack.c.l.b16 %v408
      %v1444 = vunpack.c.l.b16 %v409
      %v1445 = vunpack.c.l.b16 %v410
      %v1446 = vunpack.c.l.b16 %v411
      %v1447 = vunpack.c.l.b16 %v412
      %v1448 = vunpack.c.l.b16 %v413
      %v1449 = vunpack.c.l.b16 %v414
      %v1450 = vunpack.c.l.b16 %v415
      %v1451 = vunpack.c.l.b16 %v416
      %v1452 = vunpack.c.l.b16 %v417
      %v1453 = vunpack.c.l.b16 %v418
      %v1454 = vunpack.c.l.b16 %v419
      %v1455 = vunpack.c.l.b16 %v420
      %v1456 = vunpack.c.l.b16 %v421
      %v1457 = vunpack.c.l.b16 %v422
      %v1458 = vunpack.c.l.b16 %v423
      %v1459 = vunpack.c.l.b16 %v424
      %v1460 = vunpack.c.l.b16 %v425
      %v1461 = vunpack.c.l.b16 %v426
      %v1462 = vunpack.c.l.b16 %v427
      %v1463 = vunpack.c.l.b16 %v428
      %v1464 = vunpack.c.l.b16 %v429
      %v1465 = vunpack.c.l.b16 %v430
      %v1466 = vunpack.c.l.b16 %v431
      %v1467 = vunpack.c.l.b16 %v432
      %v1468 = vunpack.c.l.b16 %v433
      %v1469 = vunpack.c.l.b16 %v434
      %v1470 = vunpack.c.l.b16 %v435
      %v1471 = vunpack.c.l.b16 %v436
      %v1472 = vunpack.c.l.b16 %v437
      %v1473 = vunpack.c.l.b16 %v438
      %v1474 = vunpack.c.l.b16 %v439
      %v1475 = vunpack.c.l.b16 %v440
      %v1476 = vunpack.c.l.b16 %v441
      %v1477 = vunpack.c.l.b16 %v442
      %v1478 = vunpack.c.l.b16 %v443
      %v1479 = vunpack.c.l.b16 %v444
      %v1480 = vunpack.c.l.b16 %v445
      %v1481 = vunpack.c.l.b16 %v446
      %v1482 = vunpack.c.l.b16 %v447
      %v1483 = vunpack.c.l.b16 %v448
      %v1484 = vunpack.c.l.b16 %v449
      %v1485 = vunpack.c.l.b16 %v450
      %v1486 = vunpack.c.l.b16 %v451
      %v1487 = vunpack.c.l.b16 %v452
      %v1488 = vunpack.c.l.b16 %v453
      %v1489 = vunpack.c.l.b16 %v454
      %v1490 = vunpack.c.l.b16 %v455
      %v1491 = vunpack.c.l.b16 %v456
      %v1492 = vunpack.c.l.b16 %v457
      %v1493 = vunpack.c.l.b16 %v458
      %v1494 = vunpack.c.l.b16 %v459
      %v1495 = vunpack.c.l.b16 %v460
      %v1496 = vunpack.c.l.b16 %v461
      %v1497 = vunpack.c.l.b16 %v462
      %v1498 = vunpack.c.l.b16 %v463
      %v1499 = vunpack.c.l.b16 %v464
      %v1500 = vunpack.c.l.b16 %v465
      %v1501 = vunpack.c.l.b16 %v466
      %v1502 = vunpack.c.l.b16 %v467
      %v1503 = vunpack.c.l.b16 %v468
      %v1504 = vunpack.c.l.b16 %v469
      %v1505 = vunpack.c.l.b16 %v470
      %v1506 = vunpack.c.l.b16 %v471
      %v1507 = vunpack.c.l.b16 %v472
      %v1508 = vunpack.c.l.b16 %v473
      %v1509 = vunpack.c.l.b16 %v474
      %v1510 = vunpack.c.l.b16 %v475
      %v1511 = vunpack.c.l.b16 %v476
      %v1512 = vunpack.c.l.b16 %v477
      %v1513 = vunpack.c.l.b16 %v478
      %v1514 = vunpack.c.l.b16 %v479
      %v1515 = vunpack.c.l.b16 %v480
      %v1516 = vunpack.c.l.b16 %v481
      %v1517 = vunpack.c.l.b16 %v482
      %v1518 = vunpack.c.l.b16 %v483
      %v1519 = vunpack.c.l.b16 %v484
      %v1520 = vunpack.c.l.b16 %v485
      %v1521 = vunpack.c.l.b16 %v486
      %v1522 = vunpack.c.l.b16 %v487
      %v1523 = vunpack.c.l.b16 %v488
      %v1524 = vunpack.c.l.b16 %v489
      %v1525 = vunpack.c.l.b16 %v490
      %v1526 = vunpack.c.l.b16 %v491
      %v1527 = vunpack.c.l.b16 %v492
      %v1528 = vunpack.c.l.b16 %v493
      %v1529 = vunpack.c.l.b16 %v494
      %v1530 = vunpack.c.l.b16 %v495
      %v1531 = vunpack.c.l.b16 %v496
      %v1532 = vunpack.c.l.b16 %v497
      %v1533 = vunpack.c.l.b16 %v498
      %v1534 = vunpack.c.l.b16 %v499
      %v1535 = vunpack.c.l.b16 %v500
      %v1536 = vunpack.c.l.b16 %v501
      %v1537 = vunpack.c.l.b16 %v502
      %v1538 = vunpack.c.l.b16 %v503
      %v1539 = vunpack.c.l.b16 %v504
      %v1540 = vunpack.c.l.b16 %v505
      %v1541 = vunpack.c.l.b16 %v506
      %v1542 = vunpack.c.l.b16 %v507
      %v1543 = vunpack.c.l.b16 %v508
      %v1544 = vunpack.c.l.b16 %v509
      %v1545 = vunpack.c.l.b16 %v510
      %v1546 = vunpack.c.l.b16 %v511
      %v1547 = vunpack.c.l.b16 %v512
      %v1548 = vunpack.c.l.b16 %v513
      %v1549 = vunpack.c.l.b16 %v514
      %v1550 = vunpack.c.l.b16 %v515
      %v1551 = vunpack.c.l.b16 %v516
      %v1552 = vunpack.c.l.b16 %v517
      %v1553 = vunpack.c.l.b16 %v518
      %v1554 = vunpack.c.l.b16 %v519
      %v1555 = vunpack.c.l.b16 %v520
      %v1556 = vunpack.c.l.b16 %v521
      %v1557 = vunpack.c.l.b16 %v522
      %v1558 = vunpack.c.l.b16 %v523
      %v1559 = vunpack.c.l.b16 %v524
      %v1560 = vunpack.c.l.b16 %v525
      %v1561 = vunpack.c.l.b16 %v526
      %v1562 = vunpack.c.l.b16 %v527
      %v1563 = vunpack.c.l.b16 %v528
      %v1564 = vunpack.c.l.b16 %v529
      %v1565 = vunpack.c.l.b16 %v530
      %v1566 = vunpack.c.l.b16 %v531
      %v1567 = vunpack.c.l.b16 %v532
      %v1568 = vunpack.c.l.b16 %v533
      %v1569 = vunpack.c.l.b16 %v534
      %v1570 = vunpack.c.l.b16 %v535
      %v1571 = vunpack.c.l.b16 %v536
      %v1572 = vunpack.c.l.b16 %v537
      %v1573 = vunpack.c.l.b16 %v538
      %v1574 = vunpack.c.l.b16 %v539
      %v1575 = vunpack.c.l.b16 %v540
      %v1576 = vunpack.c.l.b16 %v541
      %v1577 = vunpack.c.l.b16 %v542
      %v1578 = vunpack.c.l.b16 %v543
      %v1579 = vunpack.c.l.b16 %v544
      %v1580 = vunpack.c.l.b16 %v545
      %v1581 = vunpack.c.l.b16 %v546
      %v1582 = vunpack.c.l.b16 %v547
      %v1583 = vunpack.c.l.b16 %v548
      %v1584 = vunpack.c.l.b16 %v549
      %v1585 = vunpack.c.l.b16 %v550
      %v1586 = vunpack.c.l.b16 %v551
      %v1587 = vunpack.c.l.b16 %v552
      %v1588 = vunpack.c.l.b16 %v553
      %v1589 = vunpack.c.l.b16 %v554
      %v1590 = vunpack.c.l.b16 %v555
      %v1591 = vunpack.c.l.b16 %v556
      %v1592 = vunpack.c.l.b16 %v557
      %v1593 = vunpack.c.l.b16 %v558
      %v1594 = vunpack.c.l.b16 %v559
      %v1595 = vunpack.c.l.b16 %v560
      %v1596 = vunpack.c.l.b16 %v561
      %v1597 = vunpack.c.l.b16 %v562
      %v1598 = vunpack.c.l.b16 %v563
      %v1599 = vunpack.c.l.b16 %v564
      %v1600 = vunpack.c.l.b16 %v565
      %v1601 = vunpack.c.l.b16 %v566
      %v1602 = vunpack.c.l.b16 %v567
      %v1603 = vunpack.c.l.b16 %v568
      %v1604 = vunpack.c.l.b16 %v569
      %v1605 = vunpack.c.l.b16 %v570
      %v1606 = vunpack.c.l.b16 %v571
      %v1607 = vunpack.c.l.b16 %v572
      %v1608 = vunpack.c.l.b16 %v573
      %v1609 = vunpack.c.l.b16 %v574
      %v1610 = vunpack.c.l.b16 %v575
      %v1611 = vunpack.c.l.b16 %v576
      %v1612 = vunpack.c.l.b16 %v577
      %v1613 = vunpack.c.l.b16 %v578
      %v1614 = vunpack.c.l.b16 %v579
      %v1615 = vunpack.c.l.b16 %v580
      %v1616 = vunpack.c.l.b16 %v581
      %v1617 = vunpack.c.l.b16 %v582
      %v1618 = vunpack.c.l.b16 %v583
      %v1619 = vunpack.c.l.b16 %v584
      %v1620 = vunpack.c.l.b16 %v585
      %v1621 = vunpack.c.l.b16 %v586
      %v1622 = vunpack.c.l.b16 %v587
      %v1623 = vunpack.c.l.b16 %v588
      %v1624 = vunpack.c.l.b16 %v589
      %v1625 = vunpack.c.l.b16 %v590
      %v1626 = vunpack.c.l.b16 %v591
      %v1627 = vunpack.c.l.b16 %v592
      %v1628 = vunpack.c.l.b16 %v593
      %v1629 = vunpack.c.l.b16 %v594
      %v1630 = vunpack.c.l.b16 %v595
      %v1631 = vunpack.c.l.b16 %v596
      %v1632 = vunpack.c.l.b16 %v597
      %v1633 = vunpack.c.l.b16 %v598
      %v1634 = vunpack.c.l.b16 %v599
      %v1635 = vunpack.c.l.b16 %v600
      %v1636 = vunpack.c.l.b16 %v601
      %v1637 = vunpack.c.l.b16 %v602
      %v1638 = vunpack.c.l.b16 %v603
      %v1639 = vunpack.c.l.b16 %v604
      %v1640 = vunpack.c.l.b16 %v605
      %v1641 = vunpack.c.l.b16 %v606
      %v1642 = vunpack.c.l.b16 %v607
      %v1643 = vunpack.c.l.b16 %v608
      %v1644 = vunpack.c.l.b16 %v609
      %v1645 = vunpack.c.l.b16 %v610
      %v1646 = vunpack.c.l.b16 %v611
      %v1647 = vunpack.c.l.b16 %v612
      %v1648 = vunpack.c.l.b16 %v613
      %v1649 = vunpack.c.l.b16 %v614
      %v1650 = vunpack.c.l.b16 %v615
      %v1651 = vunpack.c.l.b16 %v616
      %v1652 = vunpack.c.l.b16 %v617
      %v1653 = vunpack.c.l.b16 %v618
      %v1654 = vunpack.c.l.b16 %v619
      %v1655 = vunpack.c.l.b16 %v620
      %v1656 = vunpack.c.l.b16 %v621
      %v1657 = vunpack.c.l.b16 %v622
      %v1658 = vunpack.c.l.b16 %v623
      %v1659 = vunpack.c.l.b16 %v624
      %v1660 = vunpack.c.l.b16 %v625
      %v1661 = vunpack.c.l.b16 %v626
      %v1662 = vunpack.c.l.b16 %v627
      %v1663 = vunpack.c.l.b16 %v628
      %v1664 = vunpack.c.l.b16 %v629
      %v1665 = vunpack.c.l.b16 %v630
      %v1666 = vunpack.c.l.b16 %v631
      %v1667 = vunpack.c.l.b16 %v632
      %v1668 = vunpack.c.l.b16 %v633
      %v1669 = vunpack.c.l.b16 %v634
      %v1670 = vunpack.c.l.b16 %v635
      %v1671 = vunpack.c.l.b16 %v636
      %v1672 = vunpack.c.l.b16 %v637
      %v1673 = vunpack.c.l.b16 %v638
      %v1674 = vunpack.c.l.b16 %v639
      %v1675 = vunpack.c.l.b16 %v640
      %v1676 = vunpack.c.l.b16 %v641
      %v1677 = vunpack.c.l.b16 %v642
      %v1678 = vunpack.c.l.b16 %v643
      %v1679 = vunpack.c.l.b16 %v644
      %v1680 = vunpack.c.l.b16 %v645
      %v1681 = vunpack.c.l.b16 %v646
      %v1682 = vunpack.c.l.b16 %v647
      %v1683 = vunpack.c.l.b16 %v648
      %v1684 = vunpack.c.l.b16 %v649
      %v1685 = vunpack.c.l.b16 %v650
      %v1686 = vunpack.c.l.b16 %v651
      %v1687 = vunpack.c.l.b16 %v652
      %v1688 = vunpack.c.l.b16 %v653
      %v1689 = vunpack.c.l.b16 %v654
      %v1690 = vunpack.c.l.b16 %v655
      %v1691 = vunpack.c.l.b16 %v656
      %v1692 = vunpack.c.l.b16 %v657
      %v1693 = vunpack.c.l.b16 %v658
      %v1694 = vunpack.c.l.b16 %v659
      %v1695 = vunpack.c.l.b16 %v660
      %v1696 = vunpack.c.l.b16 %v661
      %v1697 = vunpack.c.l.b16 %v662
      %v1698 = vunpack.c.l.b16 %v663
      %v1699 = vunpack.c.l.b16 %v664
      %v1700 = vunpack.c.l.b16 %v665
      %v1701 = vunpack.c.l.b16 %v666
      %v1702 = vunpack.c.l.b16 %v667
      %v1703 = vunpack.c.l.b16 %v668
      %v1704 = vunpack.c.l.b16 %v669
      %v1705 = vunpack.c.l.b16 %v670
      %v1706 = vunpack.c.l.b16 %v671
      %v1707 = vunpack.c.l.b16 %v672
      %v1708 = vunpack.c.l.b16 %v673
      %v1709 = vunpack.c.l.b16 %v674
      %v1710 = vunpack.c.l.b16 %v675
      %v1711 = vunpack.c.l.b16 %v676
      %v1712 = vunpack.c.l.b16 %v677
      %v1713 = vunpack.c.l.b16 %v678
      %v1714 = vunpack.c.l.b16 %v679
      %v1715 = vunpack.c.l.b16 %v680
      %v1716 = vunpack.c.l.b16 %v681
      %v1717 = vunpack.c.l.b16 %v682
      %v1718 = vunpack.c.l.b16 %v683
      %v1719 = vunpack.c.l.b16 %v684
      %v1720 = vunpack.c.l.b16 %v685
      %v1721 = vunpack.c.l.b16 %v686
      %v1722 = vunpack.c.l.b16 %v687
      %v1723 = vunpack.c.l.b16 %v688
      %v1724 = vunpack.c.l.b16 %v689
      %v1725 = vunpack.c.l.b16 %v690
      %v1726 = vunpack.c.l.b16 %v691
      %v1727 = vunpack.c.l.b16 %v692
      %v1728 = vunpack.c.l.b16 %v693
      %v1729 = vunpack.c.l.b16 %v694
      %v1730 = vunpack.c.l.b16 %v695
      %v1731 = vunpack.c.l.b16 %v696
      %v1732 = vunpack.c.l.b16 %v697
      %v1733 = vunpack.c.l.b16 %v698
      %v1734 = vunpack.c.l.b16 %v699
      %v1735 = vunpack.c.l.b16 %v700
      %v1736 = vunpack.c.l.b16 %v701
      %v1737 = vunpack.c.l.b16 %v702
      %v1738 = vunpack.c.l.b16 %v703
      %v1739 = vunpack.c.l.b16 %v704
      %v1740 = vunpack.c.l.b16 %v705
      %v1741 = vunpack.c.l.b16 %v706
      %v1742 = vunpack.c.l.b16 %v707
      %v1743 = vunpack.c.l.b16 %v708
      %v1744 = vunpack.c.l.b16 %v709
      %v1745 = vunpack.c.l.b16 %v710
      %v1746 = vpack.c.b16 %v1235, %v1234
      %v1747 = vpack.c.b16 %v1237, %v1236
      %v1748 = vpack.c.b16 %v1239, %v1238
      %v1749 = vpack.c.b16 %v1241, %v1240
      %v1750 = vpack.c.b16 %v1243, %v1242
      %v1751 = vpack.c.b16 %v1245, %v1244
      %v1752 = vpack.c.b16 %v1247, %v1246
      %v1753 = vpack.c.b16 %v1249, %v1248
      %v1754 = vpack.c.b16 %v1251, %v1250
      %v1755 = vpack.c.b16 %v1253, %v1252
      %v1756 = vpack.c.b16 %v1255, %v1254
      %v1757 = vpack.c.b16 %v1257, %v1256
      %v1758 = vpack.c.b16 %v1259, %v1258
      %v1759 = vpack.c.b16 %v1261, %v1260
      %v1760 = vpack.c.b16 %v1263, %v1262
      %v1761 = vpack.c.b16 %v1265, %v1264
      %v1762 = vpack.c.b16 %v1267, %v1266
      %v1763 = vpack.c.b16 %v1269, %v1268
      %v1764 = vpack.c.b16 %v1271, %v1270
      %v1765 = vpack.c.b16 %v1273, %v1272
      %v1766 = vpack.c.b16 %v1275, %v1274
      %v1767 = vpack.c.b16 %v1277, %v1276
      %v1768 = vpack.c.b16 %v1279, %v1278
      %v1769 = vpack.c.b16 %v1281, %v1280
      %v1770 = vpack.c.b16 %v1283, %v1282
      %v1771 = vpack.c.b16 %v1285, %v1284
      %v1772 = vpack.c.b16 %v1287, %v1286
      %v1773 = vpack.c.b16 %v1289, %v1288
      %v1774 = vpack.c.b16 %v1291, %v1290
      %v1775 = vpack.c.b16 %v1293, %v1292
      %v1776 = vpack.c.b16 %v1295, %v1294
      %v1777 = vpack.c.b16 %v1297, %v1296
      %v1778 = vpack.c.b16 %v1299, %v1298
      %v1779 = vpack.c.b16 %v1301, %v1300
      %v1780 = vpack.c.b16 %v1303, %v1302
      %v1781 = vpack.c.b16 %v1305, %v1304
      %v1782 = vpack.c.b16 %v1307, %v1306
      %v1783 = vpack.c.b16 %v1309, %v1308
      %v1784 = vpack.c.b16 %v1311, %v1310
      %v1785 = vpack.c.b16 %v1313, %v1312
      %v1786 = vpack.c.b16 %v1315, %v1314
      %v1787 = vpack.c.b16 %v1317, %v1316
      %v1788 = vpack.c.b16 %v1319, %v1318
      %v1789 = vpack.c.b16 %v1321, %v1320
      %v1790 = vpack.c.b16 %v1323, %v1322
      %v1791 = vpack.c.b16 %v1325, %v1324
      %v1792 = vpack.c.b16 %v1327, %v1326
      %v1793 = vpack.c.b16 %v1329, %v1328
      %v1794 = vpack.c.b16 %v1331, %v1330
      %v1795 = vpack.c.b16 %v1333, %v1332
      %v1796 = vpack.c.b16 %v1335, %v1334
      %v1797 = vpack.c.b16 %v1337, %v1336
      %v1798 = vpack.c.b16 %v1339, %v1338
      %v1799 = vpack.c.b16 %v1341, %v1340
      %v1800 = vpack.c.b16 %v1343, %v1342
      %v1801 = vpack.c.b16 %v1345, %v1344
      %v1802 = vpack.c.b16 %v1347, %v1346
      %v1803 = vpack.c.b16 %v1349, %v1348
      %v1804 = vpack.c.b16 %v1351, %v1350
      %v1805 = vpack.c.b16 %v1353, %v1352
      %v1806 = vpack.c.b16 %v1355, %v1354
      %v1807 = vpack.c.b16 %v1357, %v1356
      %v1808 = vpack.c.b16 %v1359, %v1358
      %v1809 = vpack.c.b16 %v1361, %v1360
      %v1810 = vpack.c.b16 %v1363, %v1362
      %v1811 = vpack.c.b16 %v1365, %v1364
      %v1812 = vpack.c.b16 %v1367, %v1366
      %v1813 = vpack.c.b16 %v1369, %v1368
      %v1814 = vpack.c.b16 %v1371, %v1370
      %v1815 = vpack.c.b16 %v1373, %v1372
      %v1816 = vpack.c.b16 %v1375, %v1374
      %v1817 = vpack.c.b16 %v1377, %v1376
      %v1818 = vpack.c.b16 %v1379, %v1378
      %v1819 = vpack.c.b16 %v1381, %v1380
      %v1820 = vpack.c.b16 %v1383, %v1382
      %v1821 = vpack.c.b16 %v1385, %v1384
      %v1822 = vpack.c.b16 %v1387, %v1386
      %v1823 = vpack.c.b16 %v1389, %v1388
      %v1824 = vpack.c.b16 %v1391, %v1390
      %v1825 = vpack.c.b16 %v1393, %v1392
      %v1826 = vpack.c.b16 %v1395, %v1394
      %v1827 = vpack.c.b16 %v1397, %v1396
      %v1828 = vpack.c.b16 %v1399, %v1398
      %v1829 = vpack.c.b16 %v1401, %v1400
      %v1830 = vpack.c.b16 %v1403, %v1402
      %v1831 = vpack.c.b16 %v1405, %v1404
      %v1832 = vpack.c.b16 %v1407, %v1406
      %v1833 = vpack.c.b16 %v1409, %v1408
      %v1834 = vpack.c.b16 %v1411, %v1410
      %v1835 = vpack.c.b16 %v1413, %v1412
      %v1836 = vpack.c.b16 %v1415, %v1414
      %v1837 = vpack.c.b16 %v1417, %v1416
      %v1838 = vpack.c.b16 %v1419, %v1418
      %v1839 = vpack.c.b16 %v1421, %v1420
      %v1840 = vpack.c.b16 %v1423, %v1422
      %v1841 = vpack.c.b16 %v1425, %v1424
      %v1842 = vpack.c.b16 %v1427, %v1426
      %v1843 = vpack.c.b16 %v1429, %v1428
      %v1844 = vpack.c.b16 %v1431, %v1430
      %v1845 = vpack.c.b16 %v1433, %v1432
      %v1846 = vpack.c.b16 %v1435, %v1434
      %v1847 = vpack.c.b16 %v1437, %v1436
      %v1848 = vpack.c.b16 %v1439, %v1438
      %v1849 = vpack.c.b16 %v1441, %v1440
      %v1850 = vpack.c.b16 %v1443, %v1442
      %v1851 = vpack.c.b16 %v1445, %v1444
      %v1852 = vpack.c.b16 %v1447, %v1446
      %v1853 = vpack.c.b16 %v1449, %v1448
      %v1854 = vpack.c.b16 %v1451, %v1450
      %v1855 = vpack.c.b16 %v1453, %v1452
      %v1856 = vpack.c.b16 %v1455, %v1454
      %v1857 = vpack.c.b16 %v1457, %v1456
      %v1858 = vpack.c.b16 %v1459, %v1458
      %v1859 = vpack.c.b16 %v1461, %v1460
      %v1860 = vpack.c.b16 %v1463, %v1462
      %v1861 = vpack.c.b16 %v1465, %v1464
      %v1862 = vpack.c.b16 %v1467, %v1466
      %v1863 = vpack.c.b16 %v1469, %v1468
      %v1864 = vpack.c.b16 %v1471, %v1470
      %v1865 = vpack.c.b16 %v1473, %v1472
      %v1866 = vpack.c.b16 %v1475, %v1474
      %v1867 = vpack.c.b16 %v1477, %v1476
      %v1868 = vpack.c.b16 %v1479, %v1478
      %v1869 = vpack.c.b16 %v1481, %v1480
      %v1870 = vpack.c.b16 %v1483, %v1482
      %v1871 = vpack.c.b16 %v1485, %v1484
      %v1872 = vpack.c.b16 %v1487, %v1486
      %v1873 = vpack.c.b16 %v1489, %v1488
      %v1874 = vpack.c.b16 %v1491, %v1490
      %v1875 = vpack.c.b16 %v1493, %v1492
      %v1876 = vpack.c.b16 %v1495, %v1494
      %v1877 = vpack.c.b16 %v1497, %v1496
      %v1878 = vpack.c.b16 %v1499, %v1498
      %v1879 = vpack.c.b16 %v1501, %v1500
      %v1880 = vpack.c.b16 %v1503, %v1502
      %v1881 = vpack.c.b16 %v1505, %v1504
      %v1882 = vpack.c.b16 %v1507, %v1506
      %v1883 = vpack.c.b16 %v1509, %v1508
      %v1884 = vpack.c.b16 %v1511, %v1510
      %v1885 = vpack.c.b16 %v1513, %v1512
      %v1886 = vpack.c.b16 %v1515, %v1514
      %v1887 = vpack.c.b16 %v1517, %v1516
      %v1888 = vpack.c.b16 %v1519, %v1518
      %v1889 = vpack.c.b16 %v1521, %v1520
      %v1890 = vpack.c.b16 %v1523, %v1522
      %v1891 = vpack.c.b16 %v1525, %v1524
      %v1892 = vpack.c.b16 %v1527, %v1526
      %v1893 = vpack.c.b16 %v1529, %v1528
      %v1894 = vpack.c.b16 %v1531, %v1530
      %v1895 = vpack.c.b16 %v1533, %v1532
      %v1896 = vpack.c.b16 %v1535, %v1534
      %v1897 = vpack.c.b16 %v1537, %v1536
      %v1898 = vpack.c.b16 %v1539, %v1538
      %v1899 = vpack.c.b16 %v1541, %v1540
      %v1900 = vpack.c.b16 %v1543, %v1542
      %v1901 = vpack.c.b16 %v1545, %v1544
      %v1902 = vpack.c.b16 %v1547, %v1546
      %v1903 = vpack.c.b16 %v1549, %v1548
      %v1904 = vpack.c.b16 %v1551, %v1550
      %v1905 = vpack.c.b16 %v1553, %v1552
      %v1906 = vpack.c.b16 %v1555, %v1554
      %v1907 = vpack.c.b16 %v1557, %v1556
      %v1908 = vpack.c.b16 %v1559, %v1558
      %v1909 = vpack.c.b16 %v1561, %v1560
      %v1910 = vpack.c.b16 %v1563, %v1562
      %v1911 = vpack.c.b16 %v1565, %v1564
      %v1912 = vpack.c.b16 %v1567, %v1566
      %v1913 = vpack.c.b16 %v1569, %v1568
      %v1914 = vpack.c.b16 %v1571, %v1570
      %v1915 = vpack.c.b16 %v1573, %v1572
      %v1916 = vpack.c.b16 %v1575, %v1574
      %v1917 = vpack.c.b16 %v1577, %v1576
      %v1918 = vpack.c.b16 %v1579, %v1578
      %v1919 = vpack.c.b16 %v1581, %v1580
      %v1920 = vpack.c.b16 %v1583, %v1582
      %v1921 = vpack.c.b16 %v1585, %v1584
      %v1922 = vpack.c.b16 %v1587, %v1586
      %v1923 = vpack.c.b16 %v1589, %v1588
      %v1924 = vpack.c.b16 %v1591, %v1590
      %v1925 = vpack.c.b16 %v1593, %v1592
      %v1926 = vpack.c.b16 %v1595, %v1594
      %v1927 = vpack.c.b16 %v1597, %v1596
      %v1928 = vpack.c.b16 %v1599, %v1598
      %v1929 = vpack.c.b16 %v1601, %v1600
      %v1930 = vpack.c.b16 %v1603, %v1602
      %v1931 = vpack.c.b16 %v1605, %v1604
      %v1932 = vpack.c.b16 %v1607, %v1606
      %v1933 = vpack.c.b16 %v1609, %v1608
      %v1934 = vpack.c.b16 %v1611, %v1610
      %v1935 = vpack.c.b16 %v1613, %v1612
      %v1936 = vpack.c.b16 %v1615, %v1614
      %v1937 = vpack.c.b16 %v1617, %v1616
      %v1938 = vpack.c.b16 %v1619, %v1618
      %v1939 = vpack.c.b16 %v1621, %v1620
      %v1940 = vpack.c.b16 %v1623, %v1622
      %v1941 = vpack.c.b16 %v1625, %v1624
      %v1942 = vpack.c.b16 %v1627, %v1626
      %v1943 = vpack.c.b16 %v1629, %v1628
      %v1944 = vpack.c.b16 %v1631, %v1630
      %v1945 = vpack.c.b16 %v1633, %v1632
      %v1946 = vpack.c.b16 %v1635, %v1634
      %v1947 = vpack.c.b16 %v1637, %v1636
      %v1948 = vpack.c.b16 %v1639, %v1638
      %v1949 = vpack.c.b16 %v1641, %v1640
      %v1950 = vpack.c.b16 %v1643, %v1642
      %v1951 = vpack.c.b16 %v1645, %v1644
      %v1952 = vpack.c.b16 %v1647, %v1646
      %v1953 = vpack.c.b16 %v1649, %v1648
      %v1954 = vpack.c.b16 %v1651, %v1650
      %v1955 = vpack.c.b16 %v1653, %v1652
      %v1956 = vpack.c.b16 %v1655, %v1654
      %v1957 = vpack.c.b16 %v1657, %v1656
      %v1958 = vpack.c.b16 %v1659, %v1658
      %v1959 = vpack.c.b16 %v1661, %v1660
      %v1960 = vpack.c.b16 %v1663, %v1662
      %v1961 = vpack.c.b16 %v1665, %v1664
      %v1962 = vpack.c.b16 %v1667, %v1666
      %v1963 = vpack.c.b16 %v1669, %v1668
      %v1964 = vpack.c.b16 %v1671, %v1670
      %v1965 = vpack.c.b16 %v1673, %v1672
      %v1966 = vpack.c.b16 %v1675, %v1674
      %v1967 = vpack.c.b16 %v1677, %v1676
      %v1968 = vpack.c.b16 %v1679, %v1678
      %v1969 = vpack.c.b16 %v1681, %v1680
      %v1970 = vpack.c.b16 %v1683, %v1682
      %v1971 = vpack.c.b16 %v1685, %v1684
      %v1972 = vpack.c.b16 %v1687, %v1686
      %v1973 = vpack.c.b16 %v1689, %v1688
      %v1974 = vpack.c.b16 %v1691, %v1690
      %v1975 = vpack.c.b16 %v1693, %v1692
      %v1976 = vpack.c.b16 %v1695, %v1694
      %v1977 = vpack.c.b16 %v1697, %v1696
      %v1978 = vpack.c.b16 %v1699, %v1698
      %v1979 = vpack.c.b16 %v1701, %v1700
      %v1980 = vpack.c.b16 %v1703, %v1702
      %v1981 = vpack.c.b16 %v1705, %v1704
      %v1982 = vpack.c.b16 %v1707, %v1706
      %v1983 = vpack.c.b16 %v1709, %v1708
      %v1984 = vpack.c.b16 %v1711, %v1710
      %v1985 = vpack.c.b16 %v1713, %v1712
      %v1986 = vpack.c.b16 %v1715, %v1714
      %v1987 = vpack.c.b16 %v1717, %v1716
      %v1988 = vpack.c.b16 %v1719, %v1718
      %v1989 = vpack.c.b16 %v1721, %v1720
      %v1990 = vpack.c.b16 %v1723, %v1722
      %v1991 = vpack.c.b16 %v1725, %v1724
      %v1992 = vpack.c.b16 %v1727, %v1726
      %v1993 = vpack.c.b16 %v1729, %v1728
      %v1994 = vpack.c.b16 %v1731, %v1730
      %v1995 = vpack.c.b16 %v1733, %v1732
      %v1996 = vpack.c.b16 %v1735, %v1734
      %v1997 = vpack.c.b16 %v1737, %v1736
      %v1998 = vpack.c.b16 %v1739, %v1738
      %v1999 = vpack.c.b16 %v1741, %v1740
      %v2000 = vpack.c.b16 %v1743, %v1742
      %v2001 = vpack.c.b16 %v1745, %v1744
      %v2006 = vunpack.c.l.b16 %v711
      %v2007 = vunpack.c.l.b16 %v712
      %v2008 = vunpack.c.l.b16 %v713
      %v2009 = vunpack.c.l.b16 %v714
      %v2010 = vpack.c.b16 %v2007, %v2006
      %v2011 = vpack.c.b16 %v2009, %v2008
      %vm2013 = vcmask 220160
      %v2015 = vsel %vm2013, %v1746, 0
      %v2018 = vsel %vm2013, %v1747, 0
      %v2021 = vsel %vm2013, %v1748, 0
      %v2024 = vsel %vm2013, %v1749, 0
      %v2027 = vsel %vm2013, %v1750, 0
      %v2030 = vsel %vm2013, %v1751, 0
      %v2033 = vsel %vm2013, %v1752, 0
      %v2036 = vsel %vm2013, %v1753, 0
      %v2039 = vsel %vm2013, %v1754, 0
      %v2042 = vsel %vm2013, %v1755, 0
      %v2045 = vsel %vm2013, %v1756, 0
      %v2048 = vsel %vm2013, %v1757, 0
      %v2051 = vsel %vm2013, %v1758, 0
      %v2054 = vsel %vm2013, %v1759, 0
      %v2057 = vsel %vm2013, %v1760, 0
      %v2060 = vsel %vm2013, %v1761, 0
      %v2063 = vsel %vm2013, %v1762, 0
      %v2066 = vsel %vm2013, %v1763, 0
      %v2069 = vsel %vm2013, %v1764, 0
      %v2072 = vsel %vm2013, %v1765, 0
      %v2075 = vsel %vm2013, %v1766, 0
      %v2078 = vsel %vm2013, %v1767, 0
      %v2081 = vsel %vm2013, %v1768, 0
      %v2084 = vsel %vm2013, %v1769, 0
      %v2087 = vsel %vm2013, %v1770, 0
      %v2090 = vsel %vm2013, %v1771, 0
      %v2093 = vsel %vm2013, %v1772, 0
      %v2096 = vsel %vm2013, %v1773, 0
      %v2099 = vsel %vm2013, %v1774, 0
      %v2102 = vsel %vm2013, %v1775, 0
      %v2105 = vsel %vm2013, %v1776, 0
      %v2108 = vsel %vm2013, %v1777, 0
      %v2111 = vsel %vm2013, %v1778, 0
      %v2114 = vsel %vm2013, %v1779, 0
      %v2117 = vsel %vm2013, %v1780, 0
      %v2120 = vsel %vm2013, %v1781, 0
      %v2123 = vsel %vm2013, %v1782, 0
      %v2126 = vsel %vm2013, %v1783, 0
      %v2129 = vsel %vm2013, %v1784, 0
      %v2132 = vsel %vm2013, %v1785, 0
      %v2135 = vsel %vm2013, %v1786, 0
      %v2138 = vsel %vm2013, %v1787, 0
      %v2141 = vsel %vm2013, %v1788, 0
      %v2144 = vsel %vm2013, %v1789, 0
      %v2147 = vsel %vm2013, %v1790, 0
      %v2150 = vsel %vm2013, %v1791, 0
      %v2153 = vsel %vm2013, %v1792, 0
      %v2156 = vsel %vm2013, %v1793, 0
      %v2159 = vsel %vm2013, %v1794, 0
      %v2162 = vsel %vm2013, %v1795, 0
      %v2165 = vsel %vm2013, %v1796, 0
      %v2168 = vsel %vm2013, %v1797, 0
      %v2171 = vsel %vm2013, %v1798, 0
      %v2174 = vsel %vm2013, %v1799, 0
      %v2177 = vsel %vm2013, %v1800, 0
      %v2180 = vsel %vm2013, %v1801, 0
      %v2183 = vsel %vm2013, %v1802, 0
      %v2186 = vsel %vm2013, %v1803, 0
      %v2189 = vsel %vm2013, %v1804, 0
      %v2192 = vsel %vm2013, %v1805, 0
      %v2195 = vsel %vm2013, %v1806, 0
      %v2198 = vsel %vm2013, %v1807, 0
      %v2201 = vsel %vm2013, %v1808, 0
      %v2204 = vsel %vm2013, %v1809, 0
      %v2207 = vsel %vm2013, %v1810, 0
      %v2210 = vsel %vm2013, %v1811, 0
      %v2213 = vsel %vm2013, %v1812, 0
      %v2216 = vsel %vm2013, %v1813, 0
      %v2219 = vsel %vm2013, %v1814, 0
      %v2222 = vsel %vm2013, %v1815, 0
      %v2225 = vsel %vm2013, %v1816, 0
      %v2228 = vsel %vm2013, %v1817, 0
      %v2231 = vsel %vm2013, %v1818, 0
      %v2234 = vsel %vm2013, %v1819, 0
      %v2237 = vsel %vm2013, %v1820, 0
      %v2240 = vsel %vm2013, %v1821, 0
      %v2243 = vsel %vm2013, %v1822, 0
      %v2246 = vsel %vm2013, %v1823, 0
      %v2249 = vsel %vm2013, %v1824, 0
      %v2252 = vsel %vm2013, %v1825, 0
      %v2255 = vsel %vm2013, %v1826, 0
      %v2258 = vsel %vm2013, %v1827, 0
      %v2261 = vsel %vm2013, %v1828, 0
      %v2264 = vsel %vm2013, %v1829, 0
      %v2267 = vsel %vm2013, %v1830, 0
      %v2270 = vsel %vm2013, %v1831, 0
      %v2273 = vsel %vm2013, %v1832, 0
      %v2276 = vsel %vm2013, %v1833, 0
      %v2279 = vsel %vm2013, %v1834, 0
      %v2282 = vsel %vm2013, %v1835, 0
      %v2285 = vsel %vm2013, %v1836, 0
      %v2288 = vsel %vm2013, %v1837, 0
      %v2291 = vsel %vm2013, %v1838, 0
      %v2294 = vsel %vm2013, %v1839, 0
      %v2297 = vsel %vm2013, %v1840, 0
      %v2300 = vsel %vm2013, %v1841, 0
      %v2303 = vsel %vm2013, %v1842, 0
      %v2306 = vsel %vm2013, %v1843, 0
      %v2309 = vsel %vm2013, %v1844, 0
      %v2312 = vsel %vm2013, %v1845, 0
      %v2315 = vsel %vm2013, %v1846, 0
      %v2318 = vsel %vm2013, %v1847, 0
      %v2321 = vsel %vm2013, %v1848, 0
      %v2324 = vsel %vm2013, %v1849, 0
      %v2327 = vsel %vm2013, %v1850, 0
      %v2330 = vsel %vm2013, %v1851, 0
      %v2333 = vsel %vm2013, %v1852, 0
      %v2336 = vsel %vm2013, %v1853, 0
      %v2339 = vsel %vm2013, %v1854, 0
      %v2342 = vsel %vm2013, %v1855, 0
      %v2345 = vsel %vm2013, %v1856, 0
      %v2348 = vsel %vm2013, %v1857, 0
      %v2351 = vsel %vm2013, %v1858, 0
      %v2354 = vsel %vm2013, %v1859, 0
      %v2357 = vsel %vm2013, %v1860, 0
      %v2360 = vsel %vm2013, %v1861, 0
      %v2363 = vsel %vm2013, %v1862, 0
      %v2366 = vsel %vm2013, %v1863, 0
      %v2369 = vsel %vm2013, %v1864, 0
      %v2372 = vsel %vm2013, %v1865, 0
      %v2375 = vsel %vm2013, %v1866, 0
      %v2378 = vsel %vm2013, %v1867, 0
      %v2381 = vsel %vm2013, %v1868, 0
      %v2384 = vsel %vm2013, %v1869, 0
      %v2387 = vsel %vm2013, %v1870, 0
      %v2390 = vsel %vm2013, %v1871, 0
      %v2393 = vsel %vm2013, %v1872, 0
      %v2396 = vsel %vm2013, %v1873, 0
      %v2399 = vsel %vm2013, %v1874, 0
      %v2402 = vsel %vm2013, %v1875, 0
      %v2405 = vsel %vm2013, %v1876, 0
      %v2408 = vsel %vm2013, %v1877, 0
      %v2411 = vsel %vm2013, %v1878, 0
      %v2414 = vsel %vm2013, %v1879, 0
      %v2417 = vsel %vm2013, %v1880, 0
      %v2420 = vsel %vm2013, %v1881, 0
      %v2423 = vsel %vm2013, %v1882, 0
      %v2426 = vsel %vm2013, %v1883, 0
      %v2429 = vsel %vm2013, %v1884, 0
      %v2432 = vsel %vm2013, %v1885, 0
      %v2435 = vsel %vm2013, %v1886, 0
      %v2438 = vsel %vm2013, %v1887, 0
      %v2441 = vsel %vm2013, %v1888, 0
      %v2444 = vsel %vm2013, %v1889, 0
      %v2447 = vsel %vm2013, %v1890, 0
      %v2450 = vsel %vm2013, %v1891, 0
      %v2453 = vsel %vm2013, %v1892, 0
      %v2456 = vsel %vm2013, %v1893, 0
      %v2459 = vsel %vm2013, %v1894, 0
      %v2462 = vsel %vm2013, %v1895, 0
      %v2465 = vsel %vm2013, %v1896, 0
      %v2468 = vsel %vm2013, %v1897, 0
      %v2471 = vsel %vm2013, %v1898, 0
      %v2474 = vsel %vm2013, %v1899, 0
      %v2477 = vsel %vm2013, %v1900, 0
      %v2480 = vsel %vm2013, %v1901, 0
      %v2483 = vsel %vm2013, %v1902, 0
      %v2486 = vsel %vm2013, %v1903, 0
      %v2489 = vsel %vm2013, %v1904, 0
      %v2492 = vsel %vm2013, %v1905, 0
      %v2495 = vsel %vm2013, %v1906, 0
      %v2498 = vsel %vm2013, %v1907, 0
      %v2501 = vsel %vm2013, %v1908, 0
      %v2504 = vsel %vm2013, %v1909, 0
      %v2507 = vsel %vm2013, %v1910, 0
      %v2510 = vsel %vm2013, %v1911, 0
      %v2513 = vsel %vm2013, %v1912, 0
      %v2516 = vsel %vm2013, %v1913, 0
      %v2519 = vsel %vm2013, %v1914, 0
      %v2522 = vsel %vm2013, %v1915, 0
      %v2525 = vsel %vm2013, %v1916, 0
      %v2528 = vsel %vm2013, %v1917, 0
      %v2531 = vsel %vm2013, %v1918, 0
      %v2534 = vsel %vm2013, %v1919, 0
      %v2537 = vsel %vm2013, %v1920, 0
      %v2540 = vsel %vm2013, %v1921, 0
      %v2543 = vsel %vm2013, %v1922, 0
      %v2546 = vsel %vm2013, %v1923, 0
      %v2549 = vsel %vm2013, %v1924, 0
      %v2552 = vsel %vm2013, %v1925, 0
      %v2555 = vsel %vm2013, %v1926, 0
      %v2558 = vsel %vm2013, %v1927, 0
      %v2561 = vsel %vm2013, %v1928, 0
      %v2564 = vsel %vm2013, %v1929, 0
      %v2567 = vsel %vm2013, %v1930, 0
      %v2570 = vsel %vm2013, %v1931, 0
      %v2573 = vsel %vm2013, %v1932, 0
      %v2576 = vsel %vm2013, %v1933, 0
      %v2579 = vsel %vm2013, %v1934, 0
      %v2582 = vsel %vm2013, %v1935, 0
      %v2585 = vsel %vm2013, %v1936, 0
      %v2588 = vsel %vm2013, %v1937, 0
      %v2591 = vsel %vm2013, %v1938, 0
      %v2594 = vsel %vm2013, %v1939, 0
      %v2597 = vsel %vm2013, %v1940, 0
      %v2600 = vsel %vm2013, %v1941, 0
      %v2603 = vsel %vm2013, %v1942, 0
      %v2606 = vsel %vm2013, %v1943, 0
      %v2609 = vsel %vm2013, %v1944, 0
      %v2612 = vsel %vm2013, %v1945, 0
      %v2615 = vsel %vm2013, %v1946, 0
      %v2618 = vsel %vm2013, %v1947, 0
      %v2621 = vsel %vm2013, %v1948, 0
      %v2624 = vsel %vm2013, %v1949, 0
      %v2627 = vsel %vm2013, %v1950, 0
      %v2630 = vsel %vm2013, %v1951, 0
      %v2633 = vsel %vm2013, %v1952, 0
      %v2636 = vsel %vm2013, %v1953, 0
      %v2639 = vsel %vm2013, %v1954, 0
      %v2642 = vsel %vm2013, %v1955, 0
      %v2645 = vsel %vm2013, %v1956, 0
      %v2648 = vsel %vm2013, %v1957, 0
      %v2651 = vsel %vm2013, %v1958, 0
      %v2654 = vsel %vm2013, %v1959, 0
      %v2657 = vsel %vm2013, %v1960, 0
      %v2660 = vsel %vm2013, %v1961, 0
      %v2663 = vsel %vm2013, %v1962, 0
      %v2666 = vsel %vm2013, %v1963, 0
      %v2669 = vsel %vm2013, %v1964, 0
      %v2672 = vsel %vm2013, %v1965, 0
      %v2675 = vsel %vm2013, %v1966, 0
      %v2678 = vsel %vm2013, %v1967, 0
      %v2681 = vsel %vm2013, %v1968, 0
      %v2684 = vsel %vm2013, %v1969, 0
      %v2687 = vsel %vm2013, %v1970, 0
      %v2690 = vsel %vm2013, %v1971, 0
      %v2693 = vsel %vm2013, %v1972, 0
      %v2696 = vsel %vm2013, %v1973, 0
      %v2699 = vsel %vm2013, %v1974, 0
      %v2702 = vsel %vm2013, %v1975, 0
      %v2705 = vsel %vm2013, %v1976, 0
      %v2708 = vsel %vm2013, %v1977, 0
      %v2711 = vsel %vm2013, %v1978, 0
      %v2714 = vsel %vm2013, %v1979, 0
      %v2717 = vsel %vm2013, %v1980, 0
      %v2720 = vsel %vm2013, %v1981, 0
      %v2723 = vsel %vm2013, %v1982, 0
      %v2726 = vsel %vm2013, %v1983, 0
      %v2729 = vsel %vm2013, %v1984, 0
      %v2732 = vsel %vm2013, %v1985, 0
      %v2735 = vsel %vm2013, %v1986, 0
      %v2738 = vsel %vm2013, %v1987, 0
      %v2741 = vsel %vm2013, %v1988, 0
      %v2744 = vsel %vm2013, %v1989, 0
      %v2747 = vsel %vm2013, %v1990, 0
      %v2750 = vsel %vm2013, %v1991, 0
      %v2753 = vsel %vm2013, %v1992, 0
      %v2756 = vsel %vm2013, %v1993, 0
      %v2759 = vsel %vm2013, %v1994, 0
      %v2762 = vsel %vm2013, %v1995, 0
      %v2765 = vsel %vm2013, %v1996, 0
      %v2768 = vsel %vm2013, %v1997, 0
      %v2771 = vsel %vm2013, %v1998, 0
      %v2774 = vsel %vm2013, %v1999, 0
      %v2777 = vsel %vm2013, %v2000, 0
      %v2780 = vsel %vm2013, %v2001, 0
      %vm2782 = vcmask 1044480
      %vm2783 = vcmask 1045504
      %v2784 = vsel %vm2782, 4294967295, 65535
      %v2785 = vsel %vm2783, %v2784, 0
      %v2787 = vand.u32 %v2011, %v2785
      %2789 = vmatprep.subr.bf16.mxu0 0
      %2790 = vmatpush1.bf16.msra.mxu0 0
      %2791 = vmatprep.subr.bf16.mxu0 0
      %2792 = vmatpush1.bf16.msra.mxu0 0
      %2793 = vmatprep.subr.bf16.mxu0 0
      %2794 = vmatpush1.bf16.msra.mxu0 0
      %2795 = vmatprep.subr.bf16.mxu0 0
      %2796 = vmatpush1.bf16.msra.mxu0 0
      %2797 = vmatprep.subr.bf16.mxu0 0
      %2798 = vmatpush1.bf16.msra.mxu0 0
      %2799 = vmatprep.subr.bf16.mxu0 0
      %2800 = vmatpush1.bf16.msra.mxu0 0
      %2801 = vmatprep.subr.bf16.mxu0 0
      %2802 = vmatpush1.bf16.msra.mxu0 %v2787
      %2803 = vmatprep.subr.bf16.mxu0 0
      %2804 = vmatpush1.bf16.msra.mxu0 %v2010
      %2805 = vmatprep.subr.bf16.mxu0 0
      %2806 = vmatpush2.bf16.msra.mxu0 0
      %2807 = vmatprep.subr.bf16.mxu0 0
      %2808 = vmatpush2.bf16.msra.mxu0 0
      %2809 = vmatprep.subr.bf16.mxu0 0
      %2810 = vmatpush2.bf16.msra.mxu0 0
      %2811 = vmatprep.subr.bf16.mxu0 0
      %2812 = vmatpush2.bf16.msra.mxu0 0
      %2813 = vmatprep.subr.bf16.mxu0 0
      %2814 = vmatpush2.bf16.msra.mxu0 0
      %2815 = vmatprep.subr.bf16.mxu0 0
      %2816 = vmatpush2.bf16.msra.mxu0 0
      %2817 = vmatprep.subr.bf16.mxu0 0
      %2818 = vmatpush2.bf16.msra.mxu0 0
      %2819 = vmatprep.subr.bf16.mxu0 0
      %2820 = vmatpush2.bf16.msra.mxu0 0
      %2821 = vmatprep.mubr.bf16.mxu0 0
      %2822 = vmatmul.mubr.bf16.gmra.mxu0 %v2015
      %v2823 = vpop.f32.mrf.mxu0
      %v2824 = vadd.f32 %v720, %v2823
      %v2825 = vpop.f32.mrf.mxu0
      %v2826 = vpop.f32.mrf.mxu0
      %v2827 = vadd.f32 %v720, %v2826
      %v2828 = vpop.f32.mrf.mxu0
      %2829 = vmatprep.mubr.bf16.mxu0 0
      %2830 = vmatmul.mubr.bf16.gmra.mxu0 %v2018
      %v2831 = vpop.f32.mrf.mxu0
      %v2832 = vadd.f32 %v720, %v2831
      %v2833 = vpop.f32.mrf.mxu0
      %v2834 = vpop.f32.mrf.mxu0
      %v2835 = vadd.f32 %v720, %v2834
      %v2836 = vpop.f32.mrf.mxu0
      %2837 = vmatprep.mubr.bf16.mxu0 0
      %2838 = vmatmul.mubr.bf16.gmra.mxu0 %v2021
      %v2839 = vpop.f32.mrf.mxu0
      %v2840 = vadd.f32 %v720, %v2839
      %v2841 = vpop.f32.mrf.mxu0
      %v2842 = vpop.f32.mrf.mxu0
      %v2843 = vadd.f32 %v720, %v2842
      %v2844 = vpop.f32.mrf.mxu0
      %2845 = vmatprep.mubr.bf16.mxu0 0
      %2846 = vmatmul.mubr.bf16.gmra.mxu0 %v2024
      %v2847 = vpop.f32.mrf.mxu0
      %v2848 = vadd.f32 %v720, %v2847
      %v2849 = vpop.f32.mrf.mxu0
      %v2850 = vpop.f32.mrf.mxu0
      %v2851 = vadd.f32 %v720, %v2850
      %v2852 = vpop.f32.mrf.mxu0
      %2853 = vmatprep.mubr.bf16.mxu0 0
      %2854 = vmatmul.mubr.bf16.gmra.mxu0 %v2027
      %v2855 = vpop.f32.mrf.mxu0
      %v2856 = vadd.f32 %v720, %v2855
      %v2857 = vpop.f32.mrf.mxu0
      %v2858 = vpop.f32.mrf.mxu0
      %v2859 = vadd.f32 %v720, %v2858
      %v2860 = vpop.f32.mrf.mxu0
      %2861 = vmatprep.mubr.bf16.mxu0 0
      %2862 = vmatmul.mubr.bf16.gmra.mxu0 %v2030
      %v2863 = vpop.f32.mrf.mxu0
      %v2864 = vadd.f32 %v720, %v2863
      %v2865 = vpop.f32.mrf.mxu0
      %v2866 = vpop.f32.mrf.mxu0
      %v2867 = vadd.f32 %v720, %v2866
      %v2868 = vpop.f32.mrf.mxu0
      %2869 = vmatprep.mubr.bf16.mxu0 0
      %2870 = vmatmul.mubr.bf16.gmra.mxu0 %v2033
      %v2871 = vpop.f32.mrf.mxu0
      %v2872 = vadd.f32 %v720, %v2871
      %v2873 = vpop.f32.mrf.mxu0
      %v2874 = vpop.f32.mrf.mxu0
      %v2875 = vadd.f32 %v720, %v2874
      %v2876 = vpop.f32.mrf.mxu0
      %2877 = vmatprep.mubr.bf16.mxu0 0
      %2878 = vmatmul.mubr.bf16.gmra.mxu0 %v2036
      %v2879 = vpop.f32.mrf.mxu0
      %v2880 = vadd.f32 %v720, %v2879
      %v2881 = vpop.f32.mrf.mxu0
      %v2882 = vpop.f32.mrf.mxu0
      %v2883 = vadd.f32 %v720, %v2882
      %v2884 = vpop.f32.mrf.mxu0
      %2885 = vmatprep.mubr.bf16.mxu0 0
      %2886 = vmatmul.mubr.bf16.gmra.mxu0 %v2039
      %v2887 = vpop.f32.mrf.mxu0
      %v2888 = vadd.f32 %v720, %v2887
      %v2889 = vpop.f32.mrf.mxu0
      %v2890 = vpop.f32.mrf.mxu0
      %v2891 = vadd.f32 %v720, %v2890
      %v2892 = vpop.f32.mrf.mxu0
      %2893 = vmatprep.mubr.bf16.mxu0 0
      %2894 = vmatmul.mubr.bf16.gmra.mxu0 %v2042
      %v2895 = vpop.f32.mrf.mxu0
      %v2896 = vadd.f32 %v720, %v2895
      %v2897 = vpop.f32.mrf.mxu0
      %v2898 = vpop.f32.mrf.mxu0
      %v2899 = vadd.f32 %v720, %v2898
      %v2900 = vpop.f32.mrf.mxu0
      %2901 = vmatprep.mubr.bf16.mxu0 0
      %2902 = vmatmul.mubr.bf16.gmra.mxu0 %v2045
      %v2903 = vpop.f32.mrf.mxu0
      %v2904 = vadd.f32 %v720, %v2903
      %v2905 = vpop.f32.mrf.mxu0
      %v2906 = vpop.f32.mrf.mxu0
      %v2907 = vadd.f32 %v720, %v2906
      %v2908 = vpop.f32.mrf.mxu0
      %2909 = vmatprep.mubr.bf16.mxu0 0
      %2910 = vmatmul.mubr.bf16.gmra.mxu0 %v2048
      %v2911 = vpop.f32.mrf.mxu0
      %v2912 = vadd.f32 %v720, %v2911
      %v2913 = vpop.f32.mrf.mxu0
      %v2914 = vpop.f32.mrf.mxu0
      %v2915 = vadd.f32 %v720, %v2914
      %v2916 = vpop.f32.mrf.mxu0
      %2917 = vmatprep.mubr.bf16.mxu0 0
      %2918 = vmatmul.mubr.bf16.gmra.mxu0 %v2051
      %v2919 = vpop.f32.mrf.mxu0
      %v2920 = vadd.f32 %v720, %v2919
      %v2921 = vpop.f32.mrf.mxu0
      %v2922 = vpop.f32.mrf.mxu0
      %v2923 = vadd.f32 %v720, %v2922
      %v2924 = vpop.f32.mrf.mxu0
      %2925 = vmatprep.mubr.bf16.mxu0 0
      %2926 = vmatmul.mubr.bf16.gmra.mxu0 %v2054
      %v2927 = vpop.f32.mrf.mxu0
      %v2928 = vadd.f32 %v720, %v2927
      %v2929 = vpop.f32.mrf.mxu0
      %v2930 = vpop.f32.mrf.mxu0
      %v2931 = vadd.f32 %v720, %v2930
      %v2932 = vpop.f32.mrf.mxu0
      %2933 = vmatprep.mubr.bf16.mxu0 0
      %2934 = vmatmul.mubr.bf16.gmra.mxu0 %v2057
      %v2935 = vpop.f32.mrf.mxu0
      %v2936 = vadd.f32 %v720, %v2935
      %v2937 = vpop.f32.mrf.mxu0
      %v2938 = vpop.f32.mrf.mxu0
      %v2939 = vadd.f32 %v720, %v2938
      %v2940 = vpop.f32.mrf.mxu0
      %2941 = vmatprep.mubr.bf16.mxu0 0
      %2942 = vmatmul.mubr.bf16.gmra.mxu0 %v2060
      %v2943 = vpop.f32.mrf.mxu0
      %v2944 = vadd.f32 %v720, %v2943
      %v2945 = vpop.f32.mrf.mxu0
      %v2946 = vpop.f32.mrf.mxu0
      %v2947 = vadd.f32 %v720, %v2946
      %v2948 = vpop.f32.mrf.mxu0
      %2949 = vmatprep.mubr.bf16.mxu0 0
      %2950 = vmatmul.mubr.bf16.gmra.mxu0 %v2063
      %v2951 = vpop.f32.mrf.mxu0
      %v2952 = vadd.f32 %v720, %v2951
      %v2953 = vpop.f32.mrf.mxu0
      %v2954 = vpop.f32.mrf.mxu0
      %v2955 = vadd.f32 %v720, %v2954
      %v2956 = vpop.f32.mrf.mxu0
      %2957 = vmatprep.mubr.bf16.mxu0 0
      %2958 = vmatmul.mubr.bf16.gmra.mxu0 %v2066
      %v2959 = vpop.f32.mrf.mxu0
      %v2960 = vadd.f32 %v720, %v2959
      %v2961 = vpop.f32.mrf.mxu0
      %v2962 = vpop.f32.mrf.mxu0
      %v2963 = vadd.f32 %v720, %v2962
      %v2964 = vpop.f32.mrf.mxu0
      %2965 = vmatprep.mubr.bf16.mxu0 0
      %2966 = vmatmul.mubr.bf16.gmra.mxu0 %v2069
      %v2967 = vpop.f32.mrf.mxu0
      %v2968 = vadd.f32 %v720, %v2967
      %v2969 = vpop.f32.mrf.mxu0
      %v2970 = vpop.f32.mrf.mxu0
      %v2971 = vadd.f32 %v720, %v2970
      %v2972 = vpop.f32.mrf.mxu0
      %2973 = vmatprep.mubr.bf16.mxu0 0
      %2974 = vmatmul.mubr.bf16.gmra.mxu0 %v2072
      %v2975 = vpop.f32.mrf.mxu0
      %v2976 = vadd.f32 %v720, %v2975
      %v2977 = vpop.f32.mrf.mxu0
      %v2978 = vpop.f32.mrf.mxu0
      %v2979 = vadd.f32 %v720, %v2978
      %v2980 = vpop.f32.mrf.mxu0
      %2981 = vmatprep.mubr.bf16.mxu0 0
      %2982 = vmatmul.mubr.bf16.gmra.mxu0 %v2075
      %v2983 = vpop.f32.mrf.mxu0
      %v2984 = vadd.f32 %v720, %v2983
      %v2985 = vpop.f32.mrf.mxu0
      %v2986 = vpop.f32.mrf.mxu0
      %v2987 = vadd.f32 %v720, %v2986
      %v2988 = vpop.f32.mrf.mxu0
      %2989 = vmatprep.mubr.bf16.mxu0 0
      %2990 = vmatmul.mubr.bf16.gmra.mxu0 %v2078
      %v2991 = vpop.f32.mrf.mxu0
      %v2992 = vadd.f32 %v720, %v2991
      %v2993 = vpop.f32.mrf.mxu0
      %v2994 = vpop.f32.mrf.mxu0
      %v2995 = vadd.f32 %v720, %v2994
      %v2996 = vpop.f32.mrf.mxu0
      %2997 = vmatprep.mubr.bf16.mxu0 0
      %2998 = vmatmul.mubr.bf16.gmra.mxu0 %v2081
      %v2999 = vpop.f32.mrf.mxu0
      %v3000 = vadd.f32 %v720, %v2999
      %v3001 = vpop.f32.mrf.mxu0
      %v3002 = vpop.f32.mrf.mxu0
      %v3003 = vadd.f32 %v720, %v3002
      %v3004 = vpop.f32.mrf.mxu0
      %3005 = vmatprep.mubr.bf16.mxu0 0
      %3006 = vmatmul.mubr.bf16.gmra.mxu0 %v2084
      %v3007 = vpop.f32.mrf.mxu0
      %v3008 = vadd.f32 %v720, %v3007
      %v3009 = vpop.f32.mrf.mxu0
      %v3010 = vpop.f32.mrf.mxu0
      %v3011 = vadd.f32 %v720, %v3010
      %v3012 = vpop.f32.mrf.mxu0
      %3013 = vmatprep.mubr.bf16.mxu0 0
      %3014 = vmatmul.mubr.bf16.gmra.mxu0 %v2087
      %v3015 = vpop.f32.mrf.mxu0
      %v3016 = vadd.f32 %v720, %v3015
      %v3017 = vpop.f32.mrf.mxu0
      %v3018 = vpop.f32.mrf.mxu0
      %v3019 = vadd.f32 %v720, %v3018
      %v3020 = vpop.f32.mrf.mxu0
      %3021 = vmatprep.mubr.bf16.mxu0 0
      %3022 = vmatmul.mubr.bf16.gmra.mxu0 %v2090
      %v3023 = vpop.f32.mrf.mxu0
      %v3024 = vadd.f32 %v720, %v3023
      %v3025 = vpop.f32.mrf.mxu0
      %v3026 = vpop.f32.mrf.mxu0
      %v3027 = vadd.f32 %v720, %v3026
      %v3028 = vpop.f32.mrf.mxu0
      %3029 = vmatprep.mubr.bf16.mxu0 0
      %3030 = vmatmul.mubr.bf16.gmra.mxu0 %v2093
      %v3031 = vpop.f32.mrf.mxu0
      %v3032 = vadd.f32 %v720, %v3031
      %v3033 = vpop.f32.mrf.mxu0
      %v3034 = vpop.f32.mrf.mxu0
      %v3035 = vadd.f32 %v720, %v3034
      %v3036 = vpop.f32.mrf.mxu0
      %3037 = vmatprep.mubr.bf16.mxu0 0
      %3038 = vmatmul.mubr.bf16.gmra.mxu0 %v2096
      %v3039 = vpop.f32.mrf.mxu0
      %v3040 = vadd.f32 %v720, %v3039
      %v3041 = vpop.f32.mrf.mxu0
      %v3042 = vpop.f32.mrf.mxu0
      %v3043 = vadd.f32 %v720, %v3042
      %v3044 = vpop.f32.mrf.mxu0
      %3045 = vmatprep.mubr.bf16.mxu0 0
      %3046 = vmatmul.mubr.bf16.gmra.mxu0 %v2099
      %v3047 = vpop.f32.mrf.mxu0
      %v3048 = vadd.f32 %v720, %v3047
      %v3049 = vpop.f32.mrf.mxu0
      %v3050 = vpop.f32.mrf.mxu0
      %v3051 = vadd.f32 %v720, %v3050
      %v3052 = vpop.f32.mrf.mxu0
      %3053 = vmatprep.mubr.bf16.mxu0 0
      %3054 = vmatmul.mubr.bf16.gmra.mxu0 %v2102
      %v3055 = vpop.f32.mrf.mxu0
      %v3056 = vadd.f32 %v720, %v3055
      %v3057 = vpop.f32.mrf.mxu0
      %v3058 = vpop.f32.mrf.mxu0
      %v3059 = vadd.f32 %v720, %v3058
      %v3060 = vpop.f32.mrf.mxu0
      %3061 = vmatprep.mubr.bf16.mxu0 0
      %3062 = vmatmul.mubr.bf16.gmra.mxu0 %v2105
      %v3063 = vpop.f32.mrf.mxu0
      %v3064 = vadd.f32 %v720, %v3063
      %v3065 = vpop.f32.mrf.mxu0
      %v3066 = vpop.f32.mrf.mxu0
      %v3067 = vadd.f32 %v720, %v3066
      %v3068 = vpop.f32.mrf.mxu0
      %3069 = vmatprep.mubr.bf16.mxu0 0
      %3070 = vmatmul.mubr.bf16.gmra.mxu0 %v2108
      %v3071 = vpop.f32.mrf.mxu0
      %v3072 = vadd.f32 %v720, %v3071
      %v3073 = vpop.f32.mrf.mxu0
      %v3074 = vpop.f32.mrf.mxu0
      %v3075 = vadd.f32 %v720, %v3074
      %v3076 = vpop.f32.mrf.mxu0
      %3077 = vmatprep.mubr.bf16.mxu0 0
      %3078 = vmatmul.mubr.bf16.gmra.mxu0 %v2111
      %v3079 = vpop.f32.mrf.mxu0
      %v3080 = vadd.f32 %v720, %v3079
      %v3081 = vpop.f32.mrf.mxu0
      %v3082 = vpop.f32.mrf.mxu0
      %v3083 = vadd.f32 %v720, %v3082
      %v3084 = vpop.f32.mrf.mxu0
      %3085 = vmatprep.mubr.bf16.mxu0 0
      %3086 = vmatmul.mubr.bf16.gmra.mxu0 %v2114
      %v3087 = vpop.f32.mrf.mxu0
      %v3088 = vadd.f32 %v720, %v3087
      %v3089 = vpop.f32.mrf.mxu0
      %v3090 = vpop.f32.mrf.mxu0
      %v3091 = vadd.f32 %v720, %v3090
      %v3092 = vpop.f32.mrf.mxu0
      %3093 = vmatprep.mubr.bf16.mxu0 0
      %3094 = vmatmul.mubr.bf16.gmra.mxu0 %v2117
      %v3095 = vpop.f32.mrf.mxu0
      %v3096 = vadd.f32 %v720, %v3095
      %v3097 = vpop.f32.mrf.mxu0
      %v3098 = vpop.f32.mrf.mxu0
      %v3099 = vadd.f32 %v720, %v3098
      %v3100 = vpop.f32.mrf.mxu0
      %3101 = vmatprep.mubr.bf16.mxu0 0
      %3102 = vmatmul.mubr.bf16.gmra.mxu0 %v2120
      %v3103 = vpop.f32.mrf.mxu0
      %v3104 = vadd.f32 %v720, %v3103
      %v3105 = vpop.f32.mrf.mxu0
      %v3106 = vpop.f32.mrf.mxu0
      %v3107 = vadd.f32 %v720, %v3106
      %v3108 = vpop.f32.mrf.mxu0
      %3109 = vmatprep.mubr.bf16.mxu0 0
      %3110 = vmatmul.mubr.bf16.gmra.mxu0 %v2123
      %v3111 = vpop.f32.mrf.mxu0
      %v3112 = vadd.f32 %v720, %v3111
      %v3113 = vpop.f32.mrf.mxu0
      %v3114 = vpop.f32.mrf.mxu0
      %v3115 = vadd.f32 %v720, %v3114
      %v3116 = vpop.f32.mrf.mxu0
      %3117 = vmatprep.mubr.bf16.mxu0 0
      %3118 = vmatmul.mubr.bf16.gmra.mxu0 %v2126
      %v3119 = vpop.f32.mrf.mxu0
      %v3120 = vadd.f32 %v720, %v3119
      %v3121 = vpop.f32.mrf.mxu0
      %v3122 = vpop.f32.mrf.mxu0
      %v3123 = vadd.f32 %v720, %v3122
      %v3124 = vpop.f32.mrf.mxu0
      %3125 = vmatprep.mubr.bf16.mxu0 0
      %3126 = vmatmul.mubr.bf16.gmra.mxu0 %v2129
      %v3127 = vpop.f32.mrf.mxu0
      %v3128 = vadd.f32 %v720, %v3127
      %v3129 = vpop.f32.mrf.mxu0
      %v3130 = vpop.f32.mrf.mxu0
      %v3131 = vadd.f32 %v720, %v3130
      %v3132 = vpop.f32.mrf.mxu0
      %3133 = vmatprep.mubr.bf16.mxu0 0
      %3134 = vmatmul.mubr.bf16.gmra.mxu0 %v2132
      %v3135 = vpop.f32.mrf.mxu0
      %v3136 = vadd.f32 %v720, %v3135
      %v3137 = vpop.f32.mrf.mxu0
      %v3138 = vpop.f32.mrf.mxu0
      %v3139 = vadd.f32 %v720, %v3138
      %v3140 = vpop.f32.mrf.mxu0
      %3141 = vmatprep.mubr.bf16.mxu0 0
      %3142 = vmatmul.mubr.bf16.gmra.mxu0 %v2135
      %v3143 = vpop.f32.mrf.mxu0
      %v3144 = vadd.f32 %v720, %v3143
      %v3145 = vpop.f32.mrf.mxu0
      %v3146 = vpop.f32.mrf.mxu0
      %v3147 = vadd.f32 %v720, %v3146
      %v3148 = vpop.f32.mrf.mxu0
      %3149 = vmatprep.mubr.bf16.mxu0 0
      %3150 = vmatmul.mubr.bf16.gmra.mxu0 %v2138
      %v3151 = vpop.f32.mrf.mxu0
      %v3152 = vadd.f32 %v720, %v3151
      %v3153 = vpop.f32.mrf.mxu0
      %v3154 = vpop.f32.mrf.mxu0
      %v3155 = vadd.f32 %v720, %v3154
      %v3156 = vpop.f32.mrf.mxu0
      %3157 = vmatprep.mubr.bf16.mxu0 0
      %3158 = vmatmul.mubr.bf16.gmra.mxu0 %v2141
      %v3159 = vpop.f32.mrf.mxu0
      %v3160 = vadd.f32 %v720, %v3159
      %v3161 = vpop.f32.mrf.mxu0
      %v3162 = vpop.f32.mrf.mxu0
      %v3163 = vadd.f32 %v720, %v3162
      %v3164 = vpop.f32.mrf.mxu0
      %3165 = vmatprep.mubr.bf16.mxu0 0
      %3166 = vmatmul.mubr.bf16.gmra.mxu0 %v2144
      %v3167 = vpop.f32.mrf.mxu0
      %v3168 = vadd.f32 %v720, %v3167
      %v3169 = vpop.f32.mrf.mxu0
      %v3170 = vpop.f32.mrf.mxu0
      %v3171 = vadd.f32 %v720, %v3170
      %v3172 = vpop.f32.mrf.mxu0
      %3173 = vmatprep.mubr.bf16.mxu0 0
      %3174 = vmatmul.mubr.bf16.gmra.mxu0 %v2147
      %v3175 = vpop.f32.mrf.mxu0
      %v3176 = vadd.f32 %v720, %v3175
      %v3177 = vpop.f32.mrf.mxu0
      %v3178 = vpop.f32.mrf.mxu0
      %v3179 = vadd.f32 %v720, %v3178
      %v3180 = vpop.f32.mrf.mxu0
      %3181 = vmatprep.mubr.bf16.mxu0 0
      %3182 = vmatmul.mubr.bf16.gmra.mxu0 %v2150
      %v3183 = vpop.f32.mrf.mxu0
      %v3184 = vadd.f32 %v720, %v3183
      %v3185 = vpop.f32.mrf.mxu0
      %v3186 = vpop.f32.mrf.mxu0
      %v3187 = vadd.f32 %v720, %v3186
      %v3188 = vpop.f32.mrf.mxu0
      %3189 = vmatprep.mubr.bf16.mxu0 0
      %3190 = vmatmul.mubr.bf16.gmra.mxu0 %v2153
      %v3191 = vpop.f32.mrf.mxu0
      %v3192 = vadd.f32 %v720, %v3191
      %v3193 = vpop.f32.mrf.mxu0
      %v3194 = vpop.f32.mrf.mxu0
      %v3195 = vadd.f32 %v720, %v3194
      %v3196 = vpop.f32.mrf.mxu0
      %3197 = vmatprep.mubr.bf16.mxu0 0
      %3198 = vmatmul.mubr.bf16.gmra.mxu0 %v2156
      %v3199 = vpop.f32.mrf.mxu0
      %v3200 = vadd.f32 %v720, %v3199
      %v3201 = vpop.f32.mrf.mxu0
      %v3202 = vpop.f32.mrf.mxu0
      %v3203 = vadd.f32 %v720, %v3202
      %v3204 = vpop.f32.mrf.mxu0
      %3205 = vmatprep.mubr.bf16.mxu0 0
      %3206 = vmatmul.mubr.bf16.gmra.mxu0 %v2159
      %v3207 = vpop.f32.mrf.mxu0
      %v3208 = vadd.f32 %v720, %v3207
      %v3209 = vpop.f32.mrf.mxu0
      %v3210 = vpop.f32.mrf.mxu0
      %v3211 = vadd.f32 %v720, %v3210
      %v3212 = vpop.f32.mrf.mxu0
      %3213 = vmatprep.mubr.bf16.mxu0 0
      %3214 = vmatmul.mubr.bf16.gmra.mxu0 %v2162
      %v3215 = vpop.f32.mrf.mxu0
      %v3216 = vadd.f32 %v720, %v3215
      %v3217 = vpop.f32.mrf.mxu0
      %v3218 = vpop.f32.mrf.mxu0
      %v3219 = vadd.f32 %v720, %v3218
      %v3220 = vpop.f32.mrf.mxu0
      %3221 = vmatprep.mubr.bf16.mxu0 0
      %3222 = vmatmul.mubr.bf16.gmra.mxu0 %v2165
      %v3223 = vpop.f32.mrf.mxu0
      %v3224 = vadd.f32 %v720, %v3223
      %v3225 = vpop.f32.mrf.mxu0
      %v3226 = vpop.f32.mrf.mxu0
      %v3227 = vadd.f32 %v720, %v3226
      %v3228 = vpop.f32.mrf.mxu0
      %3229 = vmatprep.mubr.bf16.mxu0 0
      %3230 = vmatmul.mubr.bf16.gmra.mxu0 %v2168
      %v3231 = vpop.f32.mrf.mxu0
      %v3232 = vadd.f32 %v720, %v3231
      %v3233 = vpop.f32.mrf.mxu0
      %v3234 = vpop.f32.mrf.mxu0
      %v3235 = vadd.f32 %v720, %v3234
      %v3236 = vpop.f32.mrf.mxu0
      %3237 = vmatprep.mubr.bf16.mxu0 0
      %3238 = vmatmul.mubr.bf16.gmra.mxu0 %v2171
      %v3239 = vpop.f32.mrf.mxu0
      %v3240 = vadd.f32 %v720, %v3239
      %v3241 = vpop.f32.mrf.mxu0
      %v3242 = vpop.f32.mrf.mxu0
      %v3243 = vadd.f32 %v720, %v3242
      %v3244 = vpop.f32.mrf.mxu0
      %3245 = vmatprep.mubr.bf16.mxu0 0
      %3246 = vmatmul.mubr.bf16.gmra.mxu0 %v2174
      %v3247 = vpop.f32.mrf.mxu0
      %v3248 = vadd.f32 %v720, %v3247
      %v3249 = vpop.f32.mrf.mxu0
      %v3250 = vpop.f32.mrf.mxu0
      %v3251 = vadd.f32 %v720, %v3250
      %v3252 = vpop.f32.mrf.mxu0
      %3253 = vmatprep.mubr.bf16.mxu0 0
      %3254 = vmatmul.mubr.bf16.gmra.mxu0 %v2177
      %v3255 = vpop.f32.mrf.mxu0
      %v3256 = vadd.f32 %v720, %v3255
      %v3257 = vpop.f32.mrf.mxu0
      %v3258 = vpop.f32.mrf.mxu0
      %v3259 = vadd.f32 %v720, %v3258
      %v3260 = vpop.f32.mrf.mxu0
      %3261 = vmatprep.mubr.bf16.mxu0 0
      %3262 = vmatmul.mubr.bf16.gmra.mxu0 %v2180
      %v3263 = vpop.f32.mrf.mxu0
      %v3264 = vadd.f32 %v720, %v3263
      %v3265 = vpop.f32.mrf.mxu0
      %v3266 = vpop.f32.mrf.mxu0
      %v3267 = vadd.f32 %v720, %v3266
      %v3268 = vpop.f32.mrf.mxu0
      %3269 = vmatprep.mubr.bf16.mxu0 0
      %3270 = vmatmul.mubr.bf16.gmra.mxu0 %v2183
      %v3271 = vpop.f32.mrf.mxu0
      %v3272 = vadd.f32 %v720, %v3271
      %v3273 = vpop.f32.mrf.mxu0
      %v3274 = vpop.f32.mrf.mxu0
      %v3275 = vadd.f32 %v720, %v3274
      %v3276 = vpop.f32.mrf.mxu0
      %3277 = vmatprep.mubr.bf16.mxu0 0
      %3278 = vmatmul.mubr.bf16.gmra.mxu0 %v2186
      %v3279 = vpop.f32.mrf.mxu0
      %v3280 = vadd.f32 %v720, %v3279
      %v3281 = vpop.f32.mrf.mxu0
      %v3282 = vpop.f32.mrf.mxu0
      %v3283 = vadd.f32 %v720, %v3282
      %v3284 = vpop.f32.mrf.mxu0
      %3285 = vmatprep.mubr.bf16.mxu0 0
      %3286 = vmatmul.mubr.bf16.gmra.mxu0 %v2189
      %v3287 = vpop.f32.mrf.mxu0
      %v3288 = vadd.f32 %v720, %v3287
      %v3289 = vpop.f32.mrf.mxu0
      %v3290 = vpop.f32.mrf.mxu0
      %v3291 = vadd.f32 %v720, %v3290
      %v3292 = vpop.f32.mrf.mxu0
      %3293 = vmatprep.mubr.bf16.mxu0 0
      %3294 = vmatmul.mubr.bf16.gmra.mxu0 %v2192
      %v3295 = vpop.f32.mrf.mxu0
      %v3296 = vadd.f32 %v720, %v3295
      %v3297 = vpop.f32.mrf.mxu0
      %v3298 = vpop.f32.mrf.mxu0
      %v3299 = vadd.f32 %v720, %v3298
      %v3300 = vpop.f32.mrf.mxu0
      %3301 = vmatprep.mubr.bf16.mxu0 0
      %3302 = vmatmul.mubr.bf16.gmra.mxu0 %v2195
      %v3303 = vpop.f32.mrf.mxu0
      %v3304 = vadd.f32 %v720, %v3303
      %v3305 = vpop.f32.mrf.mxu0
      %v3306 = vpop.f32.mrf.mxu0
      %v3307 = vadd.f32 %v720, %v3306
      %v3308 = vpop.f32.mrf.mxu0
      %3309 = vmatprep.mubr.bf16.mxu0 0
      %3310 = vmatmul.mubr.bf16.gmra.mxu0 %v2198
      %v3311 = vpop.f32.mrf.mxu0
      %v3312 = vadd.f32 %v720, %v3311
      %v3313 = vpop.f32.mrf.mxu0
      %v3314 = vpop.f32.mrf.mxu0
      %v3315 = vadd.f32 %v720, %v3314
      %v3316 = vpop.f32.mrf.mxu0
      %3317 = vmatprep.mubr.bf16.mxu0 0
      %3318 = vmatmul.mubr.bf16.gmra.mxu0 %v2201
      %v3319 = vpop.f32.mrf.mxu0
      %v3320 = vadd.f32 %v720, %v3319
      %v3321 = vpop.f32.mrf.mxu0
      %v3322 = vpop.f32.mrf.mxu0
      %v3323 = vadd.f32 %v720, %v3322
      %v3324 = vpop.f32.mrf.mxu0
      %3325 = vmatprep.mubr.bf16.mxu0 0
      %3326 = vmatmul.mubr.bf16.gmra.mxu0 %v2204
      %v3327 = vpop.f32.mrf.mxu0
      %v3328 = vadd.f32 %v720, %v3327
      %v3329 = vpop.f32.mrf.mxu0
      %v3330 = vpop.f32.mrf.mxu0
      %v3331 = vadd.f32 %v720, %v3330
      %v3332 = vpop.f32.mrf.mxu0
      %3333 = vmatprep.mubr.bf16.mxu0 0
      %3334 = vmatmul.mubr.bf16.gmra.mxu0 %v2207
      %v3335 = vpop.f32.mrf.mxu0
      %v3336 = vadd.f32 %v720, %v3335
      %v3337 = vpop.f32.mrf.mxu0
      %v3338 = vpop.f32.mrf.mxu0
      %v3339 = vadd.f32 %v720, %v3338
      %v3340 = vpop.f32.mrf.mxu0
      %3341 = vmatprep.mubr.bf16.mxu0 0
      %3342 = vmatmul.mubr.bf16.gmra.mxu0 %v2210
      %v3343 = vpop.f32.mrf.mxu0
      %v3344 = vadd.f32 %v720, %v3343
      %v3345 = vpop.f32.mrf.mxu0
      %v3346 = vpop.f32.mrf.mxu0
      %v3347 = vadd.f32 %v720, %v3346
      %v3348 = vpop.f32.mrf.mxu0
      %3349 = vmatprep.mubr.bf16.mxu0 0
      %3350 = vmatmul.mubr.bf16.gmra.mxu0 %v2213
      %v3351 = vpop.f32.mrf.mxu0
      %v3352 = vadd.f32 %v720, %v3351
      %v3353 = vpop.f32.mrf.mxu0
      %v3354 = vpop.f32.mrf.mxu0
      %v3355 = vadd.f32 %v720, %v3354
      %v3356 = vpop.f32.mrf.mxu0
      %3357 = vmatprep.mubr.bf16.mxu0 0
      %3358 = vmatmul.mubr.bf16.gmra.mxu0 %v2216
      %v3359 = vpop.f32.mrf.mxu0
      %v3360 = vadd.f32 %v720, %v3359
      %v3361 = vpop.f32.mrf.mxu0
      %v3362 = vpop.f32.mrf.mxu0
      %v3363 = vadd.f32 %v720, %v3362
      %v3364 = vpop.f32.mrf.mxu0
      %3365 = vmatprep.mubr.bf16.mxu0 0
      %3366 = vmatmul.mubr.bf16.gmra.mxu0 %v2219
      %v3367 = vpop.f32.mrf.mxu0
      %v3368 = vadd.f32 %v720, %v3367
      %v3369 = vpop.f32.mrf.mxu0
      %v3370 = vpop.f32.mrf.mxu0
      %v3371 = vadd.f32 %v720, %v3370
      %v3372 = vpop.f32.mrf.mxu0
      %3373 = vmatprep.mubr.bf16.mxu0 0
      %3374 = vmatmul.mubr.bf16.gmra.mxu0 %v2222
      %v3375 = vpop.f32.mrf.mxu0
      %v3376 = vadd.f32 %v720, %v3375
      %v3377 = vpop.f32.mrf.mxu0
      %v3378 = vpop.f32.mrf.mxu0
      %v3379 = vadd.f32 %v720, %v3378
      %v3380 = vpop.f32.mrf.mxu0
      %3381 = vmatprep.mubr.bf16.mxu0 0
      %3382 = vmatmul.mubr.bf16.gmra.mxu0 %v2225
      %v3383 = vpop.f32.mrf.mxu0
      %v3384 = vadd.f32 %v720, %v3383
      %v3385 = vpop.f32.mrf.mxu0
      %v3386 = vpop.f32.mrf.mxu0
      %v3387 = vadd.f32 %v720, %v3386
      %v3388 = vpop.f32.mrf.mxu0
      %3389 = vmatprep.mubr.bf16.mxu0 0
      %3390 = vmatmul.mubr.bf16.gmra.mxu0 %v2228
      %v3391 = vpop.f32.mrf.mxu0
      %v3392 = vadd.f32 %v720, %v3391
      %v3393 = vpop.f32.mrf.mxu0
      %v3394 = vpop.f32.mrf.mxu0
      %v3395 = vadd.f32 %v720, %v3394
      %v3396 = vpop.f32.mrf.mxu0
      %3397 = vmatprep.mubr.bf16.mxu0 0
      %3398 = vmatmul.mubr.bf16.gmra.mxu0 %v2231
      %v3399 = vpop.f32.mrf.mxu0
      %v3400 = vadd.f32 %v720, %v3399
      %v3401 = vpop.f32.mrf.mxu0
      %v3402 = vpop.f32.mrf.mxu0
      %v3403 = vadd.f32 %v720, %v3402
      %v3404 = vpop.f32.mrf.mxu0
      %3405 = vmatprep.mubr.bf16.mxu0 0
      %3406 = vmatmul.mubr.bf16.gmra.mxu0 %v2234
      %v3407 = vpop.f32.mrf.mxu0
      %v3408 = vadd.f32 %v720, %v3407
      %v3409 = vpop.f32.mrf.mxu0
      %v3410 = vpop.f32.mrf.mxu0
      %v3411 = vadd.f32 %v720, %v3410
      %v3412 = vpop.f32.mrf.mxu0
      %3413 = vmatprep.mubr.bf16.mxu0 0
      %3414 = vmatmul.mubr.bf16.gmra.mxu0 %v2237
      %v3415 = vpop.f32.mrf.mxu0
      %v3416 = vadd.f32 %v720, %v3415
      %v3417 = vpop.f32.mrf.mxu0
      %v3418 = vpop.f32.mrf.mxu0
      %v3419 = vadd.f32 %v720, %v3418
      %v3420 = vpop.f32.mrf.mxu0
      %3421 = vmatprep.mubr.bf16.mxu0 0
      %3422 = vmatmul.mubr.bf16.gmra.mxu0 %v2240
      %v3423 = vpop.f32.mrf.mxu0
      %v3424 = vadd.f32 %v720, %v3423
      %v3425 = vpop.f32.mrf.mxu0
      %v3426 = vpop.f32.mrf.mxu0
      %v3427 = vadd.f32 %v720, %v3426
      %v3428 = vpop.f32.mrf.mxu0
      %3429 = vmatprep.mubr.bf16.mxu0 0
      %3430 = vmatmul.mubr.bf16.gmra.mxu0 %v2243
      %v3431 = vpop.f32.mrf.mxu0
      %v3432 = vadd.f32 %v720, %v3431
      %v3433 = vpop.f32.mrf.mxu0
      %v3434 = vpop.f32.mrf.mxu0
      %v3435 = vadd.f32 %v720, %v3434
      %v3436 = vpop.f32.mrf.mxu0
      %3437 = vmatprep.mubr.bf16.mxu0 0
      %3438 = vmatmul.mubr.bf16.gmra.mxu0 %v2246
      %v3439 = vpop.f32.mrf.mxu0
      %v3440 = vadd.f32 %v720, %v3439
      %v3441 = vpop.f32.mrf.mxu0
      %v3442 = vpop.f32.mrf.mxu0
      %v3443 = vadd.f32 %v720, %v3442
      %v3444 = vpop.f32.mrf.mxu0
      %3445 = vmatprep.mubr.bf16.mxu0 0
      %3446 = vmatmul.mubr.bf16.gmra.mxu0 %v2249
      %v3447 = vpop.f32.mrf.mxu0
      %v3448 = vadd.f32 %v720, %v3447
      %v3449 = vpop.f32.mrf.mxu0
      %v3450 = vpop.f32.mrf.mxu0
      %v3451 = vadd.f32 %v720, %v3450
      %v3452 = vpop.f32.mrf.mxu0
      %3453 = vmatprep.mubr.bf16.mxu0 0
      %3454 = vmatmul.mubr.bf16.gmra.mxu0 %v2252
      %v3455 = vpop.f32.mrf.mxu0
      %v3456 = vadd.f32 %v720, %v3455
      %v3457 = vpop.f32.mrf.mxu0
      %v3458 = vpop.f32.mrf.mxu0
      %v3459 = vadd.f32 %v720, %v3458
      %v3460 = vpop.f32.mrf.mxu0
      %3461 = vmatprep.mubr.bf16.mxu0 0
      %3462 = vmatmul.mubr.bf16.gmra.mxu0 %v2255
      %v3463 = vpop.f32.mrf.mxu0
      %v3464 = vadd.f32 %v720, %v3463
      %v3465 = vpop.f32.mrf.mxu0
      %v3466 = vpop.f32.mrf.mxu0
      %v3467 = vadd.f32 %v720, %v3466
      %v3468 = vpop.f32.mrf.mxu0
      %3469 = vmatprep.mubr.bf16.mxu0 0
      %3470 = vmatmul.mubr.bf16.gmra.mxu0 %v2258
      %v3471 = vpop.f32.mrf.mxu0
      %v3472 = vadd.f32 %v720, %v3471
      %v3473 = vpop.f32.mrf.mxu0
      %v3474 = vpop.f32.mrf.mxu0
      %v3475 = vadd.f32 %v720, %v3474
      %v3476 = vpop.f32.mrf.mxu0
      %3477 = vmatprep.mubr.bf16.mxu0 0
      %3478 = vmatmul.mubr.bf16.gmra.mxu0 %v2261
      %v3479 = vpop.f32.mrf.mxu0
      %v3480 = vadd.f32 %v720, %v3479
      %v3481 = vpop.f32.mrf.mxu0
      %v3482 = vpop.f32.mrf.mxu0
      %v3483 = vadd.f32 %v720, %v3482
      %v3484 = vpop.f32.mrf.mxu0
      %3485 = vmatprep.mubr.bf16.mxu0 0
      %3486 = vmatmul.mubr.bf16.gmra.mxu0 %v2264
      %v3487 = vpop.f32.mrf.mxu0
      %v3488 = vadd.f32 %v720, %v3487
      %v3489 = vpop.f32.mrf.mxu0
      %v3490 = vpop.f32.mrf.mxu0
      %v3491 = vadd.f32 %v720, %v3490
      %v3492 = vpop.f32.mrf.mxu0
      %3493 = vmatprep.mubr.bf16.mxu0 0
      %3494 = vmatmul.mubr.bf16.gmra.mxu0 %v2267
      %v3495 = vpop.f32.mrf.mxu0
      %v3496 = vadd.f32 %v720, %v3495
      %v3497 = vpop.f32.mrf.mxu0
      %v3498 = vpop.f32.mrf.mxu0
      %v3499 = vadd.f32 %v720, %v3498
      %v3500 = vpop.f32.mrf.mxu0
      %3501 = vmatprep.mubr.bf16.mxu0 0
      %3502 = vmatmul.mubr.bf16.gmra.mxu0 %v2270
      %v3503 = vpop.f32.mrf.mxu0
      %v3504 = vadd.f32 %v720, %v3503
      %v3505 = vpop.f32.mrf.mxu0
      %v3506 = vpop.f32.mrf.mxu0
      %v3507 = vadd.f32 %v720, %v3506
      %v3508 = vpop.f32.mrf.mxu0
      %3509 = vmatprep.mubr.bf16.mxu0 0
      %3510 = vmatmul.mubr.bf16.gmra.mxu0 %v2273
      %v3511 = vpop.f32.mrf.mxu0
      %v3512 = vadd.f32 %v720, %v3511
      %v3513 = vpop.f32.mrf.mxu0
      %v3514 = vpop.f32.mrf.mxu0
      %v3515 = vadd.f32 %v720, %v3514
      %v3516 = vpop.f32.mrf.mxu0
      %3517 = vmatprep.mubr.bf16.mxu0 0
      %3518 = vmatmul.mubr.bf16.gmra.mxu0 %v2276
      %v3519 = vpop.f32.mrf.mxu0
      %v3520 = vadd.f32 %v720, %v3519
      %v3521 = vpop.f32.mrf.mxu0
      %v3522 = vpop.f32.mrf.mxu0
      %v3523 = vadd.f32 %v720, %v3522
      %v3524 = vpop.f32.mrf.mxu0
      %3525 = vmatprep.mubr.bf16.mxu0 0
      %3526 = vmatmul.mubr.bf16.gmra.mxu0 %v2279
      %v3527 = vpop.f32.mrf.mxu0
      %v3528 = vadd.f32 %v720, %v3527
      %v3529 = vpop.f32.mrf.mxu0
      %v3530 = vpop.f32.mrf.mxu0
      %v3531 = vadd.f32 %v720, %v3530
      %v3532 = vpop.f32.mrf.mxu0
      %3533 = vmatprep.mubr.bf16.mxu0 0
      %3534 = vmatmul.mubr.bf16.gmra.mxu0 %v2282
      %v3535 = vpop.f32.mrf.mxu0
      %v3536 = vadd.f32 %v720, %v3535
      %v3537 = vpop.f32.mrf.mxu0
      %v3538 = vpop.f32.mrf.mxu0
      %v3539 = vadd.f32 %v720, %v3538
      %v3540 = vpop.f32.mrf.mxu0
      %3541 = vmatprep.mubr.bf16.mxu0 0
      %3542 = vmatmul.mubr.bf16.gmra.mxu0 %v2285
      %v3543 = vpop.f32.mrf.mxu0
      %v3544 = vadd.f32 %v720, %v3543
      %v3545 = vpop.f32.mrf.mxu0
      %v3546 = vpop.f32.mrf.mxu0
      %v3547 = vadd.f32 %v720, %v3546
      %v3548 = vpop.f32.mrf.mxu0
      %3549 = vmatprep.mubr.bf16.mxu0 0
      %3550 = vmatmul.mubr.bf16.gmra.mxu0 %v2288
      %v3551 = vpop.f32.mrf.mxu0
      %v3552 = vadd.f32 %v720, %v3551
      %v3553 = vpop.f32.mrf.mxu0
      %v3554 = vpop.f32.mrf.mxu0
      %v3555 = vadd.f32 %v720, %v3554
      %v3556 = vpop.f32.mrf.mxu0
      %3557 = vmatprep.mubr.bf16.mxu0 0
      %3558 = vmatmul.mubr.bf16.gmra.mxu0 %v2291
      %v3559 = vpop.f32.mrf.mxu0
      %v3560 = vadd.f32 %v720, %v3559
      %v3561 = vpop.f32.mrf.mxu0
      %v3562 = vpop.f32.mrf.mxu0
      %v3563 = vadd.f32 %v720, %v3562
      %v3564 = vpop.f32.mrf.mxu0
      %3565 = vmatprep.mubr.bf16.mxu0 0
      %3566 = vmatmul.mubr.bf16.gmra.mxu0 %v2294
      %v3567 = vpop.f32.mrf.mxu0
      %v3568 = vadd.f32 %v720, %v3567
      %v3569 = vpop.f32.mrf.mxu0
      %v3570 = vpop.f32.mrf.mxu0
      %v3571 = vadd.f32 %v720, %v3570
      %v3572 = vpop.f32.mrf.mxu0
      %3573 = vmatprep.mubr.bf16.mxu0 0
      %3574 = vmatmul.mubr.bf16.gmra.mxu0 %v2297
      %v3575 = vpop.f32.mrf.mxu0
      %v3576 = vadd.f32 %v720, %v3575
      %v3577 = vpop.f32.mrf.mxu0
      %v3578 = vpop.f32.mrf.mxu0
      %v3579 = vadd.f32 %v720, %v3578
      %v3580 = vpop.f32.mrf.mxu0
      %3581 = vmatprep.mubr.bf16.mxu0 0
      %3582 = vmatmul.mubr.bf16.gmra.mxu0 %v2300
      %v3583 = vpop.f32.mrf.mxu0
      %v3584 = vadd.f32 %v720, %v3583
      %v3585 = vpop.f32.mrf.mxu0
      %v3586 = vpop.f32.mrf.mxu0
      %v3587 = vadd.f32 %v720, %v3586
      %v3588 = vpop.f32.mrf.mxu0
      %3589 = vmatprep.mubr.bf16.mxu0 0
      %3590 = vmatmul.mubr.bf16.gmra.mxu0 %v2303
      %v3591 = vpop.f32.mrf.mxu0
      %v3592 = vadd.f32 %v720, %v3591
      %v3593 = vpop.f32.mrf.mxu0
      %v3594 = vpop.f32.mrf.mxu0
      %v3595 = vadd.f32 %v720, %v3594
      %v3596 = vpop.f32.mrf.mxu0
      %3597 = vmatprep.mubr.bf16.mxu0 0
      %3598 = vmatmul.mubr.bf16.gmra.mxu0 %v2306
      %v3599 = vpop.f32.mrf.mxu0
      %v3600 = vadd.f32 %v720, %v3599
      %v3601 = vpop.f32.mrf.mxu0
      %v3602 = vpop.f32.mrf.mxu0
      %v3603 = vadd.f32 %v720, %v3602
      %v3604 = vpop.f32.mrf.mxu0
      %3605 = vmatprep.mubr.bf16.mxu0 0
      %3606 = vmatmul.mubr.bf16.gmra.mxu0 %v2309
      %v3607 = vpop.f32.mrf.mxu0
      %v3608 = vadd.f32 %v720, %v3607
      %v3609 = vpop.f32.mrf.mxu0
      %v3610 = vpop.f32.mrf.mxu0
      %v3611 = vadd.f32 %v720, %v3610
      %v3612 = vpop.f32.mrf.mxu0
      %3613 = vmatprep.mubr.bf16.mxu0 0
      %3614 = vmatmul.mubr.bf16.gmra.mxu0 %v2312
      %v3615 = vpop.f32.mrf.mxu0
      %v3616 = vadd.f32 %v720, %v3615
      %v3617 = vpop.f32.mrf.mxu0
      %v3618 = vpop.f32.mrf.mxu0
      %v3619 = vadd.f32 %v720, %v3618
      %v3620 = vpop.f32.mrf.mxu0
      %3621 = vmatprep.mubr.bf16.mxu0 0
      %3622 = vmatmul.mubr.bf16.gmra.mxu0 %v2315
      %v3623 = vpop.f32.mrf.mxu0
      %v3624 = vadd.f32 %v720, %v3623
      %v3625 = vpop.f32.mrf.mxu0
      %v3626 = vpop.f32.mrf.mxu0
      %v3627 = vadd.f32 %v720, %v3626
      %v3628 = vpop.f32.mrf.mxu0
      %3629 = vmatprep.mubr.bf16.mxu0 0
      %3630 = vmatmul.mubr.bf16.gmra.mxu0 %v2318
      %v3631 = vpop.f32.mrf.mxu0
      %v3632 = vadd.f32 %v720, %v3631
      %v3633 = vpop.f32.mrf.mxu0
      %v3634 = vpop.f32.mrf.mxu0
      %v3635 = vadd.f32 %v720, %v3634
      %v3636 = vpop.f32.mrf.mxu0
      %3637 = vmatprep.mubr.bf16.mxu0 0
      %3638 = vmatmul.mubr.bf16.gmra.mxu0 %v2321
      %v3639 = vpop.f32.mrf.mxu0
      %v3640 = vadd.f32 %v720, %v3639
      %v3641 = vpop.f32.mrf.mxu0
      %v3642 = vpop.f32.mrf.mxu0
      %v3643 = vadd.f32 %v720, %v3642
      %v3644 = vpop.f32.mrf.mxu0
      %3645 = vmatprep.mubr.bf16.mxu0 0
      %3646 = vmatmul.mubr.bf16.gmra.mxu0 %v2324
      %v3647 = vpop.f32.mrf.mxu0
      %v3648 = vadd.f32 %v720, %v3647
      %v3649 = vpop.f32.mrf.mxu0
      %v3650 = vpop.f32.mrf.mxu0
      %v3651 = vadd.f32 %v720, %v3650
      %v3652 = vpop.f32.mrf.mxu0
      %3653 = vmatprep.mubr.bf16.mxu0 0
      %3654 = vmatmul.mubr.bf16.gmra.mxu0 %v2327
      %v3655 = vpop.f32.mrf.mxu0
      %v3656 = vadd.f32 %v720, %v3655
      %v3657 = vpop.f32.mrf.mxu0
      %v3658 = vpop.f32.mrf.mxu0
      %v3659 = vadd.f32 %v720, %v3658
      %v3660 = vpop.f32.mrf.mxu0
      %3661 = vmatprep.mubr.bf16.mxu0 0
      %3662 = vmatmul.mubr.bf16.gmra.mxu0 %v2330
      %v3663 = vpop.f32.mrf.mxu0
      %v3664 = vadd.f32 %v720, %v3663
      %v3665 = vpop.f32.mrf.mxu0
      %v3666 = vpop.f32.mrf.mxu0
      %v3667 = vadd.f32 %v720, %v3666
      %v3668 = vpop.f32.mrf.mxu0
      %3669 = vmatprep.mubr.bf16.mxu0 0
      %3670 = vmatmul.mubr.bf16.gmra.mxu0 %v2333
      %v3671 = vpop.f32.mrf.mxu0
      %v3672 = vadd.f32 %v720, %v3671
      %v3673 = vpop.f32.mrf.mxu0
      %v3674 = vpop.f32.mrf.mxu0
      %v3675 = vadd.f32 %v720, %v3674
      %v3676 = vpop.f32.mrf.mxu0
      %3677 = vmatprep.mubr.bf16.mxu0 0
      %3678 = vmatmul.mubr.bf16.gmra.mxu0 %v2336
      %v3679 = vpop.f32.mrf.mxu0
      %v3680 = vadd.f32 %v720, %v3679
      %v3681 = vpop.f32.mrf.mxu0
      %v3682 = vpop.f32.mrf.mxu0
      %v3683 = vadd.f32 %v720, %v3682
      %v3684 = vpop.f32.mrf.mxu0
      %3685 = vmatprep.mubr.bf16.mxu0 0
      %3686 = vmatmul.mubr.bf16.gmra.mxu0 %v2339
      %v3687 = vpop.f32.mrf.mxu0
      %v3688 = vadd.f32 %v720, %v3687
      %v3689 = vpop.f32.mrf.mxu0
      %v3690 = vpop.f32.mrf.mxu0
      %v3691 = vadd.f32 %v720, %v3690
      %v3692 = vpop.f32.mrf.mxu0
      %3693 = vmatprep.mubr.bf16.mxu0 0
      %3694 = vmatmul.mubr.bf16.gmra.mxu0 %v2342
      %v3695 = vpop.f32.mrf.mxu0
      %v3696 = vadd.f32 %v720, %v3695
      %v3697 = vpop.f32.mrf.mxu0
      %v3698 = vpop.f32.mrf.mxu0
      %v3699 = vadd.f32 %v720, %v3698
      %v3700 = vpop.f32.mrf.mxu0
      %3701 = vmatprep.mubr.bf16.mxu0 0
      %3702 = vmatmul.mubr.bf16.gmra.mxu0 %v2345
      %v3703 = vpop.f32.mrf.mxu0
      %v3704 = vadd.f32 %v720, %v3703
      %v3705 = vpop.f32.mrf.mxu0
      %v3706 = vpop.f32.mrf.mxu0
      %v3707 = vadd.f32 %v720, %v3706
      %v3708 = vpop.f32.mrf.mxu0
      %3709 = vmatprep.mubr.bf16.mxu0 0
      %3710 = vmatmul.mubr.bf16.gmra.mxu0 %v2348
      %v3711 = vpop.f32.mrf.mxu0
      %v3712 = vadd.f32 %v720, %v3711
      %v3713 = vpop.f32.mrf.mxu0
      %v3714 = vpop.f32.mrf.mxu0
      %v3715 = vadd.f32 %v720, %v3714
      %v3716 = vpop.f32.mrf.mxu0
      %3717 = vmatprep.mubr.bf16.mxu0 0
      %3718 = vmatmul.mubr.bf16.gmra.mxu0 %v2351
      %v3719 = vpop.f32.mrf.mxu0
      %v3720 = vadd.f32 %v720, %v3719
      %v3721 = vpop.f32.mrf.mxu0
      %v3722 = vpop.f32.mrf.mxu0
      %v3723 = vadd.f32 %v720, %v3722
      %v3724 = vpop.f32.mrf.mxu0
      %3725 = vmatprep.mubr.bf16.mxu0 0
      %3726 = vmatmul.mubr.bf16.gmra.mxu0 %v2354
      %v3727 = vpop.f32.mrf.mxu0
      %v3728 = vadd.f32 %v720, %v3727
      %v3729 = vpop.f32.mrf.mxu0
      %v3730 = vpop.f32.mrf.mxu0
      %v3731 = vadd.f32 %v720, %v3730
      %v3732 = vpop.f32.mrf.mxu0
      %3733 = vmatprep.mubr.bf16.mxu0 0
      %3734 = vmatmul.mubr.bf16.gmra.mxu0 %v2357
      %v3735 = vpop.f32.mrf.mxu0
      %v3736 = vadd.f32 %v720, %v3735
      %v3737 = vpop.f32.mrf.mxu0
      %v3738 = vpop.f32.mrf.mxu0
      %v3739 = vadd.f32 %v720, %v3738
      %v3740 = vpop.f32.mrf.mxu0
      %3741 = vmatprep.mubr.bf16.mxu0 0
      %3742 = vmatmul.mubr.bf16.gmra.mxu0 %v2360
      %v3743 = vpop.f32.mrf.mxu0
      %v3744 = vadd.f32 %v720, %v3743
      %v3745 = vpop.f32.mrf.mxu0
      %v3746 = vpop.f32.mrf.mxu0
      %v3747 = vadd.f32 %v720, %v3746
      %v3748 = vpop.f32.mrf.mxu0
      %3749 = vmatprep.mubr.bf16.mxu0 0
      %3750 = vmatmul.mubr.bf16.gmra.mxu0 %v2363
      %v3751 = vpop.f32.mrf.mxu0
      %v3752 = vadd.f32 %v720, %v3751
      %v3753 = vpop.f32.mrf.mxu0
      %v3754 = vpop.f32.mrf.mxu0
      %v3755 = vadd.f32 %v720, %v3754
      %v3756 = vpop.f32.mrf.mxu0
      %3757 = vmatprep.mubr.bf16.mxu0 0
      %3758 = vmatmul.mubr.bf16.gmra.mxu0 %v2366
      %v3759 = vpop.f32.mrf.mxu0
      %v3760 = vadd.f32 %v720, %v3759
      %v3761 = vpop.f32.mrf.mxu0
      %v3762 = vpop.f32.mrf.mxu0
      %v3763 = vadd.f32 %v720, %v3762
      %v3764 = vpop.f32.mrf.mxu0
      %3765 = vmatprep.mubr.bf16.mxu0 0
      %3766 = vmatmul.mubr.bf16.gmra.mxu0 %v2369
      %v3767 = vpop.f32.mrf.mxu0
      %v3768 = vadd.f32 %v720, %v3767
      %v3769 = vpop.f32.mrf.mxu0
      %v3770 = vpop.f32.mrf.mxu0
      %v3771 = vadd.f32 %v720, %v3770
      %v3772 = vpop.f32.mrf.mxu0
      %3773 = vmatprep.mubr.bf16.mxu0 0
      %3774 = vmatmul.mubr.bf16.gmra.mxu0 %v2372
      %v3775 = vpop.f32.mrf.mxu0
      %v3776 = vadd.f32 %v720, %v3775
      %v3777 = vpop.f32.mrf.mxu0
      %v3778 = vpop.f32.mrf.mxu0
      %v3779 = vadd.f32 %v720, %v3778
      %v3780 = vpop.f32.mrf.mxu0
      %3781 = vmatprep.mubr.bf16.mxu0 0
      %3782 = vmatmul.mubr.bf16.gmra.mxu0 %v2375
      %v3783 = vpop.f32.mrf.mxu0
      %v3784 = vadd.f32 %v720, %v3783
      %v3785 = vpop.f32.mrf.mxu0
      %v3786 = vpop.f32.mrf.mxu0
      %v3787 = vadd.f32 %v720, %v3786
      %v3788 = vpop.f32.mrf.mxu0
      %3789 = vmatprep.mubr.bf16.mxu0 0
      %3790 = vmatmul.mubr.bf16.gmra.mxu0 %v2378
      %v3791 = vpop.f32.mrf.mxu0
      %v3792 = vadd.f32 %v720, %v3791
      %v3793 = vpop.f32.mrf.mxu0
      %v3794 = vpop.f32.mrf.mxu0
      %v3795 = vadd.f32 %v720, %v3794
      %v3796 = vpop.f32.mrf.mxu0
      %3797 = vmatprep.mubr.bf16.mxu0 0
      %3798 = vmatmul.mubr.bf16.gmra.mxu0 %v2381
      %v3799 = vpop.f32.mrf.mxu0
      %v3800 = vadd.f32 %v720, %v3799
      %v3801 = vpop.f32.mrf.mxu0
      %v3802 = vpop.f32.mrf.mxu0
      %v3803 = vadd.f32 %v720, %v3802
      %v3804 = vpop.f32.mrf.mxu0
      %3805 = vmatprep.mubr.bf16.mxu0 0
      %3806 = vmatmul.mubr.bf16.gmra.mxu0 %v2384
      %v3807 = vpop.f32.mrf.mxu0
      %v3808 = vadd.f32 %v720, %v3807
      %v3809 = vpop.f32.mrf.mxu0
      %v3810 = vpop.f32.mrf.mxu0
      %v3811 = vadd.f32 %v720, %v3810
      %v3812 = vpop.f32.mrf.mxu0
      %3813 = vmatprep.mubr.bf16.mxu0 0
      %3814 = vmatmul.mubr.bf16.gmra.mxu0 %v2387
      %v3815 = vpop.f32.mrf.mxu0
      %v3816 = vadd.f32 %v720, %v3815
      %v3817 = vpop.f32.mrf.mxu0
      %v3818 = vpop.f32.mrf.mxu0
      %v3819 = vadd.f32 %v720, %v3818
      %v3820 = vpop.f32.mrf.mxu0
      %3821 = vmatprep.mubr.bf16.mxu0 0
      %3822 = vmatmul.mubr.bf16.gmra.mxu0 %v2390
      %v3823 = vpop.f32.mrf.mxu0
      %v3824 = vadd.f32 %v720, %v3823
      %v3825 = vpop.f32.mrf.mxu0
      %v3826 = vpop.f32.mrf.mxu0
      %v3827 = vadd.f32 %v720, %v3826
      %v3828 = vpop.f32.mrf.mxu0
      %3829 = vmatprep.mubr.bf16.mxu0 0
      %3830 = vmatmul.mubr.bf16.gmra.mxu0 %v2393
      %v3831 = vpop.f32.mrf.mxu0
      %v3832 = vadd.f32 %v720, %v3831
      %v3833 = vpop.f32.mrf.mxu0
      %v3834 = vpop.f32.mrf.mxu0
      %v3835 = vadd.f32 %v720, %v3834
      %v3836 = vpop.f32.mrf.mxu0
      %3837 = vmatprep.mubr.bf16.mxu0 0
      %3838 = vmatmul.mubr.bf16.gmra.mxu0 %v2396
      %v3839 = vpop.f32.mrf.mxu0
      %v3840 = vadd.f32 %v720, %v3839
      %v3841 = vpop.f32.mrf.mxu0
      %v3842 = vpop.f32.mrf.mxu0
      %v3843 = vadd.f32 %v720, %v3842
      %v3844 = vpop.f32.mrf.mxu0
      %3845 = vmatprep.mubr.bf16.mxu0 0
      %3846 = vmatmul.mubr.bf16.gmra.mxu0 %v2399
      %v3847 = vpop.f32.mrf.mxu0
      %v3848 = vadd.f32 %v720, %v3847
      %v3849 = vpop.f32.mrf.mxu0
      %v3850 = vpop.f32.mrf.mxu0
      %v3851 = vadd.f32 %v720, %v3850
      %v3852 = vpop.f32.mrf.mxu0
      %3853 = vmatprep.mubr.bf16.mxu0 0
      %3854 = vmatmul.mubr.bf16.gmra.mxu0 %v2402
      %v3855 = vpop.f32.mrf.mxu0
      %v3856 = vadd.f32 %v720, %v3855
      %v3857 = vpop.f32.mrf.mxu0
      %v3858 = vpop.f32.mrf.mxu0
      %v3859 = vadd.f32 %v720, %v3858
      %v3860 = vpop.f32.mrf.mxu0
      %3861 = vmatprep.mubr.bf16.mxu0 0
      %3862 = vmatmul.mubr.bf16.gmra.mxu0 %v2405
      %v3863 = vpop.f32.mrf.mxu0
      %v3864 = vadd.f32 %v720, %v3863
      %v3865 = vpop.f32.mrf.mxu0
      %v3866 = vpop.f32.mrf.mxu0
      %v3867 = vadd.f32 %v720, %v3866
      %v3868 = vpop.f32.mrf.mxu0
      %3869 = vmatprep.mubr.bf16.mxu0 0
      %3870 = vmatmul.mubr.bf16.gmra.mxu0 %v2408
      %v3871 = vpop.f32.mrf.mxu0
      %v3872 = vadd.f32 %v720, %v3871
      %v3873 = vpop.f32.mrf.mxu0
      %v3874 = vpop.f32.mrf.mxu0
      %v3875 = vadd.f32 %v720, %v3874
      %v3876 = vpop.f32.mrf.mxu0
      %3877 = vmatprep.mubr.bf16.mxu0 0
      %3878 = vmatmul.mubr.bf16.gmra.mxu0 %v2411
      %v3879 = vpop.f32.mrf.mxu0
      %v3880 = vadd.f32 %v720, %v3879
      %v3881 = vpop.f32.mrf.mxu0
      %v3882 = vpop.f32.mrf.mxu0
      %v3883 = vadd.f32 %v720, %v3882
      %v3884 = vpop.f32.mrf.mxu0
      %3885 = vmatprep.mubr.bf16.mxu0 0
      %3886 = vmatmul.mubr.bf16.gmra.mxu0 %v2414
      %v3887 = vpop.f32.mrf.mxu0
      %v3888 = vadd.f32 %v720, %v3887
      %v3889 = vpop.f32.mrf.mxu0
      %v3890 = vpop.f32.mrf.mxu0
      %v3891 = vadd.f32 %v720, %v3890
      %v3892 = vpop.f32.mrf.mxu0
      %3893 = vmatprep.mubr.bf16.mxu0 0
      %3894 = vmatmul.mubr.bf16.gmra.mxu0 %v2417
      %v3895 = vpop.f32.mrf.mxu0
      %v3896 = vadd.f32 %v720, %v3895
      %v3897 = vpop.f32.mrf.mxu0
      %v3898 = vpop.f32.mrf.mxu0
      %v3899 = vadd.f32 %v720, %v3898
      %v3900 = vpop.f32.mrf.mxu0
      %3901 = vmatprep.mubr.bf16.mxu0 0
      %3902 = vmatmul.mubr.bf16.gmra.mxu0 %v2420
      %v3903 = vpop.f32.mrf.mxu0
      %v3904 = vadd.f32 %v720, %v3903
      %v3905 = vpop.f32.mrf.mxu0
      %v3906 = vpop.f32.mrf.mxu0
      %v3907 = vadd.f32 %v720, %v3906
      %v3908 = vpop.f32.mrf.mxu0
      %3909 = vmatprep.mubr.bf16.mxu0 0
      %3910 = vmatmul.mubr.bf16.gmra.mxu0 %v2423
      %v3911 = vpop.f32.mrf.mxu0
      %v3912 = vadd.f32 %v720, %v3911
      %v3913 = vpop.f32.mrf.mxu0
      %v3914 = vpop.f32.mrf.mxu0
      %v3915 = vadd.f32 %v720, %v3914
      %v3916 = vpop.f32.mrf.mxu0
      %3917 = vmatprep.mubr.bf16.mxu0 0
      %3918 = vmatmul.mubr.bf16.gmra.mxu0 %v2426
      %v3919 = vpop.f32.mrf.mxu0
      %v3920 = vadd.f32 %v720, %v3919
      %v3921 = vpop.f32.mrf.mxu0
      %v3922 = vpop.f32.mrf.mxu0
      %v3923 = vadd.f32 %v720, %v3922
      %v3924 = vpop.f32.mrf.mxu0
      %3925 = vmatprep.mubr.bf16.mxu0 0
      %3926 = vmatmul.mubr.bf16.gmra.mxu0 %v2429
      %v3927 = vpop.f32.mrf.mxu0
      %v3928 = vadd.f32 %v720, %v3927
      %v3929 = vpop.f32.mrf.mxu0
      %v3930 = vpop.f32.mrf.mxu0
      %v3931 = vadd.f32 %v720, %v3930
      %v3932 = vpop.f32.mrf.mxu0
      %3933 = vmatprep.mubr.bf16.mxu0 0
      %3934 = vmatmul.mubr.bf16.gmra.mxu0 %v2432
      %v3935 = vpop.f32.mrf.mxu0
      %v3936 = vadd.f32 %v720, %v3935
      %v3937 = vpop.f32.mrf.mxu0
      %v3938 = vpop.f32.mrf.mxu0
      %v3939 = vadd.f32 %v720, %v3938
      %v3940 = vpop.f32.mrf.mxu0
      %3941 = vmatprep.mubr.bf16.mxu0 0
      %3942 = vmatmul.mubr.bf16.gmra.mxu0 %v2435
      %v3943 = vpop.f32.mrf.mxu0
      %v3944 = vadd.f32 %v720, %v3943
      %v3945 = vpop.f32.mrf.mxu0
      %v3946 = vpop.f32.mrf.mxu0
      %v3947 = vadd.f32 %v720, %v3946
      %v3948 = vpop.f32.mrf.mxu0
      %3949 = vmatprep.mubr.bf16.mxu0 0
      %3950 = vmatmul.mubr.bf16.gmra.mxu0 %v2438
      %v3951 = vpop.f32.mrf.mxu0
      %v3952 = vadd.f32 %v720, %v3951
      %v3953 = vpop.f32.mrf.mxu0
      %v3954 = vpop.f32.mrf.mxu0
      %v3955 = vadd.f32 %v720, %v3954
      %v3956 = vpop.f32.mrf.mxu0
      %3957 = vmatprep.mubr.bf16.mxu0 0
      %3958 = vmatmul.mubr.bf16.gmra.mxu0 %v2441
      %v3959 = vpop.f32.mrf.mxu0
      %v3960 = vadd.f32 %v720, %v3959
      %v3961 = vpop.f32.mrf.mxu0
      %v3962 = vpop.f32.mrf.mxu0
      %v3963 = vadd.f32 %v720, %v3962
      %v3964 = vpop.f32.mrf.mxu0
      %3965 = vmatprep.mubr.bf16.mxu0 0
      %3966 = vmatmul.mubr.bf16.gmra.mxu0 %v2444
      %v3967 = vpop.f32.mrf.mxu0
      %v3968 = vadd.f32 %v720, %v3967
      %v3969 = vpop.f32.mrf.mxu0
      %v3970 = vpop.f32.mrf.mxu0
      %v3971 = vadd.f32 %v720, %v3970
      %v3972 = vpop.f32.mrf.mxu0
      %3973 = vmatprep.mubr.bf16.mxu0 0
      %3974 = vmatmul.mubr.bf16.gmra.mxu0 %v2447
      %v3975 = vpop.f32.mrf.mxu0
      %v3976 = vadd.f32 %v720, %v3975
      %v3977 = vpop.f32.mrf.mxu0
      %v3978 = vpop.f32.mrf.mxu0
      %v3979 = vadd.f32 %v720, %v3978
      %v3980 = vpop.f32.mrf.mxu0
      %3981 = vmatprep.mubr.bf16.mxu0 0
      %3982 = vmatmul.mubr.bf16.gmra.mxu0 %v2450
      %v3983 = vpop.f32.mrf.mxu0
      %v3984 = vadd.f32 %v720, %v3983
      %v3985 = vpop.f32.mrf.mxu0
      %v3986 = vpop.f32.mrf.mxu0
      %v3987 = vadd.f32 %v720, %v3986
      %v3988 = vpop.f32.mrf.mxu0
      %3989 = vmatprep.mubr.bf16.mxu0 0
      %3990 = vmatmul.mubr.bf16.gmra.mxu0 %v2453
      %v3991 = vpop.f32.mrf.mxu0
      %v3992 = vadd.f32 %v720, %v3991
      %v3993 = vpop.f32.mrf.mxu0
      %v3994 = vpop.f32.mrf.mxu0
      %v3995 = vadd.f32 %v720, %v3994
      %v3996 = vpop.f32.mrf.mxu0
      %3997 = vmatprep.mubr.bf16.mxu0 0
      %3998 = vmatmul.mubr.bf16.gmra.mxu0 %v2456
      %v3999 = vpop.f32.mrf.mxu0
      %v4000 = vadd.f32 %v720, %v3999
      %v4001 = vpop.f32.mrf.mxu0
      %v4002 = vpop.f32.mrf.mxu0
      %v4003 = vadd.f32 %v720, %v4002
      %v4004 = vpop.f32.mrf.mxu0
      %4005 = vmatprep.mubr.bf16.mxu0 0
      %4006 = vmatmul.mubr.bf16.gmra.mxu0 %v2459
      %v4007 = vpop.f32.mrf.mxu0
      %v4008 = vadd.f32 %v720, %v4007
      %v4009 = vpop.f32.mrf.mxu0
      %v4010 = vpop.f32.mrf.mxu0
      %v4011 = vadd.f32 %v720, %v4010
      %v4012 = vpop.f32.mrf.mxu0
      %4013 = vmatprep.mubr.bf16.mxu0 0
      %4014 = vmatmul.mubr.bf16.gmra.mxu0 %v2462
      %v4015 = vpop.f32.mrf.mxu0
      %v4016 = vadd.f32 %v720, %v4015
      %v4017 = vpop.f32.mrf.mxu0
      %v4018 = vpop.f32.mrf.mxu0
      %v4019 = vadd.f32 %v720, %v4018
      %v4020 = vpop.f32.mrf.mxu0
      %4021 = vmatprep.mubr.bf16.mxu0 0
      %4022 = vmatmul.mubr.bf16.gmra.mxu0 %v2465
      %v4023 = vpop.f32.mrf.mxu0
      %v4024 = vadd.f32 %v720, %v4023
      %v4025 = vpop.f32.mrf.mxu0
      %v4026 = vpop.f32.mrf.mxu0
      %v4027 = vadd.f32 %v720, %v4026
      %v4028 = vpop.f32.mrf.mxu0
      %4029 = vmatprep.mubr.bf16.mxu0 0
      %4030 = vmatmul.mubr.bf16.gmra.mxu0 %v2468
      %v4031 = vpop.f32.mrf.mxu0
      %v4032 = vadd.f32 %v720, %v4031
      %v4033 = vpop.f32.mrf.mxu0
      %v4034 = vpop.f32.mrf.mxu0
      %v4035 = vadd.f32 %v720, %v4034
      %v4036 = vpop.f32.mrf.mxu0
      %4037 = vmatprep.mubr.bf16.mxu0 0
      %4038 = vmatmul.mubr.bf16.gmra.mxu0 %v2471
      %v4039 = vpop.f32.mrf.mxu0
      %v4040 = vadd.f32 %v720, %v4039
      %v4041 = vpop.f32.mrf.mxu0
      %v4042 = vpop.f32.mrf.mxu0
      %v4043 = vadd.f32 %v720, %v4042
      %v4044 = vpop.f32.mrf.mxu0
      %4045 = vmatprep.mubr.bf16.mxu0 0
      %4046 = vmatmul.mubr.bf16.gmra.mxu0 %v2474
      %v4047 = vpop.f32.mrf.mxu0
      %v4048 = vadd.f32 %v720, %v4047
      %v4049 = vpop.f32.mrf.mxu0
      %v4050 = vpop.f32.mrf.mxu0
      %v4051 = vadd.f32 %v720, %v4050
      %v4052 = vpop.f32.mrf.mxu0
      %4053 = vmatprep.mubr.bf16.mxu0 0
      %4054 = vmatmul.mubr.bf16.gmra.mxu0 %v2477
      %v4055 = vpop.f32.mrf.mxu0
      %v4056 = vadd.f32 %v720, %v4055
      %v4057 = vpop.f32.mrf.mxu0
      %v4058 = vpop.f32.mrf.mxu0
      %v4059 = vadd.f32 %v720, %v4058
      %v4060 = vpop.f32.mrf.mxu0
      %4061 = vmatprep.mubr.bf16.mxu0 0
      %4062 = vmatmul.mubr.bf16.gmra.mxu0 %v2480
      %v4063 = vpop.f32.mrf.mxu0
      %v4064 = vadd.f32 %v720, %v4063
      %v4065 = vpop.f32.mrf.mxu0
      %v4066 = vpop.f32.mrf.mxu0
      %v4067 = vadd.f32 %v720, %v4066
      %v4068 = vpop.f32.mrf.mxu0
      %4069 = vmatprep.mubr.bf16.mxu0 0
      %4070 = vmatmul.mubr.bf16.gmra.mxu0 %v2483
      %v4071 = vpop.f32.mrf.mxu0
      %v4072 = vadd.f32 %v720, %v4071
      %v4073 = vpop.f32.mrf.mxu0
      %v4074 = vpop.f32.mrf.mxu0
      %v4075 = vadd.f32 %v720, %v4074
      %v4076 = vpop.f32.mrf.mxu0
      %4077 = vmatprep.mubr.bf16.mxu0 0
      %4078 = vmatmul.mubr.bf16.gmra.mxu0 %v2486
      %v4079 = vpop.f32.mrf.mxu0
      %v4080 = vadd.f32 %v720, %v4079
      %v4081 = vpop.f32.mrf.mxu0
      %v4082 = vpop.f32.mrf.mxu0
      %v4083 = vadd.f32 %v720, %v4082
      %v4084 = vpop.f32.mrf.mxu0
      %4085 = vmatprep.mubr.bf16.mxu0 0
      %4086 = vmatmul.mubr.bf16.gmra.mxu0 %v2489
      %v4087 = vpop.f32.mrf.mxu0
      %v4088 = vadd.f32 %v720, %v4087
      %v4089 = vpop.f32.mrf.mxu0
      %v4090 = vpop.f32.mrf.mxu0
      %v4091 = vadd.f32 %v720, %v4090
      %v4092 = vpop.f32.mrf.mxu0
      %4093 = vmatprep.mubr.bf16.mxu0 0
      %4094 = vmatmul.mubr.bf16.gmra.mxu0 %v2492
      %v4095 = vpop.f32.mrf.mxu0
      %v4096 = vadd.f32 %v720, %v4095
      %v4097 = vpop.f32.mrf.mxu0
      %v4098 = vpop.f32.mrf.mxu0
      %v4099 = vadd.f32 %v720, %v4098
      %v4100 = vpop.f32.mrf.mxu0
      %4101 = vmatprep.mubr.bf16.mxu0 0
      %4102 = vmatmul.mubr.bf16.gmra.mxu0 %v2495
      %v4103 = vpop.f32.mrf.mxu0
      %v4104 = vadd.f32 %v720, %v4103
      %v4105 = vpop.f32.mrf.mxu0
      %v4106 = vpop.f32.mrf.mxu0
      %v4107 = vadd.f32 %v720, %v4106
      %v4108 = vpop.f32.mrf.mxu0
      %4109 = vmatprep.mubr.bf16.mxu0 0
      %4110 = vmatmul.mubr.bf16.gmra.mxu0 %v2498
      %v4111 = vpop.f32.mrf.mxu0
      %v4112 = vadd.f32 %v720, %v4111
      %v4113 = vpop.f32.mrf.mxu0
      %v4114 = vpop.f32.mrf.mxu0
      %v4115 = vadd.f32 %v720, %v4114
      %v4116 = vpop.f32.mrf.mxu0
      %4117 = vmatprep.mubr.bf16.mxu0 0
      %4118 = vmatmul.mubr.bf16.gmra.mxu0 %v2501
      %v4119 = vpop.f32.mrf.mxu0
      %v4120 = vadd.f32 %v720, %v4119
      %v4121 = vpop.f32.mrf.mxu0
      %v4122 = vpop.f32.mrf.mxu0
      %v4123 = vadd.f32 %v720, %v4122
      %v4124 = vpop.f32.mrf.mxu0
      %4125 = vmatprep.mubr.bf16.mxu0 0
      %4126 = vmatmul.mubr.bf16.gmra.mxu0 %v2504
      %v4127 = vpop.f32.mrf.mxu0
      %v4128 = vadd.f32 %v720, %v4127
      %v4129 = vpop.f32.mrf.mxu0
      %v4130 = vpop.f32.mrf.mxu0
      %v4131 = vadd.f32 %v720, %v4130
      %v4132 = vpop.f32.mrf.mxu0
      %4133 = vmatprep.mubr.bf16.mxu0 0
      %4134 = vmatmul.mubr.bf16.gmra.mxu0 %v2507
      %v4135 = vpop.f32.mrf.mxu0
      %v4136 = vadd.f32 %v720, %v4135
      %v4137 = vpop.f32.mrf.mxu0
      %v4138 = vpop.f32.mrf.mxu0
      %v4139 = vadd.f32 %v720, %v4138
      %v4140 = vpop.f32.mrf.mxu0
      %4141 = vmatprep.mubr.bf16.mxu0 0
      %4142 = vmatmul.mubr.bf16.gmra.mxu0 %v2510
      %v4143 = vpop.f32.mrf.mxu0
      %v4144 = vadd.f32 %v720, %v4143
      %v4145 = vpop.f32.mrf.mxu0
      %v4146 = vpop.f32.mrf.mxu0
      %v4147 = vadd.f32 %v720, %v4146
      %v4148 = vpop.f32.mrf.mxu0
      %4149 = vmatprep.mubr.bf16.mxu0 0
      %4150 = vmatmul.mubr.bf16.gmra.mxu0 %v2513
      %v4151 = vpop.f32.mrf.mxu0
      %v4152 = vadd.f32 %v720, %v4151
      %v4153 = vpop.f32.mrf.mxu0
      %v4154 = vpop.f32.mrf.mxu0
      %v4155 = vadd.f32 %v720, %v4154
      %v4156 = vpop.f32.mrf.mxu0
      %4157 = vmatprep.mubr.bf16.mxu0 0
      %4158 = vmatmul.mubr.bf16.gmra.mxu0 %v2516
      %v4159 = vpop.f32.mrf.mxu0
      %v4160 = vadd.f32 %v720, %v4159
      %v4161 = vpop.f32.mrf.mxu0
      %v4162 = vpop.f32.mrf.mxu0
      %v4163 = vadd.f32 %v720, %v4162
      %v4164 = vpop.f32.mrf.mxu0
      %4165 = vmatprep.mubr.bf16.mxu0 0
      %4166 = vmatmul.mubr.bf16.gmra.mxu0 %v2519
      %v4167 = vpop.f32.mrf.mxu0
      %v4168 = vadd.f32 %v720, %v4167
      %v4169 = vpop.f32.mrf.mxu0
      %v4170 = vpop.f32.mrf.mxu0
      %v4171 = vadd.f32 %v720, %v4170
      %v4172 = vpop.f32.mrf.mxu0
      %4173 = vmatprep.mubr.bf16.mxu0 0
      %4174 = vmatmul.mubr.bf16.gmra.mxu0 %v2522
      %v4175 = vpop.f32.mrf.mxu0
      %v4176 = vadd.f32 %v720, %v4175
      %v4177 = vpop.f32.mrf.mxu0
      %v4178 = vpop.f32.mrf.mxu0
      %v4179 = vadd.f32 %v720, %v4178
      %v4180 = vpop.f32.mrf.mxu0
      %4181 = vmatprep.mubr.bf16.mxu0 0
      %4182 = vmatmul.mubr.bf16.gmra.mxu0 %v2525
      %v4183 = vpop.f32.mrf.mxu0
      %v4184 = vadd.f32 %v720, %v4183
      %v4185 = vpop.f32.mrf.mxu0
      %v4186 = vpop.f32.mrf.mxu0
      %v4187 = vadd.f32 %v720, %v4186
      %v4188 = vpop.f32.mrf.mxu0
      %4189 = vmatprep.mubr.bf16.mxu0 0
      %4190 = vmatmul.mubr.bf16.gmra.mxu0 %v2528
      %v4191 = vpop.f32.mrf.mxu0
      %v4192 = vadd.f32 %v720, %v4191
      %v4193 = vpop.f32.mrf.mxu0
      %v4194 = vpop.f32.mrf.mxu0
      %v4195 = vadd.f32 %v720, %v4194
      %v4196 = vpop.f32.mrf.mxu0
      %4197 = vmatprep.mubr.bf16.mxu0 0
      %4198 = vmatmul.mubr.bf16.gmra.mxu0 %v2531
      %v4199 = vpop.f32.mrf.mxu0
      %v4200 = vadd.f32 %v720, %v4199
      %v4201 = vpop.f32.mrf.mxu0
      %v4202 = vpop.f32.mrf.mxu0
      %v4203 = vadd.f32 %v720, %v4202
      %v4204 = vpop.f32.mrf.mxu0
      %4205 = vmatprep.mubr.bf16.mxu0 0
      %4206 = vmatmul.mubr.bf16.gmra.mxu0 %v2534
      %v4207 = vpop.f32.mrf.mxu0
      %v4208 = vadd.f32 %v720, %v4207
      %v4209 = vpop.f32.mrf.mxu0
      %v4210 = vpop.f32.mrf.mxu0
      %v4211 = vadd.f32 %v720, %v4210
      %v4212 = vpop.f32.mrf.mxu0
      %4213 = vmatprep.mubr.bf16.mxu0 0
      %4214 = vmatmul.mubr.bf16.gmra.mxu0 %v2537
      %v4215 = vpop.f32.mrf.mxu0
      %v4216 = vadd.f32 %v720, %v4215
      %v4217 = vpop.f32.mrf.mxu0
      %v4218 = vpop.f32.mrf.mxu0
      %v4219 = vadd.f32 %v720, %v4218
      %v4220 = vpop.f32.mrf.mxu0
      %4221 = vmatprep.mubr.bf16.mxu0 0
      %4222 = vmatmul.mubr.bf16.gmra.mxu0 %v2540
      %v4223 = vpop.f32.mrf.mxu0
      %v4224 = vadd.f32 %v720, %v4223
      %v4225 = vpop.f32.mrf.mxu0
      %v4226 = vpop.f32.mrf.mxu0
      %v4227 = vadd.f32 %v720, %v4226
      %v4228 = vpop.f32.mrf.mxu0
      %4229 = vmatprep.mubr.bf16.mxu0 0
      %4230 = vmatmul.mubr.bf16.gmra.mxu0 %v2543
      %v4231 = vpop.f32.mrf.mxu0
      %v4232 = vadd.f32 %v720, %v4231
      %v4233 = vpop.f32.mrf.mxu0
      %v4234 = vpop.f32.mrf.mxu0
      %v4235 = vadd.f32 %v720, %v4234
      %v4236 = vpop.f32.mrf.mxu0
      %4237 = vmatprep.mubr.bf16.mxu0 0
      %4238 = vmatmul.mubr.bf16.gmra.mxu0 %v2546
      %v4239 = vpop.f32.mrf.mxu0
      %v4240 = vadd.f32 %v720, %v4239
      %v4241 = vpop.f32.mrf.mxu0
      %v4242 = vpop.f32.mrf.mxu0
      %v4243 = vadd.f32 %v720, %v4242
      %v4244 = vpop.f32.mrf.mxu0
      %4245 = vmatprep.mubr.bf16.mxu0 0
      %4246 = vmatmul.mubr.bf16.gmra.mxu0 %v2549
      %v4247 = vpop.f32.mrf.mxu0
      %v4248 = vadd.f32 %v720, %v4247
      %v4249 = vpop.f32.mrf.mxu0
      %v4250 = vpop.f32.mrf.mxu0
      %v4251 = vadd.f32 %v720, %v4250
      %v4252 = vpop.f32.mrf.mxu0
      %4253 = vmatprep.mubr.bf16.mxu0 0
      %4254 = vmatmul.mubr.bf16.gmra.mxu0 %v2552
      %v4255 = vpop.f32.mrf.mxu0
      %v4256 = vadd.f32 %v720, %v4255
      %v4257 = vpop.f32.mrf.mxu0
      %v4258 = vpop.f32.mrf.mxu0
      %v4259 = vadd.f32 %v720, %v4258
      %v4260 = vpop.f32.mrf.mxu0
      %4261 = vmatprep.mubr.bf16.mxu0 0
      %4262 = vmatmul.mubr.bf16.gmra.mxu0 %v2555
      %v4263 = vpop.f32.mrf.mxu0
      %v4264 = vadd.f32 %v720, %v4263
      %v4265 = vpop.f32.mrf.mxu0
      %v4266 = vpop.f32.mrf.mxu0
      %v4267 = vadd.f32 %v720, %v4266
      %v4268 = vpop.f32.mrf.mxu0
      %4269 = vmatprep.mubr.bf16.mxu0 0
      %4270 = vmatmul.mubr.bf16.gmra.mxu0 %v2558
      %v4271 = vpop.f32.mrf.mxu0
      %v4272 = vadd.f32 %v720, %v4271
      %v4273 = vpop.f32.mrf.mxu0
      %v4274 = vpop.f32.mrf.mxu0
      %v4275 = vadd.f32 %v720, %v4274
      %v4276 = vpop.f32.mrf.mxu0
      %4277 = vmatprep.mubr.bf16.mxu0 0
      %4278 = vmatmul.mubr.bf16.gmra.mxu0 %v2561
      %v4279 = vpop.f32.mrf.mxu0
      %v4280 = vadd.f32 %v720, %v4279
      %v4281 = vpop.f32.mrf.mxu0
      %v4282 = vpop.f32.mrf.mxu0
      %v4283 = vadd.f32 %v720, %v4282
      %v4284 = vpop.f32.mrf.mxu0
      %4285 = vmatprep.mubr.bf16.mxu0 0
      %4286 = vmatmul.mubr.bf16.gmra.mxu0 %v2564
      %v4287 = vpop.f32.mrf.mxu0
      %v4288 = vadd.f32 %v720, %v4287
      %v4289 = vpop.f32.mrf.mxu0
      %v4290 = vpop.f32.mrf.mxu0
      %v4291 = vadd.f32 %v720, %v4290
      %v4292 = vpop.f32.mrf.mxu0
      %4293 = vmatprep.mubr.bf16.mxu0 0
      %4294 = vmatmul.mubr.bf16.gmra.mxu0 %v2567
      %v4295 = vpop.f32.mrf.mxu0
      %v4296 = vadd.f32 %v720, %v4295
      %v4297 = vpop.f32.mrf.mxu0
      %v4298 = vpop.f32.mrf.mxu0
      %v4299 = vadd.f32 %v720, %v4298
      %v4300 = vpop.f32.mrf.mxu0
      %4301 = vmatprep.mubr.bf16.mxu0 0
      %4302 = vmatmul.mubr.bf16.gmra.mxu0 %v2570
      %v4303 = vpop.f32.mrf.mxu0
      %v4304 = vadd.f32 %v720, %v4303
      %v4305 = vpop.f32.mrf.mxu0
      %v4306 = vpop.f32.mrf.mxu0
      %v4307 = vadd.f32 %v720, %v4306
      %v4308 = vpop.f32.mrf.mxu0
      %4309 = vmatprep.mubr.bf16.mxu0 0
      %4310 = vmatmul.mubr.bf16.gmra.mxu0 %v2573
      %v4311 = vpop.f32.mrf.mxu0
      %v4312 = vadd.f32 %v720, %v4311
      %v4313 = vpop.f32.mrf.mxu0
      %v4314 = vpop.f32.mrf.mxu0
      %v4315 = vadd.f32 %v720, %v4314
      %v4316 = vpop.f32.mrf.mxu0
      %4317 = vmatprep.mubr.bf16.mxu0 0
      %4318 = vmatmul.mubr.bf16.gmra.mxu0 %v2576
      %v4319 = vpop.f32.mrf.mxu0
      %v4320 = vadd.f32 %v720, %v4319
      %v4321 = vpop.f32.mrf.mxu0
      %v4322 = vpop.f32.mrf.mxu0
      %v4323 = vadd.f32 %v720, %v4322
      %v4324 = vpop.f32.mrf.mxu0
      %4325 = vmatprep.mubr.bf16.mxu0 0
      %4326 = vmatmul.mubr.bf16.gmra.mxu0 %v2579
      %v4327 = vpop.f32.mrf.mxu0
      %v4328 = vadd.f32 %v720, %v4327
      %v4329 = vpop.f32.mrf.mxu0
      %v4330 = vpop.f32.mrf.mxu0
      %v4331 = vadd.f32 %v720, %v4330
      %v4332 = vpop.f32.mrf.mxu0
      %4333 = vmatprep.mubr.bf16.mxu0 0
      %4334 = vmatmul.mubr.bf16.gmra.mxu0 %v2582
      %v4335 = vpop.f32.mrf.mxu0
      %v4336 = vadd.f32 %v720, %v4335
      %v4337 = vpop.f32.mrf.mxu0
      %v4338 = vpop.f32.mrf.mxu0
      %v4339 = vadd.f32 %v720, %v4338
      %v4340 = vpop.f32.mrf.mxu0
      %4341 = vmatprep.mubr.bf16.mxu0 0
      %4342 = vmatmul.mubr.bf16.gmra.mxu0 %v2585
      %v4343 = vpop.f32.mrf.mxu0
      %v4344 = vadd.f32 %v720, %v4343
      %v4345 = vpop.f32.mrf.mxu0
      %v4346 = vpop.f32.mrf.mxu0
      %v4347 = vadd.f32 %v720, %v4346
      %v4348 = vpop.f32.mrf.mxu0
      %4349 = vmatprep.mubr.bf16.mxu0 0
      %4350 = vmatmul.mubr.bf16.gmra.mxu0 %v2588
      %v4351 = vpop.f32.mrf.mxu0
      %v4352 = vadd.f32 %v720, %v4351
      %v4353 = vpop.f32.mrf.mxu0
      %v4354 = vpop.f32.mrf.mxu0
      %v4355 = vadd.f32 %v720, %v4354
      %v4356 = vpop.f32.mrf.mxu0
      %4357 = vmatprep.mubr.bf16.mxu0 0
      %4358 = vmatmul.mubr.bf16.gmra.mxu0 %v2591
      %v4359 = vpop.f32.mrf.mxu0
      %v4360 = vadd.f32 %v720, %v4359
      %v4361 = vpop.f32.mrf.mxu0
      %v4362 = vpop.f32.mrf.mxu0
      %v4363 = vadd.f32 %v720, %v4362
      %v4364 = vpop.f32.mrf.mxu0
      %4365 = vmatprep.mubr.bf16.mxu0 0
      %4366 = vmatmul.mubr.bf16.gmra.mxu0 %v2594
      %v4367 = vpop.f32.mrf.mxu0
      %v4368 = vadd.f32 %v720, %v4367
      %v4369 = vpop.f32.mrf.mxu0
      %v4370 = vpop.f32.mrf.mxu0
      %v4371 = vadd.f32 %v720, %v4370
      %v4372 = vpop.f32.mrf.mxu0
      %4373 = vmatprep.mubr.bf16.mxu0 0
      %4374 = vmatmul.mubr.bf16.gmra.mxu0 %v2597
      %v4375 = vpop.f32.mrf.mxu0
      %v4376 = vadd.f32 %v720, %v4375
      %v4377 = vpop.f32.mrf.mxu0
      %v4378 = vpop.f32.mrf.mxu0
      %v4379 = vadd.f32 %v720, %v4378
      %v4380 = vpop.f32.mrf.mxu0
      %4381 = vmatprep.mubr.bf16.mxu0 0
      %4382 = vmatmul.mubr.bf16.gmra.mxu0 %v2600
      %v4383 = vpop.f32.mrf.mxu0
      %v4384 = vadd.f32 %v720, %v4383
      %v4385 = vpop.f32.mrf.mxu0
      %v4386 = vpop.f32.mrf.mxu0
      %v4387 = vadd.f32 %v720, %v4386
      %v4388 = vpop.f32.mrf.mxu0
      %4389 = vmatprep.mubr.bf16.mxu0 0
      %4390 = vmatmul.mubr.bf16.gmra.mxu0 %v2603
      %v4391 = vpop.f32.mrf.mxu0
      %v4392 = vadd.f32 %v720, %v4391
      %v4393 = vpop.f32.mrf.mxu0
      %v4394 = vpop.f32.mrf.mxu0
      %v4395 = vadd.f32 %v720, %v4394
      %v4396 = vpop.f32.mrf.mxu0
      %4397 = vmatprep.mubr.bf16.mxu0 0
      %4398 = vmatmul.mubr.bf16.gmra.mxu0 %v2606
      %v4399 = vpop.f32.mrf.mxu0
      %v4400 = vadd.f32 %v720, %v4399
      %v4401 = vpop.f32.mrf.mxu0
      %v4402 = vpop.f32.mrf.mxu0
      %v4403 = vadd.f32 %v720, %v4402
      %v4404 = vpop.f32.mrf.mxu0
      %4405 = vmatprep.mubr.bf16.mxu0 0
      %4406 = vmatmul.mubr.bf16.gmra.mxu0 %v2609
      %v4407 = vpop.f32.mrf.mxu0
      %v4408 = vadd.f32 %v720, %v4407
      %v4409 = vpop.f32.mrf.mxu0
      %v4410 = vpop.f32.mrf.mxu0
      %v4411 = vadd.f32 %v720, %v4410
      %v4412 = vpop.f32.mrf.mxu0
      %4413 = vmatprep.mubr.bf16.mxu0 0
      %4414 = vmatmul.mubr.bf16.gmra.mxu0 %v2612
      %v4415 = vpop.f32.mrf.mxu0
      %v4416 = vadd.f32 %v720, %v4415
      %v4417 = vpop.f32.mrf.mxu0
      %v4418 = vpop.f32.mrf.mxu0
      %v4419 = vadd.f32 %v720, %v4418
      %v4420 = vpop.f32.mrf.mxu0
      %4421 = vmatprep.mubr.bf16.mxu0 0
      %4422 = vmatmul.mubr.bf16.gmra.mxu0 %v2615
      %v4423 = vpop.f32.mrf.mxu0
      %v4424 = vadd.f32 %v720, %v4423
      %v4425 = vpop.f32.mrf.mxu0
      %v4426 = vpop.f32.mrf.mxu0
      %v4427 = vadd.f32 %v720, %v4426
      %v4428 = vpop.f32.mrf.mxu0
      %4429 = vmatprep.mubr.bf16.mxu0 0
      %4430 = vmatmul.mubr.bf16.gmra.mxu0 %v2618
      %v4431 = vpop.f32.mrf.mxu0
      %v4432 = vadd.f32 %v720, %v4431
      %v4433 = vpop.f32.mrf.mxu0
      %v4434 = vpop.f32.mrf.mxu0
      %v4435 = vadd.f32 %v720, %v4434
      %v4436 = vpop.f32.mrf.mxu0
      %4437 = vmatprep.mubr.bf16.mxu0 0
      %4438 = vmatmul.mubr.bf16.gmra.mxu0 %v2621
      %v4439 = vpop.f32.mrf.mxu0
      %v4440 = vadd.f32 %v720, %v4439
      %v4441 = vpop.f32.mrf.mxu0
      %v4442 = vpop.f32.mrf.mxu0
      %v4443 = vadd.f32 %v720, %v4442
      %v4444 = vpop.f32.mrf.mxu0
      %4445 = vmatprep.mubr.bf16.mxu0 0
      %4446 = vmatmul.mubr.bf16.gmra.mxu0 %v2624
      %v4447 = vpop.f32.mrf.mxu0
      %v4448 = vadd.f32 %v720, %v4447
      %v4449 = vpop.f32.mrf.mxu0
      %v4450 = vpop.f32.mrf.mxu0
      %v4451 = vadd.f32 %v720, %v4450
      %v4452 = vpop.f32.mrf.mxu0
      %4453 = vmatprep.mubr.bf16.mxu0 0
      %4454 = vmatmul.mubr.bf16.gmra.mxu0 %v2627
      %v4455 = vpop.f32.mrf.mxu0
      %v4456 = vadd.f32 %v720, %v4455
      %v4457 = vpop.f32.mrf.mxu0
      %v4458 = vpop.f32.mrf.mxu0
      %v4459 = vadd.f32 %v720, %v4458
      %v4460 = vpop.f32.mrf.mxu0
      %4461 = vmatprep.mubr.bf16.mxu0 0
      %4462 = vmatmul.mubr.bf16.gmra.mxu0 %v2630
      %v4463 = vpop.f32.mrf.mxu0
      %v4464 = vadd.f32 %v720, %v4463
      %v4465 = vpop.f32.mrf.mxu0
      %v4466 = vpop.f32.mrf.mxu0
      %v4467 = vadd.f32 %v720, %v4466
      %v4468 = vpop.f32.mrf.mxu0
      %4469 = vmatprep.mubr.bf16.mxu0 0
      %4470 = vmatmul.mubr.bf16.gmra.mxu0 %v2633
      %v4471 = vpop.f32.mrf.mxu0
      %v4472 = vadd.f32 %v720, %v4471
      %v4473 = vpop.f32.mrf.mxu0
      %v4474 = vpop.f32.mrf.mxu0
      %v4475 = vadd.f32 %v720, %v4474
      %v4476 = vpop.f32.mrf.mxu0
      %4477 = vmatprep.mubr.bf16.mxu0 0
      %4478 = vmatmul.mubr.bf16.gmra.mxu0 %v2636
      %v4479 = vpop.f32.mrf.mxu0
      %v4480 = vadd.f32 %v720, %v4479
      %v4481 = vpop.f32.mrf.mxu0
      %v4482 = vpop.f32.mrf.mxu0
      %v4483 = vadd.f32 %v720, %v4482
      %v4484 = vpop.f32.mrf.mxu0
      %4485 = vmatprep.mubr.bf16.mxu0 0
      %4486 = vmatmul.mubr.bf16.gmra.mxu0 %v2639
      %v4487 = vpop.f32.mrf.mxu0
      %v4488 = vadd.f32 %v720, %v4487
      %v4489 = vpop.f32.mrf.mxu0
      %v4490 = vpop.f32.mrf.mxu0
      %v4491 = vadd.f32 %v720, %v4490
      %v4492 = vpop.f32.mrf.mxu0
      %4493 = vmatprep.mubr.bf16.mxu0 0
      %4494 = vmatmul.mubr.bf16.gmra.mxu0 %v2642
      %v4495 = vpop.f32.mrf.mxu0
      %v4496 = vadd.f32 %v720, %v4495
      %v4497 = vpop.f32.mrf.mxu0
      %v4498 = vpop.f32.mrf.mxu0
      %v4499 = vadd.f32 %v720, %v4498
      %v4500 = vpop.f32.mrf.mxu0
      %4501 = vmatprep.mubr.bf16.mxu0 0
      %4502 = vmatmul.mubr.bf16.gmra.mxu0 %v2645
      %v4503 = vpop.f32.mrf.mxu0
      %v4504 = vadd.f32 %v720, %v4503
      %v4505 = vpop.f32.mrf.mxu0
      %v4506 = vpop.f32.mrf.mxu0
      %v4507 = vadd.f32 %v720, %v4506
      %v4508 = vpop.f32.mrf.mxu0
      %4509 = vmatprep.mubr.bf16.mxu0 0
      %4510 = vmatmul.mubr.bf16.gmra.mxu0 %v2648
      %v4511 = vpop.f32.mrf.mxu0
      %v4512 = vadd.f32 %v720, %v4511
      %v4513 = vpop.f32.mrf.mxu0
      %v4514 = vpop.f32.mrf.mxu0
      %v4515 = vadd.f32 %v720, %v4514
      %v4516 = vpop.f32.mrf.mxu0
      %4517 = vmatprep.mubr.bf16.mxu0 0
      %4518 = vmatmul.mubr.bf16.gmra.mxu0 %v2651
      %v4519 = vpop.f32.mrf.mxu0
      %v4520 = vadd.f32 %v720, %v4519
      %v4521 = vpop.f32.mrf.mxu0
      %v4522 = vpop.f32.mrf.mxu0
      %v4523 = vadd.f32 %v720, %v4522
      %v4524 = vpop.f32.mrf.mxu0
      %4525 = vmatprep.mubr.bf16.mxu0 0
      %4526 = vmatmul.mubr.bf16.gmra.mxu0 %v2654
      %v4527 = vpop.f32.mrf.mxu0
      %v4528 = vadd.f32 %v720, %v4527
      %v4529 = vpop.f32.mrf.mxu0
      %v4530 = vpop.f32.mrf.mxu0
      %v4531 = vadd.f32 %v720, %v4530
      %v4532 = vpop.f32.mrf.mxu0
      %4533 = vmatprep.mubr.bf16.mxu0 0
      %4534 = vmatmul.mubr.bf16.gmra.mxu0 %v2657
      %v4535 = vpop.f32.mrf.mxu0
      %v4536 = vadd.f32 %v720, %v4535
      %v4537 = vpop.f32.mrf.mxu0
      %v4538 = vpop.f32.mrf.mxu0
      %v4539 = vadd.f32 %v720, %v4538
      %v4540 = vpop.f32.mrf.mxu0
      %4541 = vmatprep.mubr.bf16.mxu0 0
      %4542 = vmatmul.mubr.bf16.gmra.mxu0 %v2660
      %v4543 = vpop.f32.mrf.mxu0
      %v4544 = vadd.f32 %v720, %v4543
      %v4545 = vpop.f32.mrf.mxu0
      %v4546 = vpop.f32.mrf.mxu0
      %v4547 = vadd.f32 %v720, %v4546
      %v4548 = vpop.f32.mrf.mxu0
      %4549 = vmatprep.mubr.bf16.mxu0 0
      %4550 = vmatmul.mubr.bf16.gmra.mxu0 %v2663
      %v4551 = vpop.f32.mrf.mxu0
      %v4552 = vadd.f32 %v720, %v4551
      %v4553 = vpop.f32.mrf.mxu0
      %v4554 = vpop.f32.mrf.mxu0
      %v4555 = vadd.f32 %v720, %v4554
      %v4556 = vpop.f32.mrf.mxu0
      %4557 = vmatprep.mubr.bf16.mxu0 0
      %4558 = vmatmul.mubr.bf16.gmra.mxu0 %v2666
      %v4559 = vpop.f32.mrf.mxu0
      %v4560 = vadd.f32 %v720, %v4559
      %v4561 = vpop.f32.mrf.mxu0
      %v4562 = vpop.f32.mrf.mxu0
      %v4563 = vadd.f32 %v720, %v4562
      %v4564 = vpop.f32.mrf.mxu0
      %4565 = vmatprep.mubr.bf16.mxu0 0
      %4566 = vmatmul.mubr.bf16.gmra.mxu0 %v2669
      %v4567 = vpop.f32.mrf.mxu0
      %v4568 = vadd.f32 %v720, %v4567
      %v4569 = vpop.f32.mrf.mxu0
      %v4570 = vpop.f32.mrf.mxu0
      %v4571 = vadd.f32 %v720, %v4570
      %v4572 = vpop.f32.mrf.mxu0
      %4573 = vmatprep.mubr.bf16.mxu0 0
      %4574 = vmatmul.mubr.bf16.gmra.mxu0 %v2672
      %v4575 = vpop.f32.mrf.mxu0
      %v4576 = vadd.f32 %v720, %v4575
      %v4577 = vpop.f32.mrf.mxu0
      %v4578 = vpop.f32.mrf.mxu0
      %v4579 = vadd.f32 %v720, %v4578
      %v4580 = vpop.f32.mrf.mxu0
      %4581 = vmatprep.mubr.bf16.mxu0 0
      %4582 = vmatmul.mubr.bf16.gmra.mxu0 %v2675
      %v4583 = vpop.f32.mrf.mxu0
      %v4584 = vadd.f32 %v720, %v4583
      %v4585 = vpop.f32.mrf.mxu0
      %v4586 = vpop.f32.mrf.mxu0
      %v4587 = vadd.f32 %v720, %v4586
      %v4588 = vpop.f32.mrf.mxu0
      %4589 = vmatprep.mubr.bf16.mxu0 0
      %4590 = vmatmul.mubr.bf16.gmra.mxu0 %v2678
      %v4591 = vpop.f32.mrf.mxu0
      %v4592 = vadd.f32 %v720, %v4591
      %v4593 = vpop.f32.mrf.mxu0
      %v4594 = vpop.f32.mrf.mxu0
      %v4595 = vadd.f32 %v720, %v4594
      %v4596 = vpop.f32.mrf.mxu0
      %4597 = vmatprep.mubr.bf16.mxu0 0
      %4598 = vmatmul.mubr.bf16.gmra.mxu0 %v2681
      %v4599 = vpop.f32.mrf.mxu0
      %v4600 = vadd.f32 %v720, %v4599
      %v4601 = vpop.f32.mrf.mxu0
      %v4602 = vpop.f32.mrf.mxu0
      %v4603 = vadd.f32 %v720, %v4602
      %v4604 = vpop.f32.mrf.mxu0
      %4605 = vmatprep.mubr.bf16.mxu0 0
      %4606 = vmatmul.mubr.bf16.gmra.mxu0 %v2684
      %v4607 = vpop.f32.mrf.mxu0
      %v4608 = vadd.f32 %v720, %v4607
      %v4609 = vpop.f32.mrf.mxu0
      %v4610 = vpop.f32.mrf.mxu0
      %v4611 = vadd.f32 %v720, %v4610
      %v4612 = vpop.f32.mrf.mxu0
      %4613 = vmatprep.mubr.bf16.mxu0 0
      %4614 = vmatmul.mubr.bf16.gmra.mxu0 %v2687
      %v4615 = vpop.f32.mrf.mxu0
      %v4616 = vadd.f32 %v720, %v4615
      %v4617 = vpop.f32.mrf.mxu0
      %v4618 = vpop.f32.mrf.mxu0
      %v4619 = vadd.f32 %v720, %v4618
      %v4620 = vpop.f32.mrf.mxu0
      %4621 = vmatprep.mubr.bf16.mxu0 0
      %4622 = vmatmul.mubr.bf16.gmra.mxu0 %v2690
      %v4623 = vpop.f32.mrf.mxu0
      %v4624 = vadd.f32 %v720, %v4623
      %v4625 = vpop.f32.mrf.mxu0
      %v4626 = vpop.f32.mrf.mxu0
      %v4627 = vadd.f32 %v720, %v4626
      %v4628 = vpop.f32.mrf.mxu0
      %4629 = vmatprep.mubr.bf16.mxu0 0
      %4630 = vmatmul.mubr.bf16.gmra.mxu0 %v2693
      %v4631 = vpop.f32.mrf.mxu0
      %v4632 = vadd.f32 %v720, %v4631
      %v4633 = vpop.f32.mrf.mxu0
      %v4634 = vpop.f32.mrf.mxu0
      %v4635 = vadd.f32 %v720, %v4634
      %v4636 = vpop.f32.mrf.mxu0
      %4637 = vmatprep.mubr.bf16.mxu0 0
      %4638 = vmatmul.mubr.bf16.gmra.mxu0 %v2696
      %v4639 = vpop.f32.mrf.mxu0
      %v4640 = vadd.f32 %v720, %v4639
      %v4641 = vpop.f32.mrf.mxu0
      %v4642 = vpop.f32.mrf.mxu0
      %v4643 = vadd.f32 %v720, %v4642
      %v4644 = vpop.f32.mrf.mxu0
      %4645 = vmatprep.mubr.bf16.mxu0 0
      %4646 = vmatmul.mubr.bf16.gmra.mxu0 %v2699
      %v4647 = vpop.f32.mrf.mxu0
      %v4648 = vadd.f32 %v720, %v4647
      %v4649 = vpop.f32.mrf.mxu0
      %v4650 = vpop.f32.mrf.mxu0
      %v4651 = vadd.f32 %v720, %v4650
      %v4652 = vpop.f32.mrf.mxu0
      %4653 = vmatprep.mubr.bf16.mxu0 0
      %4654 = vmatmul.mubr.bf16.gmra.mxu0 %v2702
      %v4655 = vpop.f32.mrf.mxu0
      %v4656 = vadd.f32 %v720, %v4655
      %v4657 = vpop.f32.mrf.mxu0
      %v4658 = vpop.f32.mrf.mxu0
      %v4659 = vadd.f32 %v720, %v4658
      %v4660 = vpop.f32.mrf.mxu0
      %4661 = vmatprep.mubr.bf16.mxu0 0
      %4662 = vmatmul.mubr.bf16.gmra.mxu0 %v2705
      %v4663 = vpop.f32.mrf.mxu0
      %v4664 = vadd.f32 %v720, %v4663
      %v4665 = vpop.f32.mrf.mxu0
      %v4666 = vpop.f32.mrf.mxu0
      %v4667 = vadd.f32 %v720, %v4666
      %v4668 = vpop.f32.mrf.mxu0
      %4669 = vmatprep.mubr.bf16.mxu0 0
      %4670 = vmatmul.mubr.bf16.gmra.mxu0 %v2708
      %v4671 = vpop.f32.mrf.mxu0
      %v4672 = vadd.f32 %v720, %v4671
      %v4673 = vpop.f32.mrf.mxu0
      %v4674 = vpop.f32.mrf.mxu0
      %v4675 = vadd.f32 %v720, %v4674
      %v4676 = vpop.f32.mrf.mxu0
      %4677 = vmatprep.mubr.bf16.mxu0 0
      %4678 = vmatmul.mubr.bf16.gmra.mxu0 %v2711
      %v4679 = vpop.f32.mrf.mxu0
      %v4680 = vadd.f32 %v720, %v4679
      %v4681 = vpop.f32.mrf.mxu0
      %v4682 = vpop.f32.mrf.mxu0
      %v4683 = vadd.f32 %v720, %v4682
      %v4684 = vpop.f32.mrf.mxu0
      %4685 = vmatprep.mubr.bf16.mxu0 0
      %4686 = vmatmul.mubr.bf16.gmra.mxu0 %v2714
      %v4687 = vpop.f32.mrf.mxu0
      %v4688 = vadd.f32 %v720, %v4687
      %v4689 = vpop.f32.mrf.mxu0
      %v4690 = vpop.f32.mrf.mxu0
      %v4691 = vadd.f32 %v720, %v4690
      %v4692 = vpop.f32.mrf.mxu0
      %4693 = vmatprep.mubr.bf16.mxu0 0
      %4694 = vmatmul.mubr.bf16.gmra.mxu0 %v2717
      %v4695 = vpop.f32.mrf.mxu0
      %v4696 = vadd.f32 %v720, %v4695
      %v4697 = vpop.f32.mrf.mxu0
      %v4698 = vpop.f32.mrf.mxu0
      %v4699 = vadd.f32 %v720, %v4698
      %v4700 = vpop.f32.mrf.mxu0
      %4701 = vmatprep.mubr.bf16.mxu0 0
      %4702 = vmatmul.mubr.bf16.gmra.mxu0 %v2720
      %v4703 = vpop.f32.mrf.mxu0
      %v4704 = vadd.f32 %v720, %v4703
      %v4705 = vpop.f32.mrf.mxu0
      %v4706 = vpop.f32.mrf.mxu0
      %v4707 = vadd.f32 %v720, %v4706
      %v4708 = vpop.f32.mrf.mxu0
      %4709 = vmatprep.mubr.bf16.mxu0 0
      %4710 = vmatmul.mubr.bf16.gmra.mxu0 %v2723
      %v4711 = vpop.f32.mrf.mxu0
      %v4712 = vadd.f32 %v720, %v4711
      %v4713 = vpop.f32.mrf.mxu0
      %v4714 = vpop.f32.mrf.mxu0
      %v4715 = vadd.f32 %v720, %v4714
      %v4716 = vpop.f32.mrf.mxu0
      %4717 = vmatprep.mubr.bf16.mxu0 0
      %4718 = vmatmul.mubr.bf16.gmra.mxu0 %v2726
      %v4719 = vpop.f32.mrf.mxu0
      %v4720 = vadd.f32 %v720, %v4719
      %v4721 = vpop.f32.mrf.mxu0
      %v4722 = vpop.f32.mrf.mxu0
      %v4723 = vadd.f32 %v720, %v4722
      %v4724 = vpop.f32.mrf.mxu0
      %4725 = vmatprep.mubr.bf16.mxu0 0
      %4726 = vmatmul.mubr.bf16.gmra.mxu0 %v2729
      %v4727 = vpop.f32.mrf.mxu0
      %v4728 = vadd.f32 %v720, %v4727
      %v4729 = vpop.f32.mrf.mxu0
      %v4730 = vpop.f32.mrf.mxu0
      %v4731 = vadd.f32 %v720, %v4730
      %v4732 = vpop.f32.mrf.mxu0
      %4733 = vmatprep.mubr.bf16.mxu0 0
      %4734 = vmatmul.mubr.bf16.gmra.mxu0 %v2732
      %v4735 = vpop.f32.mrf.mxu0
      %v4736 = vadd.f32 %v720, %v4735
      %v4737 = vpop.f32.mrf.mxu0
      %v4738 = vpop.f32.mrf.mxu0
      %v4739 = vadd.f32 %v720, %v4738
      %v4740 = vpop.f32.mrf.mxu0
      %4741 = vmatprep.mubr.bf16.mxu0 0
      %4742 = vmatmul.mubr.bf16.gmra.mxu0 %v2735
      %v4743 = vpop.f32.mrf.mxu0
      %v4744 = vadd.f32 %v720, %v4743
      %v4745 = vpop.f32.mrf.mxu0
      %v4746 = vpop.f32.mrf.mxu0
      %v4747 = vadd.f32 %v720, %v4746
      %v4748 = vpop.f32.mrf.mxu0
      %4749 = vmatprep.mubr.bf16.mxu0 0
      %4750 = vmatmul.mubr.bf16.gmra.mxu0 %v2738
      %v4751 = vpop.f32.mrf.mxu0
      %v4752 = vadd.f32 %v720, %v4751
      %v4753 = vpop.f32.mrf.mxu0
      %v4754 = vpop.f32.mrf.mxu0
      %v4755 = vadd.f32 %v720, %v4754
      %v4756 = vpop.f32.mrf.mxu0
      %4757 = vmatprep.mubr.bf16.mxu0 0
      %4758 = vmatmul.mubr.bf16.gmra.mxu0 %v2741
      %v4759 = vpop.f32.mrf.mxu0
      %v4760 = vadd.f32 %v720, %v4759
      %v4761 = vpop.f32.mrf.mxu0
      %v4762 = vpop.f32.mrf.mxu0
      %v4763 = vadd.f32 %v720, %v4762
      %v4764 = vpop.f32.mrf.mxu0
      %4765 = vmatprep.mubr.bf16.mxu0 0
      %4766 = vmatmul.mubr.bf16.gmra.mxu0 %v2744
      %v4767 = vpop.f32.mrf.mxu0
      %v4768 = vadd.f32 %v720, %v4767
      %v4769 = vpop.f32.mrf.mxu0
      %v4770 = vpop.f32.mrf.mxu0
      %v4771 = vadd.f32 %v720, %v4770
      %v4772 = vpop.f32.mrf.mxu0
      %4773 = vmatprep.mubr.bf16.mxu0 0
      %4774 = vmatmul.mubr.bf16.gmra.mxu0 %v2747
      %v4775 = vpop.f32.mrf.mxu0
      %v4776 = vadd.f32 %v720, %v4775
      %v4777 = vpop.f32.mrf.mxu0
      %v4778 = vpop.f32.mrf.mxu0
      %v4779 = vadd.f32 %v720, %v4778
      %v4780 = vpop.f32.mrf.mxu0
      %4781 = vmatprep.mubr.bf16.mxu0 0
      %4782 = vmatmul.mubr.bf16.gmra.mxu0 %v2750
      %v4783 = vpop.f32.mrf.mxu0
      %v4784 = vadd.f32 %v720, %v4783
      %v4785 = vpop.f32.mrf.mxu0
      %v4786 = vpop.f32.mrf.mxu0
      %v4787 = vadd.f32 %v720, %v4786
      %v4788 = vpop.f32.mrf.mxu0
      %4789 = vmatprep.mubr.bf16.mxu0 0
      %4790 = vmatmul.mubr.bf16.gmra.mxu0 %v2753
      %v4791 = vpop.f32.mrf.mxu0
      %v4792 = vadd.f32 %v720, %v4791
      %v4793 = vpop.f32.mrf.mxu0
      %v4794 = vpop.f32.mrf.mxu0
      %v4795 = vadd.f32 %v720, %v4794
      %v4796 = vpop.f32.mrf.mxu0
      %4797 = vmatprep.mubr.bf16.mxu0 0
      %4798 = vmatmul.mubr.bf16.gmra.mxu0 %v2756
      %v4799 = vpop.f32.mrf.mxu0
      %v4800 = vadd.f32 %v720, %v4799
      %v4801 = vpop.f32.mrf.mxu0
      %v4802 = vpop.f32.mrf.mxu0
      %v4803 = vadd.f32 %v720, %v4802
      %v4804 = vpop.f32.mrf.mxu0
      %4805 = vmatprep.mubr.bf16.mxu0 0
      %4806 = vmatmul.mubr.bf16.gmra.mxu0 %v2759
      %v4807 = vpop.f32.mrf.mxu0
      %v4808 = vadd.f32 %v720, %v4807
      %v4809 = vpop.f32.mrf.mxu0
      %v4810 = vpop.f32.mrf.mxu0
      %v4811 = vadd.f32 %v720, %v4810
      %v4812 = vpop.f32.mrf.mxu0
      %4813 = vmatprep.mubr.bf16.mxu0 0
      %4814 = vmatmul.mubr.bf16.gmra.mxu0 %v2762
      %v4815 = vpop.f32.mrf.mxu0
      %v4816 = vadd.f32 %v720, %v4815
      %v4817 = vpop.f32.mrf.mxu0
      %v4818 = vpop.f32.mrf.mxu0
      %v4819 = vadd.f32 %v720, %v4818
      %v4820 = vpop.f32.mrf.mxu0
      %4821 = vmatprep.mubr.bf16.mxu0 0
      %4822 = vmatmul.mubr.bf16.gmra.mxu0 %v2765
      %v4823 = vpop.f32.mrf.mxu0
      %v4824 = vadd.f32 %v720, %v4823
      %v4825 = vpop.f32.mrf.mxu0
      %v4826 = vpop.f32.mrf.mxu0
      %v4827 = vadd.f32 %v720, %v4826
      %v4828 = vpop.f32.mrf.mxu0
      %4829 = vmatprep.mubr.bf16.mxu0 0
      %4830 = vmatmul.mubr.bf16.gmra.mxu0 %v2768
      %v4831 = vpop.f32.mrf.mxu0
      %v4832 = vadd.f32 %v720, %v4831
      %v4833 = vpop.f32.mrf.mxu0
      %v4834 = vpop.f32.mrf.mxu0
      %v4835 = vadd.f32 %v720, %v4834
      %v4836 = vpop.f32.mrf.mxu0
      %4837 = vmatprep.mubr.bf16.mxu0 0
      %4838 = vmatmul.mubr.bf16.gmra.mxu0 %v2771
      %v4839 = vpop.f32.mrf.mxu0
      %v4840 = vadd.f32 %v720, %v4839
      %v4841 = vpop.f32.mrf.mxu0
      %v4842 = vpop.f32.mrf.mxu0
      %v4843 = vadd.f32 %v720, %v4842
      %v4844 = vpop.f32.mrf.mxu0
      %4845 = vmatprep.mubr.bf16.mxu0 0
      %4846 = vmatmul.mubr.bf16.gmra.mxu0 %v2774
      %v4847 = vpop.f32.mrf.mxu0
      %v4848 = vadd.f32 %v720, %v4847
      %v4849 = vpop.f32.mrf.mxu0
      %v4850 = vpop.f32.mrf.mxu0
      %v4851 = vadd.f32 %v720, %v4850
      %v4852 = vpop.f32.mrf.mxu0
      %4853 = vmatprep.mubr.bf16.mxu0 0
      %4854 = vmatmul.mubr.bf16.gmra.mxu0 %v2777
      %v4855 = vpop.f32.mrf.mxu0
      %v4856 = vadd.f32 %v720, %v4855
      %v4857 = vpop.f32.mrf.mxu0
      %v4858 = vpop.f32.mrf.mxu0
      %v4859 = vadd.f32 %v720, %v4858
      %v4860 = vpop.f32.mrf.mxu0
      %4861 = vmatprep.mubr.bf16.mxu0 0
      %4862 = vmatmul.mubr.bf16.gmra.mxu0 %v2780
      %v4863 = vpop.f32.mrf.mxu0
      %v4864 = vadd.f32 %v720, %v4863
      %v4865 = vpop.f32.mrf.mxu0
      %v4866 = vpop.f32.mrf.mxu0
      %v4867 = vadd.f32 %v720, %v4866
      %v4868 = vpop.f32.mrf.mxu0
      %4869 = vdwg.mxu0
      %v4870 = vmax.f32 %v2824, 0.0
      %v4871 = vmax.f32 %v2827, 0.0
      %v4872 = vmax.f32 %v2832, 0.0
      %v4873 = vmax.f32 %v2835, 0.0
      %v4874 = vmax.f32 %v2840, 0.0
      %v4875 = vmax.f32 %v2843, 0.0
      %v4876 = vmax.f32 %v2848, 0.0
      %v4877 = vmax.f32 %v2851, 0.0
      %v4878 = vmax.f32 %v2856, 0.0
      %v4879 = vmax.f32 %v2859, 0.0
      %v4880 = vmax.f32 %v2864, 0.0
      %v4881 = vmax.f32 %v2867, 0.0
      %v4882 = vmax.f32 %v2872, 0.0
      %v4883 = vmax.f32 %v2875, 0.0
      %v4884 = vmax.f32 %v2880, 0.0
      %v4885 = vmax.f32 %v2883, 0.0
      %v4886 = vmax.f32 %v2888, 0.0
      %v4887 = vmax.f32 %v2891, 0.0
      %v4888 = vmax.f32 %v2896, 0.0
      %v4889 = vmax.f32 %v2899, 0.0
      %v4890 = vmax.f32 %v2904, 0.0
      %v4891 = vmax.f32 %v2907, 0.0
      %v4892 = vmax.f32 %v2912, 0.0
      %v4893 = vmax.f32 %v2915, 0.0
      %v4894 = vmax.f32 %v2920, 0.0
      %v4895 = vmax.f32 %v2923, 0.0
      %v4896 = vmax.f32 %v2928, 0.0
      %v4897 = vmax.f32 %v2931, 0.0
      %v4898 = vmax.f32 %v2936, 0.0
      %v4899 = vmax.f32 %v2939, 0.0
      %v4900 = vmax.f32 %v2944, 0.0
      %v4901 = vmax.f32 %v2947, 0.0
      %v4902 = vmax.f32 %v2952, 0.0
      %v4903 = vmax.f32 %v2955, 0.0
      %v4904 = vmax.f32 %v2960, 0.0
      %v4905 = vmax.f32 %v2963, 0.0
      %v4906 = vmax.f32 %v2968, 0.0
      %v4907 = vmax.f32 %v2971, 0.0
      %v4908 = vmax.f32 %v2976, 0.0
      %v4909 = vmax.f32 %v2979, 0.0
      %v4910 = vmax.f32 %v2984, 0.0
      %v4911 = vmax.f32 %v2987, 0.0
      %v4912 = vmax.f32 %v2992, 0.0
      %v4913 = vmax.f32 %v2995, 0.0
      %v4914 = vmax.f32 %v3000, 0.0
      %v4915 = vmax.f32 %v3003, 0.0
      %v4916 = vmax.f32 %v3008, 0.0
      %v4917 = vmax.f32 %v3011, 0.0
      %v4918 = vmax.f32 %v3016, 0.0
      %v4919 = vmax.f32 %v3019, 0.0
      %v4920 = vmax.f32 %v3024, 0.0
      %v4921 = vmax.f32 %v3027, 0.0
      %v4922 = vmax.f32 %v3032, 0.0
      %v4923 = vmax.f32 %v3035, 0.0
      %v4924 = vmax.f32 %v3040, 0.0
      %v4925 = vmax.f32 %v3043, 0.0
      %v4926 = vmax.f32 %v3048, 0.0
      %v4927 = vmax.f32 %v3051, 0.0
      %v4928 = vmax.f32 %v3056, 0.0
      %v4929 = vmax.f32 %v3059, 0.0
      %v4930 = vmax.f32 %v3064, 0.0
      %v4931 = vmax.f32 %v3067, 0.0
      %v4932 = vmax.f32 %v3072, 0.0
      %v4933 = vmax.f32 %v3075, 0.0
      %v4934 = vmax.f32 %v3080, 0.0
      %v4935 = vmax.f32 %v3083, 0.0
      %v4936 = vmax.f32 %v3088, 0.0
      %v4937 = vmax.f32 %v3091, 0.0
      %v4938 = vmax.f32 %v3096, 0.0
      %v4939 = vmax.f32 %v3099, 0.0
      %v4940 = vmax.f32 %v3104, 0.0
      %v4941 = vmax.f32 %v3107, 0.0
      %v4942 = vmax.f32 %v3112, 0.0
      %v4943 = vmax.f32 %v3115, 0.0
      %v4944 = vmax.f32 %v3120, 0.0
      %v4945 = vmax.f32 %v3123, 0.0
      %v4946 = vmax.f32 %v3128, 0.0
      %v4947 = vmax.f32 %v3131, 0.0
      %v4948 = vmax.f32 %v3136, 0.0
      %v4949 = vmax.f32 %v3139, 0.0
      %v4950 = vmax.f32 %v3144, 0.0
      %v4951 = vmax.f32 %v3147, 0.0
      %v4952 = vmax.f32 %v3152, 0.0
      %v4953 = vmax.f32 %v3155, 0.0
      %v4954 = vmax.f32 %v3160, 0.0
      %v4955 = vmax.f32 %v3163, 0.0
      %v4956 = vmax.f32 %v3168, 0.0
      %v4957 = vmax.f32 %v3171, 0.0
      %v4958 = vmax.f32 %v3176, 0.0
      %v4959 = vmax.f32 %v3179, 0.0
      %v4960 = vmax.f32 %v3184, 0.0
      %v4961 = vmax.f32 %v3187, 0.0
      %v4962 = vmax.f32 %v3192, 0.0
      %v4963 = vmax.f32 %v3195, 0.0
      %v4964 = vmax.f32 %v3200, 0.0
      %v4965 = vmax.f32 %v3203, 0.0
      %v4966 = vmax.f32 %v3208, 0.0
      %v4967 = vmax.f32 %v3211, 0.0
      %v4968 = vmax.f32 %v3216, 0.0
      %v4969 = vmax.f32 %v3219, 0.0
      %v4970 = vmax.f32 %v3224, 0.0
      %v4971 = vmax.f32 %v3227, 0.0
      %v4972 = vmax.f32 %v3232, 0.0
      %v4973 = vmax.f32 %v3235, 0.0
      %v4974 = vmax.f32 %v3240, 0.0
      %v4975 = vmax.f32 %v3243, 0.0
      %v4976 = vmax.f32 %v3248, 0.0
      %v4977 = vmax.f32 %v3251, 0.0
      %v4978 = vmax.f32 %v3256, 0.0
      %v4979 = vmax.f32 %v3259, 0.0
      %v4980 = vmax.f32 %v3264, 0.0
      %v4981 = vmax.f32 %v3267, 0.0
      %v4982 = vmax.f32 %v3272, 0.0
      %v4983 = vmax.f32 %v3275, 0.0
      %v4984 = vmax.f32 %v3280, 0.0
      %v4985 = vmax.f32 %v3283, 0.0
      %v4986 = vmax.f32 %v3288, 0.0
      %v4987 = vmax.f32 %v3291, 0.0
      %v4988 = vmax.f32 %v3296, 0.0
      %v4989 = vmax.f32 %v3299, 0.0
      %v4990 = vmax.f32 %v3304, 0.0
      %v4991 = vmax.f32 %v3307, 0.0
      %v4992 = vmax.f32 %v3312, 0.0
      %v4993 = vmax.f32 %v3315, 0.0
      %v4994 = vmax.f32 %v3320, 0.0
      %v4995 = vmax.f32 %v3323, 0.0
      %v4996 = vmax.f32 %v3328, 0.0
      %v4997 = vmax.f32 %v3331, 0.0
      %v4998 = vmax.f32 %v3336, 0.0
      %v4999 = vmax.f32 %v3339, 0.0
      %v5000 = vmax.f32 %v3344, 0.0
      %v5001 = vmax.f32 %v3347, 0.0
      %v5002 = vmax.f32 %v3352, 0.0
      %v5003 = vmax.f32 %v3355, 0.0
      %v5004 = vmax.f32 %v3360, 0.0
      %v5005 = vmax.f32 %v3363, 0.0
      %v5006 = vmax.f32 %v3368, 0.0
      %v5007 = vmax.f32 %v3371, 0.0
      %v5008 = vmax.f32 %v3376, 0.0
      %v5009 = vmax.f32 %v3379, 0.0
      %v5010 = vmax.f32 %v3384, 0.0
      %v5011 = vmax.f32 %v3387, 0.0
      %v5012 = vmax.f32 %v3392, 0.0
      %v5013 = vmax.f32 %v3395, 0.0
      %v5014 = vmax.f32 %v3400, 0.0
      %v5015 = vmax.f32 %v3403, 0.0
      %v5016 = vmax.f32 %v3408, 0.0
      %v5017 = vmax.f32 %v3411, 0.0
      %v5018 = vmax.f32 %v3416, 0.0
      %v5019 = vmax.f32 %v3419, 0.0
      %v5020 = vmax.f32 %v3424, 0.0
      %v5021 = vmax.f32 %v3427, 0.0
      %v5022 = vmax.f32 %v3432, 0.0
      %v5023 = vmax.f32 %v3435, 0.0
      %v5024 = vmax.f32 %v3440, 0.0
      %v5025 = vmax.f32 %v3443, 0.0
      %v5026 = vmax.f32 %v3448, 0.0
      %v5027 = vmax.f32 %v3451, 0.0
      %v5028 = vmax.f32 %v3456, 0.0
      %v5029 = vmax.f32 %v3459, 0.0
      %v5030 = vmax.f32 %v3464, 0.0
      %v5031 = vmax.f32 %v3467, 0.0
      %v5032 = vmax.f32 %v3472, 0.0
      %v5033 = vmax.f32 %v3475, 0.0
      %v5034 = vmax.f32 %v3480, 0.0
      %v5035 = vmax.f32 %v3483, 0.0
      %v5036 = vmax.f32 %v3488, 0.0
      %v5037 = vmax.f32 %v3491, 0.0
      %v5038 = vmax.f32 %v3496, 0.0
      %v5039 = vmax.f32 %v3499, 0.0
      %v5040 = vmax.f32 %v3504, 0.0
      %v5041 = vmax.f32 %v3507, 0.0
      %v5042 = vmax.f32 %v3512, 0.0
      %v5043 = vmax.f32 %v3515, 0.0
      %v5044 = vmax.f32 %v3520, 0.0
      %v5045 = vmax.f32 %v3523, 0.0
      %v5046 = vmax.f32 %v3528, 0.0
      %v5047 = vmax.f32 %v3531, 0.0
      %v5048 = vmax.f32 %v3536, 0.0
      %v5049 = vmax.f32 %v3539, 0.0
      %v5050 = vmax.f32 %v3544, 0.0
      %v5051 = vmax.f32 %v3547, 0.0
      %v5052 = vmax.f32 %v3552, 0.0
      %v5053 = vmax.f32 %v3555, 0.0
      %v5054 = vmax.f32 %v3560, 0.0
      %v5055 = vmax.f32 %v3563, 0.0
      %v5056 = vmax.f32 %v3568, 0.0
      %v5057 = vmax.f32 %v3571, 0.0
      %v5058 = vmax.f32 %v3576, 0.0
      %v5059 = vmax.f32 %v3579, 0.0
      %v5060 = vmax.f32 %v3584, 0.0
      %v5061 = vmax.f32 %v3587, 0.0
      %v5062 = vmax.f32 %v3592, 0.0
      %v5063 = vmax.f32 %v3595, 0.0
      %v5064 = vmax.f32 %v3600, 0.0
      %v5065 = vmax.f32 %v3603, 0.0
      %v5066 = vmax.f32 %v3608, 0.0
      %v5067 = vmax.f32 %v3611, 0.0
      %v5068 = vmax.f32 %v3616, 0.0
      %v5069 = vmax.f32 %v3619, 0.0
      %v5070 = vmax.f32 %v3624, 0.0
      %v5071 = vmax.f32 %v3627, 0.0
      %v5072 = vmax.f32 %v3632, 0.0
      %v5073 = vmax.f32 %v3635, 0.0
      %v5074 = vmax.f32 %v3640, 0.0
      %v5075 = vmax.f32 %v3643, 0.0
      %v5076 = vmax.f32 %v3648, 0.0
      %v5077 = vmax.f32 %v3651, 0.0
      %v5078 = vmax.f32 %v3656, 0.0
      %v5079 = vmax.f32 %v3659, 0.0
      %v5080 = vmax.f32 %v3664, 0.0
      %v5081 = vmax.f32 %v3667, 0.0
      %v5082 = vmax.f32 %v3672, 0.0
      %v5083 = vmax.f32 %v3675, 0.0
      %v5084 = vmax.f32 %v3680, 0.0
      %v5085 = vmax.f32 %v3683, 0.0
      %v5086 = vmax.f32 %v3688, 0.0
      %v5087 = vmax.f32 %v3691, 0.0
      %v5088 = vmax.f32 %v3696, 0.0
      %v5089 = vmax.f32 %v3699, 0.0
      %v5090 = vmax.f32 %v3704, 0.0
      %v5091 = vmax.f32 %v3707, 0.0
      %v5092 = vmax.f32 %v3712, 0.0
      %v5093 = vmax.f32 %v3715, 0.0
      %v5094 = vmax.f32 %v3720, 0.0
      %v5095 = vmax.f32 %v3723, 0.0
      %v5096 = vmax.f32 %v3728, 0.0
      %v5097 = vmax.f32 %v3731, 0.0
      %v5098 = vmax.f32 %v3736, 0.0
      %v5099 = vmax.f32 %v3739, 0.0
      %v5100 = vmax.f32 %v3744, 0.0
      %v5101 = vmax.f32 %v3747, 0.0
      %v5102 = vmax.f32 %v3752, 0.0
      %v5103 = vmax.f32 %v3755, 0.0
      %v5104 = vmax.f32 %v3760, 0.0
      %v5105 = vmax.f32 %v3763, 0.0
      %v5106 = vmax.f32 %v3768, 0.0
      %v5107 = vmax.f32 %v3771, 0.0
      %v5108 = vmax.f32 %v3776, 0.0
      %v5109 = vmax.f32 %v3779, 0.0
      %v5110 = vmax.f32 %v3784, 0.0
      %v5111 = vmax.f32 %v3787, 0.0
      %v5112 = vmax.f32 %v3792, 0.0
      %v5113 = vmax.f32 %v3795, 0.0
      %v5114 = vmax.f32 %v3800, 0.0
      %v5115 = vmax.f32 %v3803, 0.0
      %v5116 = vmax.f32 %v3808, 0.0
      %v5117 = vmax.f32 %v3811, 0.0
      %v5118 = vmax.f32 %v3816, 0.0
      %v5119 = vmax.f32 %v3819, 0.0
      %v5120 = vmax.f32 %v3824, 0.0
      %v5121 = vmax.f32 %v3827, 0.0
      %v5122 = vmax.f32 %v3832, 0.0
      %v5123 = vmax.f32 %v3835, 0.0
      %v5124 = vmax.f32 %v3840, 0.0
      %v5125 = vmax.f32 %v3843, 0.0
      %v5126 = vmax.f32 %v3848, 0.0
      %v5127 = vmax.f32 %v3851, 0.0
      %v5128 = vmax.f32 %v3856, 0.0
      %v5129 = vmax.f32 %v3859, 0.0
      %v5130 = vmax.f32 %v3864, 0.0
      %v5131 = vmax.f32 %v3867, 0.0
      %v5132 = vmax.f32 %v3872, 0.0
      %v5133 = vmax.f32 %v3875, 0.0
      %v5134 = vmax.f32 %v3880, 0.0
      %v5135 = vmax.f32 %v3883, 0.0
      %v5136 = vmax.f32 %v3888, 0.0
      %v5137 = vmax.f32 %v3891, 0.0
      %v5138 = vmax.f32 %v3896, 0.0
      %v5139 = vmax.f32 %v3899, 0.0
      %v5140 = vmax.f32 %v3904, 0.0
      %v5141 = vmax.f32 %v3907, 0.0
      %v5142 = vmax.f32 %v3912, 0.0
      %v5143 = vmax.f32 %v3915, 0.0
      %v5144 = vmax.f32 %v3920, 0.0
      %v5145 = vmax.f32 %v3923, 0.0
      %v5146 = vmax.f32 %v3928, 0.0
      %v5147 = vmax.f32 %v3931, 0.0
      %v5148 = vmax.f32 %v3936, 0.0
      %v5149 = vmax.f32 %v3939, 0.0
      %v5150 = vmax.f32 %v3944, 0.0
      %v5151 = vmax.f32 %v3947, 0.0
      %v5152 = vmax.f32 %v3952, 0.0
      %v5153 = vmax.f32 %v3955, 0.0
      %v5154 = vmax.f32 %v3960, 0.0
      %v5155 = vmax.f32 %v3963, 0.0
      %v5156 = vmax.f32 %v3968, 0.0
      %v5157 = vmax.f32 %v3971, 0.0
      %v5158 = vmax.f32 %v3976, 0.0
      %v5159 = vmax.f32 %v3979, 0.0
      %v5160 = vmax.f32 %v3984, 0.0
      %v5161 = vmax.f32 %v3987, 0.0
      %v5162 = vmax.f32 %v3992, 0.0
      %v5163 = vmax.f32 %v3995, 0.0
      %v5164 = vmax.f32 %v4000, 0.0
      %v5165 = vmax.f32 %v4003, 0.0
      %v5166 = vmax.f32 %v4008, 0.0
      %v5167 = vmax.f32 %v4011, 0.0
      %v5168 = vmax.f32 %v4016, 0.0
      %v5169 = vmax.f32 %v4019, 0.0
      %v5170 = vmax.f32 %v4024, 0.0
      %v5171 = vmax.f32 %v4027, 0.0
      %v5172 = vmax.f32 %v4032, 0.0
      %v5173 = vmax.f32 %v4035, 0.0
      %v5174 = vmax.f32 %v4040, 0.0
      %v5175 = vmax.f32 %v4043, 0.0
      %v5176 = vmax.f32 %v4048, 0.0
      %v5177 = vmax.f32 %v4051, 0.0
      %v5178 = vmax.f32 %v4056, 0.0
      %v5179 = vmax.f32 %v4059, 0.0
      %v5180 = vmax.f32 %v4064, 0.0
      %v5181 = vmax.f32 %v4067, 0.0
      %v5182 = vmax.f32 %v4072, 0.0
      %v5183 = vmax.f32 %v4075, 0.0
      %v5184 = vmax.f32 %v4080, 0.0
      %v5185 = vmax.f32 %v4083, 0.0
      %v5186 = vmax.f32 %v4088, 0.0
      %v5187 = vmax.f32 %v4091, 0.0
      %v5188 = vmax.f32 %v4096, 0.0
      %v5189 = vmax.f32 %v4099, 0.0
      %v5190 = vmax.f32 %v4104, 0.0
      %v5191 = vmax.f32 %v4107, 0.0
      %v5192 = vmax.f32 %v4112, 0.0
      %v5193 = vmax.f32 %v4115, 0.0
      %v5194 = vmax.f32 %v4120, 0.0
      %v5195 = vmax.f32 %v4123, 0.0
      %v5196 = vmax.f32 %v4128, 0.0
      %v5197 = vmax.f32 %v4131, 0.0
      %v5198 = vmax.f32 %v4136, 0.0
      %v5199 = vmax.f32 %v4139, 0.0
      %v5200 = vmax.f32 %v4144, 0.0
      %v5201 = vmax.f32 %v4147, 0.0
      %v5202 = vmax.f32 %v4152, 0.0
      %v5203 = vmax.f32 %v4155, 0.0
      %v5204 = vmax.f32 %v4160, 0.0
      %v5205 = vmax.f32 %v4163, 0.0
      %v5206 = vmax.f32 %v4168, 0.0
      %v5207 = vmax.f32 %v4171, 0.0
      %v5208 = vmax.f32 %v4176, 0.0
      %v5209 = vmax.f32 %v4179, 0.0
      %v5210 = vmax.f32 %v4184, 0.0
      %v5211 = vmax.f32 %v4187, 0.0
      %v5212 = vmax.f32 %v4192, 0.0
      %v5213 = vmax.f32 %v4195, 0.0
      %v5214 = vmax.f32 %v4200, 0.0
      %v5215 = vmax.f32 %v4203, 0.0
      %v5216 = vmax.f32 %v4208, 0.0
      %v5217 = vmax.f32 %v4211, 0.0
      %v5218 = vmax.f32 %v4216, 0.0
      %v5219 = vmax.f32 %v4219, 0.0
      %v5220 = vmax.f32 %v4224, 0.0
      %v5221 = vmax.f32 %v4227, 0.0
      %v5222 = vmax.f32 %v4232, 0.0
      %v5223 = vmax.f32 %v4235, 0.0
      %v5224 = vmax.f32 %v4240, 0.0
      %v5225 = vmax.f32 %v4243, 0.0
      %v5226 = vmax.f32 %v4248, 0.0
      %v5227 = vmax.f32 %v4251, 0.0
      %v5228 = vmax.f32 %v4256, 0.0
      %v5229 = vmax.f32 %v4259, 0.0
      %v5230 = vmax.f32 %v4264, 0.0
      %v5231 = vmax.f32 %v4267, 0.0
      %v5232 = vmax.f32 %v4272, 0.0
      %v5233 = vmax.f32 %v4275, 0.0
      %v5234 = vmax.f32 %v4280, 0.0
      %v5235 = vmax.f32 %v4283, 0.0
      %v5236 = vmax.f32 %v4288, 0.0
      %v5237 = vmax.f32 %v4291, 0.0
      %v5238 = vmax.f32 %v4296, 0.0
      %v5239 = vmax.f32 %v4299, 0.0
      %v5240 = vmax.f32 %v4304, 0.0
      %v5241 = vmax.f32 %v4307, 0.0
      %v5242 = vmax.f32 %v4312, 0.0
      %v5243 = vmax.f32 %v4315, 0.0
      %v5244 = vmax.f32 %v4320, 0.0
      %v5245 = vmax.f32 %v4323, 0.0
      %v5246 = vmax.f32 %v4328, 0.0
      %v5247 = vmax.f32 %v4331, 0.0
      %v5248 = vmax.f32 %v4336, 0.0
      %v5249 = vmax.f32 %v4339, 0.0
      %v5250 = vmax.f32 %v4344, 0.0
      %v5251 = vmax.f32 %v4347, 0.0
      %v5252 = vmax.f32 %v4352, 0.0
      %v5253 = vmax.f32 %v4355, 0.0
      %v5254 = vmax.f32 %v4360, 0.0
      %v5255 = vmax.f32 %v4363, 0.0
      %v5256 = vmax.f32 %v4368, 0.0
      %v5257 = vmax.f32 %v4371, 0.0
      %v5258 = vmax.f32 %v4376, 0.0
      %v5259 = vmax.f32 %v4379, 0.0
      %v5260 = vmax.f32 %v4384, 0.0
      %v5261 = vmax.f32 %v4387, 0.0
      %v5262 = vmax.f32 %v4392, 0.0
      %v5263 = vmax.f32 %v4395, 0.0
      %v5264 = vmax.f32 %v4400, 0.0
      %v5265 = vmax.f32 %v4403, 0.0
      %v5266 = vmax.f32 %v4408, 0.0
      %v5267 = vmax.f32 %v4411, 0.0
      %v5268 = vmax.f32 %v4416, 0.0
      %v5269 = vmax.f32 %v4419, 0.0
      %v5270 = vmax.f32 %v4424, 0.0
      %v5271 = vmax.f32 %v4427, 0.0
      %v5272 = vmax.f32 %v4432, 0.0
      %v5273 = vmax.f32 %v4435, 0.0
      %v5274 = vmax.f32 %v4440, 0.0
      %v5275 = vmax.f32 %v4443, 0.0
      %v5276 = vmax.f32 %v4448, 0.0
      %v5277 = vmax.f32 %v4451, 0.0
      %v5278 = vmax.f32 %v4456, 0.0
      %v5279 = vmax.f32 %v4459, 0.0
      %v5280 = vmax.f32 %v4464, 0.0
      %v5281 = vmax.f32 %v4467, 0.0
      %v5282 = vmax.f32 %v4472, 0.0
      %v5283 = vmax.f32 %v4475, 0.0
      %v5284 = vmax.f32 %v4480, 0.0
      %v5285 = vmax.f32 %v4483, 0.0
      %v5286 = vmax.f32 %v4488, 0.0
      %v5287 = vmax.f32 %v4491, 0.0
      %v5288 = vmax.f32 %v4496, 0.0
      %v5289 = vmax.f32 %v4499, 0.0
      %v5290 = vmax.f32 %v4504, 0.0
      %v5291 = vmax.f32 %v4507, 0.0
      %v5292 = vmax.f32 %v4512, 0.0
      %v5293 = vmax.f32 %v4515, 0.0
      %v5294 = vmax.f32 %v4520, 0.0
      %v5295 = vmax.f32 %v4523, 0.0
      %v5296 = vmax.f32 %v4528, 0.0
      %v5297 = vmax.f32 %v4531, 0.0
      %v5298 = vmax.f32 %v4536, 0.0
      %v5299 = vmax.f32 %v4539, 0.0
      %v5300 = vmax.f32 %v4544, 0.0
      %v5301 = vmax.f32 %v4547, 0.0
      %v5302 = vmax.f32 %v4552, 0.0
      %v5303 = vmax.f32 %v4555, 0.0
      %v5304 = vmax.f32 %v4560, 0.0
      %v5305 = vmax.f32 %v4563, 0.0
      %v5306 = vmax.f32 %v4568, 0.0
      %v5307 = vmax.f32 %v4571, 0.0
      %v5308 = vmax.f32 %v4576, 0.0
      %v5309 = vmax.f32 %v4579, 0.0
      %v5310 = vmax.f32 %v4584, 0.0
      %v5311 = vmax.f32 %v4587, 0.0
      %v5312 = vmax.f32 %v4592, 0.0
      %v5313 = vmax.f32 %v4595, 0.0
      %v5314 = vmax.f32 %v4600, 0.0
      %v5315 = vmax.f32 %v4603, 0.0
      %v5316 = vmax.f32 %v4608, 0.0
      %v5317 = vmax.f32 %v4611, 0.0
      %v5318 = vmax.f32 %v4616, 0.0
      %v5319 = vmax.f32 %v4619, 0.0
      %v5320 = vmax.f32 %v4624, 0.0
      %v5321 = vmax.f32 %v4627, 0.0
      %v5322 = vmax.f32 %v4632, 0.0
      %v5323 = vmax.f32 %v4635, 0.0
      %v5324 = vmax.f32 %v4640, 0.0
      %v5325 = vmax.f32 %v4643, 0.0
      %v5326 = vmax.f32 %v4648, 0.0
      %v5327 = vmax.f32 %v4651, 0.0
      %v5328 = vmax.f32 %v4656, 0.0
      %v5329 = vmax.f32 %v4659, 0.0
      %v5330 = vmax.f32 %v4664, 0.0
      %v5331 = vmax.f32 %v4667, 0.0
      %v5332 = vmax.f32 %v4672, 0.0
      %v5333 = vmax.f32 %v4675, 0.0
      %v5334 = vmax.f32 %v4680, 0.0
      %v5335 = vmax.f32 %v4683, 0.0
      %v5336 = vmax.f32 %v4688, 0.0
      %v5337 = vmax.f32 %v4691, 0.0
      %v5338 = vmax.f32 %v4696, 0.0
      %v5339 = vmax.f32 %v4699, 0.0
      %v5340 = vmax.f32 %v4704, 0.0
      %v5341 = vmax.f32 %v4707, 0.0
      %v5342 = vmax.f32 %v4712, 0.0
      %v5343 = vmax.f32 %v4715, 0.0
      %v5344 = vmax.f32 %v4720, 0.0
      %v5345 = vmax.f32 %v4723, 0.0
      %v5346 = vmax.f32 %v4728, 0.0
      %v5347 = vmax.f32 %v4731, 0.0
      %v5348 = vmax.f32 %v4736, 0.0
      %v5349 = vmax.f32 %v4739, 0.0
      %v5350 = vmax.f32 %v4744, 0.0
      %v5351 = vmax.f32 %v4747, 0.0
      %v5352 = vmax.f32 %v4752, 0.0
      %v5353 = vmax.f32 %v4755, 0.0
      %v5354 = vmax.f32 %v4760, 0.0
      %v5355 = vmax.f32 %v4763, 0.0
      %v5356 = vmax.f32 %v4768, 0.0
      %v5357 = vmax.f32 %v4771, 0.0
      %v5358 = vmax.f32 %v4776, 0.0
      %v5359 = vmax.f32 %v4779, 0.0
      %v5360 = vmax.f32 %v4784, 0.0
      %v5361 = vmax.f32 %v4787, 0.0
      %v5362 = vmax.f32 %v4792, 0.0
      %v5363 = vmax.f32 %v4795, 0.0
      %v5364 = vmax.f32 %v4800, 0.0
      %v5365 = vmax.f32 %v4803, 0.0
      %v5366 = vmax.f32 %v4808, 0.0
      %v5367 = vmax.f32 %v4811, 0.0
      %v5368 = vmax.f32 %v4816, 0.0
      %v5369 = vmax.f32 %v4819, 0.0
      %v5370 = vmax.f32 %v4824, 0.0
      %v5371 = vmax.f32 %v4827, 0.0
      %v5372 = vmax.f32 %v4832, 0.0
      %v5373 = vmax.f32 %v4835, 0.0
      %v5374 = vmax.f32 %v4840, 0.0
      %v5375 = vmax.f32 %v4843, 0.0
      %v5376 = vmax.f32 %v4848, 0.0
      %v5377 = vmax.f32 %v4851, 0.0
      %v5378 = vmax.f32 %v4856, 0.0
      %v5379 = vmax.f32 %v4859, 0.0
      %v5380 = vmax.f32 %v4864, 0.0
      %v5381 = vmax.f32 %v4867, 0.0
      %v5382 = vld [vmem:[%s3] sm:$0xff]
      %v5383 = vld [vmem:[%s3 + $0x8] sm:$0xff]
      %v5384 = vld [vmem:[%s3 + $0x10] sm:$0xff]
      %v5385 = vld [vmem:[%s3 + $0x18] sm:$0xff]
      %v5386 = vld [vmem:[%s3 + $0x20] sm:$0xff]
      %v5387 = vld [vmem:[%s3 + $0x28] sm:$0xff]
      %v5388 = vld [vmem:[%s3 + $0x30] sm:$0xff]
      %v5389 = vld [vmem:[%s3 + $0x38] sm:$0xff]
      %v5390 = vld [vmem:[%s3 + $0x40] sm:$0xff]
      %v5391 = vld [vmem:[%s3 + $0x48] sm:$0xff]
      %v5392 = vld [vmem:[%s3 + $0x50] sm:$0xff]
      %v5393 = vld [vmem:[%s3 + $0x58] sm:$0xff]
      %v5394 = vld [vmem:[%s3 + $0x60] sm:$0xff]
      %v5395 = vld [vmem:[%s3 + $0x68] sm:$0xff]
      %v5396 = vld [vmem:[%s3 + $0x70] sm:$0xff]
      %v5397 = vld [vmem:[%s3 + $0x78] sm:$0xff]
      %v5398 = vld [vmem:[%s3 + $0x80] sm:$0xff]
      %v5399 = vld [vmem:[%s3 + $0x88] sm:$0xff]
      %v5400 = vld [vmem:[%s3 + $0x90] sm:$0xff]
      %v5401 = vld [vmem:[%s3 + $0x98] sm:$0xff]
      %v5402 = vld [vmem:[%s3 + $0xa0] sm:$0xff]
      %v5403 = vld [vmem:[%s3 + $0xa8] sm:$0xff]
      %v5404 = vld [vmem:[%s3 + $0xb0] sm:$0xff]
      %v5405 = vld [vmem:[%s3 + $0xb8] sm:$0xff]
      %v5406 = vld [vmem:[%s3 + $0xc0] sm:$0xff]
      %v5407 = vld [vmem:[%s3 + $0xc8] sm:$0xff]
      %v5408 = vld [vmem:[%s3 + $0xd0] sm:$0xff]
      %v5409 = vld [vmem:[%s3 + $0xd8] sm:$0xff]
      %v5410 = vld [vmem:[%s3 + $0xe0] sm:$0xff]
      %v5411 = vld [vmem:[%s3 + $0xe8] sm:$0xff]
      %v5412 = vld [vmem:[%s3 + $0xf0] sm:$0xff]
      %v5413 = vld [vmem:[%s3 + $0xf8] sm:$0xff]
      %v5414 = vpack.c.bf16 %v4871, %v4870
      %v5415 = vpack.c.bf16 %v4873, %v4872
      %v5416 = vpack.c.bf16 %v4875, %v4874
      %v5417 = vpack.c.bf16 %v4877, %v4876
      %v5418 = vpack.c.bf16 %v4879, %v4878
      %v5419 = vpack.c.bf16 %v4881, %v4880
      %v5420 = vpack.c.bf16 %v4883, %v4882
      %v5421 = vpack.c.bf16 %v4885, %v4884
      %v5422 = vpack.c.bf16 %v4887, %v4886
      %v5423 = vpack.c.bf16 %v4889, %v4888
      %v5424 = vpack.c.bf16 %v4891, %v4890
      %v5425 = vpack.c.bf16 %v4893, %v4892
      %v5426 = vpack.c.bf16 %v4895, %v4894
      %v5427 = vpack.c.bf16 %v4897, %v4896
      %v5428 = vpack.c.bf16 %v4899, %v4898
      %v5429 = vpack.c.bf16 %v4901, %v4900
      %v5430 = vpack.c.bf16 %v4903, %v4902
      %v5431 = vpack.c.bf16 %v4905, %v4904
      %v5432 = vpack.c.bf16 %v4907, %v4906
      %v5433 = vpack.c.bf16 %v4909, %v4908
      %v5434 = vpack.c.bf16 %v4911, %v4910
      %v5435 = vpack.c.bf16 %v4913, %v4912
      %v5436 = vpack.c.bf16 %v4915, %v4914
      %v5437 = vpack.c.bf16 %v4917, %v4916
      %v5438 = vpack.c.bf16 %v4919, %v4918
      %v5439 = vpack.c.bf16 %v4921, %v4920
      %v5440 = vpack.c.bf16 %v4923, %v4922
      %v5441 = vpack.c.bf16 %v4925, %v4924
      %v5442 = vpack.c.bf16 %v4927, %v4926
      %v5443 = vpack.c.bf16 %v4929, %v4928
      %v5444 = vpack.c.bf16 %v4931, %v4930
      %v5445 = vpack.c.bf16 %v4933, %v4932
      %v5446 = vpack.c.bf16 %v4935, %v4934
      %v5447 = vpack.c.bf16 %v4937, %v4936
      %v5448 = vpack.c.bf16 %v4939, %v4938
      %v5449 = vpack.c.bf16 %v4941, %v4940
      %v5450 = vpack.c.bf16 %v4943, %v4942
      %v5451 = vpack.c.bf16 %v4945, %v4944
      %v5452 = vpack.c.bf16 %v4947, %v4946
      %v5453 = vpack.c.bf16 %v4949, %v4948
      %v5454 = vpack.c.bf16 %v4951, %v4950
      %v5455 = vpack.c.bf16 %v4953, %v4952
      %v5456 = vpack.c.bf16 %v4955, %v4954
      %v5457 = vpack.c.bf16 %v4957, %v4956
      %v5458 = vpack.c.bf16 %v4959, %v4958
      %v5459 = vpack.c.bf16 %v4961, %v4960
      %v5460 = vpack.c.bf16 %v4963, %v4962
      %v5461 = vpack.c.bf16 %v4965, %v4964
      %v5462 = vpack.c.bf16 %v4967, %v4966
      %v5463 = vpack.c.bf16 %v4969, %v4968
      %v5464 = vpack.c.bf16 %v4971, %v4970
      %v5465 = vpack.c.bf16 %v4973, %v4972
      %v5466 = vpack.c.bf16 %v4975, %v4974
      %v5467 = vpack.c.bf16 %v4977, %v4976
      %v5468 = vpack.c.bf16 %v4979, %v4978
      %v5469 = vpack.c.bf16 %v4981, %v4980
      %v5470 = vpack.c.bf16 %v4983, %v4982
      %v5471 = vpack.c.bf16 %v4985, %v4984
      %v5472 = vpack.c.bf16 %v4987, %v4986
      %v5473 = vpack.c.bf16 %v4989, %v4988
      %v5474 = vpack.c.bf16 %v4991, %v4990
      %v5475 = vpack.c.bf16 %v4993, %v4992
      %v5476 = vpack.c.bf16 %v4995, %v4994
      %v5477 = vpack.c.bf16 %v4997, %v4996
      %v5478 = vpack.c.bf16 %v4999, %v4998
      %v5479 = vpack.c.bf16 %v5001, %v5000
      %v5480 = vpack.c.bf16 %v5003, %v5002
      %v5481 = vpack.c.bf16 %v5005, %v5004
      %v5482 = vpack.c.bf16 %v5007, %v5006
      %v5483 = vpack.c.bf16 %v5009, %v5008
      %v5484 = vpack.c.bf16 %v5011, %v5010
      %v5485 = vpack.c.bf16 %v5013, %v5012
      %v5486 = vpack.c.bf16 %v5015, %v5014
      %v5487 = vpack.c.bf16 %v5017, %v5016
      %v5488 = vpack.c.bf16 %v5019, %v5018
      %v5489 = vpack.c.bf16 %v5021, %v5020
      %v5490 = vpack.c.bf16 %v5023, %v5022
      %v5491 = vpack.c.bf16 %v5025, %v5024
      %v5492 = vpack.c.bf16 %v5027, %v5026
      %v5493 = vpack.c.bf16 %v5029, %v5028
      %v5494 = vpack.c.bf16 %v5031, %v5030
      %v5495 = vpack.c.bf16 %v5033, %v5032
      %v5496 = vpack.c.bf16 %v5035, %v5034
      %v5497 = vpack.c.bf16 %v5037, %v5036
      %v5498 = vpack.c.bf16 %v5039, %v5038
      %v5499 = vpack.c.bf16 %v5041, %v5040
      %v5500 = vpack.c.bf16 %v5043, %v5042
      %v5501 = vpack.c.bf16 %v5045, %v5044
      %v5502 = vpack.c.bf16 %v5047, %v5046
      %v5503 = vpack.c.bf16 %v5049, %v5048
      %v5504 = vpack.c.bf16 %v5051, %v5050
      %v5505 = vpack.c.bf16 %v5053, %v5052
      %v5506 = vpack.c.bf16 %v5055, %v5054
      %v5507 = vpack.c.bf16 %v5057, %v5056
      %v5508 = vpack.c.bf16 %v5059, %v5058
      %v5509 = vpack.c.bf16 %v5061, %v5060
      %v5510 = vpack.c.bf16 %v5063, %v5062
      %v5511 = vpack.c.bf16 %v5065, %v5064
      %v5512 = vpack.c.bf16 %v5067, %v5066
      %v5513 = vpack.c.bf16 %v5069, %v5068
      %v5514 = vpack.c.bf16 %v5071, %v5070
      %v5515 = vpack.c.bf16 %v5073, %v5072
      %v5516 = vpack.c.bf16 %v5075, %v5074
      %v5517 = vpack.c.bf16 %v5077, %v5076
      %v5518 = vpack.c.bf16 %v5079, %v5078
      %v5519 = vpack.c.bf16 %v5081, %v5080
      %v5520 = vpack.c.bf16 %v5083, %v5082
      %v5521 = vpack.c.bf16 %v5085, %v5084
      %v5522 = vpack.c.bf16 %v5087, %v5086
      %v5523 = vpack.c.bf16 %v5089, %v5088
      %v5524 = vpack.c.bf16 %v5091, %v5090
      %v5525 = vpack.c.bf16 %v5093, %v5092
      %v5526 = vpack.c.bf16 %v5095, %v5094
      %v5527 = vpack.c.bf16 %v5097, %v5096
      %v5528 = vpack.c.bf16 %v5099, %v5098
      %v5529 = vpack.c.bf16 %v5101, %v5100
      %v5530 = vpack.c.bf16 %v5103, %v5102
      %v5531 = vpack.c.bf16 %v5105, %v5104
      %v5532 = vpack.c.bf16 %v5107, %v5106
      %v5533 = vpack.c.bf16 %v5109, %v5108
      %v5534 = vpack.c.bf16 %v5111, %v5110
      %v5535 = vpack.c.bf16 %v5113, %v5112
      %v5536 = vpack.c.bf16 %v5115, %v5114
      %v5537 = vpack.c.bf16 %v5117, %v5116
      %v5538 = vpack.c.bf16 %v5119, %v5118
      %v5539 = vpack.c.bf16 %v5121, %v5120
      %v5540 = vpack.c.bf16 %v5123, %v5122
      %v5541 = vpack.c.bf16 %v5125, %v5124
      %v5542 = vpack.c.bf16 %v5127, %v5126
      %v5543 = vpack.c.bf16 %v5129, %v5128
      %v5544 = vpack.c.bf16 %v5131, %v5130
      %v5545 = vpack.c.bf16 %v5133, %v5132
      %v5546 = vpack.c.bf16 %v5135, %v5134
      %v5547 = vpack.c.bf16 %v5137, %v5136
      %v5548 = vpack.c.bf16 %v5139, %v5138
      %v5549 = vpack.c.bf16 %v5141, %v5140
      %v5550 = vpack.c.bf16 %v5143, %v5142
      %v5551 = vpack.c.bf16 %v5145, %v5144
      %v5552 = vpack.c.bf16 %v5147, %v5146
      %v5553 = vpack.c.bf16 %v5149, %v5148
      %v5554 = vpack.c.bf16 %v5151, %v5150
      %v5555 = vpack.c.bf16 %v5153, %v5152
      %v5556 = vpack.c.bf16 %v5155, %v5154
      %v5557 = vpack.c.bf16 %v5157, %v5156
      %v5558 = vpack.c.bf16 %v5159, %v5158
      %v5559 = vpack.c.bf16 %v5161, %v5160
      %v5560 = vpack.c.bf16 %v5163, %v5162
      %v5561 = vpack.c.bf16 %v5165, %v5164
      %v5562 = vpack.c.bf16 %v5167, %v5166
      %v5563 = vpack.c.bf16 %v5169, %v5168
      %v5564 = vpack.c.bf16 %v5171, %v5170
      %v5565 = vpack.c.bf16 %v5173, %v5172
      %v5566 = vpack.c.bf16 %v5175, %v5174
      %v5567 = vpack.c.bf16 %v5177, %v5176
      %v5568 = vpack.c.bf16 %v5179, %v5178
      %v5569 = vpack.c.bf16 %v5181, %v5180
      %v5570 = vpack.c.bf16 %v5183, %v5182
      %v5571 = vpack.c.bf16 %v5185, %v5184
      %v5572 = vpack.c.bf16 %v5187, %v5186
      %v5573 = vpack.c.bf16 %v5189, %v5188
      %v5574 = vpack.c.bf16 %v5191, %v5190
      %v5575 = vpack.c.bf16 %v5193, %v5192
      %v5576 = vpack.c.bf16 %v5195, %v5194
      %v5577 = vpack.c.bf16 %v5197, %v5196
      %v5578 = vpack.c.bf16 %v5199, %v5198
      %v5579 = vpack.c.bf16 %v5201, %v5200
      %v5580 = vpack.c.bf16 %v5203, %v5202
      %v5581 = vpack.c.bf16 %v5205, %v5204
      %v5582 = vpack.c.bf16 %v5207, %v5206
      %v5583 = vpack.c.bf16 %v5209, %v5208
      %v5584 = vpack.c.bf16 %v5211, %v5210
      %v5585 = vpack.c.bf16 %v5213, %v5212
      %v5586 = vpack.c.bf16 %v5215, %v5214
      %v5587 = vpack.c.bf16 %v5217, %v5216
      %v5588 = vpack.c.bf16 %v5219, %v5218
      %v5589 = vpack.c.bf16 %v5221, %v5220
      %v5590 = vpack.c.bf16 %v5223, %v5222
      %v5591 = vpack.c.bf16 %v5225, %v5224
      %v5592 = vpack.c.bf16 %v5227, %v5226
      %v5593 = vpack.c.bf16 %v5229, %v5228
      %v5594 = vpack.c.bf16 %v5231, %v5230
      %v5595 = vpack.c.bf16 %v5233, %v5232
      %v5596 = vpack.c.bf16 %v5235, %v5234
      %v5597 = vpack.c.bf16 %v5237, %v5236
      %v5598 = vpack.c.bf16 %v5239, %v5238
      %v5599 = vpack.c.bf16 %v5241, %v5240
      %v5600 = vpack.c.bf16 %v5243, %v5242
      %v5601 = vpack.c.bf16 %v5245, %v5244
      %v5602 = vpack.c.bf16 %v5247, %v5246
      %v5603 = vpack.c.bf16 %v5249, %v5248
      %v5604 = vpack.c.bf16 %v5251, %v5250
      %v5605 = vpack.c.bf16 %v5253, %v5252
      %v5606 = vpack.c.bf16 %v5255, %v5254
      %v5607 = vpack.c.bf16 %v5257, %v5256
      %v5608 = vpack.c.bf16 %v5259, %v5258
      %v5609 = vpack.c.bf16 %v5261, %v5260
      %v5610 = vpack.c.bf16 %v5263, %v5262
      %v5611 = vpack.c.bf16 %v5265, %v5264
      %v5612 = vpack.c.bf16 %v5267, %v5266
      %v5613 = vpack.c.bf16 %v5269, %v5268
      %v5614 = vpack.c.bf16 %v5271, %v5270
      %v5615 = vpack.c.bf16 %v5273, %v5272
      %v5616 = vpack.c.bf16 %v5275, %v5274
      %v5617 = vpack.c.bf16 %v5277, %v5276
      %v5618 = vpack.c.bf16 %v5279, %v5278
      %v5619 = vpack.c.bf16 %v5281, %v5280
      %v5620 = vpack.c.bf16 %v5283, %v5282
      %v5621 = vpack.c.bf16 %v5285, %v5284
      %v5622 = vpack.c.bf16 %v5287, %v5286
      %v5623 = vpack.c.bf16 %v5289, %v5288
      %v5624 = vpack.c.bf16 %v5291, %v5290
      %v5625 = vpack.c.bf16 %v5293, %v5292
      %v5626 = vpack.c.bf16 %v5295, %v5294
      %v5627 = vpack.c.bf16 %v5297, %v5296
      %v5628 = vpack.c.bf16 %v5299, %v5298
      %v5629 = vpack.c.bf16 %v5301, %v5300
      %v5630 = vpack.c.bf16 %v5303, %v5302
      %v5631 = vpack.c.bf16 %v5305, %v5304
      %v5632 = vpack.c.bf16 %v5307, %v5306
      %v5633 = vpack.c.bf16 %v5309, %v5308
      %v5634 = vpack.c.bf16 %v5311, %v5310
      %v5635 = vpack.c.bf16 %v5313, %v5312
      %v5636 = vpack.c.bf16 %v5315, %v5314
      %v5637 = vpack.c.bf16 %v5317, %v5316
      %v5638 = vpack.c.bf16 %v5319, %v5318
      %v5639 = vpack.c.bf16 %v5321, %v5320
      %v5640 = vpack.c.bf16 %v5323, %v5322
      %v5641 = vpack.c.bf16 %v5325, %v5324
      %v5642 = vpack.c.bf16 %v5327, %v5326
      %v5643 = vpack.c.bf16 %v5329, %v5328
      %v5644 = vpack.c.bf16 %v5331, %v5330
      %v5645 = vpack.c.bf16 %v5333, %v5332
      %v5646 = vpack.c.bf16 %v5335, %v5334
      %v5647 = vpack.c.bf16 %v5337, %v5336
      %v5648 = vpack.c.bf16 %v5339, %v5338
      %v5649 = vpack.c.bf16 %v5341, %v5340
      %v5650 = vpack.c.bf16 %v5343, %v5342
      %v5651 = vpack.c.bf16 %v5345, %v5344
      %v5652 = vpack.c.bf16 %v5347, %v5346
      %v5653 = vpack.c.bf16 %v5349, %v5348
      %v5654 = vpack.c.bf16 %v5351, %v5350
      %v5655 = vpack.c.bf16 %v5353, %v5352
      %v5656 = vpack.c.bf16 %v5355, %v5354
      %v5657 = vpack.c.bf16 %v5357, %v5356
      %v5658 = vpack.c.bf16 %v5359, %v5358
      %v5659 = vpack.c.bf16 %v5361, %v5360
      %v5660 = vpack.c.bf16 %v5363, %v5362
      %v5661 = vpack.c.bf16 %v5365, %v5364
      %v5662 = vpack.c.bf16 %v5367, %v5366
      %v5663 = vpack.c.bf16 %v5369, %v5368
      %v5664 = vpack.c.bf16 %v5371, %v5370
      %v5665 = vpack.c.bf16 %v5373, %v5372
      %v5666 = vpack.c.bf16 %v5375, %v5374
      %v5667 = vpack.c.bf16 %v5377, %v5376
      %v5668 = vpack.c.bf16 %v5379, %v5378
      %v5669 = vpack.c.bf16 %v5381, %v5380
      %v5702 = vunpack.c.l.b16 %v5382
      %v5703 = vunpack.c.h.b16 %v5382
      %v5704 = vunpack.c.l.b16 %v5383
      %v5705 = vunpack.c.h.b16 %v5383
      %v5706 = vunpack.c.l.b16 %v5384
      %v5707 = vunpack.c.h.b16 %v5384
      %v5708 = vunpack.c.l.b16 %v5385
      %v5709 = vunpack.c.h.b16 %v5385
      %v5710 = vunpack.c.l.b16 %v5386
      %v5711 = vunpack.c.h.b16 %v5386
      %v5712 = vunpack.c.l.b16 %v5387
      %v5713 = vunpack.c.h.b16 %v5387
      %v5714 = vunpack.c.l.b16 %v5388
      %v5715 = vunpack.c.h.b16 %v5388
      %v5716 = vunpack.c.l.b16 %v5389
      %v5717 = vunpack.c.h.b16 %v5389
      %v5718 = vunpack.c.l.b16 %v5390
      %v5719 = vunpack.c.h.b16 %v5390
      %v5720 = vunpack.c.l.b16 %v5391
      %v5721 = vunpack.c.h.b16 %v5391
      %v5722 = vunpack.c.l.b16 %v5392
      %v5723 = vunpack.c.h.b16 %v5392
      %v5724 = vunpack.c.l.b16 %v5393
      %v5725 = vunpack.c.h.b16 %v5393
      %v5726 = vunpack.c.l.b16 %v5394
      %v5727 = vunpack.c.h.b16 %v5394
      %v5728 = vunpack.c.l.b16 %v5395
      %v5729 = vunpack.c.h.b16 %v5395
      %v5730 = vunpack.c.l.b16 %v5396
      %v5731 = vunpack.c.h.b16 %v5396
      %v5732 = vunpack.c.l.b16 %v5397
      %v5733 = vunpack.c.h.b16 %v5397
      %v5734 = vunpack.c.l.b16 %v5398
      %v5735 = vunpack.c.h.b16 %v5398
      %v5736 = vunpack.c.l.b16 %v5399
      %v5737 = vunpack.c.h.b16 %v5399
      %v5738 = vunpack.c.l.b16 %v5400
      %v5739 = vunpack.c.h.b16 %v5400
      %v5740 = vunpack.c.l.b16 %v5401
      %v5741 = vunpack.c.h.b16 %v5401
      %v5742 = vunpack.c.l.b16 %v5402
      %v5743 = vunpack.c.h.b16 %v5402
      %v5744 = vunpack.c.l.b16 %v5403
      %v5745 = vunpack.c.h.b16 %v5403
      %v5746 = vunpack.c.l.b16 %v5404
      %v5747 = vunpack.c.h.b16 %v5404
      %v5748 = vunpack.c.l.b16 %v5405
      %v5749 = vunpack.c.h.b16 %v5405
      %v5750 = vunpack.c.l.b16 %v5406
      %v5751 = vunpack.c.h.b16 %v5406
      %v5752 = vunpack.c.l.b16 %v5407
      %v5753 = vunpack.c.h.b16 %v5407
      %v5754 = vunpack.c.l.b16 %v5408
      %v5755 = vunpack.c.h.b16 %v5408
      %v5756 = vunpack.c.l.b16 %v5409
      %v5757 = vunpack.c.h.b16 %v5409
      %v5758 = vunpack.c.l.b16 %v5410
      %v5759 = vunpack.c.h.b16 %v5410
      %v5760 = vunpack.c.l.b16 %v5411
      %v5761 = vunpack.c.h.b16 %v5411
      %v5762 = vunpack.c.l.b16 %v5412
      %v5763 = vunpack.c.h.b16 %v5412
      %v5764 = vunpack.c.l.b16 %v5413
      %v5765 = vunpack.c.h.b16 %v5413
      %v5766 = vpack.c.b16 %v5734, %v5702
      %v5767 = vpack.c.b16 %v5735, %v5703
      %v5768 = vpack.c.b16 %v5736, %v5704
      %v5769 = vpack.c.b16 %v5737, %v5705
      %v5770 = vpack.c.b16 %v5738, %v5706
      %v5771 = vpack.c.b16 %v5739, %v5707
      %v5772 = vpack.c.b16 %v5740, %v5708
      %v5773 = vpack.c.b16 %v5741, %v5709
      %v5774 = vpack.c.b16 %v5742, %v5710
      %v5775 = vpack.c.b16 %v5743, %v5711
      %v5776 = vpack.c.b16 %v5744, %v5712
      %v5777 = vpack.c.b16 %v5745, %v5713
      %v5778 = vpack.c.b16 %v5746, %v5714
      %v5779 = vpack.c.b16 %v5747, %v5715
      %v5780 = vpack.c.b16 %v5748, %v5716
      %v5781 = vpack.c.b16 %v5749, %v5717
      %v5782 = vpack.c.b16 %v5750, %v5718
      %v5783 = vpack.c.b16 %v5751, %v5719
      %v5784 = vpack.c.b16 %v5752, %v5720
      %v5785 = vpack.c.b16 %v5753, %v5721
      %v5786 = vpack.c.b16 %v5754, %v5722
      %v5787 = vpack.c.b16 %v5755, %v5723
      %v5788 = vpack.c.b16 %v5756, %v5724
      %v5789 = vpack.c.b16 %v5757, %v5725
      %v5790 = vpack.c.b16 %v5758, %v5726
      %v5791 = vpack.c.b16 %v5759, %v5727
      %v5792 = vpack.c.b16 %v5760, %v5728
      %v5793 = vpack.c.b16 %v5761, %v5729
      %v5794 = vpack.c.b16 %v5762, %v5730
      %v5795 = vpack.c.b16 %v5763, %v5731
      %v5796 = vpack.c.b16 %v5764, %v5732
      %v5797 = vpack.c.b16 %v5765, %v5733
      %5830 = vmatprep.subr.bf16.mxu0 0
      %5831 = vmatpush1.bf16.msra.mxu0 %v5421
      %5832 = vmatprep.subr.bf16.mxu0 0
      %5833 = vmatpush1.bf16.msra.mxu0 %v5420
      %5834 = vmatprep.subr.bf16.mxu0 0
      %5835 = vmatpush1.bf16.msra.mxu0 %v5419
      %5836 = vmatprep.subr.bf16.mxu0 0
      %5837 = vmatpush1.bf16.msra.mxu0 %v5418
      %5838 = vmatprep.subr.bf16.mxu0 0
      %5839 = vmatpush1.bf16.msra.mxu0 %v5417
      %5840 = vmatprep.subr.bf16.mxu0 0
      %5841 = vmatpush1.bf16.msra.mxu0 %v5416
      %5842 = vmatprep.subr.bf16.mxu0 0
      %5843 = vmatpush1.bf16.msra.mxu0 %v5415
      %5844 = vmatprep.subr.bf16.mxu0 0
      %5845 = vmatpush1.bf16.msra.mxu0 %v5414
      %5846 = vmatprep.subr.bf16.mxu0 0
      %5847 = vmatpush2.bf16.msra.mxu0 %v5429
      %5848 = vmatprep.subr.bf16.mxu0 0
      %5849 = vmatpush2.bf16.msra.mxu0 %v5428
      %5850 = vmatprep.subr.bf16.mxu0 0
      %5851 = vmatpush2.bf16.msra.mxu0 %v5427
      %5852 = vmatprep.subr.bf16.mxu0 0
      %5853 = vmatpush2.bf16.msra.mxu0 %v5426
      %5854 = vmatprep.subr.bf16.mxu0 0
      %5855 = vmatpush2.bf16.msra.mxu0 %v5425
      %5856 = vmatprep.subr.bf16.mxu0 0
      %5857 = vmatpush2.bf16.msra.mxu0 %v5424
      %5858 = vmatprep.subr.bf16.mxu0 0
      %5859 = vmatpush2.bf16.msra.mxu0 %v5423
      %5860 = vmatprep.subr.bf16.mxu0 0
      %5861 = vmatpush2.bf16.msra.mxu0 %v5422
      %5862 = vmatprep.mubr.bf16.mxu0 %v5767
      %5863 = vmatmul.mubr.bf16.gmra.mxu0 %v5766
      %v5864 = vpop.f32.mrf.mxu0
      %v5865 = vadd.f32 0.0, %v5864
      %v5866 = vpop.f32.mrf.mxu0
      %v5867 = vpop.f32.mrf.mxu0
      %v5868 = vadd.f32 0.0, %v5867
      %v5869 = vpop.f32.mrf.mxu0
      %5870 = vdwg.mxu0
      %5871 = vmatprep.subr.bf16.mxu0 0
      %5872 = vmatpush1.bf16.msra.mxu0 %v5437
      %5873 = vmatprep.subr.bf16.mxu0 0
      %5874 = vmatpush1.bf16.msra.mxu0 %v5436
      %5875 = vmatprep.subr.bf16.mxu0 0
      %5876 = vmatpush1.bf16.msra.mxu0 %v5435
      %5877 = vmatprep.subr.bf16.mxu0 0
      %5878 = vmatpush1.bf16.msra.mxu0 %v5434
      %5879 = vmatprep.subr.bf16.mxu0 0
      %5880 = vmatpush1.bf16.msra.mxu0 %v5433
      %5881 = vmatprep.subr.bf16.mxu0 0
      %5882 = vmatpush1.bf16.msra.mxu0 %v5432
      %5883 = vmatprep.subr.bf16.mxu0 0
      %5884 = vmatpush1.bf16.msra.mxu0 %v5431
      %5885 = vmatprep.subr.bf16.mxu0 0
      %5886 = vmatpush1.bf16.msra.mxu0 %v5430
      %5887 = vmatprep.subr.bf16.mxu0 0
      %5888 = vmatpush2.bf16.msra.mxu0 %v5445
      %5889 = vmatprep.subr.bf16.mxu0 0
      %5890 = vmatpush2.bf16.msra.mxu0 %v5444
      %5891 = vmatprep.subr.bf16.mxu0 0
      %5892 = vmatpush2.bf16.msra.mxu0 %v5443
      %5893 = vmatprep.subr.bf16.mxu0 0
      %5894 = vmatpush2.bf16.msra.mxu0 %v5442
      %5895 = vmatprep.subr.bf16.mxu0 0
      %5896 = vmatpush2.bf16.msra.mxu0 %v5441
      %5897 = vmatprep.subr.bf16.mxu0 0
      %5898 = vmatpush2.bf16.msra.mxu0 %v5440
      %5899 = vmatprep.subr.bf16.mxu0 0
      %5900 = vmatpush2.bf16.msra.mxu0 %v5439
      %5901 = vmatprep.subr.bf16.mxu0 0
      %5902 = vmatpush2.bf16.msra.mxu0 %v5438
      %5903 = vmatprep.mubr.bf16.mxu0 %v5769
      %5904 = vmatmul.mubr.bf16.gmra.mxu0 %v5768
      %v5905 = vpop.f32.mrf.mxu0
      %v5906 = vadd.f32 %v5865, %v5905
      %v5907 = vpop.f32.mrf.mxu0
      %v5908 = vpop.f32.mrf.mxu0
      %v5909 = vadd.f32 %v5868, %v5908
      %v5910 = vpop.f32.mrf.mxu0
      %5911 = vdwg.mxu0
      %5912 = vmatprep.subr.bf16.mxu0 0
      %5913 = vmatpush1.bf16.msra.mxu0 %v5453
      %5914 = vmatprep.subr.bf16.mxu0 0
      %5915 = vmatpush1.bf16.msra.mxu0 %v5452
      %5916 = vmatprep.subr.bf16.mxu0 0
      %5917 = vmatpush1.bf16.msra.mxu0 %v5451
      %5918 = vmatprep.subr.bf16.mxu0 0
      %5919 = vmatpush1.bf16.msra.mxu0 %v5450
      %5920 = vmatprep.subr.bf16.mxu0 0
      %5921 = vmatpush1.bf16.msra.mxu0 %v5449
      %5922 = vmatprep.subr.bf16.mxu0 0
      %5923 = vmatpush1.bf16.msra.mxu0 %v5448
      %5924 = vmatprep.subr.bf16.mxu0 0
      %5925 = vmatpush1.bf16.msra.mxu0 %v5447
      %5926 = vmatprep.subr.bf16.mxu0 0
      %5927 = vmatpush1.bf16.msra.mxu0 %v5446
      %5928 = vmatprep.subr.bf16.mxu0 0
      %5929 = vmatpush2.bf16.msra.mxu0 %v5461
      %5930 = vmatprep.subr.bf16.mxu0 0
      %5931 = vmatpush2.bf16.msra.mxu0 %v5460
      %5932 = vmatprep.subr.bf16.mxu0 0
      %5933 = vmatpush2.bf16.msra.mxu0 %v5459
      %5934 = vmatprep.subr.bf16.mxu0 0
      %5935 = vmatpush2.bf16.msra.mxu0 %v5458
      %5936 = vmatprep.subr.bf16.mxu0 0
      %5937 = vmatpush2.bf16.msra.mxu0 %v5457
      %5938 = vmatprep.subr.bf16.mxu0 0
      %5939 = vmatpush2.bf16.msra.mxu0 %v5456
      %5940 = vmatprep.subr.bf16.mxu0 0
      %5941 = vmatpush2.bf16.msra.mxu0 %v5455
      %5942 = vmatprep.subr.bf16.mxu0 0
      %5943 = vmatpush2.bf16.msra.mxu0 %v5454
      %5944 = vmatprep.mubr.bf16.mxu0 %v5771
      %5945 = vmatmul.mubr.bf16.gmra.mxu0 %v5770
      %v5946 = vpop.f32.mrf.mxu0
      %v5947 = vadd.f32 %v5906, %v5946
      %v5948 = vpop.f32.mrf.mxu0
      %v5949 = vpop.f32.mrf.mxu0
      %v5950 = vadd.f32 %v5909, %v5949
      %v5951 = vpop.f32.mrf.mxu0
      %5952 = vdwg.mxu0
      %5953 = vmatprep.subr.bf16.mxu0 0
      %5954 = vmatpush1.bf16.msra.mxu0 %v5469
      %5955 = vmatprep.subr.bf16.mxu0 0
      %5956 = vmatpush1.bf16.msra.mxu0 %v5468
      %5957 = vmatprep.subr.bf16.mxu0 0
      %5958 = vmatpush1.bf16.msra.mxu0 %v5467
      %5959 = vmatprep.subr.bf16.mxu0 0
      %5960 = vmatpush1.bf16.msra.mxu0 %v5466
      %5961 = vmatprep.subr.bf16.mxu0 0
      %5962 = vmatpush1.bf16.msra.mxu0 %v5465
      %5963 = vmatprep.subr.bf16.mxu0 0
      %5964 = vmatpush1.bf16.msra.mxu0 %v5464
      %5965 = vmatprep.subr.bf16.mxu0 0
      %5966 = vmatpush1.bf16.msra.mxu0 %v5463
      %5967 = vmatprep.subr.bf16.mxu0 0
      %5968 = vmatpush1.bf16.msra.mxu0 %v5462
      %5969 = vmatprep.subr.bf16.mxu0 0
      %5970 = vmatpush2.bf16.msra.mxu0 %v5477
      %5971 = vmatprep.subr.bf16.mxu0 0
      %5972 = vmatpush2.bf16.msra.mxu0 %v5476
      %5973 = vmatprep.subr.bf16.mxu0 0
      %5974 = vmatpush2.bf16.msra.mxu0 %v5475
      %5975 = vmatprep.subr.bf16.mxu0 0
      %5976 = vmatpush2.bf16.msra.mxu0 %v5474
      %5977 = vmatprep.subr.bf16.mxu0 0
      %5978 = vmatpush2.bf16.msra.mxu0 %v5473
      %5979 = vmatprep.subr.bf16.mxu0 0
      %5980 = vmatpush2.bf16.msra.mxu0 %v5472
      %5981 = vmatprep.subr.bf16.mxu0 0
      %5982 = vmatpush2.bf16.msra.mxu0 %v5471
      %5983 = vmatprep.subr.bf16.mxu0 0
      %5984 = vmatpush2.bf16.msra.mxu0 %v5470
      %5985 = vmatprep.mubr.bf16.mxu0 %v5773
      %5986 = vmatmul.mubr.bf16.gmra.mxu0 %v5772
      %v5987 = vpop.f32.mrf.mxu0
      %v5988 = vadd.f32 %v5947, %v5987
      %v5989 = vpop.f32.mrf.mxu0
      %v5990 = vpop.f32.mrf.mxu0
      %v5991 = vadd.f32 %v5950, %v5990
      %v5992 = vpop.f32.mrf.mxu0
      %5993 = vdwg.mxu0
      %5994 = vmatprep.subr.bf16.mxu0 0
      %5995 = vmatpush1.bf16.msra.mxu0 %v5485
      %5996 = vmatprep.subr.bf16.mxu0 0
      %5997 = vmatpush1.bf16.msra.mxu0 %v5484
      %5998 = vmatprep.subr.bf16.mxu0 0
      %5999 = vmatpush1.bf16.msra.mxu0 %v5483
      %6000 = vmatprep.subr.bf16.mxu0 0
      %6001 = vmatpush1.bf16.msra.mxu0 %v5482
      %6002 = vmatprep.subr.bf16.mxu0 0
      %6003 = vmatpush1.bf16.msra.mxu0 %v5481
      %6004 = vmatprep.subr.bf16.mxu0 0
      %6005 = vmatpush1.bf16.msra.mxu0 %v5480
      %6006 = vmatprep.subr.bf16.mxu0 0
      %6007 = vmatpush1.bf16.msra.mxu0 %v5479
      %6008 = vmatprep.subr.bf16.mxu0 0
      %6009 = vmatpush1.bf16.msra.mxu0 %v5478
      %6010 = vmatprep.subr.bf16.mxu0 0
      %6011 = vmatpush2.bf16.msra.mxu0 %v5493
      %6012 = vmatprep.subr.bf16.mxu0 0
      %6013 = vmatpush2.bf16.msra.mxu0 %v5492
      %6014 = vmatprep.subr.bf16.mxu0 0
      %6015 = vmatpush2.bf16.msra.mxu0 %v5491
      %6016 = vmatprep.subr.bf16.mxu0 0
      %6017 = vmatpush2.bf16.msra.mxu0 %v5490
      %6018 = vmatprep.subr.bf16.mxu0 0
      %6019 = vmatpush2.bf16.msra.mxu0 %v5489
      %6020 = vmatprep.subr.bf16.mxu0 0
      %6021 = vmatpush2.bf16.msra.mxu0 %v5488
      %6022 = vmatprep.subr.bf16.mxu0 0
      %6023 = vmatpush2.bf16.msra.mxu0 %v5487
      %6024 = vmatprep.subr.bf16.mxu0 0
      %6025 = vmatpush2.bf16.msra.mxu0 %v5486
      %6026 = vmatprep.mubr.bf16.mxu0 %v5775
      %6027 = vmatmul.mubr.bf16.gmra.mxu0 %v5774
      %v6028 = vpop.f32.mrf.mxu0
      %v6029 = vadd.f32 %v5988, %v6028
      %v6030 = vpop.f32.mrf.mxu0
      %v6031 = vpop.f32.mrf.mxu0
      %v6032 = vadd.f32 %v5991, %v6031
      %v6033 = vpop.f32.mrf.mxu0
      %6034 = vdwg.mxu0
      %6035 = vmatprep.subr.bf16.mxu0 0
      %6036 = vmatpush1.bf16.msra.mxu0 %v5501
      %6037 = vmatprep.subr.bf16.mxu0 0
      %6038 = vmatpush1.bf16.msra.mxu0 %v5500
      %6039 = vmatprep.subr.bf16.mxu0 0
      %6040 = vmatpush1.bf16.msra.mxu0 %v5499
      %6041 = vmatprep.subr.bf16.mxu0 0
      %6042 = vmatpush1.bf16.msra.mxu0 %v5498
      %6043 = vmatprep.subr.bf16.mxu0 0
      %6044 = vmatpush1.bf16.msra.mxu0 %v5497
      %6045 = vmatprep.subr.bf16.mxu0 0
      %6046 = vmatpush1.bf16.msra.mxu0 %v5496
      %6047 = vmatprep.subr.bf16.mxu0 0
      %6048 = vmatpush1.bf16.msra.mxu0 %v5495
      %6049 = vmatprep.subr.bf16.mxu0 0
      %6050 = vmatpush1.bf16.msra.mxu0 %v5494
      %6051 = vmatprep.subr.bf16.mxu0 0
      %6052 = vmatpush2.bf16.msra.mxu0 %v5509
      %6053 = vmatprep.subr.bf16.mxu0 0
      %6054 = vmatpush2.bf16.msra.mxu0 %v5508
      %6055 = vmatprep.subr.bf16.mxu0 0
      %6056 = vmatpush2.bf16.msra.mxu0 %v5507
      %6057 = vmatprep.subr.bf16.mxu0 0
      %6058 = vmatpush2.bf16.msra.mxu0 %v5506
      %6059 = vmatprep.subr.bf16.mxu0 0
      %6060 = vmatpush2.bf16.msra.mxu0 %v5505
      %6061 = vmatprep.subr.bf16.mxu0 0
      %6062 = vmatpush2.bf16.msra.mxu0 %v5504
      %6063 = vmatprep.subr.bf16.mxu0 0
      %6064 = vmatpush2.bf16.msra.mxu0 %v5503
      %6065 = vmatprep.subr.bf16.mxu0 0
      %6066 = vmatpush2.bf16.msra.mxu0 %v5502
      %6067 = vmatprep.mubr.bf16.mxu0 %v5777
      %6068 = vmatmul.mubr.bf16.gmra.mxu0 %v5776
      %v6069 = vpop.f32.mrf.mxu0
      %v6070 = vadd.f32 %v6029, %v6069
      %v6071 = vpop.f32.mrf.mxu0
      %v6072 = vpop.f32.mrf.mxu0
      %v6073 = vadd.f32 %v6032, %v6072
      %v6074 = vpop.f32.mrf.mxu0
      %6075 = vdwg.mxu0
      %6076 = vmatprep.subr.bf16.mxu0 0
      %6077 = vmatpush1.bf16.msra.mxu0 %v5517
      %6078 = vmatprep.subr.bf16.mxu0 0
      %6079 = vmatpush1.bf16.msra.mxu0 %v5516
      %6080 = vmatprep.subr.bf16.mxu0 0
      %6081 = vmatpush1.bf16.msra.mxu0 %v5515
      %6082 = vmatprep.subr.bf16.mxu0 0
      %6083 = vmatpush1.bf16.msra.mxu0 %v5514
      %6084 = vmatprep.subr.bf16.mxu0 0
      %6085 = vmatpush1.bf16.msra.mxu0 %v5513
      %6086 = vmatprep.subr.bf16.mxu0 0
      %6087 = vmatpush1.bf16.msra.mxu0 %v5512
      %6088 = vmatprep.subr.bf16.mxu0 0
      %6089 = vmatpush1.bf16.msra.mxu0 %v5511
      %6090 = vmatprep.subr.bf16.mxu0 0
      %6091 = vmatpush1.bf16.msra.mxu0 %v5510
      %6092 = vmatprep.subr.bf16.mxu0 0
      %6093 = vmatpush2.bf16.msra.mxu0 %v5525
      %6094 = vmatprep.subr.bf16.mxu0 0
      %6095 = vmatpush2.bf16.msra.mxu0 %v5524
      %6096 = vmatprep.subr.bf16.mxu0 0
      %6097 = vmatpush2.bf16.msra.mxu0 %v5523
      %6098 = vmatprep.subr.bf16.mxu0 0
      %6099 = vmatpush2.bf16.msra.mxu0 %v5522
      %6100 = vmatprep.subr.bf16.mxu0 0
      %6101 = vmatpush2.bf16.msra.mxu0 %v5521
      %6102 = vmatprep.subr.bf16.mxu0 0
      %6103 = vmatpush2.bf16.msra.mxu0 %v5520
      %6104 = vmatprep.subr.bf16.mxu0 0
      %6105 = vmatpush2.bf16.msra.mxu0 %v5519
      %6106 = vmatprep.subr.bf16.mxu0 0
      %6107 = vmatpush2.bf16.msra.mxu0 %v5518
      %6108 = vmatprep.mubr.bf16.mxu0 %v5779
      %6109 = vmatmul.mubr.bf16.gmra.mxu0 %v5778
      %v6110 = vpop.f32.mrf.mxu0
      %v6111 = vadd.f32 %v6070, %v6110
      %v6112 = vpop.f32.mrf.mxu0
      %v6113 = vpop.f32.mrf.mxu0
      %v6114 = vadd.f32 %v6073, %v6113
      %v6115 = vpop.f32.mrf.mxu0
      %6116 = vdwg.mxu0
      %6117 = vmatprep.subr.bf16.mxu0 0
      %6118 = vmatpush1.bf16.msra.mxu0 %v5533
      %6119 = vmatprep.subr.bf16.mxu0 0
      %6120 = vmatpush1.bf16.msra.mxu0 %v5532
      %6121 = vmatprep.subr.bf16.mxu0 0
      %6122 = vmatpush1.bf16.msra.mxu0 %v5531
      %6123 = vmatprep.subr.bf16.mxu0 0
      %6124 = vmatpush1.bf16.msra.mxu0 %v5530
      %6125 = vmatprep.subr.bf16.mxu0 0
      %6126 = vmatpush1.bf16.msra.mxu0 %v5529
      %6127 = vmatprep.subr.bf16.mxu0 0
      %6128 = vmatpush1.bf16.msra.mxu0 %v5528
      %6129 = vmatprep.subr.bf16.mxu0 0
      %6130 = vmatpush1.bf16.msra.mxu0 %v5527
      %6131 = vmatprep.subr.bf16.mxu0 0
      %6132 = vmatpush1.bf16.msra.mxu0 %v5526
      %6133 = vmatprep.subr.bf16.mxu0 0
      %6134 = vmatpush2.bf16.msra.mxu0 %v5541
      %6135 = vmatprep.subr.bf16.mxu0 0
      %6136 = vmatpush2.bf16.msra.mxu0 %v5540
      %6137 = vmatprep.subr.bf16.mxu0 0
      %6138 = vmatpush2.bf16.msra.mxu0 %v5539
      %6139 = vmatprep.subr.bf16.mxu0 0
      %6140 = vmatpush2.bf16.msra.mxu0 %v5538
      %6141 = vmatprep.subr.bf16.mxu0 0
      %6142 = vmatpush2.bf16.msra.mxu0 %v5537
      %6143 = vmatprep.subr.bf16.mxu0 0
      %6144 = vmatpush2.bf16.msra.mxu0 %v5536
      %6145 = vmatprep.subr.bf16.mxu0 0
      %6146 = vmatpush2.bf16.msra.mxu0 %v5535
      %6147 = vmatprep.subr.bf16.mxu0 0
      %6148 = vmatpush2.bf16.msra.mxu0 %v5534
      %6149 = vmatprep.mubr.bf16.mxu0 %v5781
      %6150 = vmatmul.mubr.bf16.gmra.mxu0 %v5780
      %v6151 = vpop.f32.mrf.mxu0
      %v6152 = vadd.f32 %v6111, %v6151
      %v6153 = vpop.f32.mrf.mxu0
      %v6154 = vpop.f32.mrf.mxu0
      %v6155 = vadd.f32 %v6114, %v6154
      %v6156 = vpop.f32.mrf.mxu0
      %6157 = vdwg.mxu0
      %6158 = vmatprep.subr.bf16.mxu0 0
      %6159 = vmatpush1.bf16.msra.mxu0 %v5549
      %6160 = vmatprep.subr.bf16.mxu0 0
      %6161 = vmatpush1.bf16.msra.mxu0 %v5548
      %6162 = vmatprep.subr.bf16.mxu0 0
      %6163 = vmatpush1.bf16.msra.mxu0 %v5547
      %6164 = vmatprep.subr.bf16.mxu0 0
      %6165 = vmatpush1.bf16.msra.mxu0 %v5546
      %6166 = vmatprep.subr.bf16.mxu0 0
      %6167 = vmatpush1.bf16.msra.mxu0 %v5545
      %6168 = vmatprep.subr.bf16.mxu0 0
      %6169 = vmatpush1.bf16.msra.mxu0 %v5544
      %6170 = vmatprep.subr.bf16.mxu0 0
      %6171 = vmatpush1.bf16.msra.mxu0 %v5543
      %6172 = vmatprep.subr.bf16.mxu0 0
      %6173 = vmatpush1.bf16.msra.mxu0 %v5542
      %6174 = vmatprep.subr.bf16.mxu0 0
      %6175 = vmatpush2.bf16.msra.mxu0 %v5557
      %6176 = vmatprep.subr.bf16.mxu0 0
      %6177 = vmatpush2.bf16.msra.mxu0 %v5556
      %6178 = vmatprep.subr.bf16.mxu0 0
      %6179 = vmatpush2.bf16.msra.mxu0 %v5555
      %6180 = vmatprep.subr.bf16.mxu0 0
      %6181 = vmatpush2.bf16.msra.mxu0 %v5554
      %6182 = vmatprep.subr.bf16.mxu0 0
      %6183 = vmatpush2.bf16.msra.mxu0 %v5553
      %6184 = vmatprep.subr.bf16.mxu0 0
      %6185 = vmatpush2.bf16.msra.mxu0 %v5552
      %6186 = vmatprep.subr.bf16.mxu0 0
      %6187 = vmatpush2.bf16.msra.mxu0 %v5551
      %6188 = vmatprep.subr.bf16.mxu0 0
      %6189 = vmatpush2.bf16.msra.mxu0 %v5550
      %6190 = vmatprep.mubr.bf16.mxu0 %v5783
      %6191 = vmatmul.mubr.bf16.gmra.mxu0 %v5782
      %v6192 = vpop.f32.mrf.mxu0
      %v6193 = vadd.f32 %v6152, %v6192
      %v6194 = vpop.f32.mrf.mxu0
      %v6195 = vpop.f32.mrf.mxu0
      %v6196 = vadd.f32 %v6155, %v6195
      %v6197 = vpop.f32.mrf.mxu0
      %6198 = vdwg.mxu0
      %6199 = vmatprep.subr.bf16.mxu0 0
      %6200 = vmatpush1.bf16.msra.mxu0 %v5565
      %6201 = vmatprep.subr.bf16.mxu0 0
      %6202 = vmatpush1.bf16.msra.mxu0 %v5564
      %6203 = vmatprep.subr.bf16.mxu0 0
      %6204 = vmatpush1.bf16.msra.mxu0 %v5563
      %6205 = vmatprep.subr.bf16.mxu0 0
      %6206 = vmatpush1.bf16.msra.mxu0 %v5562
      %6207 = vmatprep.subr.bf16.mxu0 0
      %6208 = vmatpush1.bf16.msra.mxu0 %v5561
      %6209 = vmatprep.subr.bf16.mxu0 0
      %6210 = vmatpush1.bf16.msra.mxu0 %v5560
      %6211 = vmatprep.subr.bf16.mxu0 0
      %6212 = vmatpush1.bf16.msra.mxu0 %v5559
      %6213 = vmatprep.subr.bf16.mxu0 0
      %6214 = vmatpush1.bf16.msra.mxu0 %v5558
      %6215 = vmatprep.subr.bf16.mxu0 0
      %6216 = vmatpush2.bf16.msra.mxu0 %v5573
      %6217 = vmatprep.subr.bf16.mxu0 0
      %6218 = vmatpush2.bf16.msra.mxu0 %v5572
      %6219 = vmatprep.subr.bf16.mxu0 0
      %6220 = vmatpush2.bf16.msra.mxu0 %v5571
      %6221 = vmatprep.subr.bf16.mxu0 0
      %6222 = vmatpush2.bf16.msra.mxu0 %v5570
      %6223 = vmatprep.subr.bf16.mxu0 0
      %6224 = vmatpush2.bf16.msra.mxu0 %v5569
      %6225 = vmatprep.subr.bf16.mxu0 0
      %6226 = vmatpush2.bf16.msra.mxu0 %v5568
      %6227 = vmatprep.subr.bf16.mxu0 0
      %6228 = vmatpush2.bf16.msra.mxu0 %v5567
      %6229 = vmatprep.subr.bf16.mxu0 0
      %6230 = vmatpush2.bf16.msra.mxu0 %v5566
      %6231 = vmatprep.mubr.bf16.mxu0 %v5785
      %6232 = vmatmul.mubr.bf16.gmra.mxu0 %v5784
      %v6233 = vpop.f32.mrf.mxu0
      %v6234 = vadd.f32 %v6193, %v6233
      %v6235 = vpop.f32.mrf.mxu0
      %v6236 = vpop.f32.mrf.mxu0
      %v6237 = vadd.f32 %v6196, %v6236
      %v6238 = vpop.f32.mrf.mxu0
      %6239 = vdwg.mxu0
      %6240 = vmatprep.subr.bf16.mxu0 0
      %6241 = vmatpush1.bf16.msra.mxu0 %v5581
      %6242 = vmatprep.subr.bf16.mxu0 0
      %6243 = vmatpush1.bf16.msra.mxu0 %v5580
      %6244 = vmatprep.subr.bf16.mxu0 0
      %6245 = vmatpush1.bf16.msra.mxu0 %v5579
      %6246 = vmatprep.subr.bf16.mxu0 0
      %6247 = vmatpush1.bf16.msra.mxu0 %v5578
      %6248 = vmatprep.subr.bf16.mxu0 0
      %6249 = vmatpush1.bf16.msra.mxu0 %v5577
      %6250 = vmatprep.subr.bf16.mxu0 0
      %6251 = vmatpush1.bf16.msra.mxu0 %v5576
      %6252 = vmatprep.subr.bf16.mxu0 0
      %6253 = vmatpush1.bf16.msra.mxu0 %v5575
      %6254 = vmatprep.subr.bf16.mxu0 0
      %6255 = vmatpush1.bf16.msra.mxu0 %v5574
      %6256 = vmatprep.subr.bf16.mxu0 0
      %6257 = vmatpush2.bf16.msra.mxu0 %v5589
      %6258 = vmatprep.subr.bf16.mxu0 0
      %6259 = vmatpush2.bf16.msra.mxu0 %v5588
      %6260 = vmatprep.subr.bf16.mxu0 0
      %6261 = vmatpush2.bf16.msra.mxu0 %v5587
      %6262 = vmatprep.subr.bf16.mxu0 0
      %6263 = vmatpush2.bf16.msra.mxu0 %v5586
      %6264 = vmatprep.subr.bf16.mxu0 0
      %6265 = vmatpush2.bf16.msra.mxu0 %v5585
      %6266 = vmatprep.subr.bf16.mxu0 0
      %6267 = vmatpush2.bf16.msra.mxu0 %v5584
      %6268 = vmatprep.subr.bf16.mxu0 0
      %6269 = vmatpush2.bf16.msra.mxu0 %v5583
      %6270 = vmatprep.subr.bf16.mxu0 0
      %6271 = vmatpush2.bf16.msra.mxu0 %v5582
      %6272 = vmatprep.mubr.bf16.mxu0 %v5787
      %6273 = vmatmul.mubr.bf16.gmra.mxu0 %v5786
      %v6274 = vpop.f32.mrf.mxu0
      %v6275 = vadd.f32 %v6234, %v6274
      %v6276 = vpop.f32.mrf.mxu0
      %v6277 = vpop.f32.mrf.mxu0
      %v6278 = vadd.f32 %v6237, %v6277
      %v6279 = vpop.f32.mrf.mxu0
      %6280 = vdwg.mxu0
      %6281 = vmatprep.subr.bf16.mxu0 0
      %6282 = vmatpush1.bf16.msra.mxu0 %v5597
      %6283 = vmatprep.subr.bf16.mxu0 0
      %6284 = vmatpush1.bf16.msra.mxu0 %v5596
      %6285 = vmatprep.subr.bf16.mxu0 0
      %6286 = vmatpush1.bf16.msra.mxu0 %v5595
      %6287 = vmatprep.subr.bf16.mxu0 0
      %6288 = vmatpush1.bf16.msra.mxu0 %v5594
      %6289 = vmatprep.subr.bf16.mxu0 0
      %6290 = vmatpush1.bf16.msra.mxu0 %v5593
      %6291 = vmatprep.subr.bf16.mxu0 0
      %6292 = vmatpush1.bf16.msra.mxu0 %v5592
      %6293 = vmatprep.subr.bf16.mxu0 0
      %6294 = vmatpush1.bf16.msra.mxu0 %v5591
      %6295 = vmatprep.subr.bf16.mxu0 0
      %6296 = vmatpush1.bf16.msra.mxu0 %v5590
      %6297 = vmatprep.subr.bf16.mxu0 0
      %6298 = vmatpush2.bf16.msra.mxu0 %v5605
      %6299 = vmatprep.subr.bf16.mxu0 0
      %6300 = vmatpush2.bf16.msra.mxu0 %v5604
      %6301 = vmatprep.subr.bf16.mxu0 0
      %6302 = vmatpush2.bf16.msra.mxu0 %v5603
      %6303 = vmatprep.subr.bf16.mxu0 0
      %6304 = vmatpush2.bf16.msra.mxu0 %v5602
      %6305 = vmatprep.subr.bf16.mxu0 0
      %6306 = vmatpush2.bf16.msra.mxu0 %v5601
      %6307 = vmatprep.subr.bf16.mxu0 0
      %6308 = vmatpush2.bf16.msra.mxu0 %v5600
      %6309 = vmatprep.subr.bf16.mxu0 0
      %6310 = vmatpush2.bf16.msra.mxu0 %v5599
      %6311 = vmatprep.subr.bf16.mxu0 0
      %6312 = vmatpush2.bf16.msra.mxu0 %v5598
      %6313 = vmatprep.mubr.bf16.mxu0 %v5789
      %6314 = vmatmul.mubr.bf16.gmra.mxu0 %v5788
      %v6315 = vpop.f32.mrf.mxu0
      %v6316 = vadd.f32 %v6275, %v6315
      %v6317 = vpop.f32.mrf.mxu0
      %v6318 = vpop.f32.mrf.mxu0
      %v6319 = vadd.f32 %v6278, %v6318
      %v6320 = vpop.f32.mrf.mxu0
      %6321 = vdwg.mxu0
      %6322 = vmatprep.subr.bf16.mxu0 0
      %6323 = vmatpush1.bf16.msra.mxu0 %v5613
      %6324 = vmatprep.subr.bf16.mxu0 0
      %6325 = vmatpush1.bf16.msra.mxu0 %v5612
      %6326 = vmatprep.subr.bf16.mxu0 0
      %6327 = vmatpush1.bf16.msra.mxu0 %v5611
      %6328 = vmatprep.subr.bf16.mxu0 0
      %6329 = vmatpush1.bf16.msra.mxu0 %v5610
      %6330 = vmatprep.subr.bf16.mxu0 0
      %6331 = vmatpush1.bf16.msra.mxu0 %v5609
      %6332 = vmatprep.subr.bf16.mxu0 0
      %6333 = vmatpush1.bf16.msra.mxu0 %v5608
      %6334 = vmatprep.subr.bf16.mxu0 0
      %6335 = vmatpush1.bf16.msra.mxu0 %v5607
      %6336 = vmatprep.subr.bf16.mxu0 0
      %6337 = vmatpush1.bf16.msra.mxu0 %v5606
      %6338 = vmatprep.subr.bf16.mxu0 0
      %6339 = vmatpush2.bf16.msra.mxu0 %v5621
      %6340 = vmatprep.subr.bf16.mxu0 0
      %6341 = vmatpush2.bf16.msra.mxu0 %v5620
      %6342 = vmatprep.subr.bf16.mxu0 0
      %6343 = vmatpush2.bf16.msra.mxu0 %v5619
      %6344 = vmatprep.subr.bf16.mxu0 0
      %6345 = vmatpush2.bf16.msra.mxu0 %v5618
      %6346 = vmatprep.subr.bf16.mxu0 0
      %6347 = vmatpush2.bf16.msra.mxu0 %v5617
      %6348 = vmatprep.subr.bf16.mxu0 0
      %6349 = vmatpush2.bf16.msra.mxu0 %v5616
      %6350 = vmatprep.subr.bf16.mxu0 0
      %6351 = vmatpush2.bf16.msra.mxu0 %v5615
      %6352 = vmatprep.subr.bf16.mxu0 0
      %6353 = vmatpush2.bf16.msra.mxu0 %v5614
      %6354 = vmatprep.mubr.bf16.mxu0 %v5791
      %6355 = vmatmul.mubr.bf16.gmra.mxu0 %v5790
      %v6356 = vpop.f32.mrf.mxu0
      %v6357 = vadd.f32 %v6316, %v6356
      %v6358 = vpop.f32.mrf.mxu0
      %v6359 = vpop.f32.mrf.mxu0
      %v6360 = vadd.f32 %v6319, %v6359
      %v6361 = vpop.f32.mrf.mxu0
      %6362 = vdwg.mxu0
      %6363 = vmatprep.subr.bf16.mxu0 0
      %6364 = vmatpush1.bf16.msra.mxu0 %v5629
      %6365 = vmatprep.subr.bf16.mxu0 0
      %6366 = vmatpush1.bf16.msra.mxu0 %v5628
      %6367 = vmatprep.subr.bf16.mxu0 0
      %6368 = vmatpush1.bf16.msra.mxu0 %v5627
      %6369 = vmatprep.subr.bf16.mxu0 0
      %6370 = vmatpush1.bf16.msra.mxu0 %v5626
      %6371 = vmatprep.subr.bf16.mxu0 0
      %6372 = vmatpush1.bf16.msra.mxu0 %v5625
      %6373 = vmatprep.subr.bf16.mxu0 0
      %6374 = vmatpush1.bf16.msra.mxu0 %v5624
      %6375 = vmatprep.subr.bf16.mxu0 0
      %6376 = vmatpush1.bf16.msra.mxu0 %v5623
      %6377 = vmatprep.subr.bf16.mxu0 0
      %6378 = vmatpush1.bf16.msra.mxu0 %v5622
      %6379 = vmatprep.subr.bf16.mxu0 0
      %6380 = vmatpush2.bf16.msra.mxu0 %v5637
      %6381 = vmatprep.subr.bf16.mxu0 0
      %6382 = vmatpush2.bf16.msra.mxu0 %v5636
      %6383 = vmatprep.subr.bf16.mxu0 0
      %6384 = vmatpush2.bf16.msra.mxu0 %v5635
      %6385 = vmatprep.subr.bf16.mxu0 0
      %6386 = vmatpush2.bf16.msra.mxu0 %v5634
      %6387 = vmatprep.subr.bf16.mxu0 0
      %6388 = vmatpush2.bf16.msra.mxu0 %v5633
      %6389 = vmatprep.subr.bf16.mxu0 0
      %6390 = vmatpush2.bf16.msra.mxu0 %v5632
      %6391 = vmatprep.subr.bf16.mxu0 0
      %6392 = vmatpush2.bf16.msra.mxu0 %v5631
      %6393 = vmatprep.subr.bf16.mxu0 0
      %6394 = vmatpush2.bf16.msra.mxu0 %v5630
      %6395 = vmatprep.mubr.bf16.mxu0 %v5793
      %6396 = vmatmul.mubr.bf16.gmra.mxu0 %v5792
      %v6397 = vpop.f32.mrf.mxu0
      %v6398 = vadd.f32 %v6357, %v6397
      %v6399 = vpop.f32.mrf.mxu0
      %v6400 = vpop.f32.mrf.mxu0
      %v6401 = vadd.f32 %v6360, %v6400
      %v6402 = vpop.f32.mrf.mxu0
      %6403 = vdwg.mxu0
      %6404 = vmatprep.subr.bf16.mxu0 0
      %6405 = vmatpush1.bf16.msra.mxu0 %v5645
      %6406 = vmatprep.subr.bf16.mxu0 0
      %6407 = vmatpush1.bf16.msra.mxu0 %v5644
      %6408 = vmatprep.subr.bf16.mxu0 0
      %6409 = vmatpush1.bf16.msra.mxu0 %v5643
      %6410 = vmatprep.subr.bf16.mxu0 0
      %6411 = vmatpush1.bf16.msra.mxu0 %v5642
      %6412 = vmatprep.subr.bf16.mxu0 0
      %6413 = vmatpush1.bf16.msra.mxu0 %v5641
      %6414 = vmatprep.subr.bf16.mxu0 0
      %6415 = vmatpush1.bf16.msra.mxu0 %v5640
      %6416 = vmatprep.subr.bf16.mxu0 0
      %6417 = vmatpush1.bf16.msra.mxu0 %v5639
      %6418 = vmatprep.subr.bf16.mxu0 0
      %6419 = vmatpush1.bf16.msra.mxu0 %v5638
      %6420 = vmatprep.subr.bf16.mxu0 0
      %6421 = vmatpush2.bf16.msra.mxu0 %v5653
      %6422 = vmatprep.subr.bf16.mxu0 0
      %6423 = vmatpush2.bf16.msra.mxu0 %v5652
      %6424 = vmatprep.subr.bf16.mxu0 0
      %6425 = vmatpush2.bf16.msra.mxu0 %v5651
      %6426 = vmatprep.subr.bf16.mxu0 0
      %6427 = vmatpush2.bf16.msra.mxu0 %v5650
      %6428 = vmatprep.subr.bf16.mxu0 0
      %6429 = vmatpush2.bf16.msra.mxu0 %v5649
      %6430 = vmatprep.subr.bf16.mxu0 0
      %6431 = vmatpush2.bf16.msra.mxu0 %v5648
      %6432 = vmatprep.subr.bf16.mxu0 0
      %6433 = vmatpush2.bf16.msra.mxu0 %v5647
      %6434 = vmatprep.subr.bf16.mxu0 0
      %6435 = vmatpush2.bf16.msra.mxu0 %v5646
      %6436 = vmatprep.mubr.bf16.mxu0 %v5795
      %6437 = vmatmul.mubr.bf16.gmra.mxu0 %v5794
      %v6438 = vpop.f32.mrf.mxu0
      %v6439 = vadd.f32 %v6398, %v6438
      %v6440 = vpop.f32.mrf.mxu0
      %v6441 = vpop.f32.mrf.mxu0
      %v6442 = vadd.f32 %v6401, %v6441
      %v6443 = vpop.f32.mrf.mxu0
      %6444 = vdwg.mxu0
      %6445 = vmatprep.subr.bf16.mxu0 0
      %6446 = vmatpush1.bf16.msra.mxu0 %v5661
      %6447 = vmatprep.subr.bf16.mxu0 0
      %6448 = vmatpush1.bf16.msra.mxu0 %v5660
      %6449 = vmatprep.subr.bf16.mxu0 0
      %6450 = vmatpush1.bf16.msra.mxu0 %v5659
      %6451 = vmatprep.subr.bf16.mxu0 0
      %6452 = vmatpush1.bf16.msra.mxu0 %v5658
      %6453 = vmatprep.subr.bf16.mxu0 0
      %6454 = vmatpush1.bf16.msra.mxu0 %v5657
      %6455 = vmatprep.subr.bf16.mxu0 0
      %6456 = vmatpush1.bf16.msra.mxu0 %v5656
      %6457 = vmatprep.subr.bf16.mxu0 0
      %6458 = vmatpush1.bf16.msra.mxu0 %v5655
      %6459 = vmatprep.subr.bf16.mxu0 0
      %6460 = vmatpush1.bf16.msra.mxu0 %v5654
      %6461 = vmatprep.subr.bf16.mxu0 0
      %6462 = vmatpush2.bf16.msra.mxu0 %v5669
      %6463 = vmatprep.subr.bf16.mxu0 0
      %6464 = vmatpush2.bf16.msra.mxu0 %v5668
      %6465 = vmatprep.subr.bf16.mxu0 0
      %6466 = vmatpush2.bf16.msra.mxu0 %v5667
      %6467 = vmatprep.subr.bf16.mxu0 0
      %6468 = vmatpush2.bf16.msra.mxu0 %v5666
      %6469 = vmatprep.subr.bf16.mxu0 0
      %6470 = vmatpush2.bf16.msra.mxu0 %v5665
      %6471 = vmatprep.subr.bf16.mxu0 0
      %6472 = vmatpush2.bf16.msra.mxu0 %v5664
      %6473 = vmatprep.subr.bf16.mxu0 0
      %6474 = vmatpush2.bf16.msra.mxu0 %v5663
      %6475 = vmatprep.subr.bf16.mxu0 0
      %6476 = vmatpush2.bf16.msra.mxu0 %v5662
      %6477 = vmatprep.mubr.bf16.mxu0 %v5797
      %6478 = vmatmul.mubr.bf16.gmra.mxu0 %v5796
      %v6479 = vpop.f32.mrf.mxu0
      %v6480 = vadd.f32 %v6439, %v6479
      %v6481 = vpop.f32.mrf.mxu0
      %v6482 = vpop.f32.mrf.mxu0
      %v6483 = vadd.f32 %v6442, %v6482
      %v6484 = vpop.f32.mrf.mxu0
      %6485 = vdwg.mxu0
      %vm6486 = vcmask 261120
      %6487 = vst.msk [vmem:[%s197] sm:$0xff] %vm6486, %v6480
      %6488 = vst.msk [vmem:[%s197 + $0x8] sm:$0xff] %vm6486, %v6483
      %p6489 = scmp.lt.s32.totalorder %s15, 1
      %s6490 = scalar_select %p6489, %s15, 1
      %s6491 = smul.addr %s6490, 2
      %s6492 = smul.addr %s6491, 8
      %s6493 = scalar_lea.vmem %s4, %s6492
      // Predicated region
      $region37: #{faster_rcnn_forward.3} parent=35 // pred_check
        %p6494 = pneg %p122
      $region38: #{faster_rcnn_forward.3} parent=35 // pred_check_branch
        %6496 = sbr.rel (%p6494) target = $region40
      $region39: #{faster_rcnn_forward.3} parent=35 // pred_region
        _
      $region40: #{faster_rcnn_forward.3} parent=35 // pred_fallthru
        _
    $region36: #{faster_rcnn_forward.3} parent=5 // pred_fallthru
      _
    %p6497 = scmp.le.s32.totalorder 2, %s10
    // Predicated region
    $region41: #{faster_rcnn_forward.3} parent=5 // pred_check
      %p6498 = pneg %p6497
    $region42: #{faster_rcnn_forward.3} parent=5 // pred_check_branch
      %6500 = sbr.rel (%p6498) target = $region44
    $region43: #{faster_rcnn_forward.3} parent=5 // pred_region
      %s6501 = ssub.s32 %s10, 2
      // Predicated region
      $region45: #{faster_rcnn_forward.3} parent=43 // pred_check
        %p6502 = pneg %p128
      $region46: #{faster_rcnn_forward.3} parent=43 // pred_check_branch
        %6504 = sbr.rel (%p6502) target = $region48
      $region47: #{faster_rcnn_forward.3} parent=43 // pred_region
        %p6505 = scmp.lt.s32.totalorder %s16, 1
        %s6506 = scalar_select %p6505, %s16, 1
        %s6507 = smul.addr %s6506, 2
        %s6508 = smul.addr %s6507, 8
        %s6509 = scalar_lea.vmem %s4, %s6508
      $region48: #{faster_rcnn_forward.3} parent=43 // pred_fallthru
        _
    $region44: #{faster_rcnn_forward.3} parent=5 // pred_fallthru
      _
  $region6: #{faster_rcnn_forward.3} parent=0 // loop_footer
    %s14 = sadd.s32 1, %s10
  $region7: #{faster_rcnn_forward.3} parent=0 // loop_footer_branch
    %9 = sbr.rel target = $region3
  $region8: #{faster_rcnn_forward.3} parent=0 // loop_exit
    _

// kernel: faster_rcnn_forward.5
$region0: #{faster_rcnn_forward.5}
  #allocation0 [shape = 'u32[]', space=smem, size = 0x4, offset = 0x4, fixed_abs, tag = 'smem constant byte address 0x4 - core index']
  #allocation1 [shape = 'u32[144,128]{1,0:T(1,128)}', space=vmem, size = 0x12000, scoped, tag = 'internal scratch']
  %s0 = inlined_call_operand.vmem [shape: bf16[16,512], index: 0, kind: input, shape index: {}]
  %s1 = inlined_call_operand.vmem [shape: bf16[512,64], index: 1, kind: input, shape index: {}]
  %s2 = inlined_call_operand.vmem [shape: f32[1,64], index: 2, kind: input, shape index: {}]
  %s3 = inlined_call_operand.vmem [shape: bf16[64,64], index: 3, kind: input, shape index: {}]
  %s4 = inlined_call_operand.vmem [shape: f32[1,64], index: 4, kind: input, shape index: {}]
  %s5 = inlined_call_operand.vmem [shape: bf16[64,128], index: 5, kind: input, shape index: {}]
  %s6 = inlined_call_operand.vmem [shape: f32[1,128], index: 6, kind: input, shape index: {}]
  %s7 = inlined_call_operand.vmem [shape: f32[16,128], index: 7, kind: output, shape index: {}]
  %s8 = sld [smem:[#allocation0]]
  $region38: #{faster_rcnn_forward.5} parent=0
    _
  %s10 = ssub.s32 1, %s8
  %s11 = scalar_select 0, %s10, %s8
  // Predicated region
  $region2: #{faster_rcnn_forward.5} parent=0 // pred_check
    _
  $region3: #{faster_rcnn_forward.5} parent=0 // pred_check_branch
    %13 = sbr.rel (0) target = $region5
  $region4: #{faster_rcnn_forward.5} parent=0 // pred_region
    _
  $region5: #{faster_rcnn_forward.5} parent=0 // pred_fallthru
    _
  // Predicated region
  $region6: #{faster_rcnn_forward.5} parent=0 // pred_check
    _
  $region7: #{faster_rcnn_forward.5} parent=0 // pred_check_branch
    %15 = sbr.rel (0) target = $region9
  $region8: #{faster_rcnn_forward.5} parent=0 // pred_region
    _
  $region9: #{faster_rcnn_forward.5} parent=0 // pred_fallthru
    _
  // Predicated region
  $region10: #{faster_rcnn_forward.5} parent=0 // pred_check
    _
  $region11: #{faster_rcnn_forward.5} parent=0 // pred_check_branch
    %17 = sbr.rel (0) target = $region13
  $region12: #{faster_rcnn_forward.5} parent=0 // pred_region
    _
  $region13: #{faster_rcnn_forward.5} parent=0 // pred_fallthru
    _
  // Predicated region
  $region14: #{faster_rcnn_forward.5} parent=0 // pred_check
    _
  $region15: #{faster_rcnn_forward.5} parent=0 // pred_check_branch
    %19 = sbr.rel (0) target = $region17
  $region16: #{faster_rcnn_forward.5} parent=0 // pred_region
    _
  $region17: #{faster_rcnn_forward.5} parent=0 // pred_fallthru
    _
  // Predicated region
  $region18: #{faster_rcnn_forward.5} parent=0 // pred_check
    _
  $region19: #{faster_rcnn_forward.5} parent=0 // pred_check_branch
    %21 = sbr.rel (0) target = $region21
  $region20: #{faster_rcnn_forward.5} parent=0 // pred_region
    _
  $region21: #{faster_rcnn_forward.5} parent=0 // pred_fallthru
    _
  // Predicated region
  $region22: #{faster_rcnn_forward.5} parent=0 // pred_check
    _
  $region23: #{faster_rcnn_forward.5} parent=0 // pred_check_branch
    %23 = sbr.rel (0) target = $region25
  $region24: #{faster_rcnn_forward.5} parent=0 // pred_region
    _
  $region25: #{faster_rcnn_forward.5} parent=0 // pred_fallthru
    _
  // Predicated region
  $region26: #{faster_rcnn_forward.5} parent=0 // pred_check
    _
  $region27: #{faster_rcnn_forward.5} parent=0 // pred_check_branch
    %25 = sbr.rel (0) target = $region29
  $region28: #{faster_rcnn_forward.5} parent=0 // pred_region
    _
  $region29: #{faster_rcnn_forward.5} parent=0 // pred_fallthru
    _
  %v27 = vld [vmem:[%s0] sm:$0xff]
  %v28 = vld [vmem:[%s0 + $0x8] sm:$0xff]
  %v29 = vld [vmem:[%s0 + $0x10] sm:$0xff]
  %v30 = vld [vmem:[%s0 + $0x18] sm:$0xff]
  %v31 = vld [vmem:[%s1] sm:$0xf]
  %v32 = vld [vmem:[%s1 + $0x4] sm:$0xf]
  %v33 = vld [vmem:[%s1 + $0x8] sm:$0xf]
  %v34 = vld [vmem:[%s1 + $0xc] sm:$0xf]
  %v35 = vld [vmem:[%s1 + $0x10] sm:$0xf]
  %v36 = vld [vmem:[%s1 + $0x14] sm:$0xf]
  %v37 = vld [vmem:[%s1 + $0x18] sm:$0xf]
  %v38 = vld [vmem:[%s1 + $0x1c] sm:$0xf]
  %v39 = vld [vmem:[%s1 + $0x20] sm:$0xf]
  %v40 = vld [vmem:[%s1 + $0x24] sm:$0xf]
  %v41 = vld [vmem:[%s1 + $0x28] sm:$0xf]
  %v42 = vld [vmem:[%s1 + $0x2c] sm:$0xf]
  %v43 = vld [vmem:[%s1 + $0x30] sm:$0xf]
  %v44 = vld [vmem:[%s1 + $0x34] sm:$0xf]
  %v45 = vld [vmem:[%s1 + $0x38] sm:$0xf]
  %v46 = vld [vmem:[%s1 + $0x3c] sm:$0xf]
  %v47 = vld [vmem:[%s1 + $0x40] sm:$0xf]
  %v48 = vld [vmem:[%s1 + $0x44] sm:$0xf]
  %v49 = vld [vmem:[%s1 + $0x48] sm:$0xf]
  %v50 = vld [vmem:[%s1 + $0x4c] sm:$0xf]
  %v51 = vld [vmem:[%s1 + $0x50] sm:$0xf]
  %v52 = vld [vmem:[%s1 + $0x54] sm:$0xf]
  %v53 = vld [vmem:[%s1 + $0x58] sm:$0xf]
  %v54 = vld [vmem:[%s1 + $0x5c] sm:$0xf]
  %v55 = vld [vmem:[%s1 + $0x60] sm:$0xf]
  %v56 = vld [vmem:[%s1 + $0x64] sm:$0xf]
  %v57 = vld [vmem:[%s1 + $0x68] sm:$0xf]
  %v58 = vld [vmem:[%s1 + $0x6c] sm:$0xf]
  %v59 = vld [vmem:[%s1 + $0x70] sm:$0xf]
  %v60 = vld [vmem:[%s1 + $0x74] sm:$0xf]
  %v61 = vld [vmem:[%s1 + $0x78] sm:$0xf]
  %v62 = vld [vmem:[%s1 + $0x7c] sm:$0xf]
  %v63 = vld [vmem:[%s1 + $0x80] sm:$0xf]
  %v64 = vld [vmem:[%s1 + $0x84] sm:$0xf]
  %v65 = vld [vmem:[%s1 + $0x88] sm:$0xf]
  %v66 = vld [vmem:[%s1 + $0x8c] sm:$0xf]
  %v67 = vld [vmem:[%s1 + $0x90] sm:$0xf]
  %v68 = vld [vmem:[%s1 + $0x94] sm:$0xf]
  %v69 = vld [vmem:[%s1 + $0x98] sm:$0xf]
  %v70 = vld [vmem:[%s1 + $0x9c] sm:$0xf]
  %v71 = vld [vmem:[%s1 + $0xa0] sm:$0xf]
  %v72 = vld [vmem:[%s1 + $0xa4] sm:$0xf]
  %v73 = vld [vmem:[%s1 + $0xa8] sm:$0xf]
  %v74 = vld [vmem:[%s1 + $0xac] sm:$0xf]
  %v75 = vld [vmem:[%s1 + $0xb0] sm:$0xf]
  %v76 = vld [vmem:[%s1 + $0xb4] sm:$0xf]
  %v77 = vld [vmem:[%s1 + $0xb8] sm:$0xf]
  %v78 = vld [vmem:[%s1 + $0xbc] sm:$0xf]
  %v79 = vld [vmem:[%s1 + $0xc0] sm:$0xf]
  %v80 = vld [vmem:[%s1 + $0xc4] sm:$0xf]
  %v81 = vld [vmem:[%s1 + $0xc8] sm:$0xf]
  %v82 = vld [vmem:[%s1 + $0xcc] sm:$0xf]
  %v83 = vld [vmem:[%s1 + $0xd0] sm:$0xf]
  %v84 = vld [vmem:[%s1 + $0xd4] sm:$0xf]
  %v85 = vld [vmem:[%s1 + $0xd8] sm:$0xf]
  %v86 = vld [vmem:[%s1 + $0xdc] sm:$0xf]
  %v87 = vld [vmem:[%s1 + $0xe0] sm:$0xf]
  %v88 = vld [vmem:[%s1 + $0xe4] sm:$0xf]
  %v89 = vld [vmem:[%s1 + $0xe8] sm:$0xf]
  %v90 = vld [vmem:[%s1 + $0xec] sm:$0xf]
  %v91 = vld [vmem:[%s1 + $0xf0] sm:$0xf]
  %v92 = vld [vmem:[%s1 + $0xf4] sm:$0xf]
  %v93 = vld [vmem:[%s1 + $0xf8] sm:$0xf]
  %v94 = vld [vmem:[%s1 + $0xfc] sm:$0xf]
  %v95 = vld [vmem:[%s2] sm:$0x1]
  %v97 = vlaneseq
  %v98 = vshrl.u32 %v97, 7
  %v99 = vsub.s32 0, %v98
  %v100 = vrot.slane %v95, %v99
  %v106 = vunpack.c.l.b16 %v27
  %v107 = vunpack.c.h.b16 %v27
  %v108 = vunpack.c.l.b16 %v28
  %v109 = vunpack.c.h.b16 %v28
  %v110 = vunpack.c.l.b16 %v29
  %v111 = vunpack.c.h.b16 %v29
  %v112 = vunpack.c.l.b16 %v30
  %v113 = vunpack.c.h.b16 %v30
  %v114 = vpack.c.b16 %v110, %v106
  %v115 = vpack.c.b16 %v111, %v107
  %v116 = vpack.c.b16 %v112, %v108
  %v117 = vpack.c.b16 %v113, %v109
  %v186 = vunpack.c.l.b16 %v31
  %v187 = vunpack.c.l.b16 %v32
  %v188 = vunpack.c.l.b16 %v33
  %v189 = vunpack.c.l.b16 %v34
  %v190 = vunpack.c.l.b16 %v35
  %v191 = vunpack.c.l.b16 %v36
  %v192 = vunpack.c.l.b16 %v37
  %v193 = vunpack.c.l.b16 %v38
  %v194 = vunpack.c.l.b16 %v39
  %v195 = vunpack.c.l.b16 %v40
  %v196 = vunpack.c.l.b16 %v41
  %v197 = vunpack.c.l.b16 %v42
  %v198 = vunpack.c.l.b16 %v43
  %v199 = vunpack.c.l.b16 %v44
  %v200 = vunpack.c.l.b16 %v45
  %v201 = vunpack.c.l.b16 %v46
  %v202 = vunpack.c.l.b16 %v47
  %v203 = vunpack.c.l.b16 %v48
  %v204 = vunpack.c.l.b16 %v49
  %v205 = vunpack.c.l.b16 %v50
  %v206 = vunpack.c.l.b16 %v51
  %v207 = vunpack.c.l.b16 %v52
  %v208 = vunpack.c.l.b16 %v53
  %v209 = vunpack.c.l.b16 %v54
  %v210 = vunpack.c.l.b16 %v55
  %v211 = vunpack.c.l.b16 %v56
  %v212 = vunpack.c.l.b16 %v57
  %v213 = vunpack.c.l.b16 %v58
  %v214 = vunpack.c.l.b16 %v59
  %v215 = vunpack.c.l.b16 %v60
  %v216 = vunpack.c.l.b16 %v61
  %v217 = vunpack.c.l.b16 %v62
  %v218 = vunpack.c.l.b16 %v63
  %v219 = vunpack.c.l.b16 %v64
  %v220 = vunpack.c.l.b16 %v65
  %v221 = vunpack.c.l.b16 %v66
  %v222 = vunpack.c.l.b16 %v67
  %v223 = vunpack.c.l.b16 %v68
  %v224 = vunpack.c.l.b16 %v69
  %v225 = vunpack.c.l.b16 %v70
  %v226 = vunpack.c.l.b16 %v71
  %v227 = vunpack.c.l.b16 %v72
  %v228 = vunpack.c.l.b16 %v73
  %v229 = vunpack.c.l.b16 %v74
  %v230 = vunpack.c.l.b16 %v75
  %v231 = vunpack.c.l.b16 %v76
  %v232 = vunpack.c.l.b16 %v77
  %v233 = vunpack.c.l.b16 %v78
  %v234 = vunpack.c.l.b16 %v79
  %v235 = vunpack.c.l.b16 %v80
  %v236 = vunpack.c.l.b16 %v81
  %v237 = vunpack.c.l.b16 %v82
  %v238 = vunpack.c.l.b16 %v83
  %v239 = vunpack.c.l.b16 %v84
  %v240 = vunpack.c.l.b16 %v85
  %v241 = vunpack.c.l.b16 %v86
  %v242 = vunpack.c.l.b16 %v87
  %v243 = vunpack.c.l.b16 %v88
  %v244 = vunpack.c.l.b16 %v89
  %v245 = vunpack.c.l.b16 %v90
  %v246 = vunpack.c.l.b16 %v91
  %v247 = vunpack.c.l.b16 %v92
  %v248 = vunpack.c.l.b16 %v93
  %v249 = vunpack.c.l.b16 %v94
  %v250 = vpack.c.b16 %v187, %v186
  %v251 = vpack.c.b16 %v189, %v188
  %v252 = vpack.c.b16 %v191, %v190
  %v253 = vpack.c.b16 %v193, %v192
  %v254 = vpack.c.b16 %v195, %v194
  %v255 = vpack.c.b16 %v197, %v196
  %v256 = vpack.c.b16 %v199, %v198
  %v257 = vpack.c.b16 %v201, %v200
  %v258 = vpack.c.b16 %v203, %v202
  %v259 = vpack.c.b16 %v205, %v204
  %v260 = vpack.c.b16 %v207, %v206
  %v261 = vpack.c.b16 %v209, %v208
  %v262 = vpack.c.b16 %v211, %v210
  %v263 = vpack.c.b16 %v213, %v212
  %v264 = vpack.c.b16 %v215, %v214
  %v265 = vpack.c.b16 %v217, %v216
  %v266 = vpack.c.b16 %v219, %v218
  %v267 = vpack.c.b16 %v221, %v220
  %v268 = vpack.c.b16 %v223, %v222
  %v269 = vpack.c.b16 %v225, %v224
  %v270 = vpack.c.b16 %v227, %v226
  %v271 = vpack.c.b16 %v229, %v228
  %v272 = vpack.c.b16 %v231, %v230
  %v273 = vpack.c.b16 %v233, %v232
  %v274 = vpack.c.b16 %v235, %v234
  %v275 = vpack.c.b16 %v237, %v236
  %v276 = vpack.c.b16 %v239, %v238
  %v277 = vpack.c.b16 %v241, %v240
  %v278 = vpack.c.b16 %v243, %v242
  %v279 = vpack.c.b16 %v245, %v244
  %v280 = vpack.c.b16 %v247, %v246
  %v281 = vpack.c.b16 %v249, %v248
  %314 = vmatprep.subr.bf16.mxu0 0
  %315 = vmatpush1.bf16.msra.mxu0 %v257
  %316 = vmatprep.subr.bf16.mxu0 0
  %317 = vmatpush1.bf16.msra.mxu0 %v256
  %318 = vmatprep.subr.bf16.mxu0 0
  %319 = vmatpush1.bf16.msra.mxu0 %v255
  %320 = vmatprep.subr.bf16.mxu0 0
  %321 = vmatpush1.bf16.msra.mxu0 %v254
  %322 = vmatprep.subr.bf16.mxu0 0
  %323 = vmatpush1.bf16.msra.mxu0 %v253
  %324 = vmatprep.subr.bf16.mxu0 0
  %325 = vmatpush1.bf16.msra.mxu0 %v252
  %326 = vmatprep.subr.bf16.mxu0 0
  %327 = vmatpush1.bf16.msra.mxu0 %v251
  %328 = vmatprep.subr.bf16.mxu0 0
  %329 = vmatpush1.bf16.msra.mxu0 %v250
  %330 = vmatprep.subr.bf16.mxu0 0
  %331 = vmatpush2.bf16.msra.mxu0 %v265
  %332 = vmatprep.subr.bf16.mxu0 0
  %333 = vmatpush2.bf16.msra.mxu0 %v264
  %334 = vmatprep.subr.bf16.mxu0 0
  %335 = vmatpush2.bf16.msra.mxu0 %v263
  %336 = vmatprep.subr.bf16.mxu0 0
  %337 = vmatpush2.bf16.msra.mxu0 %v262
  %338 = vmatprep.subr.bf16.mxu0 0
  %339 = vmatpush2.bf16.msra.mxu0 %v261
  %340 = vmatprep.subr.bf16.mxu0 0
  %341 = vmatpush2.bf16.msra.mxu0 %v260
  %342 = vmatprep.subr.bf16.mxu0 0
  %343 = vmatpush2.bf16.msra.mxu0 %v259
  %344 = vmatprep.subr.bf16.mxu0 0
  %345 = vmatpush2.bf16.msra.mxu0 %v258
  %346 = vmatprep.mubr.bf16.mxu0 %v115
  %347 = vmatmul.mubr.bf16.gmra.mxu0 %v114
  %v348 = vpop.f32.mrf.mxu0
  %v349 = vadd.f32 %v100, %v348
  %v350 = vpop.f32.mrf.mxu0
  %v351 = vpop.f32.mrf.mxu0
  %v352 = vadd.f32 %v100, %v351
  %v353 = vpop.f32.mrf.mxu0
  %354 = vdwg.mxu0
  %355 = vmatprep.subr.bf16.mxu0 0
  %356 = vmatpush1.bf16.msra.mxu0 %v273
  %357 = vmatprep.subr.bf16.mxu0 0
  %358 = vmatpush1.bf16.msra.mxu0 %v272
  %359 = vmatprep.subr.bf16.mxu0 0
  %360 = vmatpush1.bf16.msra.mxu0 %v271
  %361 = vmatprep.subr.bf16.mxu0 0
  %362 = vmatpush1.bf16.msra.mxu0 %v270
  %363 = vmatprep.subr.bf16.mxu0 0
  %364 = vmatpush1.bf16.msra.mxu0 %v269
  %365 = vmatprep.subr.bf16.mxu0 0
  %366 = vmatpush1.bf16.msra.mxu0 %v268
  %367 = vmatprep.subr.bf16.mxu0 0
  %368 = vmatpush1.bf16.msra.mxu0 %v267
  %369 = vmatprep.subr.bf16.mxu0 0
  %370 = vmatpush1.bf16.msra.mxu0 %v266
  %371 = vmatprep.subr.bf16.mxu0 0
  %372 = vmatpush2.bf16.msra.mxu0 %v281
  %373 = vmatprep.subr.bf16.mxu0 0
  %374 = vmatpush2.bf16.msra.mxu0 %v280
  %375 = vmatprep.subr.bf16.mxu0 0
  %376 = vmatpush2.bf16.msra.mxu0 %v279
  %377 = vmatprep.subr.bf16.mxu0 0
  %378 = vmatpush2.bf16.msra.mxu0 %v278
  %379 = vmatprep.subr.bf16.mxu0 0
  %380 = vmatpush2.bf16.msra.mxu0 %v277
  %381 = vmatprep.subr.bf16.mxu0 0
  %382 = vmatpush2.bf16.msra.mxu0 %v276
  %383 = vmatprep.subr.bf16.mxu0 0
  %384 = vmatpush2.bf16.msra.mxu0 %v275
  %385 = vmatprep.subr.bf16.mxu0 0
  %386 = vmatpush2.bf16.msra.mxu0 %v274
  %387 = vmatprep.mubr.bf16.mxu0 %v117
  %388 = vmatmul.mubr.bf16.gmra.mxu0 %v116
  %v389 = vpop.f32.mrf.mxu0
  %v390 = vadd.f32 %v349, %v389
  %v391 = vpop.f32.mrf.mxu0
  %v392 = vpop.f32.mrf.mxu0
  %v393 = vadd.f32 %v352, %v392
  %v394 = vpop.f32.mrf.mxu0
  %395 = vdwg.mxu0
  %v396 = vmax.f32 %v390, 0.0
  %v397 = vmax.f32 %v393, 0.0
  %v398 = vpack.c.bf16 %v397, %v396
  %v399 = vld [vmem:[%s3] sm:$0xf]
  %v400 = vld [vmem:[%s3 + $0x4] sm:$0xf]
  %v401 = vld [vmem:[%s3 + $0x8] sm:$0xf]
  %v402 = vld [vmem:[%s3 + $0xc] sm:$0xf]
  %v403 = vld [vmem:[%s3 + $0x10] sm:$0xf]
  %v404 = vld [vmem:[%s3 + $0x14] sm:$0xf]
  %v405 = vld [vmem:[%s3 + $0x18] sm:$0xf]
  %v406 = vld [vmem:[%s3 + $0x1c] sm:$0xf]
  %v407 = vld [vmem:[%s4] sm:$0x1]
  %v409 = vlaneseq
  %v410 = vshrl.u32 %v409, 7
  %v411 = vsub.s32 0, %v410
  %v412 = vrot.slane %v407, %v411
  %v422 = vunpack.c.l.b16 %v399
  %v423 = vunpack.c.l.b16 %v400
  %v424 = vunpack.c.l.b16 %v401
  %v425 = vunpack.c.l.b16 %v402
  %v426 = vunpack.c.l.b16 %v403
  %v427 = vunpack.c.l.b16 %v404
  %v428 = vunpack.c.l.b16 %v405
  %v429 = vunpack.c.l.b16 %v406
  %v430 = vpack.c.b16 %v423, %v422
  %v431 = vpack.c.b16 %v425, %v424
  %v432 = vpack.c.b16 %v427, %v426
  %v433 = vpack.c.b16 %v429, %v428
  %vm438 = vcmask 523264
  %v440 = vsel %vm438, %v398, 0
  %442 = vmatprep.subr.bf16.mxu0 0
  %443 = vmatpush1.bf16.msra.mxu0 0
  %444 = vmatprep.subr.bf16.mxu0 0
  %445 = vmatpush1.bf16.msra.mxu0 0
  %446 = vmatprep.subr.bf16.mxu0 0
  %447 = vmatpush1.bf16.msra.mxu0 0
  %448 = vmatprep.subr.bf16.mxu0 0
  %449 = vmatpush1.bf16.msra.mxu0 0
  %450 = vmatprep.subr.bf16.mxu0 0
  %451 = vmatpush1.bf16.msra.mxu0 %v433
  %452 = vmatprep.subr.bf16.mxu0 0
  %453 = vmatpush1.bf16.msra.mxu0 %v432
  %454 = vmatprep.subr.bf16.mxu0 0
  %455 = vmatpush1.bf16.msra.mxu0 %v431
  %456 = vmatprep.subr.bf16.mxu0 0
  %457 = vmatpush1.bf16.msra.mxu0 %v430
  %458 = vmatprep.subr.bf16.mxu0 0
  %459 = vmatpush2.bf16.msra.mxu0 0
  %460 = vmatprep.subr.bf16.mxu0 0
  %461 = vmatpush2.bf16.msra.mxu0 0
  %462 = vmatprep.subr.bf16.mxu0 0
  %463 = vmatpush2.bf16.msra.mxu0 0
  %464 = vmatprep.subr.bf16.mxu0 0
  %465 = vmatpush2.bf16.msra.mxu0 0
  %466 = vmatprep.subr.bf16.mxu0 0
  %467 = vmatpush2.bf16.msra.mxu0 0
  %468 = vmatprep.subr.bf16.mxu0 0
  %469 = vmatpush2.bf16.msra.mxu0 0
  %470 = vmatprep.subr.bf16.mxu0 0
  %471 = vmatpush2.bf16.msra.mxu0 0
  %472 = vmatprep.subr.bf16.mxu0 0
  %473 = vmatpush2.bf16.msra.mxu0 0
  %474 = vmatprep.mubr.bf16.mxu0 0
  %475 = vmatmul.mubr.bf16.gmra.mxu0 %v440
  %v476 = vpop.f32.mrf.mxu0
  %v477 = vadd.f32 %v412, %v476
  %v478 = vpop.f32.mrf.mxu0
  %v479 = vpop.f32.mrf.mxu0
  %v480 = vadd.f32 %v412, %v479
  %v481 = vpop.f32.mrf.mxu0
  %482 = vdwg.mxu0
  %v483 = vmax.f32 %v477, 0.0
  %v484 = vmax.f32 %v480, 0.0
  %v485 = vpack.c.bf16 %v484, %v483
  %v486 = vld [vmem:[%s5] sm:$0xf]
  %v487 = vld [vmem:[%s5 + $0x4] sm:$0xf]
  %v488 = vld [vmem:[%s5 + $0x8] sm:$0xf]
  %v489 = vld [vmem:[%s5 + $0xc] sm:$0xf]
  %v490 = vld [vmem:[%s5 + $0x10] sm:$0xf]
  %v491 = vld [vmem:[%s5 + $0x14] sm:$0xf]
  %v492 = vld [vmem:[%s5 + $0x18] sm:$0xf]
  %v493 = vld [vmem:[%s5 + $0x1c] sm:$0xf]
  %v494 = vld [vmem:[%s6] sm:$0x1]
  %v496 = vlaneseq
  %v497 = vshrl.u32 %v496, 7
  %v498 = vsub.s32 0, %v497
  %v499 = vrot.slane %v494, %v498
  %v509 = vunpack.c.l.b16 %v486
  %v510 = vunpack.c.l.b16 %v487
  %v511 = vunpack.c.l.b16 %v488
  %v512 = vunpack.c.l.b16 %v489
  %v513 = vunpack.c.l.b16 %v490
  %v514 = vunpack.c.l.b16 %v491
  %v515 = vunpack.c.l.b16 %v492
  %v516 = vunpack.c.l.b16 %v493
  %v517 = vpack.c.b16 %v510, %v509
  %v518 = vpack.c.b16 %v512, %v511
  %v519 = vpack.c.b16 %v514, %v513
  %v520 = vpack.c.b16 %v516, %v515
  %v526 = vsel %vm438, %v485, 0
  %528 = vmatprep.subr.bf16.mxu0 0
  %529 = vmatpush1.bf16.msra.mxu0 0
  %530 = vmatprep.subr.bf16.mxu0 0
  %531 = vmatpush1.bf16.msra.mxu0 0
  %532 = vmatprep.subr.bf16.mxu0 0
  %533 = vmatpush1.bf16.msra.mxu0 0
  %534 = vmatprep.subr.bf16.mxu0 0
  %535 = vmatpush1.bf16.msra.mxu0 0
  %536 = vmatprep.subr.bf16.mxu0 0
  %537 = vmatpush1.bf16.msra.mxu0 %v520
  %538 = vmatprep.subr.bf16.mxu0 0
  %539 = vmatpush1.bf16.msra.mxu0 %v519
  %540 = vmatprep.subr.bf16.mxu0 0
  %541 = vmatpush1.bf16.msra.mxu0 %v518
  %542 = vmatprep.subr.bf16.mxu0 0
  %543 = vmatpush1.bf16.msra.mxu0 %v517
  %544 = vmatprep.subr.bf16.mxu0 0
  %545 = vmatpush2.bf16.msra.mxu0 0
  %546 = vmatprep.subr.bf16.mxu0 0
  %547 = vmatpush2.bf16.msra.mxu0 0
  %548 = vmatprep.subr.bf16.mxu0 0
  %549 = vmatpush2.bf16.msra.mxu0 0
  %550 = vmatprep.subr.bf16.mxu0 0
  %551 = vmatpush2.bf16.msra.mxu0 0
  %552 = vmatprep.subr.bf16.mxu0 0
  %553 = vmatpush2.bf16.msra.mxu0 0
  %554 = vmatprep.subr.bf16.mxu0 0
  %555 = vmatpush2.bf16.msra.mxu0 0
  %556 = vmatprep.subr.bf16.mxu0 0
  %557 = vmatpush2.bf16.msra.mxu0 0
  %558 = vmatprep.subr.bf16.mxu0 0
  %559 = vmatpush2.bf16.msra.mxu0 0
  %560 = vmatprep.mubr.bf16.mxu0 0
  %561 = vmatmul.mubr.bf16.gmra.mxu0 %v526
  %v562 = vpop.f32.mrf.mxu0
  %v563 = vadd.f32 %v499, %v562
  %v564 = vpop.f32.mrf.mxu0
  %v565 = vpop.f32.mrf.mxu0
  %v566 = vadd.f32 %v499, %v565
  %v567 = vpop.f32.mrf.mxu0
  %568 = vdwg.mxu0
  %v569 = vlaneseq
  %v570 = vand.u32 %v569, 127
  %vm571 = vcmp.ge.s32.totalorder %v570, 36
  %vm572 = vcmp.lt.s32.totalorder %v570, 40
  %vm573 = vmand %vm571, %vm572
  %v574 = vsel %vm573, %v563, -1e+30
  %v575 = vsel %vm573, %v566, -1e+30
  %576 = vmax.xlane.f32.xlu0 %v574
  %v577 = vpop.xlane.xlu0 %576
  %578 = vmax.xlane.f32.xlu0 %v575
  %v579 = vpop.xlane.xlu0 %578
  %v580 = vsub.f32 %v563, %v577
  %v581 = vsub.f32 %v566, %v579
  %v582 = vsel %vm573, %v580, -1e+30
  %v583 = vsel %vm573, %v581, -1e+30
  %v584 = vmul.f32 %v582, 1.442695
  %v585 = vpow.pop %v584
  %v586 = vmul.f32 %v583, 1.442695
  %v587 = vpow.pop %v586
  %588 = vadd.xlane.f32.xlu0 %v585
  %v589 = vpop.xlane.xlu0 %588
  %590 = vadd.xlane.f32.xlu0 %v587
  %v591 = vpop.xlane.xlu0 %590
  %v592 = vrcp.pop %v589
  %v593 = vrcp.pop %v591
  %v594 = vmul.f32 %v585, %v592
  %v595 = vmul.f32 %v587, %v593
  %v596 = vsel %vm573, %v594, %v563
  %v597 = vsel %vm573, %v595, %v566
  %598 = vst [vmem:[%s7] sm:$0xff] %v596
  %599 = vst [vmem:[%s7 + $0x8] sm:$0xff] %v597
  // Predicated region
  $region30: #{faster_rcnn_forward.5} parent=0 // pred_check
    _
  $region31: #{faster_rcnn_forward.5} parent=0 // pred_check_branch
    %601 = sbr.rel (0) target = $region33
  $region32: #{faster_rcnn_forward.5} parent=0 // pred_region
    _
  $region33: #{faster_rcnn_forward.5} parent=0 // pred_fallthru
    _
  // Predicated region
  $region34: #{faster_rcnn_forward.5} parent=0 // pred_check
    _
  $region35: #{faster_rcnn_forward.5} parent=0 // pred_check_branch
    %603 = sbr.rel (0) target = $region37
  $region36: #{faster_rcnn_forward.5} parent=0 // pred_region
    _
  $region37: #{faster_rcnn_forward.5} parent=0 // pred_fallthru
    _

</llo_original>
